<compile_context>
chip_gen: v6e
topology: v6e:2x2x1
jax: 0.10.0
libtpu: 0.0.40
codegen_flags: <defaults>
</compile_context>

<pallas_src>
import functools

import jax
import jax.numpy as jnp
from jax.experimental import pallas as pl
from jax.experimental.pallas import tpu as pltpu


# --------------------------------- kernels ----------------------------------


def _conv3x3_im2col(read_tap, w_ref, patch_ref, Ho, Wo, C):
    """9-tap im2col into a VMEM scratch, then ONE bf16 MXU matmul (K = 9*C)."""
    for k in range(9):
        kh, kw = divmod(k, 3)
        patch_ref[:, pl.ds(k * C, C)] = (
            read_tap(kh, kw).reshape(Ho * Wo, C).astype(patch_ref.dtype))
    return jnp.dot(patch_ref[...].astype(jnp.bfloat16), w_ref[...],
                   preferred_element_type=jnp.float32)


def _write_stats(st_ref, vals):
    # vals: (M, C) f32 conv output of this image; row 0 = sum, row 1 = sum sq.
    st_ref[0, pl.ds(0, 1), :] = jnp.sum(vals, axis=0, keepdims=True)
    st_ref[0, pl.ds(1, 1), :] = jnp.sum(vals * vals, axis=0, keepdims=True)


def _conv1_body(x_ref, w1_ref, y1_ref, st1_ref, xp_ref, patch_ref, *, Ho, Wo,
                stride, wsc_ref=None, ysc_ref=None, stsc_ref=None):
    _, H, W, Cin = x_ref.shape
    # Zero-pad inside VMEM: no padded-copy HBM round trip in the wrapper.
    xp_ref[...] = jnp.zeros_like(xp_ref)
    xp_ref[pl.ds(1, H), pl.ds(1, W), :] = x_ref[0].astype(xp_ref.dtype)

    def read_tap(kh, kw):
        if stride == 1:
            return xp_ref[pl.ds(kh, Ho), pl.ds(kw, Wo), :]
        # TODO(synk): stride>1 uses strided VMEM reads; a wrapper-side phase
        # split would keep these loads contiguous (demo exercises stride=1).
        return xp_ref[pl.ds(kh, Ho, stride=stride),
                      pl.ds(kw, Wo, stride=stride), :]

    y1 = _conv3x3_im2col(read_tap, w1_ref, patch_ref, Ho, Wo, Cin)
    y1_ref[0] = y1
    _write_stats(st1_ref, y1)

    if wsc_ref is not None:
        # 1x1 projection shortcut: its input is exactly the centre tap
        # (kh = kw = 1) of the already stride-handled im2col patch -> reuse it.
        xc = patch_ref[:, pl.ds(4 * Cin, Cin)].astype(jnp.bfloat16)
        ysc = jnp.dot(xc, wsc_ref[...], preferred_element_type=jnp.float32)
        ysc_ref[0] = ysc
        _write_stats(stsc_ref, ysc)


def _make_conv1_kernel(Ho, Wo, stride, projection):
    if projection:
        def kernel(x_ref, w1_ref, wsc_ref, y1_ref, ysc_ref, st1_ref, stsc_ref,
                   xp_ref, patch_ref):
            _conv1_body(x_ref, w1_ref, y1_ref, st1_ref, xp_ref, patch_ref,
                        Ho=Ho, Wo=Wo, stride=stride,
                        wsc_ref=wsc_ref, ysc_ref=ysc_ref, stsc_ref=stsc_ref)
    else:
        def kernel(x_ref, w1_ref, y1_ref, st1_ref, xp_ref, patch_ref):
            _conv1_body(x_ref, w1_ref, y1_ref, st1_ref, xp_ref, patch_ref,
                        Ho=Ho, Wo=Wo, stride=stride)
    return kernel


def _conv2_kernel(y1_ref, w2_ref, sc1_ref, sh1_ref, y2_ref, st2_ref,
                  a_ref, patch_ref, *, Ho, Wo):
    Cout = y1_ref.shape[-1]
    # bn1 affine + ReLU written into the interior of a zeroed halo buffer, so
    # conv2's zero padding is applied to the *activation* (as PyTorch does).
    a_ref[...] = jnp.zeros_like(a_ref)
    a = jnp.maximum(y1_ref[0] * sc1_ref[...] + sh1_ref[...], 0.0)
    a_ref[pl.ds(1, Ho), pl.ds(1, Wo), :] = a.reshape(Ho, Wo, Cout)

    def read_tap(kh, kw):
        return a_ref[pl.ds(kh, Ho), pl.ds(kw, Wo), :]

    y2 = _conv3x3_im2col(read_tap, w2_ref, patch_ref, Ho, Wo, Cout)
    y2_ref[0] = y2
    _write_stats(st2_ref, y2)


def _fuse_kernel_proj(y2_ref, ysc_ref, s2_ref, t2_ref, ssc_ref, tsc_ref, o_ref):
    # bn2 + ReLU; nn.Dropout2d(p=0.0) is the identity.
    # TODO(synk): training-mode Dropout2d with p > 0 (per-channel masking) not implemented.
    out = jnp.maximum(y2_ref[...] * s2_ref[...] + t2_ref[...], 0.0)
    sc = ysc_ref[...] * ssc_ref[...] + tsc_ref[...]
    o_ref[...] = jnp.maximum(out + sc, 0.0).astype(o_ref.dtype)


def _fuse_kernel_identity(y2_ref, x_ref, s2_ref, t2_ref, o_ref):
    out = jnp.maximum(y2_ref[...] * s2_ref[...] + t2_ref[...], 0.0)
    o_ref[...] = jnp.maximum(out + x_ref[...], 0.0).astype(o_ref.dtype)


# --------------------------------- wrapper ----------------------------------


def _bn_scale_shift(stats, gamma, beta, cnt, eps):
    # Global (over N,H,W) training-mode BatchNorm stats from per-image partials.
    s = jnp.sum(stats[:, 0, :], axis=0)
    ss = jnp.sum(stats[:, 1, :], axis=0)
    mean = s / cnt
    var = jnp.maximum(ss / cnt - mean * mean, 0.0)     # biased batch variance
    scale = gamma * jax.lax.rsqrt(var + eps)
    return scale, beta - mean * scale


def _full_spec(shape):
    nd = len(shape)
    return pl.BlockSpec(shape, lambda *_: (0,) * nd)


def _per_image_spec(shape):
    nd = len(shape)
    return pl.BlockSpec((1,) + tuple(shape[1:]),
                        lambda i: (i,) + (0,) * (nd - 1))


@functools.partial(jax.jit, static_argnames=("stride", "eps"))
def residual_block(x_nchw, params, *, stride=1, eps=1e-5):
    """Pallas TPU implementation of ResidualBlock.forward (input/output NCHW)."""
    N, Cin, H, W = x_nchw.shape
    Cout = params["w1"].shape[0]
    projection = (stride != 1) or (Cin != Cout)
    Ho = (H - 1) // stride + 1
    Wo = (W - 1) // stride + 1
    cnt = float(N * Ho * Wo)
    dt = x_nchw.dtype

    x_nhwc = jnp.transpose(x_nchw, (0, 2, 3, 1))

    # im2col weight layout: row index = (kh*3 + kw)*C + c, matching the patch.
    w1i = jnp.transpose(params["w1"], (2, 3, 1, 0)).reshape(9 * Cin, Cout)
    w1i = w1i.astype(jnp.bfloat16)
    w2i = jnp.transpose(params["w2"], (2, 3, 1, 0)).reshape(9 * Cout, Cout)
    w2i = w2i.astype(jnp.bfloat16)

    cparams = pltpu.CompilerParams(dimension_semantics=("parallel",),
                                   vmem_limit_bytes=32 * 1024 * 1024)

    # --------- pass 1: conv1 (+ projection conv) + per-image BN partials -----
    y_shape = jax.ShapeDtypeStruct((N, Ho * Wo, Cout), jnp.float32)
    st_shape = jax.ShapeDtypeStruct((N, 2, Cout), jnp.float32)
    y_spec = _per_image_spec((N, Ho * Wo, Cout))
    st_spec = _per_image_spec((N, 2, Cout))

    conv1_scratch = [pltpu.VMEM((H + 2, W + 2, Cin), jnp.float32),
                     pltpu.VMEM((Ho * Wo, 9 * Cin), jnp.float32)]

    flops1 = 2 * N * Ho * Wo * (9 * Cin) * Cout
    bytes1 = 4 * x_nhwc.size + 2 * w1i.size + 4 * (N * Ho * Wo * Cout + N * 2 * Cout)
    if projection:
        wsc = jnp.transpose(params["wsc"][:, :, 0, 0], (1, 0)).astype(jnp.bfloat16)
        flops1 += 2 * N * Ho * Wo * Cin * Cout
        bytes1 += 2 * wsc.size + 4 * (N * Ho * Wo * Cout + N * 2 * Cout)
        y1, ysc, st1, stsc = pl.pallas_call(
            _make_conv1_kernel(Ho, Wo, stride, True),
            grid=(N,),
            in_specs=[_per_image_spec(x_nhwc.shape), _full_spec(w1i.shape),
                      _full_spec(wsc.shape)],
            out_specs=(y_spec, y_spec, st_spec, st_spec),
            out_shape=(y_shape, y_shape, st_shape, st_shape),
            scratch_shapes=conv1_scratch,
            compiler_params=cparams,
            cost_estimate=pl.CostEstimate(flops=flops1, transcendentals=0,
                                          bytes_accessed=bytes1),
        )(x_nhwc, w1i, wsc)
    else:
        y1, st1 = pl.pallas_call(
            _make_conv1_kernel(Ho, Wo, stride, False),
            grid=(N,),
            in_specs=[_per_image_spec(x_nhwc.shape), _full_spec(w1i.shape)],
            out_specs=(y_spec, st_spec),
            out_shape=(y_shape, st_shape),
            scratch_shapes=conv1_scratch,
            compiler_params=cparams,
            cost_estimate=pl.CostEstimate(flops=flops1, transcendentals=0,
                                          bytes_accessed=bytes1),
        )(x_nhwc, w1i)

    scale1, shift1 = _bn_scale_shift(st1, params["g1"], params["b1"], cnt, eps)

    # --------- pass 2: bn1 + ReLU + conv2 + per-image BN2 partials -----------
    flops2 = 2 * N * Ho * Wo * (9 * Cout) * Cout
    bytes2 = 4 * y1.size + 2 * w2i.size + 4 * (N * Ho * Wo * Cout + N * 2 * Cout)
    y2, st2 = pl.pallas_call(
        functools.partial(_conv2_kernel, Ho=Ho, Wo=Wo),
        grid=(N,),
        in_specs=[_per_image_spec(y1.shape), _full_spec(w2i.shape),
                  _full_spec((1, Cout)), _full_spec((1, Cout))],
        out_specs=(y_spec, st_spec),
        out_shape=(y_shape, st_shape),
        scratch_shapes=[pltpu.VMEM((Ho + 2, Wo + 2, Cout), jnp.float32),
                        pltpu.VMEM((Ho * Wo, 9 * Cout), jnp.float32)],
        compiler_params=cparams,
        cost_estimate=pl.CostEstimate(flops=flops2, transcendentals=0,
                                      bytes_accessed=bytes2),
    )(y1, w2i, scale1.reshape(1, Cout).astype(jnp.float32),
      shift1.reshape(1, Cout).astype(jnp.float32))

    scale2, shift2 = _bn_scale_shift(st2, params["g2"], params["b2"], cnt, eps)

    # --------- pass 3: lane-dense bn2 + ReLU + shortcut + add + ReLU ---------
    lanes = Wo * Cout
    y2d = y2.reshape(N, Ho, lanes)
    s2d = jnp.tile(scale2, Wo).reshape(1, lanes).astype(jnp.float32)
    t2d = jnp.tile(shift2, Wo).reshape(1, lanes).astype(jnp.float32)
    out_shape3 = jax.ShapeDtypeStruct((N, Ho, lanes), dt)
    out_spec3 = _per_image_spec((N, Ho, lanes))

    if projection:
        ssc, tsc = _bn_scale_shift(stsc, params["gsc"], params["bsc"], cnt, eps)
        yscd = ysc.reshape(N, Ho, lanes)
        sscd = jnp.tile(ssc, Wo).reshape(1, lanes).astype(jnp.float32)
        tscd = jnp.tile(tsc, Wo).reshape(1, lanes).astype(jnp.float32)
        out_d = pl.pallas_call(
            _fuse_kernel_proj,
            grid=(N,),
            in_specs=[_per_image_spec(y2d.shape), _per_image_spec(yscd.shape),
                      _full_spec(s2d.shape), _full_spec(t2d.shape),
                      _full_spec(sscd.shape), _full_spec(tscd.shape)],
            out_specs=out_spec3,
            out_shape=out_shape3,
            compiler_params=cparams,
        )(y2d, yscd, s2d, t2d, sscd, tscd)
    else:
        # identity shortcut (stride == 1 and Cin == Cout)
        xd = x_nhwc.reshape(N, H, W * Cin)
        out_d = pl.pallas_call(
            _fuse_kernel_identity,
            grid=(N,),
            in_specs=[_per_image_spec(y2d.shape), _per_image_spec(xd.shape),
                      _full_spec(s2d.shape), _full_spec(t2d.shape)],
            out_specs=out_spec3,
            out_shape=out_shape3,
            compiler_params=cparams,
        )(y2d, xd, s2d, t2d)

    return jnp.transpose(out_d.reshape(N, Ho, Wo, Cout), (0, 3, 1, 2))


# ------------------------------ test utilities ------------------------------


def init_params(key, in_channels, out_channels, projection):
    ks = jax.random.split(key, 9)
    p = {
        "w1": 0.2 * jax.random.normal(ks[0], (out_channels, in_channels, 3, 3), jnp.float32),
        "g1": 1.0 + 0.1 * jax.random.normal(ks[1], (out_channels,), jnp.float32),
        "b1": 0.1 * jax.random.normal(ks[2], (out_channels,), jnp.float32),
        "w2": 0.2 * jax.random.normal(ks[3], (out_channels, out_channels, 3, 3), jnp.float32),
        "g2": 1.0 + 0.1 * jax.random.normal(ks[4], (out_channels,), jnp.float32),
        "b2": 0.1 * jax.random.normal(ks[5], (out_channels,), jnp.float32),
    }
    if projection:
        p["wsc"] = 0.2 * jax.random.normal(ks[6], (out_channels, in_channels, 1, 1), jnp.float32)
        p["gsc"] = 1.0 + 0.1 * jax.random.normal(ks[7], (out_channels,), jnp.float32)
        p["bsc"] = 0.1 * jax.random.normal(ks[8], (out_channels,), jnp.float32)
    return p


def reference_residual_block(x, p, *, stride=1, eps=1e-5):
    """Pure-JAX (XLA, full f32) reference mirroring the PyTorch forward in NCHW."""
    dn = ("NCHW", "OIHW", "NCHW")
    hi = jax.lax.Precision.HIGHEST

    def conv(y, w, s, pad):
        return jax.lax.conv_general_dilated(
            y, w, window_strides=(s, s), padding=((pad, pad), (pad, pad)),
            dimension_numbers=dn, precision=hi)

    def bn(y, g, b):
        mean = jnp.mean(y, axis=(0, 2, 3), keepdims=True)
        var = jnp.mean((y - mean) ** 2, axis=(0, 2, 3), keepdims=True)
        return (y - mean) * jax.lax.rsqrt(var + eps) * g.reshape(1, -1, 1, 1) \
            + b.reshape(1, -1, 1, 1)

    out = jax.nn.relu(bn(conv(x, p["w1"], stride, 1), p["g1"], p["b1"]))
    out = jax.nn.relu(bn(conv(out, p["w2"], 1, 1), p["g2"], p["b2"]))
    if "wsc" in p:
        sc = bn(conv(x, p["wsc"], stride, 0), p["gsc"], p["bsc"])
    else:
        sc = x
    return jax.nn.relu(out + sc)


if __name__ == "__main__":
    key = jax.random.PRNGKey(0)
    k1, k2, k3, k4 = jax.random.split(key, 4)

    # Kernel matmuls use bf16 operands with f32 accumulation (native MXU path),
    # so compare against the full-f32 reference with a bf16-appropriate tolerance.
    TOL = 2e-2

    # Config 1: Cin != Cout -> projection (1x1 conv + BN) shortcut.
    x = jax.random.normal(k1, (2, 4, 16, 16), jnp.float32)
    params = init_params(k2, 4, 8, projection=True)
    out = jax.block_until_ready(residual_block(x, params, stride=1))
    ref = reference_residual_block(x, params, stride=1)
    assert out.shape == ref.shape, (out.shape, ref.shape)
    err = float(jnp.max(jnp.abs(out - ref)))
    assert jnp.allclose(out, ref, atol=TOL, rtol=TOL), f"projection path max|err|={err}"

    # Config 2: Cin == Cout, stride=1 -> identity shortcut.
    x2 = jax.random.normal(k3, (2, 8, 16, 16), jnp.float32)
    params2 = init_params(k4, 8, 8, projection=False)
    out2 = jax.block_until_ready(residual_block(x2, params2, stride=1))
    ref2 = reference_residual_block(x2, params2, stride=1)
    assert out2.shape == ref2.shape, (out2.shape, ref2.shape)
    err2 = float(jnp.max(jnp.abs(out2 - ref2)))
    assert jnp.allclose(out2, ref2, atol=TOL, rtol=TOL), f"identity path max|err|={err2}"

    print("KERNEL_OK")
</pallas_src>

<mosaic_0001>
module attributes {stable_mosaic.version = 11 : i64} {
  func.func @kernel(%arg0: i32, %arg1: memref<1x16x16x4xf32, #tpu.memory_space<vmem>>, %arg2: memref<36x8xbf16, #tpu.memory_space<vmem>>, %arg3: memref<4x8xbf16, #tpu.memory_space<vmem>>, %arg4: memref<1x256x8xf32, #tpu.memory_space<vmem>>, %arg5: memref<1x256x8xf32, #tpu.memory_space<vmem>>, %arg6: memref<1x2x8xf32, #tpu.memory_space<vmem>>, %arg7: memref<1x2x8xf32, #tpu.memory_space<vmem>>, %arg8: memref<18x18x4xf32, #tpu.memory_space<vmem>>, %arg9: memref<256x36xf32, #tpu.memory_space<vmem>>) attributes {dimension_semantics = [#tpu.dimension_semantics<parallel>], iteration_bounds = array<i64: 2>, scalar_prefetch = 0 : i64, scratch_operands = 2 : i64, tpu.core_type = #tpu.core_type<tc>, window_params = [{transform_indices = @transform_0, window_bounds = array<i64: 1, 16, 16, 4>}, {pipeline_mode = #tpu.pipeline_mode<synchronous>, transform_indices = @transform_1, window_bounds = array<i64: 36, 8>}, {pipeline_mode = #tpu.pipeline_mode<synchronous>, transform_indices = @transform_2, window_bounds = array<i64: 4, 8>}, {transform_indices = @transform_3, window_bounds = array<i64: 1, 256, 8>}, {transform_indices = @transform_4, window_bounds = array<i64: 1, 256, 8>}, {transform_indices = @transform_5, window_bounds = array<i64: 1, 2, 8>}, {transform_indices = @transform_6, window_bounds = array<i64: 1, 2, 8>}]} {
    %cst = arith.constant 0.000000e+00 : f32
    %0 = vector.broadcast %cst : f32 to vector<18x18x4xf32>
    %c0 = arith.constant 0 : index
    %c0_0 = arith.constant 0 : index
    %c0_1 = arith.constant 0 : index
    %1 = vector.load %arg8[%c0, %c0_0, %c0_1] : memref<18x18x4xf32, #tpu.memory_space<vmem>>, vector<18x18x4xf32>
    tpu.vector_store %arg8[%c0, %c0_0, %c0_1], %0 {strides = array<i32>} : memref<18x18x4xf32, #tpu.memory_space<vmem>>, vector<18x18x4xf32>,
    %c0_2 = arith.constant 0 : index
    %c0_3 = arith.constant 0 : index
    %c0_4 = arith.constant 0 : index
    %c0_5 = arith.constant 0 : index
    %2 = vector.load %arg1[%c0_2, %c0_3, %c0_4, %c0_5] : memref<1x16x16x4xf32, #tpu.memory_space<vmem>>, vector<1x16x16x4xf32>
    %3 = vector.shape_cast %2 : vector<1x16x16x4xf32> to vector<16x16x4xf32>
    %c1 = arith.constant 1 : index
    %c1_6 = arith.constant 1 : index
    %c0_7 = arith.constant 0 : index
    %4 = vector.load %arg8[%c1, %c1_6, %c0_7] : memref<18x18x4xf32, #tpu.memory_space<vmem>>, vector<16x16x4xf32>
    tpu.vector_store %arg8[%c1, %c1_6, %c0_7], %3 {strides = array<i32>} : memref<18x18x4xf32, #tpu.memory_space<vmem>>, vector<16x16x4xf32>,
    %c0_8 = arith.constant 0 : index
    %c0_9 = arith.constant 0 : index
    %c0_10 = arith.constant 0 : index
    %5 = vector.load %arg8[%c0_8, %c0_9, %c0_10] : memref<18x18x4xf32, #tpu.memory_space<vmem>>, vector<16x16x4xf32>
    %6 = vector.shape_cast %5 : vector<16x16x4xf32> to vector<256x4xf32>
    %c0_11 = arith.constant 0 : index
    %c0_12 = arith.constant 0 : index
    %7 = vector.load %arg9[%c0_11, %c0_12] : memref<256x36xf32, #tpu.memory_space<vmem>>, vector<256x4xf32>
    tpu.vector_store %arg9[%c0_11, %c0_12], %6 {strides = array<i32>} : memref<256x36xf32, #tpu.memory_space<vmem>>, vector<256x4xf32>,
    %c0_13 = arith.constant 0 : index
    %c1_14 = arith.constant 1 : index
    %c0_15 = arith.constant 0 : index
    %8 = vector.load %arg8[%c0_13, %c1_14, %c0_15] : memref<18x18x4xf32, #tpu.memory_space<vmem>>, vector<16x16x4xf32>
    %9 = vector.shape_cast %8 : vector<16x16x4xf32> to vector<256x4xf32>
    %c0_16 = arith.constant 0 : index
    %c4 = arith.constant 4 : index
    %10 = vector.load %arg9[%c0_16, %c4] : memref<256x36xf32, #tpu.memory_space<vmem>>, vector<256x4xf32>
    tpu.vector_store %arg9[%c0_16, %c4], %9 {strides = array<i32>} : memref<256x36xf32, #tpu.memory_space<vmem>>, vector<256x4xf32>,
    %c0_17 = arith.constant 0 : index
    %c2 = arith.constant 2 : index
    %c0_18 = arith.constant 0 : index
    %11 = vector.load %arg8[%c0_17, %c2, %c0_18] : memref<18x18x4xf32, #tpu.memory_space<vmem>>, vector<16x16x4xf32>
    %12 = vector.shape_cast %11 : vector<16x16x4xf32> to vector<256x4xf32>
    %c0_19 = arith.constant 0 : index
    %c8 = arith.constant 8 : index
    %13 = vector.load %arg9[%c0_19, %c8] : memref<256x36xf32, #tpu.memory_space<vmem>>, vector<256x4xf32>
    tpu.vector_store %arg9[%c0_19, %c8], %12 {strides = array<i32>} : memref<256x36xf32, #tpu.memory_space<vmem>>, vector<256x4xf32>,
    %c1_20 = arith.constant 1 : index
    %c0_21 = arith.constant 0 : index
    %c0_22 = arith.constant 0 : index
    %14 = vector.load %arg8[%c1_20, %c0_21, %c0_22] : memref<18x18x4xf32, #tpu.memory_space<vmem>>, vector<16x16x4xf32>
    %15 = vector.shape_cast %14 : vector<16x16x4xf32> to vector<256x4xf32>
    %c0_23 = arith.constant 0 : index
    %c12 = arith.constant 12 : index
    %16 = vector.load %arg9[%c0_23, %c12] : memref<256x36xf32, #tpu.memory_space<vmem>>, vector<256x4xf32>
    tpu.vector_store %arg9[%c0_23, %c12], %15 {strides = array<i32>} : memref<256x36xf32, #tpu.memory_space<vmem>>, vector<256x4xf32>,
    %c1_24 = arith.constant 1 : index
    %c1_25 = arith.constant 1 : index
    %c0_26 = arith.constant 0 : index
    %17 = vector.load %arg8[%c1_24, %c1_25, %c0_26] : memref<18x18x4xf32, #tpu.memory_space<vmem>>, vector<16x16x4xf32>
    %18 = vector.shape_cast %17 : vector<16x16x4xf32> to vector<256x4xf32>
    %c0_27 = arith.constant 0 : index
    %c16 = arith.constant 16 : index
    %19 = vector.load %arg9[%c0_27, %c16] : memref<256x36xf32, #tpu.memory_space<vmem>>, vector<256x4xf32>
    tpu.vector_store %arg9[%c0_27, %c16], %18 {strides = array<i32>} : memref<256x36xf32, #tpu.memory_space<vmem>>, vector<256x4xf32>,
    %c1_28 = arith.constant 1 : index
    %c2_29 = arith.constant 2 : index
    %c0_30 = arith.constant 0 : index
    %20 = vector.load %arg8[%c1_28, %c2_29, %c0_30] : memref<18x18x4xf32, #tpu.memory_space<vmem>>, vector<16x16x4xf32>
    %21 = vector.shape_cast %20 : vector<16x16x4xf32> to vector<256x4xf32>
    %c0_31 = arith.constant 0 : index
    %c20 = arith.constant 20 : index
    %22 = vector.load %arg9[%c0_31, %c20] : memref<256x36xf32, #tpu.memory_space<vmem>>, vector<256x4xf32>
    tpu.vector_store %arg9[%c0_31, %c20], %21 {strides = array<i32>} : memref<256x36xf32, #tpu.memory_space<vmem>>, vector<256x4xf32>,
    %c2_32 = arith.constant 2 : index
    %c0_33 = arith.constant 0 : index
    %c0_34 = arith.constant 0 : index
    %23 = vector.load %arg8[%c2_32, %c0_33, %c0_34] : memref<18x18x4xf32, #tpu.memory_space<vmem>>, vector<16x16x4xf32>
    %24 = vector.shape_cast %23 : vector<16x16x4xf32> to vector<256x4xf32>
    %c0_35 = arith.constant 0 : index
    %c24 = arith.constant 24 : index
    %25 = vector.load %arg9[%c0_35, %c24] : memref<256x36xf32, #tpu.memory_space<vmem>>, vector<256x4xf32>
    tpu.vector_store %arg9[%c0_35, %c24], %24 {strides = array<i32>} : memref<256x36xf32, #tpu.memory_space<vmem>>, vector<256x4xf32>,
    %c2_36 = arith.constant 2 : index
    %c1_37 = arith.constant 1 : index
    %c0_38 = arith.constant 0 : index
    %26 = vector.load %arg8[%c2_36, %c1_37, %c0_38] : memref<18x18x4xf32, #tpu.memory_space<vmem>>, vector<16x16x4xf32>
    %27 = vector.shape_cast %26 : vector<16x16x4xf32> to vector<256x4xf32>
    %c0_39 = arith.constant 0 : index
    %c28 = arith.constant 28 : index
    %28 = vector.load %arg9[%c0_39, %c28] : memref<256x36xf32, #tpu.memory_space<vmem>>, vector<256x4xf32>
    tpu.vector_store %arg9[%c0_39, %c28], %27 {strides = array<i32>} : memref<256x36xf32, #tpu.memory_space<vmem>>, vector<256x4xf32>,
    %c2_40 = arith.constant 2 : index
    %c2_41 = arith.constant 2 : index
    %c0_42 = arith.constant 0 : index
    %29 = vector.load %arg8[%c2_40, %c2_41, %c0_42] : memref<18x18x4xf32, #tpu.memory_space<vmem>>, vector<16x16x4xf32>
    %30 = vector.shape_cast %29 : vector<16x16x4xf32> to vector<256x4xf32>
    %c0_43 = arith.constant 0 : index
    %c32 = arith.constant 32 : index
    %31 = vector.load %arg9[%c0_43, %c32] : memref<256x36xf32, #tpu.memory_space<vmem>>, vector<256x4xf32>
    tpu.vector_store %arg9[%c0_43, %c32], %30 {strides = array<i32>} : memref<256x36xf32, #tpu.memory_space<vmem>>, vector<256x4xf32>,
    %c0_44 = arith.constant 0 : index
    %c0_45 = arith.constant 0 : index
    %32 = vector.load %arg9[%c0_44, %c0_45] : memref<256x36xf32, #tpu.memory_space<vmem>>, vector<256x36xf32>
    %33 = arith.truncf %32 : vector<256x36xf32> to vector<256x36xbf16>
    %c0_46 = arith.constant 0 : index
    %c0_47 = arith.constant 0 : index
    %34 = vector.load %arg2[%c0_46, %c0_47] : memref<36x8xbf16, #tpu.memory_space<vmem>>, vector<36x8xbf16>
    %cst_48 = arith.constant dense<0.000000e+00> : vector<256x8xf32>
    %35 = tpu.matmul %33, %34, %cst_48 {dimension_numbers = #tpu.dot_dimension_numbers<[1], [0], [0], [1], [0, 0, 1, 1], [], []>} : vector<256x36xbf16>, vector<36x8xbf16>, vector<256x8xf32> -> vector<256x8xf32>
    %c0_49 = arith.constant 0 : index
    %c0_50 = arith.constant 0 : index
    %c0_51 = arith.constant 0 : index
    %36 = vector.load %arg4[%c0_49, %c0_50, %c0_51] : memref<1x256x8xf32, #tpu.memory_space<vmem>>, vector<1x256x8xf32>
    %37 = vector.shape_cast %36 : vector<1x256x8xf32> to vector<256x8xf32>
    %38 = vector.shape_cast %35 : vector<256x8xf32> to vector<1x256x8xf32>
    tpu.vector_store %arg4[%c0_49, %c0_50, %c0_51], %38 {strides = array<i32>} : memref<1x256x8xf32, #tpu.memory_space<vmem>>, vector<1x256x8xf32>,
    %cst_52 = arith.constant dense<0.000000e+00> : vector<8xf32>
    %39 = vector.multi_reduction <add>, %35, %cst_52 [0] : vector<256x8xf32> to vector<8xf32>
    %40 = vector.shape_cast %39 : vector<8xf32> to vector<1x8xf32>
    %c0_53 = arith.constant 0 : index
    %c0_54 = arith.constant 0 : index
    %c0_55 = arith.constant 0 : index
    %41 = vector.load %arg6[%c0_53, %c0_54, %c0_55] : memref<1x2x8xf32, #tpu.memory_space<vmem>>, vector<1x1x8xf32>
    %42 = vector.shape_cast %41 : vector<1x1x8xf32> to vector<1x8xf32>
    %43 = vector.shape_cast %40 : vector<1x8xf32> to vector<1x1x8xf32>
    tpu.vector_store %arg6[%c0_53, %c0_54, %c0_55], %43 {strides = array<i32>} : memref<1x2x8xf32, #tpu.memory_space<vmem>>, vector<1x1x8xf32>,
    %44 = arith.mulf %35, %35 : vector<256x8xf32>
    %cst_56 = arith.constant dense<0.000000e+00> : vector<8xf32>
    %45 = vector.multi_reduction <add>, %44, %cst_56 [0] : vector<256x8xf32> to vector<8xf32>
    %46 = vector.shape_cast %45 : vector<8xf32> to vector<1x8xf32>
    %c0_57 = arith.constant 0 : index
    %c1_58 = arith.constant 1 : index
    %c0_59 = arith.constant 0 : index
    %47 = vector.load %arg6[%c0_57, %c1_58, %c0_59] : memref<1x2x8xf32, #tpu.memory_space<vmem>>, vector<1x1x8xf32>
    %48 = vector.shape_cast %47 : vector<1x1x8xf32> to vector<1x8xf32>
    %49 = vector.shape_cast %46 : vector<1x8xf32> to vector<1x1x8xf32>
    tpu.vector_store %arg6[%c0_57, %c1_58, %c0_59], %49 {strides = array<i32>} : memref<1x2x8xf32, #tpu.memory_space<vmem>>, vector<1x1x8xf32>,
    %c0_60 = arith.constant 0 : index
    %c16_61 = arith.constant 16 : index
    %50 = vector.load %arg9[%c0_60, %c16_61] : memref<256x36xf32, #tpu.memory_space<vmem>>, vector<256x4xf32>
    %51 = arith.truncf %50 : vector<256x4xf32> to vector<256x4xbf16>
    %c0_62 = arith.constant 0 : index
    %c0_63 = arith.constant 0 : index
    %52 = vector.load %arg3[%c0_62, %c0_63] : memref<4x8xbf16, #tpu.memory_space<vmem>>, vector<4x8xbf16>
    %cst_64 = arith.constant dense<0.000000e+00> : vector<256x8xf32>
    %53 = tpu.matmul %51, %52, %cst_64 {dimension_numbers = #tpu.dot_dimension_numbers<[1], [0], [0], [1], [0, 0, 1, 1], [], []>} : vector<256x4xbf16>, vector<4x8xbf16>, vector<256x8xf32> -> vector<256x8xf32>
    %c0_65 = arith.constant 0 : index
    %c0_66 = arith.constant 0 : index
    %c0_67 = arith.constant 0 : index
    %54 = vector.load %arg5[%c0_65, %c0_66, %c0_67] : memref<1x256x8xf32, #tpu.memory_space<vmem>>, vector<1x256x8xf32>
    %55 = vector.shape_cast %54 : vector<1x256x8xf32> to vector<256x8xf32>
    %56 = vector.shape_cast %53 : vector<256x8xf32> to vector<1x256x8xf32>
    tpu.vector_store %arg5[%c0_65, %c0_66, %c0_67], %56 {strides = array<i32>} : memref<1x256x8xf32, #tpu.memory_space<vmem>>, vector<1x256x8xf32>,
    %cst_68 = arith.constant dense<0.000000e+00> : vector<8xf32>
    %57 = vector.multi_reduction <add>, %53, %cst_68 [0] : vector<256x8xf32> to vector<8xf32>
    %58 = vector.shape_cast %57 : vector<8xf32> to vector<1x8xf32>
    %c0_69 = arith.constant 0 : index
    %c0_70 = arith.constant 0 : index
    %c0_71 = arith.constant 0 : index
    %59 = vector.load %arg7[%c0_69, %c0_70, %c0_71] : memref<1x2x8xf32, #tpu.memory_space<vmem>>, vector<1x1x8xf32>
    %60 = vector.shape_cast %59 : vector<1x1x8xf32> to vector<1x8xf32>
    %61 = vector.shape_cast %58 : vector<1x8xf32> to vector<1x1x8xf32>
    tpu.vector_store %arg7[%c0_69, %c0_70, %c0_71], %61 {strides = array<i32>} : memref<1x2x8xf32, #tpu.memory_space<vmem>>, vector<1x1x8xf32>,
    %62 = arith.mulf %53, %53 : vector<256x8xf32>
    %cst_72 = arith.constant dense<0.000000e+00> : vector<8xf32>
    %63 = vector.multi_reduction <add>, %62, %cst_72 [0] : vector<256x8xf32> to vector<8xf32>
    %64 = vector.shape_cast %63 : vector<8xf32> to vector<1x8xf32>
    %c0_73 = arith.constant 0 : index
    %c1_74 = arith.constant 1 : index
    %c0_75 = arith.constant 0 : index
    %65 = vector.load %arg7[%c0_73, %c1_74, %c0_75] : memref<1x2x8xf32, #tpu.memory_space<vmem>>, vector<1x1x8xf32>
    %66 = vector.shape_cast %65 : vector<1x1x8xf32> to vector<1x8xf32>
    %67 = vector.shape_cast %64 : vector<1x8xf32> to vector<1x1x8xf32>
    tpu.vector_store %arg7[%c0_73, %c1_74, %c0_75], %67 {strides = array<i32>} : memref<1x2x8xf32, #tpu.memory_space<vmem>>, vector<1x1x8xf32>,
    return
  }
  func.func @transform_0(%arg0: i32) -> (i32, i32, i32, i32) {
    %c0_i32 = arith.constant 0 : i32
    %c0_i32_0 = arith.constant 0 : i32
    %c0_i32_1 = arith.constant 0 : i32
    %c0_i32_2 = arith.constant 0 : i32
    return %arg0, %c0_i32, %c0_i32_0, %c0_i32_1 : i32, i32, i32, i32
  }
  func.func @transform_1(%arg0: i32) -> (i32, i32) {
    %c0_i32 = arith.constant 0 : i32
    %c0_i32_0 = arith.constant 0 : i32
    %c0_i32_1 = arith.constant 0 : i32
    return %c0_i32, %c0_i32_0 : i32, i32
  }
  func.func @transform_2(%arg0: i32) -> (i32, i32) {
    %c0_i32 = arith.constant 0 : i32
    %c0_i32_0 = arith.constant 0 : i32
    %c0_i32_1 = arith.constant 0 : i32
    return %c0_i32, %c0_i32_0 : i32, i32
  }
  func.func @transform_3(%arg0: i32) -> (i32, i32, i32) {
    %c0_i32 = arith.constant 0 : i32
    %c0_i32_0 = arith.constant 0 : i32
    %c0_i32_1 = arith.constant 0 : i32
    return %arg0, %c0_i32, %c0_i32_0 : i32, i32, i32
  }
  func.func @transform_4(%arg0: i32) -> (i32, i32, i32) {
    %c0_i32 = arith.constant 0 : i32
    %c0_i32_0 = arith.constant 0 : i32
    %c0_i32_1 = arith.constant 0 : i32
    return %arg0, %c0_i32, %c0_i32_0 : i32, i32, i32
  }
  func.func @transform_5(%arg0: i32) -> (i32, i32, i32) {
    %c0_i32 = arith.constant 0 : i32
    %c0_i32_0 = arith.constant 0 : i32
    %c0_i32_1 = arith.constant 0 : i32
    return %arg0, %c0_i32, %c0_i32_0 : i32, i32, i32
  }
  func.func @transform_6(%arg0: i32) -> (i32, i32, i32) {
    %c0_i32 = arith.constant 0 : i32
    %c0_i32_0 = arith.constant 0 : i32
    %c0_i32_1 = arith.constant 0 : i32
    return %arg0, %c0_i32, %c0_i32_0 : i32, i32, i32
  }
}

module attributes {stable_mosaic.version = 11 : i64} {
  func.func @_conv2_kernel(%arg0: i32, %arg1: memref<1x256x8xf32, #tpu.memory_space<vmem>>, %arg2: memref<72x8xbf16, #tpu.memory_space<vmem>>, %arg3: memref<1x8xf32, #tpu.memory_space<vmem>>, %arg4: memref<1x8xf32, #tpu.memory_space<vmem>>, %arg5: memref<1x256x8xf32, #tpu.memory_space<vmem>>, %arg6: memref<1x2x8xf32, #tpu.memory_space<vmem>>, %arg7: memref<18x18x8xf32, #tpu.memory_space<vmem>>, %arg8: memref<256x72xf32, #tpu.memory_space<vmem>>) attributes {dimension_semantics = [#tpu.dimension_semantics<parallel>], iteration_bounds = array<i64: 2>, scalar_prefetch = 0 : i64, scratch_operands = 2 : i64, tpu.core_type = #tpu.core_type<tc>, window_params = [{transform_indices = @transform_0, window_bounds = array<i64: 1, 256, 8>}, {pipeline_mode = #tpu.pipeline_mode<synchronous>, transform_indices = @transform_1, window_bounds = array<i64: 72, 8>}, {pipeline_mode = #tpu.pipeline_mode<synchronous>, transform_indices = @transform_2, window_bounds = array<i64: 1, 8>}, {pipeline_mode = #tpu.pipeline_mode<synchronous>, transform_indices = @transform_3, window_bounds = array<i64: 1, 8>}, {transform_indices = @transform_4, window_bounds = array<i64: 1, 256, 8>}, {transform_indices = @transform_5, window_bounds = array<i64: 1, 2, 8>}]} {
    %cst = arith.constant 0.000000e+00 : f32
    %0 = vector.broadcast %cst : f32 to vector<18x18x8xf32>
    %c0 = arith.constant 0 : index
    %c0_0 = arith.constant 0 : index
    %c0_1 = arith.constant 0 : index
    %1 = vector.load %arg7[%c0, %c0_0, %c0_1] : memref<18x18x8xf32, #tpu.memory_space<vmem>>, vector<18x18x8xf32>
    tpu.vector_store %arg7[%c0, %c0_0, %c0_1], %0 {strides = array<i32>} : memref<18x18x8xf32, #tpu.memory_space<vmem>>, vector<18x18x8xf32>,
    %c0_2 = arith.constant 0 : index
    %c0_3 = arith.constant 0 : index
    %c0_4 = arith.constant 0 : index
    %2 = vector.load %arg1[%c0_2, %c0_3, %c0_4] : memref<1x256x8xf32, #tpu.memory_space<vmem>>, vector<1x256x8xf32>
    %3 = vector.shape_cast %2 : vector<1x256x8xf32> to vector<256x8xf32>
    %c0_5 = arith.constant 0 : index
    %c0_6 = arith.constant 0 : index
    %4 = vector.load %arg3[%c0_5, %c0_6] : memref<1x8xf32, #tpu.memory_space<vmem>>, vector<1x8xf32>
    %5 = vector.broadcast %4 : vector<1x8xf32> to vector<256x8xf32>
    %6 = arith.mulf %3, %5 : vector<256x8xf32>
    %c0_7 = arith.constant 0 : index
    %c0_8 = arith.constant 0 : index
    %7 = vector.load %arg4[%c0_7, %c0_8] : memref<1x8xf32, #tpu.memory_space<vmem>>, vector<1x8xf32>
    %8 = vector.broadcast %7 : vector<1x8xf32> to vector<256x8xf32>
    %9 = arith.addf %6, %8 : vector<256x8xf32>
    %cst_9 = arith.constant 0.000000e+00 : f32
    %10 = vector.broadcast %cst_9 : f32 to vector<256x8xf32>
    %11 = arith.maximumf %9, %10 : vector<256x8xf32>
    %12 = vector.shape_cast %11 : vector<256x8xf32> to vector<16x16x8xf32>
    %c1 = arith.constant 1 : index
    %c1_10 = arith.constant 1 : index
    %c0_11 = arith.constant 0 : index
    %13 = vector.load %arg7[%c1, %c1_10, %c0_11] : memref<18x18x8xf32, #tpu.memory_space<vmem>>, vector<16x16x8xf32>
    tpu.vector_store %arg7[%c1, %c1_10, %c0_11], %12 {strides = array<i32>} : memref<18x18x8xf32, #tpu.memory_space<vmem>>, vector<16x16x8xf32>,
    %c0_12 = arith.constant 0 : index
    %c0_13 = arith.constant 0 : index
    %c0_14 = arith.constant 0 : index
    %14 = vector.load %arg7[%c0_12, %c0_13, %c0_14] : memref<18x18x8xf32, #tpu.memory_space<vmem>>, vector<16x16x8xf32>
    %15 = vector.shape_cast %14 : vector<16x16x8xf32> to vector<256x8xf32>
    %c0_15 = arith.constant 0 : index
    %c0_16 = arith.constant 0 : index
    %16 = vector.load %arg8[%c0_15, %c0_16] : memref<256x72xf32, #tpu.memory_space<vmem>>, vector<256x8xf32>
    tpu.vector_store %arg8[%c0_15, %c0_16], %15 {strides = array<i32>} : memref<256x72xf32, #tpu.memory_space<vmem>>, vector<256x8xf32>,
    %c0_17 = arith.constant 0 : index
    %c1_18 = arith.constant 1 : index
    %c0_19 = arith.constant 0 : index
    %17 = vector.load %arg7[%c0_17, %c1_18, %c0_19] : memref<18x18x8xf32, #tpu.memory_space<vmem>>, vector<16x16x8xf32>
    %18 = vector.shape_cast %17 : vector<16x16x8xf32> to vector<256x8xf32>
    %c0_20 = arith.constant 0 : index
    %c8 = arith.constant 8 : index
    %19 = vector.load %arg8[%c0_20, %c8] : memref<256x72xf32, #tpu.memory_space<vmem>>, vector<256x8xf32>
    tpu.vector_store %arg8[%c0_20, %c8], %18 {strides = array<i32>} : memref<256x72xf32, #tpu.memory_space<vmem>>, vector<256x8xf32>,
    %c0_21 = arith.constant 0 : index
    %c2 = arith.constant 2 : index
    %c0_22 = arith.constant 0 : index
    %20 = vector.load %arg7[%c0_21, %c2, %c0_22] : memref<18x18x8xf32, #tpu.memory_space<vmem>>, vector<16x16x8xf32>
    %21 = vector.shape_cast %20 : vector<16x16x8xf32> to vector<256x8xf32>
    %c0_23 = arith.constant 0 : index
    %c16 = arith.constant 16 : index
    %22 = vector.load %arg8[%c0_23, %c16] : memref<256x72xf32, #tpu.memory_space<vmem>>, vector<256x8xf32>
    tpu.vector_store %arg8[%c0_23, %c16], %21 {strides = array<i32>} : memref<256x72xf32, #tpu.memory_space<vmem>>, vector<256x8xf32>,
    %c1_24 = arith.constant 1 : index
    %c0_25 = arith.constant 0 : index
    %c0_26 = arith.constant 0 : index
    %23 = vector.load %arg7[%c1_24, %c0_25, %c0_26] : memref<18x18x8xf32, #tpu.memory_space<vmem>>, vector<16x16x8xf32>
    %24 = vector.shape_cast %23 : vector<16x16x8xf32> to vector<256x8xf32>
    %c0_27 = arith.constant 0 : index
    %c24 = arith.constant 24 : index
    %25 = vector.load %arg8[%c0_27, %c24] : memref<256x72xf32, #tpu.memory_space<vmem>>, vector<256x8xf32>
    tpu.vector_store %arg8[%c0_27, %c24], %24 {strides = array<i32>} : memref<256x72xf32, #tpu.memory_space<vmem>>, vector<256x8xf32>,
    %c1_28 = arith.constant 1 : index
    %c1_29 = arith.constant 1 : index
    %c0_30 = arith.constant 0 : index
    %26 = vector.load %arg7[%c1_28, %c1_29, %c0_30] : memref<18x18x8xf32, #tpu.memory_space<vmem>>, vector<16x16x8xf32>
    %27 = vector.shape_cast %26 : vector<16x16x8xf32> to vector<256x8xf32>
    %c0_31 = arith.constant 0 : index
    %c32 = arith.constant 32 : index
    %28 = vector.load %arg8[%c0_31, %c32] : memref<256x72xf32, #tpu.memory_space<vmem>>, vector<256x8xf32>
    tpu.vector_store %arg8[%c0_31, %c32], %27 {strides = array<i32>} : memref<256x72xf32, #tpu.memory_space<vmem>>, vector<256x8xf32>,
    %c1_32 = arith.constant 1 : index
    %c2_33 = arith.constant 2 : index
    %c0_34 = arith.constant 0 : index
    %29 = vector.load %arg7[%c1_32, %c2_33, %c0_34] : memref<18x18x8xf32, #tpu.memory_space<vmem>>, vector<16x16x8xf32>
    %30 = vector.shape_cast %29 : vector<16x16x8xf32> to vector<256x8xf32>
    %c0_35 = arith.constant 0 : index
    %c40 = arith.constant 40 : index
    %31 = vector.load %arg8[%c0_35, %c40] : memref<256x72xf32, #tpu.memory_space<vmem>>, vector<256x8xf32>
    tpu.vector_store %arg8[%c0_35, %c40], %30 {strides = array<i32>} : memref<256x72xf32, #tpu.memory_space<vmem>>, vector<256x8xf32>,
    %c2_36 = arith.constant 2 : index
    %c0_37 = arith.constant 0 : index
    %c0_38 = arith.constant 0 : index
    %32 = vector.load %arg7[%c2_36, %c0_37, %c0_38] : memref<18x18x8xf32, #tpu.memory_space<vmem>>, vector<16x16x8xf32>
    %33 = vector.shape_cast %32 : vector<16x16x8xf32> to vector<256x8xf32>
    %c0_39 = arith.constant 0 : index
    %c48 = arith.constant 48 : index
    %34 = vector.load %arg8[%c0_39, %c48] : memref<256x72xf32, #tpu.memory_space<vmem>>, vector<256x8xf32>
    tpu.vector_store %arg8[%c0_39, %c48], %33 {strides = array<i32>} : memref<256x72xf32, #tpu.memory_space<vmem>>, vector<256x8xf32>,
    %c2_40 = arith.constant 2 : index
    %c1_41 = arith.constant 1 : index
    %c0_42 = arith.constant 0 : index
    %35 = vector.load %arg7[%c2_40, %c1_41, %c0_42] : memref<18x18x8xf32, #tpu.memory_space<vmem>>, vector<16x16x8xf32>
    %36 = vector.shape_cast %35 : vector<16x16x8xf32> to vector<256x8xf32>
    %c0_43 = arith.constant 0 : index
    %c56 = arith.constant 56 : index
    %37 = vector.load %arg8[%c0_43, %c56] : memref<256x72xf32, #tpu.memory_space<vmem>>, vector<256x8xf32>
    tpu.vector_store %arg8[%c0_43, %c56], %36 {strides = array<i32>} : memref<256x72xf32, #tpu.memory_space<vmem>>, vector<256x8xf32>,
    %c2_44 = arith.constant 2 : index
    %c2_45 = arith.constant 2 : index
    %c0_46 = arith.constant 0 : index
    %38 = vector.load %arg7[%c2_44, %c2_45, %c0_46] : memref<18x18x8xf32, #tpu.memory_space<vmem>>, vector<16x16x8xf32>
    %39 = vector.shape_cast %38 : vector<16x16x8xf32> to vector<256x8xf32>
    %c0_47 = arith.constant 0 : index
    %c64 = arith.constant 64 : index
    %40 = vector.load %arg8[%c0_47, %c64] : memref<256x72xf32, #tpu.memory_space<vmem>>, vector<256x8xf32>
    tpu.vector_store %arg8[%c0_47, %c64], %39 {strides = array<i32>} : memref<256x72xf32, #tpu.memory_space<vmem>>, vector<256x8xf32>,
    %c0_48 = arith.constant 0 : index
    %c0_49 = arith.constant 0 : index
    %41 = vector.load %arg8[%c0_48, %c0_49] : memref<256x72xf32, #tpu.memory_space<vmem>>, vector<256x72xf32>
    %42 = arith.truncf %41 : vector<256x72xf32> to vector<256x72xbf16>
    %c0_50 = arith.constant 0 : index
    %c0_51 = arith.constant 0 : index
    %43 = vector.load %arg2[%c0_50, %c0_51] : memref<72x8xbf16, #tpu.memory_space<vmem>>, vector<72x8xbf16>
    %cst_52 = arith.constant dense<0.000000e+00> : vector<256x8xf32>
    %44 = tpu.matmul %42, %43, %cst_52 {dimension_numbers = #tpu.dot_dimension_numbers<[1], [0], [0], [1], [0, 0, 1, 1], [], []>} : vector<256x72xbf16>, vector<72x8xbf16>, vector<256x8xf32> -> vector<256x8xf32>
    %c0_53 = arith.constant 0 : index
    %c0_54 = arith.constant 0 : index
    %c0_55 = arith.constant 0 : index
    %45 = vector.load %arg5[%c0_53, %c0_54, %c0_55] : memref<1x256x8xf32, #tpu.memory_space<vmem>>, vector<1x256x8xf32>
    %46 = vector.shape_cast %45 : vector<1x256x8xf32> to vector<256x8xf32>
    %47 = vector.shape_cast %44 : vector<256x8xf32> to vector<1x256x8xf32>
    tpu.vector_store %arg5[%c0_53, %c0_54, %c0_55], %47 {strides = array<i32>} : memref<1x256x8xf32, #tpu.memory_space<vmem>>, vector<1x256x8xf32>,
    %cst_56 = arith.constant dense<0.000000e+00> : vector<8xf32>
    %48 = vector.multi_reduction <add>, %44, %cst_56 [0] : vector<256x8xf32> to vector<8xf32>
    %49 = vector.shape_cast %48 : vector<8xf32> to vector<1x8xf32>
    %c0_57 = arith.constant 0 : index
    %c0_58 = arith.constant 0 : index
    %c0_59 = arith.constant 0 : index
    %50 = vector.load %arg6[%c0_57, %c0_58, %c0_59] : memref<1x2x8xf32, #tpu.memory_space<vmem>>, vector<1x1x8xf32>
    %51 = vector.shape_cast %50 : vector<1x1x8xf32> to vector<1x8xf32>
    %52 = vector.shape_cast %49 : vector<1x8xf32> to vector<1x1x8xf32>
    tpu.vector_store %arg6[%c0_57, %c0_58, %c0_59], %52 {strides = array<i32>} : memref<1x2x8xf32, #tpu.memory_space<vmem>>, vector<1x1x8xf32>,
    %53 = arith.mulf %44, %44 : vector<256x8xf32>
    %cst_60 = arith.constant dense<0.000000e+00> : vector<8xf32>
    %54 = vector.multi_reduction <add>, %53, %cst_60 [0] : vector<256x8xf32> to vector<8xf32>
    %55 = vector.shape_cast %54 : vector<8xf32> to vector<1x8xf32>
    %c0_61 = arith.constant 0 : index
    %c1_62 = arith.constant 1 : index
    %c0_63 = arith.constant 0 : index
    %56 = vector.load %arg6[%c0_61, %c1_62, %c0_63] : memref<1x2x8xf32, #tpu.memory_space<vmem>>, vector<1x1x8xf32>
    %57 = vector.shape_cast %56 : vector<1x1x8xf32> to vector<1x8xf32>
    %58 = vector.shape_cast %55 : vector<1x8xf32> to vector<1x1x8xf32>
    tpu.vector_store %arg6[%c0_61, %c1_62, %c0_63], %58 {strides = array<i32>} : memref<1x2x8xf32, #tpu.memory_space<vmem>>, vector<1x1x8xf32>,
    return
  }
  func.func @transform_0(%arg0: i32) -> (i32, i32, i32) {
    %c0_i32 = arith.constant 0 : i32
    %c0_i32_0 = arith.constant 0 : i32
    %c0_i32_1 = arith.constant 0 : i32
    return %arg0, %c0_i32, %c0_i32_0 : i32, i32, i32
  }
  func.func @transform_1(%arg0: i32) -> (i32, i32) {
    %c0_i32 = arith.constant 0 : i32
    %c0_i32_0 = arith.constant 0 : i32
    %c0_i32_1 = arith.constant 0 : i32
    return %c0_i32, %c0_i32_0 : i32, i32
  }
  func.func @transform_2(%arg0: i32) -> (i32, i32) {
    %c0_i32 = arith.constant 0 : i32
    %c0_i32_0 = arith.constant 0 : i32
    %c0_i32_1 = arith.constant 0 : i32
    return %c0_i32, %c0_i32_0 : i32, i32
  }
  func.func @transform_3(%arg0: i32) -> (i32, i32) {
    %c0_i32 = arith.constant 0 : i32
    %c0_i32_0 = arith.constant 0 : i32
    %c0_i32_1 = arith.constant 0 : i32
    return %c0_i32, %c0_i32_0 : i32, i32
  }
  func.func @transform_4(%arg0: i32) -> (i32, i32, i32) {
    %c0_i32 = arith.constant 0 : i32
    %c0_i32_0 = arith.constant 0 : i32
    %c0_i32_1 = arith.constant 0 : i32
    return %arg0, %c0_i32, %c0_i32_0 : i32, i32, i32
  }
  func.func @transform_5(%arg0: i32) -> (i32, i32, i32) {
    %c0_i32 = arith.constant 0 : i32
    %c0_i32_0 = arith.constant 0 : i32
    %c0_i32_1 = arith.constant 0 : i32
    return %arg0, %c0_i32, %c0_i32_0 : i32, i32, i32
  }
}

module attributes {stable_mosaic.version = 11 : i64} {
  func.func @_fuse_kernel_proj(%arg0: i32, %arg1: memref<1x16x128xf32, #tpu.memory_space<vmem>>, %arg2: memref<1x16x128xf32, #tpu.memory_space<vmem>>, %arg3: memref<1x128xf32, #tpu.memory_space<vmem>>, %arg4: memref<1x128xf32, #tpu.memory_space<vmem>>, %arg5: memref<1x128xf32, #tpu.memory_space<vmem>>, %arg6: memref<1x128xf32, #tpu.memory_space<vmem>>, %arg7: memref<1x16x128xf32, #tpu.memory_space<vmem>>) attributes {dimension_semantics = [#tpu.dimension_semantics<parallel>], iteration_bounds = array<i64: 2>, scalar_prefetch = 0 : i64, scratch_operands = 0 : i64, tpu.core_type = #tpu.core_type<tc>, window_params = [{transform_indices = @transform_0, window_bounds = array<i64: 1, 16, 128>}, {transform_indices = @transform_1, window_bounds = array<i64: 1, 16, 128>}, {pipeline_mode = #tpu.pipeline_mode<synchronous>, transform_indices = @transform_2, window_bounds = array<i64: 1, 128>}, {pipeline_mode = #tpu.pipeline_mode<synchronous>, transform_indices = @transform_3, window_bounds = array<i64: 1, 128>}, {pipeline_mode = #tpu.pipeline_mode<synchronous>, transform_indices = @transform_4, window_bounds = array<i64: 1, 128>}, {pipeline_mode = #tpu.pipeline_mode<synchronous>, transform_indices = @transform_5, window_bounds = array<i64: 1, 128>}, {transform_indices = @transform_6, window_bounds = array<i64: 1, 16, 128>}]} {
    %c0 = arith.constant 0 : index
    %c0_0 = arith.constant 0 : index
    %c0_1 = arith.constant 0 : index
    %0 = vector.load %arg1[%c0, %c0_0, %c0_1] : memref<1x16x128xf32, #tpu.memory_space<vmem>>, vector<1x16x128xf32>
    %c0_2 = arith.constant 0 : index
    %c0_3 = arith.constant 0 : index
    %1 = vector.load %arg3[%c0_2, %c0_3] : memref<1x128xf32, #tpu.memory_space<vmem>>, vector<1x128xf32>
    %2 = vector.shape_cast %1 : vector<1x128xf32> to vector<1x1x128xf32>
    %3 = vector.broadcast %2 : vector<1x1x128xf32> to vector<1x16x128xf32>
    %4 = arith.mulf %0, %3 : vector<1x16x128xf32>
    %c0_4 = arith.constant 0 : index
    %c0_5 = arith.constant 0 : index
    %5 = vector.load %arg4[%c0_4, %c0_5] : memref<1x128xf32, #tpu.memory_space<vmem>>, vector<1x128xf32>
    %6 = vector.shape_cast %5 : vector<1x128xf32> to vector<1x1x128xf32>
    %7 = vector.broadcast %6 : vector<1x1x128xf32> to vector<1x16x128xf32>
    %8 = arith.addf %4, %7 : vector<1x16x128xf32>
    %cst = arith.constant 0.000000e+00 : f32
    %9 = vector.broadcast %cst : f32 to vector<1x16x128xf32>
    %10 = arith.maximumf %8, %9 : vector<1x16x128xf32>
    %c0_6 = arith.constant 0 : index
    %c0_7 = arith.constant 0 : index
    %c0_8 = arith.constant 0 : index
    %11 = vector.load %arg2[%c0_6, %c0_7, %c0_8] : memref<1x16x128xf32, #tpu.memory_space<vmem>>, vector<1x16x128xf32>
    %c0_9 = arith.constant 0 : index
    %c0_10 = arith.constant 0 : index
    %12 = vector.load %arg5[%c0_9, %c0_10] : memref<1x128xf32, #tpu.memory_space<vmem>>, vector<1x128xf32>
    %13 = vector.shape_cast %12 : vector<1x128xf32> to vector<1x1x128xf32>
    %14 = vector.broadcast %13 : vector<1x1x128xf32> to vector<1x16x128xf32>
    %15 = arith.mulf %11, %14 : vector<1x16x128xf32>
    %c0_11 = arith.constant 0 : index
    %c0_12 = arith.constant 0 : index
    %16 = vector.load %arg6[%c0_11, %c0_12] : memref<1x128xf32, #tpu.memory_space<vmem>>, vector<1x128xf32>
    %17 = vector.shape_cast %16 : vector<1x128xf32> to vector<1x1x128xf32>
    %18 = vector.broadcast %17 : vector<1x1x128xf32> to vector<1x16x128xf32>
    %19 = arith.addf %15, %18 : vector<1x16x128xf32>
    %20 = arith.addf %10, %19 : vector<1x16x128xf32>
    %cst_13 = arith.constant 0.000000e+00 : f32
    %21 = vector.broadcast %cst_13 : f32 to vector<1x16x128xf32>
    %22 = arith.maximumf %20, %21 : vector<1x16x128xf32>
    %c0_14 = arith.constant 0 : index
    %c0_15 = arith.constant 0 : index
    %c0_16 = arith.constant 0 : index
    %23 = vector.load %arg7[%c0_14, %c0_15, %c0_16] : memref<1x16x128xf32, #tpu.memory_space<vmem>>, vector<1x16x128xf32>
    tpu.vector_store %arg7[%c0_14, %c0_15, %c0_16], %22 {strides = array<i32>} : memref<1x16x128xf32, #tpu.memory_space<vmem>>, vector<1x16x128xf32>,
    return
  }
  func.func @transform_0(%arg0: i32) -> (i32, i32, i32) {
    %c0_i32 = arith.constant 0 : i32
    %c0_i32_0 = arith.constant 0 : i32
    %c0_i32_1 = arith.constant 0 : i32
    return %arg0, %c0_i32, %c0_i32_0 : i32, i32, i32
  }
  func.func @transform_1(%arg0: i32) -> (i32, i32, i32) {
    %c0_i32 = arith.constant 0 : i32
    %c0_i32_0 = arith.constant 0 : i32
    %c0_i32_1 = arith.constant 0 : i32
    return %arg0, %c0_i32, %c0_i32_0 : i32, i32, i32
  }
  func.func @transform_2(%arg0: i32) -> (i32, i32) {
    %c0_i32 = arith.constant 0 : i32
    %c0_i32_0 = arith.constant 0 : i32
    %c0_i32_1 = arith.constant 0 : i32
    return %c0_i32, %c0_i32_0 : i32, i32
  }
  func.func @transform_3(%arg0: i32) -> (i32, i32) {
    %c0_i32 = arith.constant 0 : i32
    %c0_i32_0 = arith.constant 0 : i32
    %c0_i32_1 = arith.constant 0 : i32
    return %c0_i32, %c0_i32_0 : i32, i32
  }
  func.func @transform_4(%arg0: i32) -> (i32, i32) {
    %c0_i32 = arith.constant 0 : i32
    %c0_i32_0 = arith.constant 0 : i32
    %c0_i32_1 = arith.constant 0 : i32
    return %c0_i32, %c0_i32_0 : i32, i32
  }
  func.func @transform_5(%arg0: i32) -> (i32, i32) {
    %c0_i32 = arith.constant 0 : i32
    %c0_i32_0 = arith.constant 0 : i32
    %c0_i32_1 = arith.constant 0 : i32
    return %c0_i32, %c0_i32_0 : i32, i32
  }
  func.func @transform_6(%arg0: i32) -> (i32, i32, i32) {
    %c0_i32 = arith.constant 0 : i32
    %c0_i32_0 = arith.constant 0 : i32
    %c0_i32_1 = arith.constant 0 : i32
    return %arg0, %c0_i32, %c0_i32_0 : i32, i32, i32
  }
}

</mosaic_0001>

<llo_original>
// kernel: tile.23
$region0: #{tile.23}
  #allocation0 [shape = 's32[1]{0}', space=sflag, size = 0x4, scoped, tag = 'scoped memory for tile.23']
  %s0 = inlined_call_operand.vmem [shape: f32[8], index: 0, kind: input, shape index: {}]
  %s1 = inlined_call_operand.vmem [shape: f32[16,8], index: 1, kind: output, shape index: {}]
  // Predicated region
  $region2: #{tile.23} parent=0 // pred_check
    _
  $region3: #{tile.23} parent=0 // pred_check_branch
    %3 = sbr.rel (0) target = $region5
  $region4: #{tile.23} parent=0 // pred_region
    _
  $region5: #{tile.23} parent=0 // pred_fallthru
    _
  %v4 = vld [vmem:[%s0] ss:$0 sm:$0xff]
  %5 = vst [vmem:[%s1] sm:$0xff] %v4
  %s6 = scalar_lea.vmem %s1, 8
  %7 = vst [vmem:[%s6] sm:$0xff] %v4

// kernel: tile.24
$region0: #{tile.24}
  %s0 = inlined_call_operand.vmem [shape: f32[16,8], index: 0, kind: input, shape index: {}]
  %s1 = inlined_call_operand.vmem [shape: f32[1,128], index: 1, kind: output, shape index: {}]
  $region1: #{tile.24} parent=0
    #allocation0 [shape = 'u8[4096]{0}', space=vmem, size = 0x1000, scoped, tag = 'scoped mem for output reshape']
    %v2 = vld [vmem:[%s0] sm:$0x1]
    %vm3 = vcmask 64512
    %4 = vst.msk [vmem:[#allocation0] sm:$0x1] %vm3, %v2
    %s5 = scalar_lea.vmem %s0, 15
    %v6 = vld [vmem:[%s5] sm:$0x1]
    %7 = vrot.lane.b32.xlu0 %v6, 120
    %v8 = vpop.permute.xlu0 %7
    %vm9 = vcmask 1048512
    %10 = vst.msk [vmem:[#allocation0] sm:$0x1] %vm9, %v8
    %s11 = scalar_lea.vmem %s0, 14
    %v12 = vld [vmem:[%s11] sm:$0x1]
    %13 = vrot.lane.b32.xlu0 %v12, 112
    %v14 = vpop.permute.xlu0 %13
    %vm15 = vcmask 982912
    %16 = vst.msk [vmem:[#allocation0] sm:$0x1] %vm15, %v14
    %s17 = scalar_lea.vmem %s0, 13
    %v18 = vld [vmem:[%s17] sm:$0x1]
    %19 = vrot.lane.b32.xlu0 %v18, 104
    %v20 = vpop.permute.xlu0 %19
    %vm21 = vcmask 917312
    %22 = vst.msk [vmem:[#allocation0] sm:$0x1] %vm21, %v20
    %s23 = scalar_lea.vmem %s0, 12
    %v24 = vld [vmem:[%s23] sm:$0x1]
    %25 = vrot.lane.b32.xlu0 %v24, 96
    %v26 = vpop.permute.xlu0 %25
    %vm27 = vcmask 851712
    %28 = vst.msk [vmem:[#allocation0] sm:$0x1] %vm27, %v26
    %s29 = scalar_lea.vmem %s0, 11
    %v30 = vld [vmem:[%s29] sm:$0x1]
    %31 = vrot.lane.b32.xlu0 %v30, 88
    %v32 = vpop.permute.xlu0 %31
    %vm33 = vcmask 786112
    %34 = vst.msk [vmem:[#allocation0] sm:$0x1] %vm33, %v32
    %s35 = scalar_lea.vmem %s0, 10
    %v36 = vld [vmem:[%s35] sm:$0x1]
    %37 = vrot.lane.b32.xlu0 %v36, 80
    %v38 = vpop.permute.xlu0 %37
    %vm39 = vcmask 720512
    %40 = vst.msk [vmem:[#allocation0] sm:$0x1] %vm39, %v38
    %s41 = scalar_lea.vmem %s0, 9
    %v42 = vld [vmem:[%s41] sm:$0x1]
    %43 = vrot.lane.b32.xlu0 %v42, 72
    %v44 = vpop.permute.xlu0 %43
    %vm45 = vcmask 654912
    %46 = vst.msk [vmem:[#allocation0] sm:$0x1] %vm45, %v44
    %s47 = scalar_lea.vmem %s0, 8
    %v48 = vld [vmem:[%s47] sm:$0x1]
    %49 = vrot.lane.b32.xlu0 %v48, 64
    %v50 = vpop.permute.xlu0 %49
    %vm51 = vcmask 589312
    %52 = vst.msk [vmem:[#allocation0] sm:$0x1] %vm51, %v50
    %s53 = scalar_lea.vmem %s0, 7
    %v54 = vld [vmem:[%s53] sm:$0x1]
    %55 = vrot.lane.b32.xlu0 %v54, 56
    %v56 = vpop.permute.xlu0 %55
    %vm57 = vcmask 523712
    %58 = vst.msk [vmem:[#allocation0] sm:$0x1] %vm57, %v56
    %s59 = scalar_lea.vmem %s0, 6
    %v60 = vld [vmem:[%s59] sm:$0x1]
    %61 = vrot.lane.b32.xlu0 %v60, 48
    %v62 = vpop.permute.xlu0 %61
    %vm63 = vcmask 458112
    %64 = vst.msk [vmem:[#allocation0] sm:$0x1] %vm63, %v62
    %s65 = scalar_lea.vmem %s0, 5
    %v66 = vld [vmem:[%s65] sm:$0x1]
    %67 = vrot.lane.b32.xlu0 %v66, 40
    %v68 = vpop.permute.xlu0 %67
    %vm69 = vcmask 392512
    %70 = vst.msk [vmem:[#allocation0] sm:$0x1] %vm69, %v68
    %s71 = scalar_lea.vmem %s0, 4
    %v72 = vld [vmem:[%s71] sm:$0x1]
    %73 = vrot.lane.b32.xlu0 %v72, 32
    %v74 = vpop.permute.xlu0 %73
    %vm75 = vcmask 326912
    %76 = vst.msk [vmem:[#allocation0] sm:$0x1] %vm75, %v74
    %s77 = scalar_lea.vmem %s0, 3
    %v78 = vld [vmem:[%s77] sm:$0x1]
    %79 = vrot.lane.b32.xlu0 %v78, 24
    %v80 = vpop.permute.xlu0 %79
    %vm81 = vcmask 261312
    %82 = vst.msk [vmem:[#allocation0] sm:$0x1] %vm81, %v80
    %s83 = scalar_lea.vmem %s0, 2
    %v84 = vld [vmem:[%s83] sm:$0x1]
    %85 = vrot.lane.b32.xlu0 %v84, 16
    %v86 = vpop.permute.xlu0 %85
    %vm87 = vcmask 195712
    %88 = vst.msk [vmem:[#allocation0] sm:$0x1] %vm87, %v86
    %s89 = scalar_lea.vmem %s0, 1
    %v90 = vld [vmem:[%s89] sm:$0x1]
    %91 = vrot.lane.b32.xlu0 %v90, 8
    %v92 = vpop.permute.xlu0 %91
    %vm93 = vcmask 130112
    %94 = vst.msk [vmem:[#allocation0] sm:$0x1] %vm93, %v92
    %s96 = sshll.u32 1, 1
    %s97 = ssub.s32 %s96, 1
    %v99 = vld [vmem:[#allocation0] sm:%s97]
    %s100 = sshll.u32 1, 1
    %s101 = ssub.s32 %s100, 1
    %102 = vst [vmem:[%s1] sm:%s101] %v99

// kernel: residual_block.5
$region0: #{residual_block.5}
  #allocation0 [shape = 'u32[]', space=smem, size = 0x4, offset = 0x4, fixed_abs, tag = 'smem constant byte address 0x4 - core index']
  #allocation1 [shape = 'u32[144,128]{1,0:T(1,128)}', space=vmem, size = 0x12000, scoped, tag = 'internal scratch']
  %s0 = inlined_call_operand.vmem [shape: f32[2,16,128], index: 0, kind: input, shape index: {}]
  %s1 = inlined_call_operand.vmem [shape: f32[2,16,128], index: 1, kind: input, shape index: {}]
  %s2 = inlined_call_operand.vmem [shape: f32[1,128], index: 2, kind: input, shape index: {}]
  %s3 = inlined_call_operand.vmem [shape: f32[1,128], index: 3, kind: input, shape index: {}]
  %s4 = inlined_call_operand.vmem [shape: f32[1,128], index: 4, kind: input, shape index: {}]
  %s5 = inlined_call_operand.vmem [shape: f32[1,128], index: 5, kind: input, shape index: {}]
  %s6 = inlined_call_operand.vmem [shape: f32[2,16,128], index: 6, kind: output, shape index: {}]
  %s7 = sld [smem:[#allocation0]]
  $region57: #{residual_block.5} parent=0
    _
  %s9 = ssub.s32 1, %s7
  %s10 = scalar_select 0, %s9, %s7
  loop: start=0, step=1, limit=4
  $region2: #{residual_block.5} parent=0 // loop_pre_header
    _
  $region3: #{residual_block.5} parent=0 // loop_header
    %s12 = sphi 0, %s16
    %p13 = scmp.ge.s32.totalorder %s12, 4
    %s22 = sphi 0, %s24
    %s25 = sphi 0, %s22
    %s26 = sphi 0, %s25
    %s42 = sphi 0, %s26
    %s48 = sphi 0, %s50
    %s51 = sphi 0, %s48
    %s52 = sphi 0, %s51
    %s68 = sphi 0, %s52
    %s72 = sphi 0, %s72
    %s74 = sphi 0, %s72
    %s75 = sphi 0, %s74
    %s89 = sphi 0, %s75
    %s93 = sphi 0, %s93
    %s95 = sphi 0, %s93
    %s96 = sphi 0, %s95
    %s110 = sphi 0, %s96
    %s114 = sphi 0, %s114
    %s116 = sphi 0, %s114
    %s117 = sphi 0, %s116
    %s131 = sphi 0, %s117
    %s135 = sphi 0, %s135
    %s137 = sphi 0, %s135
    %s138 = sphi 0, %s137
    %s152 = sphi 0, %s138
    %s158 = sphi 0, %s160
    %s161 = sphi 0, %s158
    %s162 = sphi 0, %s161
    %s178 = sphi 0, %s162
  $region4: #{residual_block.5} parent=0 // loop_header_branch
    %15 = sbr.rel (%p13) target = $region8
  $region5: #{residual_block.5} parent=0 // loop_body
    %s17 = ssub.s32 %s12, 1
    %s18 = ssub.s32 %s12, 2
    %s19 = sadd.s32 %s12, 1
    %s20 = ssub.s32 %s12, %s19
    %p21 = scmp.eq.s32.totalorder %s20, 0
    %s23 = sadd.s32 %s22, 1
    %s24 = scalar_select %p21, %s22, %s23
    %p27 = pneg %p21
    %p28 = scmp.eq.s32.totalorder %s12, 1
    %p29 = por %p27, %p28
    %p30 = scmp.ne.s32.totalorder %s22, %s25
    %p31 = scmp.eq.s32.totalorder %s12, 0
    %p32 = por %p30, %p31
    %p33 = scmp.ne.s32.totalorder %s22, %s25
    %p34 = scmp.eq.s32.totalorder %s17, 1
    %p35 = por %p33, %p34
    %p36 = scmp.ne.s32.totalorder %s25, %s26
    %p37 = scmp.eq.s32.totalorder %s17, 0
    %p38 = por %p36, %p37
    %p39 = scmp.ne.s32.totalorder %s25, %s26
    %p40 = scmp.eq.s32.totalorder %s18, 1
    %p41 = por %p39, %p40
    %p43 = scmp.ne.s32.totalorder %s26, %s42
    %p44 = scmp.eq.s32.totalorder %s18, 0
    %p45 = por %p43, %p44
    %s46 = ssub.s32 %s12, %s19
    %p47 = scmp.eq.s32.totalorder %s46, 0
    %s49 = sadd.s32 %s48, 1
    %s50 = scalar_select %p47, %s48, %s49
    %p53 = pneg %p47
    %p54 = scmp.eq.s32.totalorder %s12, 1
    %p55 = por %p53, %p54
    %p56 = scmp.ne.s32.totalorder %s48, %s51
    %p57 = scmp.eq.s32.totalorder %s12, 0
    %p58 = por %p56, %p57
    %p59 = scmp.ne.s32.totalorder %s48, %s51
    %p60 = scmp.eq.s32.totalorder %s17, 1
    %p61 = por %p59, %p60
    %p62 = scmp.ne.s32.totalorder %s51, %s52
    %p63 = scmp.eq.s32.totalorder %s17, 0
    %p64 = por %p62, %p63
    %p65 = scmp.ne.s32.totalorder %s51, %s52
    %p66 = scmp.eq.s32.totalorder %s18, 1
    %p67 = por %p65, %p66
    %p69 = scmp.ne.s32.totalorder %s52, %s68
    %p70 = scmp.eq.s32.totalorder %s18, 0
    %p71 = por %p69, %p70
    %s73 = sadd.s32 %s72, 1
    %p76 = scmp.eq.s32.totalorder %s12, 1
    %p77 = scmp.ne.s32.totalorder %s72, %s74
    %p78 = scmp.eq.s32.totalorder %s12, 0
    %p79 = por %p77, %p78
    %p80 = scmp.ne.s32.totalorder %s72, %s74
    %p81 = scmp.eq.s32.totalorder %s17, 1
    %p82 = por %p80, %p81
    %p83 = scmp.ne.s32.totalorder %s74, %s75
    %p84 = scmp.eq.s32.totalorder %s17, 0
    %p85 = por %p83, %p84
    %p86 = scmp.ne.s32.totalorder %s74, %s75
    %p87 = scmp.eq.s32.totalorder %s18, 1
    %p88 = por %p86, %p87
    %p90 = scmp.ne.s32.totalorder %s75, %s89
    %p91 = scmp.eq.s32.totalorder %s18, 0
    %p92 = por %p90, %p91
    %s94 = sadd.s32 %s93, 1
    %p97 = scmp.eq.s32.totalorder %s12, 1
    %p98 = scmp.ne.s32.totalorder %s93, %s95
    %p99 = scmp.eq.s32.totalorder %s12, 0
    %p100 = por %p98, %p99
    %p101 = scmp.ne.s32.totalorder %s93, %s95
    %p102 = scmp.eq.s32.totalorder %s17, 1
    %p103 = por %p101, %p102
    %p104 = scmp.ne.s32.totalorder %s95, %s96
    %p105 = scmp.eq.s32.totalorder %s17, 0
    %p106 = por %p104, %p105
    %p107 = scmp.ne.s32.totalorder %s95, %s96
    %p108 = scmp.eq.s32.totalorder %s18, 1
    %p109 = por %p107, %p108
    %p111 = scmp.ne.s32.totalorder %s96, %s110
    %p112 = scmp.eq.s32.totalorder %s18, 0
    %p113 = por %p111, %p112
    %s115 = sadd.s32 %s114, 1
    %p118 = scmp.eq.s32.totalorder %s12, 1
    %p119 = scmp.ne.s32.totalorder %s114, %s116
    %p120 = scmp.eq.s32.totalorder %s12, 0
    %p121 = por %p119, %p120
    %p122 = scmp.ne.s32.totalorder %s114, %s116
    %p123 = scmp.eq.s32.totalorder %s17, 1
    %p124 = por %p122, %p123
    %p125 = scmp.ne.s32.totalorder %s116, %s117
    %p126 = scmp.eq.s32.totalorder %s17, 0
    %p127 = por %p125, %p126
    %p128 = scmp.ne.s32.totalorder %s116, %s117
    %p129 = scmp.eq.s32.totalorder %s18, 1
    %p130 = por %p128, %p129
    %p132 = scmp.ne.s32.totalorder %s117, %s131
    %p133 = scmp.eq.s32.totalorder %s18, 0
    %p134 = por %p132, %p133
    %s136 = sadd.s32 %s135, 1
    %p139 = scmp.eq.s32.totalorder %s12, 1
    %p140 = scmp.ne.s32.totalorder %s135, %s137
    %p141 = scmp.eq.s32.totalorder %s12, 0
    %p142 = por %p140, %p141
    %p143 = scmp.ne.s32.totalorder %s135, %s137
    %p144 = scmp.eq.s32.totalorder %s17, 1
    %p145 = por %p143, %p144
    %p146 = scmp.ne.s32.totalorder %s137, %s138
    %p147 = scmp.eq.s32.totalorder %s17, 0
    %p148 = por %p146, %p147
    %p149 = scmp.ne.s32.totalorder %s137, %s138
    %p150 = scmp.eq.s32.totalorder %s18, 1
    %p151 = por %p149, %p150
    %p153 = scmp.ne.s32.totalorder %s138, %s152
    %p154 = scmp.eq.s32.totalorder %s18, 0
    %p155 = por %p153, %p154
    %s156 = ssub.s32 %s12, %s19
    %p157 = scmp.eq.s32.totalorder %s156, 0
    %s159 = sadd.s32 %s158, 1
    %s160 = scalar_select %p157, %s158, %s159
    %p163 = pneg %p157
    %p164 = scmp.eq.s32.totalorder %s12, 1
    %p165 = por %p163, %p164
    %p166 = scmp.ne.s32.totalorder %s158, %s161
    %p167 = scmp.eq.s32.totalorder %s12, 0
    %p168 = por %p166, %p167
    %p169 = scmp.ne.s32.totalorder %s158, %s161
    %p170 = scmp.eq.s32.totalorder %s17, 1
    %p171 = por %p169, %p170
    %p172 = scmp.ne.s32.totalorder %s161, %s162
    %p173 = scmp.eq.s32.totalorder %s17, 0
    %p174 = por %p172, %p173
    %p175 = scmp.ne.s32.totalorder %s161, %s162
    %p176 = scmp.eq.s32.totalorder %s18, 1
    %p177 = por %p175, %p176
    %p179 = scmp.ne.s32.totalorder %s162, %s178
    %p180 = scmp.eq.s32.totalorder %s18, 0
    %p181 = por %p179, %p180
    %p182 = scmp.le.s32.totalorder 1, %s12
    %p183 = scmp.lt.s32.totalorder %s12, 3
    %p184 = pnand %p182, %p183
    %p185 = pneg %p184
    // Predicated region
    $region9: #{residual_block.5} parent=5 // pred_check
      _
    $region10: #{residual_block.5} parent=5 // pred_check_branch
      %187 = sbr.rel (%p184) target = $region12
    $region11: #{residual_block.5} parent=5 // pred_region
      %s188 = ssub.s32 %s12, 1
      // Predicated region
      $region13: #{residual_block.5} parent=11 // pred_check
        %p189 = pneg %p85
      $region14: #{residual_block.5} parent=11 // pred_check_branch
        %191 = sbr.rel (%p189) target = $region16
      $region15: #{residual_block.5} parent=11 // pred_region
        _
      $region16: #{residual_block.5} parent=11 // pred_fallthru
        _
      // Predicated region
      $region17: #{residual_block.5} parent=11 // pred_check
        %p192 = pneg %p106
      $region18: #{residual_block.5} parent=11 // pred_check_branch
        %194 = sbr.rel (%p192) target = $region20
      $region19: #{residual_block.5} parent=11 // pred_region
        _
      $region20: #{residual_block.5} parent=11 // pred_fallthru
        _
      // Predicated region
      $region21: #{residual_block.5} parent=11 // pred_check
        %p195 = pneg %p127
      $region22: #{residual_block.5} parent=11 // pred_check_branch
        %197 = sbr.rel (%p195) target = $region24
      $region23: #{residual_block.5} parent=11 // pred_region
        _
      $region24: #{residual_block.5} parent=11 // pred_fallthru
        _
      // Predicated region
      $region25: #{residual_block.5} parent=11 // pred_check
        %p198 = pneg %p148
      $region26: #{residual_block.5} parent=11 // pred_check_branch
        %200 = sbr.rel (%p198) target = $region28
      $region27: #{residual_block.5} parent=11 // pred_region
        _
      $region28: #{residual_block.5} parent=11 // pred_fallthru
        _
    $region12: #{residual_block.5} parent=5 // pred_fallthru
      _
    %p201 = scmp.lt.s32.totalorder %s12, 2
    // Predicated region
    $region29: #{residual_block.5} parent=5 // pred_check
      %p202 = pneg %p201
    $region30: #{residual_block.5} parent=5 // pred_check_branch
      %204 = sbr.rel (%p202) target = $region32
    $region31: #{residual_block.5} parent=5 // pred_region
      // Predicated region
      $region33: #{residual_block.5} parent=31 // pred_check
        %p205 = pneg %p32
      $region34: #{residual_block.5} parent=31 // pred_check_branch
        %207 = sbr.rel (%p205) target = $region36
      $region35: #{residual_block.5} parent=31 // pred_region
        %p208 = scmp.lt.s32.totalorder %s12, 1
        %s209 = scalar_select %p208, %s12, 1
        %s210 = smul.addr %s209, 2
        %s211 = smul.addr %s210, 8
        %s212 = scalar_lea.vmem %s0, %s211
      $region36: #{residual_block.5} parent=31 // pred_fallthru
        _
      // Predicated region
      $region37: #{residual_block.5} parent=31 // pred_check
        %p213 = pneg %p58
      $region38: #{residual_block.5} parent=31 // pred_check_branch
        %215 = sbr.rel (%p213) target = $region40
      $region39: #{residual_block.5} parent=31 // pred_region
        %p216 = scmp.lt.s32.totalorder %s12, 1
        %s217 = scalar_select %p216, %s12, 1
        %s218 = smul.addr %s217, 2
        %s219 = smul.addr %s218, 8
        %s220 = scalar_lea.vmem %s1, %s219
      $region40: #{residual_block.5} parent=31 // pred_fallthru
        _
    $region32: #{residual_block.5} parent=5 // pred_fallthru
      _
    %p221 = scmp.le.s32.totalorder 1, %s12
    %p222 = scmp.lt.s32.totalorder %s12, 3
    %p223 = pnand %p221, %p222
    %p224 = pneg %p223
    // Predicated region
    $region41: #{residual_block.5} parent=5 // pred_check
      _
    $region42: #{residual_block.5} parent=5 // pred_check_branch
      %226 = sbr.rel (%p223) target = $region44
    $region43: #{residual_block.5} parent=5 // pred_region
      %s227 = ssub.s32 %s12, 1
      %p228 = scmp.lt.s32.totalorder %s17, 1
      %s229 = scalar_select %p228, %s17, 1
      %s230 = smul.addr %s229, 2
      %s231 = smul.addr %s230, 8
      %s232 = scalar_lea.vmem %s0, %s231
      %p233 = pneg %p38
      %p234 = pneg %p35
      %p235 = scmp.lt.s32.totalorder %s17, 1
      %s236 = scalar_select %p235, %s17, 1
      %s237 = smul.addr %s236, 2
      %s238 = smul.addr %s237, 8
      %s239 = scalar_lea.vmem %s1, %s238
      %p240 = pneg %p64
      %p241 = pneg %p61
      %p242 = pneg %p85
      %p243 = pneg %p82
      %p244 = pneg %p106
      %p245 = pneg %p103
      %p246 = pneg %p127
      %p247 = pneg %p124
      %p248 = pneg %p148
      %p249 = pneg %p145
      %p250 = pneg %p174
      %p251 = pneg %p171
      %p252 = scmp.lt.s32.totalorder %s17, 1
      %s253 = scalar_select %p252, %s17, 1
      %s254 = smul.addr %s253, 2
      %s255 = smul.addr %s254, 8
      %s256 = scalar_lea.vmem %s6, %s255
      %p257 = scmp.lt.s32.totalorder %s17, 1
      %s258 = scalar_select %p257, %s17, 1
      %s259 = smul.addr %s258, 2
      %s260 = smul.addr %s259, 8
      %s261 = scalar_lea.vmem %s0, %s260
      %p262 = scmp.lt.s32.totalorder %s17, 1
      %s263 = scalar_select %p262, %s17, 1
      %s264 = smul.addr %s263, 2
      %s265 = smul.addr %s264, 8
      %s266 = scalar_lea.vmem %s1, %s265
      %p267 = scmp.lt.s32.totalorder %s17, 1
      %s268 = scalar_select %p267, %s17, 1
      %s269 = smul.addr %s268, 2
      %s270 = smul.addr %s269, 8
      %s271 = scalar_lea.vmem %s6, %s270
      %v272 = vld [vmem:[%s261] sm:$0xff]
      %v273 = vld [vmem:[%s261 + $0x8] sm:$0xff]
      %v274 = vld [vmem:[%s2] sm:$0x1]
      %v276 = vlaneseq
      %v277 = vshrl.u32 %v276, 7
      %v278 = vsub.s32 0, %v277
      %v279 = vrot.slane %v274, %v278
      %v281 = vmul.f32 %v272, %v279
      %v282 = vmul.f32 %v273, %v279
      %v283 = vld [vmem:[%s3] sm:$0x1]
      %v285 = vlaneseq
      %v286 = vshrl.u32 %v285, 7
      %v287 = vsub.s32 0, %v286
      %v288 = vrot.slane %v283, %v287
      %v290 = vadd.f32 %v281, %v288
      %v291 = vadd.f32 %v282, %v288
      %v292 = vmax.f32 %v290, 0.0
      %v293 = vmax.f32 %v291, 0.0
      %v294 = vld [vmem:[%s266] sm:$0xff]
      %v295 = vld [vmem:[%s266 + $0x8] sm:$0xff]
      %v296 = vld [vmem:[%s4] sm:$0x1]
      %v298 = vlaneseq
      %v299 = vshrl.u32 %v298, 7
      %v300 = vsub.s32 0, %v299
      %v301 = vrot.slane %v296, %v300
      %v303 = vmul.f32 %v294, %v301
      %v304 = vmul.f32 %v295, %v301
      %v305 = vld [vmem:[%s5] sm:$0x1]
      %v307 = vlaneseq
      %v308 = vshrl.u32 %v307, 7
      %v309 = vsub.s32 0, %v308
      %v310 = vrot.slane %v305, %v309
      %v312 = vadd.f32 %v303, %v310
      %v313 = vadd.f32 %v304, %v310
      %v314 = vadd.f32 %v292, %v312
      %v315 = vadd.f32 %v293, %v313
      %v316 = vmax.f32 %v314, 0.0
      %v317 = vmax.f32 %v315, 0.0
      %318 = vst [vmem:[%s271] sm:$0xff] %v316
      %319 = vst [vmem:[%s271 + $0x8] sm:$0xff] %v317
      %p320 = scmp.lt.s32.totalorder %s17, 1
      %s321 = scalar_select %p320, %s17, 1
      %s322 = smul.addr %s321, 2
      %s323 = smul.addr %s322, 8
      %s324 = scalar_lea.vmem %s6, %s323
      // Predicated region
      $region45: #{residual_block.5} parent=43 // pred_check
        %p325 = pneg %p171
      $region46: #{residual_block.5} parent=43 // pred_check_branch
        %327 = sbr.rel (%p325) target = $region48
      $region47: #{residual_block.5} parent=43 // pred_region
        _
      $region48: #{residual_block.5} parent=43 // pred_fallthru
        _
    $region44: #{residual_block.5} parent=5 // pred_fallthru
      _
    %p328 = scmp.le.s32.totalorder 2, %s12
    // Predicated region
    $region49: #{residual_block.5} parent=5 // pred_check
      %p329 = pneg %p328
    $region50: #{residual_block.5} parent=5 // pred_check_branch
      %331 = sbr.rel (%p329) target = $region52
    $region51: #{residual_block.5} parent=5 // pred_region
      %s332 = ssub.s32 %s12, 2
      // Predicated region
      $region53: #{residual_block.5} parent=51 // pred_check
        %p333 = pneg %p177
      $region54: #{residual_block.5} parent=51 // pred_check_branch
        %335 = sbr.rel (%p333) target = $region56
      $region55: #{residual_block.5} parent=51 // pred_region
        %p336 = scmp.lt.s32.totalorder %s18, 1
        %s337 = scalar_select %p336, %s18, 1
        %s338 = smul.addr %s337, 2
        %s339 = smul.addr %s338, 8
        %s340 = scalar_lea.vmem %s6, %s339
      $region56: #{residual_block.5} parent=51 // pred_fallthru
        _
    $region52: #{residual_block.5} parent=5 // pred_fallthru
      _
  $region6: #{residual_block.5} parent=0 // loop_footer
    %s16 = sadd.s32 1, %s12
  $region7: #{residual_block.5} parent=0 // loop_footer_branch
    %11 = sbr.rel target = $region3
  $region8: #{residual_block.5} parent=0 // loop_exit
    _

// kernel: residual_block.4
$region0: #{residual_block.4}
  #allocation0 [shape = 'u32[]', space=smem, size = 0x4, offset = 0x4, fixed_abs, tag = 'smem constant byte address 0x4 - core index']
  #allocation1 [shape = 'u32[144,128]{1,0:T(1,128)}', space=vmem, size = 0x12000, scoped, tag = 'internal scratch']
  #allocation2 [shape = 'f32[18,18,8]{2,1,0:T(8,128)}', space=vmem, size = 0x36000, scoped, tag = 'scratch operand']
  #allocation3 [shape = 'f32[256,72]{1,0:T(8,128)}', space=vmem, size = 0x20000, scoped, tag = 'scratch operand']
  %s0 = inlined_call_operand.vmem [shape: f32[2,256,8], index: 0, kind: input, shape index: {}]
  %s1 = inlined_call_operand.vmem [shape: bf16[72,8], index: 1, kind: input, shape index: {}]
  %s2 = inlined_call_operand.vmem [shape: f32[1,8], index: 2, kind: input, shape index: {}]
  %s3 = inlined_call_operand.vmem [shape: f32[1,8], index: 3, kind: input, shape index: {}]
  %s4 = inlined_call_operand.vmem [shape: f32[2,256,8], index: 4, kind: output, shape index: {0}]
  %s5 = inlined_call_operand.vmem [shape: f32[2,2,8], index: 5, kind: output, shape index: {1}]
  %6 = xla_tuple %s4, %s5
  %s7 = sld [smem:[#allocation0]]
  $region57: #{residual_block.4} parent=0
    _
  %s9 = ssub.s32 1, %s7
  %s10 = scalar_select 0, %s9, %s7
  loop: start=0, step=1, limit=4
  $region2: #{residual_block.4} parent=0 // loop_pre_header
    _
  $region3: #{residual_block.4} parent=0 // loop_header
    %s12 = sphi 0, %s16
    %p13 = scmp.ge.s32.totalorder %s12, 4
    %s22 = sphi 0, %s24
    %s25 = sphi 0, %s22
    %s26 = sphi 0, %s25
    %s42 = sphi 0, %s26
    %s46 = sphi 0, %s46
    %s48 = sphi 0, %s46
    %s49 = sphi 0, %s48
    %s63 = sphi 0, %s49
    %s67 = sphi 0, %s67
    %s69 = sphi 0, %s67
    %s70 = sphi 0, %s69
    %s84 = sphi 0, %s70
    %s88 = sphi 0, %s88
    %s90 = sphi 0, %s88
    %s91 = sphi 0, %s90
    %s105 = sphi 0, %s91
    %s111 = sphi 0, %s113
    %s114 = sphi 0, %s111
    %s115 = sphi 0, %s114
    %s131 = sphi 0, %s115
    %s137 = sphi 0, %s139
    %s140 = sphi 0, %s137
    %s141 = sphi 0, %s140
    %s157 = sphi 0, %s141
  $region4: #{residual_block.4} parent=0 // loop_header_branch
    %15 = sbr.rel (%p13) target = $region8
  $region5: #{residual_block.4} parent=0 // loop_body
    %s17 = ssub.s32 %s12, 1
    %s18 = ssub.s32 %s12, 2
    %s19 = sadd.s32 %s12, 1
    %s20 = ssub.s32 %s12, %s19
    %p21 = scmp.eq.s32.totalorder %s20, 0
    %s23 = sadd.s32 %s22, 1
    %s24 = scalar_select %p21, %s22, %s23
    %p27 = pneg %p21
    %p28 = scmp.eq.s32.totalorder %s12, 1
    %p29 = por %p27, %p28
    %p30 = scmp.ne.s32.totalorder %s22, %s25
    %p31 = scmp.eq.s32.totalorder %s12, 0
    %p32 = por %p30, %p31
    %p33 = scmp.ne.s32.totalorder %s22, %s25
    %p34 = scmp.eq.s32.totalorder %s17, 1
    %p35 = por %p33, %p34
    %p36 = scmp.ne.s32.totalorder %s25, %s26
    %p37 = scmp.eq.s32.totalorder %s17, 0
    %p38 = por %p36, %p37
    %p39 = scmp.ne.s32.totalorder %s25, %s26
    %p40 = scmp.eq.s32.totalorder %s18, 1
    %p41 = por %p39, %p40
    %p43 = scmp.ne.s32.totalorder %s26, %s42
    %p44 = scmp.eq.s32.totalorder %s18, 0
    %p45 = por %p43, %p44
    %s47 = sadd.s32 %s46, 1
    %p50 = scmp.eq.s32.totalorder %s12, 1
    %p51 = scmp.ne.s32.totalorder %s46, %s48
    %p52 = scmp.eq.s32.totalorder %s12, 0
    %p53 = por %p51, %p52
    %p54 = scmp.ne.s32.totalorder %s46, %s48
    %p55 = scmp.eq.s32.totalorder %s17, 1
    %p56 = por %p54, %p55
    %p57 = scmp.ne.s32.totalorder %s48, %s49
    %p58 = scmp.eq.s32.totalorder %s17, 0
    %p59 = por %p57, %p58
    %p60 = scmp.ne.s32.totalorder %s48, %s49
    %p61 = scmp.eq.s32.totalorder %s18, 1
    %p62 = por %p60, %p61
    %p64 = scmp.ne.s32.totalorder %s49, %s63
    %p65 = scmp.eq.s32.totalorder %s18, 0
    %p66 = por %p64, %p65
    %s68 = sadd.s32 %s67, 1
    %p71 = scmp.eq.s32.totalorder %s12, 1
    %p72 = scmp.ne.s32.totalorder %s67, %s69
    %p73 = scmp.eq.s32.totalorder %s12, 0
    %p74 = por %p72, %p73
    %p75 = scmp.ne.s32.totalorder %s67, %s69
    %p76 = scmp.eq.s32.totalorder %s17, 1
    %p77 = por %p75, %p76
    %p78 = scmp.ne.s32.totalorder %s69, %s70
    %p79 = scmp.eq.s32.totalorder %s17, 0
    %p80 = por %p78, %p79
    %p81 = scmp.ne.s32.totalorder %s69, %s70
    %p82 = scmp.eq.s32.totalorder %s18, 1
    %p83 = por %p81, %p82
    %p85 = scmp.ne.s32.totalorder %s70, %s84
    %p86 = scmp.eq.s32.totalorder %s18, 0
    %p87 = por %p85, %p86
    %s89 = sadd.s32 %s88, 1
    %p92 = scmp.eq.s32.totalorder %s12, 1
    %p93 = scmp.ne.s32.totalorder %s88, %s90
    %p94 = scmp.eq.s32.totalorder %s12, 0
    %p95 = por %p93, %p94
    %p96 = scmp.ne.s32.totalorder %s88, %s90
    %p97 = scmp.eq.s32.totalorder %s17, 1
    %p98 = por %p96, %p97
    %p99 = scmp.ne.s32.totalorder %s90, %s91
    %p100 = scmp.eq.s32.totalorder %s17, 0
    %p101 = por %p99, %p100
    %p102 = scmp.ne.s32.totalorder %s90, %s91
    %p103 = scmp.eq.s32.totalorder %s18, 1
    %p104 = por %p102, %p103
    %p106 = scmp.ne.s32.totalorder %s91, %s105
    %p107 = scmp.eq.s32.totalorder %s18, 0
    %p108 = por %p106, %p107
    %s109 = ssub.s32 %s12, %s19
    %p110 = scmp.eq.s32.totalorder %s109, 0
    %s112 = sadd.s32 %s111, 1
    %s113 = scalar_select %p110, %s111, %s112
    %p116 = pneg %p110
    %p117 = scmp.eq.s32.totalorder %s12, 1
    %p118 = por %p116, %p117
    %p119 = scmp.ne.s32.totalorder %s111, %s114
    %p120 = scmp.eq.s32.totalorder %s12, 0
    %p121 = por %p119, %p120
    %p122 = scmp.ne.s32.totalorder %s111, %s114
    %p123 = scmp.eq.s32.totalorder %s17, 1
    %p124 = por %p122, %p123
    %p125 = scmp.ne.s32.totalorder %s114, %s115
    %p126 = scmp.eq.s32.totalorder %s17, 0
    %p127 = por %p125, %p126
    %p128 = scmp.ne.s32.totalorder %s114, %s115
    %p129 = scmp.eq.s32.totalorder %s18, 1
    %p130 = por %p128, %p129
    %p132 = scmp.ne.s32.totalorder %s115, %s131
    %p133 = scmp.eq.s32.totalorder %s18, 0
    %p134 = por %p132, %p133
    %s135 = ssub.s32 %s12, %s19
    %p136 = scmp.eq.s32.totalorder %s135, 0
    %s138 = sadd.s32 %s137, 1
    %s139 = scalar_select %p136, %s137, %s138
    %p142 = pneg %p136
    %p143 = scmp.eq.s32.totalorder %s12, 1
    %p144 = por %p142, %p143
    %p145 = scmp.ne.s32.totalorder %s137, %s140
    %p146 = scmp.eq.s32.totalorder %s12, 0
    %p147 = por %p145, %p146
    %p148 = scmp.ne.s32.totalorder %s137, %s140
    %p149 = scmp.eq.s32.totalorder %s17, 1
    %p150 = por %p148, %p149
    %p151 = scmp.ne.s32.totalorder %s140, %s141
    %p152 = scmp.eq.s32.totalorder %s17, 0
    %p153 = por %p151, %p152
    %p154 = scmp.ne.s32.totalorder %s140, %s141
    %p155 = scmp.eq.s32.totalorder %s18, 1
    %p156 = por %p154, %p155
    %p158 = scmp.ne.s32.totalorder %s141, %s157
    %p159 = scmp.eq.s32.totalorder %s18, 0
    %p160 = por %p158, %p159
    %p161 = scmp.le.s32.totalorder 1, %s12
    %p162 = scmp.lt.s32.totalorder %s12, 3
    %p163 = pnand %p161, %p162
    %p164 = pneg %p163
    // Predicated region
    $region9: #{residual_block.4} parent=5 // pred_check
      _
    $region10: #{residual_block.4} parent=5 // pred_check_branch
      %166 = sbr.rel (%p163) target = $region12
    $region11: #{residual_block.4} parent=5 // pred_region
      %s167 = ssub.s32 %s12, 1
      // Predicated region
      $region13: #{residual_block.4} parent=11 // pred_check
        %p168 = pneg %p59
      $region14: #{residual_block.4} parent=11 // pred_check_branch
        %170 = sbr.rel (%p168) target = $region16
      $region15: #{residual_block.4} parent=11 // pred_region
        _
      $region16: #{residual_block.4} parent=11 // pred_fallthru
        _
      // Predicated region
      $region17: #{residual_block.4} parent=11 // pred_check
        %p171 = pneg %p80
      $region18: #{residual_block.4} parent=11 // pred_check_branch
        %173 = sbr.rel (%p171) target = $region20
      $region19: #{residual_block.4} parent=11 // pred_region
        _
      $region20: #{residual_block.4} parent=11 // pred_fallthru
        _
      // Predicated region
      $region21: #{residual_block.4} parent=11 // pred_check
        %p174 = pneg %p101
      $region22: #{residual_block.4} parent=11 // pred_check_branch
        %176 = sbr.rel (%p174) target = $region24
      $region23: #{residual_block.4} parent=11 // pred_region
        _
      $region24: #{residual_block.4} parent=11 // pred_fallthru
        _
    $region12: #{residual_block.4} parent=5 // pred_fallthru
      _
    %p177 = scmp.lt.s32.totalorder %s12, 2
    // Predicated region
    $region25: #{residual_block.4} parent=5 // pred_check
      %p178 = pneg %p177
    $region26: #{residual_block.4} parent=5 // pred_check_branch
      %180 = sbr.rel (%p178) target = $region28
    $region27: #{residual_block.4} parent=5 // pred_region
      // Predicated region
      $region29: #{residual_block.4} parent=27 // pred_check
        %p181 = pneg %p32
      $region30: #{residual_block.4} parent=27 // pred_check_branch
        %183 = sbr.rel (%p181) target = $region32
      $region31: #{residual_block.4} parent=27 // pred_region
        %p184 = scmp.lt.s32.totalorder %s12, 1
        %s185 = scalar_select %p184, %s12, 1
        %s186 = smul.addr %s185, 32
        %s187 = smul.addr %s186, 8
        %s188 = scalar_lea.vmem %s0, %s187
      $region32: #{residual_block.4} parent=27 // pred_fallthru
        _
    $region28: #{residual_block.4} parent=5 // pred_fallthru
      _
    %p189 = scmp.le.s32.totalorder 1, %s12
    %p190 = scmp.lt.s32.totalorder %s12, 3
    %p191 = pnand %p189, %p190
    %p192 = pneg %p191
    // Predicated region
    $region33: #{residual_block.4} parent=5 // pred_check
      _
    $region34: #{residual_block.4} parent=5 // pred_check_branch
      %194 = sbr.rel (%p191) target = $region36
    $region35: #{residual_block.4} parent=5 // pred_region
      %s195 = ssub.s32 %s12, 1
      %p196 = scmp.lt.s32.totalorder %s17, 1
      %s197 = scalar_select %p196, %s17, 1
      %s198 = smul.addr %s197, 32
      %s199 = smul.addr %s198, 8
      %s200 = scalar_lea.vmem %s0, %s199
      %p201 = pneg %p38
      %p202 = pneg %p35
      %p203 = pneg %p59
      %p204 = pneg %p56
      %p205 = pneg %p80
      %p206 = pneg %p77
      %p207 = pneg %p101
      %p208 = pneg %p98
      %p209 = pneg %p127
      %p210 = pneg %p124
      %p211 = scmp.lt.s32.totalorder %s17, 1
      %s212 = scalar_select %p211, %s17, 1
      %s213 = smul.addr %s212, 32
      %s214 = smul.addr %s213, 8
      %s215 = scalar_lea.vmem %s4, %s214
      %p216 = pneg %p153
      %p217 = pneg %p150
      %p218 = scmp.lt.s32.totalorder %s17, 1
      %s219 = scalar_select %p218, %s17, 1
      %s220 = smul.addr %s219, 2
      %s221 = scalar_lea.vmem %s5, %s220
      %p222 = scmp.lt.s32.totalorder %s17, 1
      %s223 = scalar_select %p222, %s17, 1
      %s224 = smul.addr %s223, 32
      %s225 = smul.addr %s224, 8
      %s226 = scalar_lea.vmem %s0, %s225
      %p227 = scmp.lt.s32.totalorder %s17, 1
      %s228 = scalar_select %p227, %s17, 1
      %s229 = smul.addr %s228, 32
      %s230 = smul.addr %s229, 8
      %s231 = scalar_lea.vmem %s4, %s230
      %p232 = scmp.lt.s32.totalorder %s17, 1
      %s233 = scalar_select %p232, %s17, 1
      %s234 = smul.addr %s233, 2
      %s235 = scalar_lea.vmem %s5, %s234
      %vm237 = vcmask 64512
      %238 = vst.msk [vmem:[#allocation2] sm:$0xff] %vm237, 0.0
      %239 = vst.msk [vmem:[#allocation2 + $0x8] sm:$0xff] %vm237, 0.0
      %vm240 = vcmask 58368
      %241 = vst.msk [vmem:[#allocation2 + $0x10] sm:$0x3] %vm240, 0.0
      %242 = vst.msk [vmem:[#allocation2 + $0x18] sm:$0xff] %vm237, 0.0
      %243 = vst.msk [vmem:[#allocation2 + $0x20] sm:$0xff] %vm237, 0.0
      %244 = vst.msk [vmem:[#allocation2 + $0x28] sm:$0x3] %vm240, 0.0
      %245 = vst.msk [vmem:[#allocation2 + $0x30] sm:$0xff] %vm237, 0.0
      %246 = vst.msk [vmem:[#allocation2 + $0x38] sm:$0xff] %vm237, 0.0
      %247 = vst.msk [vmem:[#allocation2 + $0x40] sm:$0x3] %vm240, 0.0
      %248 = vst.msk [vmem:[#allocation2 + $0x48] sm:$0xff] %vm237, 0.0
      %249 = vst.msk [vmem:[#allocation2 + $0x50] sm:$0xff] %vm237, 0.0
      %250 = vst.msk [vmem:[#allocation2 + $0x58] sm:$0x3] %vm240, 0.0
      %251 = vst.msk [vmem:[#allocation2 + $0x60] sm:$0xff] %vm237, 0.0
      %252 = vst.msk [vmem:[#allocation2 + $0x68] sm:$0xff] %vm237, 0.0
      %253 = vst.msk [vmem:[#allocation2 + $0x70] sm:$0x3] %vm240, 0.0
      %254 = vst.msk [vmem:[#allocation2 + $0x78] sm:$0xff] %vm237, 0.0
      %255 = vst.msk [vmem:[#allocation2 + $0x80] sm:$0xff] %vm237, 0.0
      %256 = vst.msk [vmem:[#allocation2 + $0x88] sm:$0x3] %vm240, 0.0
      %257 = vst.msk [vmem:[#allocation2 + $0x90] sm:$0xff] %vm237, 0.0
      %258 = vst.msk [vmem:[#allocation2 + $0x98] sm:$0xff] %vm237, 0.0
      %259 = vst.msk [vmem:[#allocation2 + $0xa0] sm:$0x3] %vm240, 0.0
      %260 = vst.msk [vmem:[#allocation2 + $0xa8] sm:$0xff] %vm237, 0.0
      %261 = vst.msk [vmem:[#allocation2 + $0xb0] sm:$0xff] %vm237, 0.0
      %262 = vst.msk [vmem:[#allocation2 + $0xb8] sm:$0x3] %vm240, 0.0
      %263 = vst.msk [vmem:[#allocation2 + $0xc0] sm:$0xff] %vm237, 0.0
      %264 = vst.msk [vmem:[#allocation2 + $0xc8] sm:$0xff] %vm237, 0.0
      %265 = vst.msk [vmem:[#allocation2 + $0xd0] sm:$0x3] %vm240, 0.0
      %266 = vst.msk [vmem:[#allocation2 + $0xd8] sm:$0xff] %vm237, 0.0
      %267 = vst.msk [vmem:[#allocation2 + $0xe0] sm:$0xff] %vm237, 0.0
      %268 = vst.msk [vmem:[#allocation2 + $0xe8] sm:$0x3] %vm240, 0.0
      %269 = vst.msk [vmem:[#allocation2 + $0xf0] sm:$0xff] %vm237, 0.0
      %270 = vst.msk [vmem:[#allocation2 + $0xf8] sm:$0xff] %vm237, 0.0
      %271 = vst.msk [vmem:[#allocation2 + $0x100] sm:$0x3] %vm240, 0.0
      %272 = vst.msk [vmem:[#allocation2 + $0x108] sm:$0xff] %vm237, 0.0
      %273 = vst.msk [vmem:[#allocation2 + $0x110] sm:$0xff] %vm237, 0.0
      %274 = vst.msk [vmem:[#allocation2 + $0x118] sm:$0x3] %vm240, 0.0
      %275 = vst.msk [vmem:[#allocation2 + $0x120] sm:$0xff] %vm237, 0.0
      %276 = vst.msk [vmem:[#allocation2 + $0x128] sm:$0xff] %vm237, 0.0
      %277 = vst.msk [vmem:[#allocation2 + $0x130] sm:$0x3] %vm240, 0.0
      %278 = vst.msk [vmem:[#allocation2 + $0x138] sm:$0xff] %vm237, 0.0
      %279 = vst.msk [vmem:[#allocation2 + $0x140] sm:$0xff] %vm237, 0.0
      %280 = vst.msk [vmem:[#allocation2 + $0x148] sm:$0x3] %vm240, 0.0
      %281 = vst.msk [vmem:[#allocation2 + $0x150] sm:$0xff] %vm237, 0.0
      %282 = vst.msk [vmem:[#allocation2 + $0x158] sm:$0xff] %vm237, 0.0
      %283 = vst.msk [vmem:[#allocation2 + $0x160] sm:$0x3] %vm240, 0.0
      %284 = vst.msk [vmem:[#allocation2 + $0x168] sm:$0xff] %vm237, 0.0
      %285 = vst.msk [vmem:[#allocation2 + $0x170] sm:$0xff] %vm237, 0.0
      %286 = vst.msk [vmem:[#allocation2 + $0x178] sm:$0x3] %vm240, 0.0
      %287 = vst.msk [vmem:[#allocation2 + $0x180] sm:$0xff] %vm237, 0.0
      %288 = vst.msk [vmem:[#allocation2 + $0x188] sm:$0xff] %vm237, 0.0
      %289 = vst.msk [vmem:[#allocation2 + $0x190] sm:$0x3] %vm240, 0.0
      %290 = vst.msk [vmem:[#allocation2 + $0x198] sm:$0xff] %vm237, 0.0
      %291 = vst.msk [vmem:[#allocation2 + $0x1a0] sm:$0xff] %vm237, 0.0
      %292 = vst.msk [vmem:[#allocation2 + $0x1a8] sm:$0x3] %vm240, 0.0
      %v293 = vld [vmem:[%s226] sm:$0xff]
      %v294 = vld [vmem:[%s226 + $0x8] sm:$0xff]
      %v295 = vld [vmem:[%s226 + $0x10] sm:$0xff]
      %v296 = vld [vmem:[%s226 + $0x18] sm:$0xff]
      %v297 = vld [vmem:[%s226 + $0x20] sm:$0xff]
      %v298 = vld [vmem:[%s226 + $0x28] sm:$0xff]
      %v299 = vld [vmem:[%s226 + $0x30] sm:$0xff]
      %v300 = vld [vmem:[%s226 + $0x38] sm:$0xff]
      %v301 = vld [vmem:[%s226 + $0x40] sm:$0xff]
      %v302 = vld [vmem:[%s226 + $0x48] sm:$0xff]
      %v303 = vld [vmem:[%s226 + $0x50] sm:$0xff]
      %v304 = vld [vmem:[%s226 + $0x58] sm:$0xff]
      %v305 = vld [vmem:[%s226 + $0x60] sm:$0xff]
      %v306 = vld [vmem:[%s226 + $0x68] sm:$0xff]
      %v307 = vld [vmem:[%s226 + $0x70] sm:$0xff]
      %v308 = vld [vmem:[%s226 + $0x78] sm:$0xff]
      %v309 = vld [vmem:[%s226 + $0x80] sm:$0xff]
      %v310 = vld [vmem:[%s226 + $0x88] sm:$0xff]
      %v311 = vld [vmem:[%s226 + $0x90] sm:$0xff]
      %v312 = vld [vmem:[%s226 + $0x98] sm:$0xff]
      %v313 = vld [vmem:[%s226 + $0xa0] sm:$0xff]
      %v314 = vld [vmem:[%s226 + $0xa8] sm:$0xff]
      %v315 = vld [vmem:[%s226 + $0xb0] sm:$0xff]
      %v316 = vld [vmem:[%s226 + $0xb8] sm:$0xff]
      %v317 = vld [vmem:[%s226 + $0xc0] sm:$0xff]
      %v318 = vld [vmem:[%s226 + $0xc8] sm:$0xff]
      %v319 = vld [vmem:[%s226 + $0xd0] sm:$0xff]
      %v320 = vld [vmem:[%s226 + $0xd8] sm:$0xff]
      %v321 = vld [vmem:[%s226 + $0xe0] sm:$0xff]
      %v322 = vld [vmem:[%s226 + $0xe8] sm:$0xff]
      %v323 = vld [vmem:[%s226 + $0xf0] sm:$0xff]
      %v324 = vld [vmem:[%s226 + $0xf8] sm:$0xff]
      %v325 = vld [vmem:[%s2] sm:$0x1]
      %v327 = vlaneseq
      %v328 = vshrl.u32 %v327, 7
      %v329 = vsub.s32 0, %v328
      %v330 = vrot.slane %v325, %v329
      %v332 = vmul.f32 %v293, %v330
      %v333 = vmul.f32 %v294, %v330
      %v334 = vmul.f32 %v295, %v330
      %v335 = vmul.f32 %v296, %v330
      %v336 = vmul.f32 %v297, %v330
      %v337 = vmul.f32 %v298, %v330
      %v338 = vmul.f32 %v299, %v330
      %v339 = vmul.f32 %v300, %v330
      %v340 = vmul.f32 %v301, %v330
      %v341 = vmul.f32 %v302, %v330
      %v342 = vmul.f32 %v303, %v330
      %v343 = vmul.f32 %v304, %v330
      %v344 = vmul.f32 %v305, %v330
      %v345 = vmul.f32 %v306, %v330
      %v346 = vmul.f32 %v307, %v330
      %v347 = vmul.f32 %v308, %v330
      %v348 = vmul.f32 %v309, %v330
      %v349 = vmul.f32 %v310, %v330
      %v350 = vmul.f32 %v311, %v330
      %v351 = vmul.f32 %v312, %v330
      %v352 = vmul.f32 %v313, %v330
      %v353 = vmul.f32 %v314, %v330
      %v354 = vmul.f32 %v315, %v330
      %v355 = vmul.f32 %v316, %v330
      %v356 = vmul.f32 %v317, %v330
      %v357 = vmul.f32 %v318, %v330
      %v358 = vmul.f32 %v319, %v330
      %v359 = vmul.f32 %v320, %v330
      %v360 = vmul.f32 %v321, %v330
      %v361 = vmul.f32 %v322, %v330
      %v362 = vmul.f32 %v323, %v330
      %v363 = vmul.f32 %v324, %v330
      %v364 = vld [vmem:[%s3] sm:$0x1]
      %v366 = vlaneseq
      %v367 = vshrl.u32 %v366, 7
      %v368 = vsub.s32 0, %v367
      %v369 = vrot.slane %v364, %v368
      %v371 = vadd.f32 %v332, %v369
      %v372 = vadd.f32 %v333, %v369
      %v373 = vadd.f32 %v334, %v369
      %v374 = vadd.f32 %v335, %v369
      %v375 = vadd.f32 %v336, %v369
      %v376 = vadd.f32 %v337, %v369
      %v377 = vadd.f32 %v338, %v369
      %v378 = vadd.f32 %v339, %v369
      %v379 = vadd.f32 %v340, %v369
      %v380 = vadd.f32 %v341, %v369
      %v381 = vadd.f32 %v342, %v369
      %v382 = vadd.f32 %v343, %v369
      %v383 = vadd.f32 %v344, %v369
      %v384 = vadd.f32 %v345, %v369
      %v385 = vadd.f32 %v346, %v369
      %v386 = vadd.f32 %v347, %v369
      %v387 = vadd.f32 %v348, %v369
      %v388 = vadd.f32 %v349, %v369
      %v389 = vadd.f32 %v350, %v369
      %v390 = vadd.f32 %v351, %v369
      %v391 = vadd.f32 %v352, %v369
      %v392 = vadd.f32 %v353, %v369
      %v393 = vadd.f32 %v354, %v369
      %v394 = vadd.f32 %v355, %v369
      %v395 = vadd.f32 %v356, %v369
      %v396 = vadd.f32 %v357, %v369
      %v397 = vadd.f32 %v358, %v369
      %v398 = vadd.f32 %v359, %v369
      %v399 = vadd.f32 %v360, %v369
      %v400 = vadd.f32 %v361, %v369
      %v401 = vadd.f32 %v362, %v369
      %v402 = vadd.f32 %v363, %v369
      %v403 = vmax.f32 %v371, 0.0
      %v404 = vmax.f32 %v372, 0.0
      %v405 = vmax.f32 %v373, 0.0
      %v406 = vmax.f32 %v374, 0.0
      %v407 = vmax.f32 %v375, 0.0
      %v408 = vmax.f32 %v376, 0.0
      %v409 = vmax.f32 %v377, 0.0
      %v410 = vmax.f32 %v378, 0.0
      %v411 = vmax.f32 %v379, 0.0
      %v412 = vmax.f32 %v380, 0.0
      %v413 = vmax.f32 %v381, 0.0
      %v414 = vmax.f32 %v382, 0.0
      %v415 = vmax.f32 %v383, 0.0
      %v416 = vmax.f32 %v384, 0.0
      %v417 = vmax.f32 %v385, 0.0
      %v418 = vmax.f32 %v386, 0.0
      %v419 = vmax.f32 %v387, 0.0
      %v420 = vmax.f32 %v388, 0.0
      %v421 = vmax.f32 %v389, 0.0
      %v422 = vmax.f32 %v390, 0.0
      %v423 = vmax.f32 %v391, 0.0
      %v424 = vmax.f32 %v392, 0.0
      %v425 = vmax.f32 %v393, 0.0
      %v426 = vmax.f32 %v394, 0.0
      %v427 = vmax.f32 %v395, 0.0
      %v428 = vmax.f32 %v396, 0.0
      %v429 = vmax.f32 %v397, 0.0
      %v430 = vmax.f32 %v398, 0.0
      %v431 = vmax.f32 %v399, 0.0
      %v432 = vmax.f32 %v400, 0.0
      %v433 = vmax.f32 %v401, 0.0
      %v434 = vmax.f32 %v402, 0.0
      %s435 = scalar_lea.vmem [#allocation2], 24
      %436 = vst.msk [vmem:[%s435 + $0x1] sm:$0xff] %vm237, %v403
      %437 = vst.msk [vmem:[%s435 + $0x9] sm:$0xff] %vm237, %v404
      %438 = vst.msk [vmem:[%s435 + $0x19] sm:$0xff] %vm237, %v405
      %439 = vst.msk [vmem:[%s435 + $0x21] sm:$0xff] %vm237, %v406
      %440 = vst.msk [vmem:[%s435 + $0x31] sm:$0xff] %vm237, %v407
      %441 = vst.msk [vmem:[%s435 + $0x39] sm:$0xff] %vm237, %v408
      %442 = vst.msk [vmem:[%s435 + $0x49] sm:$0xff] %vm237, %v409
      %443 = vst.msk [vmem:[%s435 + $0x51] sm:$0xff] %vm237, %v410
      %444 = vst.msk [vmem:[%s435 + $0x61] sm:$0xff] %vm237, %v411
      %445 = vst.msk [vmem:[%s435 + $0x69] sm:$0xff] %vm237, %v412
      %446 = vst.msk [vmem:[%s435 + $0x79] sm:$0xff] %vm237, %v413
      %447 = vst.msk [vmem:[%s435 + $0x81] sm:$0xff] %vm237, %v414
      %448 = vst.msk [vmem:[%s435 + $0x91] sm:$0xff] %vm237, %v415
      %449 = vst.msk [vmem:[%s435 + $0x99] sm:$0xff] %vm237, %v416
      %450 = vst.msk [vmem:[%s435 + $0xa9] sm:$0xff] %vm237, %v417
      %451 = vst.msk [vmem:[%s435 + $0xb1] sm:$0xff] %vm237, %v418
      %452 = vst.msk [vmem:[%s435 + $0xc1] sm:$0xff] %vm237, %v419
      %453 = vst.msk [vmem:[%s435 + $0xc9] sm:$0xff] %vm237, %v420
      %454 = vst.msk [vmem:[%s435 + $0xd9] sm:$0xff] %vm237, %v421
      %455 = vst.msk [vmem:[%s435 + $0xe1] sm:$0xff] %vm237, %v422
      %456 = vst.msk [vmem:[%s435 + $0xf1] sm:$0xff] %vm237, %v423
      %457 = vst.msk [vmem:[%s435 + $0xf9] sm:$0xff] %vm237, %v424
      %458 = vst.msk [vmem:[%s435 + $0x109] sm:$0xff] %vm237, %v425
      %459 = vst.msk [vmem:[%s435 + $0x111] sm:$0xff] %vm237, %v426
      %460 = vst.msk [vmem:[%s435 + $0x121] sm:$0xff] %vm237, %v427
      %461 = vst.msk [vmem:[%s435 + $0x129] sm:$0xff] %vm237, %v428
      %462 = vst.msk [vmem:[%s435 + $0x139] sm:$0xff] %vm237, %v429
      %463 = vst.msk [vmem:[%s435 + $0x141] sm:$0xff] %vm237, %v430
      %464 = vst.msk [vmem:[%s435 + $0x151] sm:$0xff] %vm237, %v431
      %465 = vst.msk [vmem:[%s435 + $0x159] sm:$0xff] %vm237, %v432
      %466 = vst.msk [vmem:[%s435 + $0x169] sm:$0xff] %vm237, %v433
      %467 = vst.msk [vmem:[%s435 + $0x171] sm:$0xff] %vm237, %v434
      %v468 = vld [vmem:[#allocation2] sm:$0xff]
      %v469 = vld [vmem:[#allocation2 + $0x8] sm:$0xff]
      %v470 = vld [vmem:[#allocation2 + $0x18] sm:$0xff]
      %v471 = vld [vmem:[#allocation2 + $0x20] sm:$0xff]
      %v472 = vld [vmem:[#allocation2 + $0x30] sm:$0xff]
      %v473 = vld [vmem:[#allocation2 + $0x38] sm:$0xff]
      %v474 = vld [vmem:[#allocation2 + $0x48] sm:$0xff]
      %v475 = vld [vmem:[#allocation2 + $0x50] sm:$0xff]
      %v476 = vld [vmem:[#allocation2 + $0x60] sm:$0xff]
      %v477 = vld [vmem:[#allocation2 + $0x68] sm:$0xff]
      %v478 = vld [vmem:[#allocation2 + $0x78] sm:$0xff]
      %v479 = vld [vmem:[#allocation2 + $0x80] sm:$0xff]
      %v480 = vld [vmem:[#allocation2 + $0x90] sm:$0xff]
      %v481 = vld [vmem:[#allocation2 + $0x98] sm:$0xff]
      %v482 = vld [vmem:[#allocation2 + $0xa8] sm:$0xff]
      %v483 = vld [vmem:[#allocation2 + $0xb0] sm:$0xff]
      %v484 = vld [vmem:[#allocation2 + $0xc0] sm:$0xff]
      %v485 = vld [vmem:[#allocation2 + $0xc8] sm:$0xff]
      %v486 = vld [vmem:[#allocation2 + $0xd8] sm:$0xff]
      %v487 = vld [vmem:[#allocation2 + $0xe0] sm:$0xff]
      %v488 = vld [vmem:[#allocation2 + $0xf0] sm:$0xff]
      %v489 = vld [vmem:[#allocation2 + $0xf8] sm:$0xff]
      %v490 = vld [vmem:[#allocation2 + $0x108] sm:$0xff]
      %v491 = vld [vmem:[#allocation2 + $0x110] sm:$0xff]
      %v492 = vld [vmem:[#allocation2 + $0x120] sm:$0xff]
      %v493 = vld [vmem:[#allocation2 + $0x128] sm:$0xff]
      %v494 = vld [vmem:[#allocation2 + $0x138] sm:$0xff]
      %v495 = vld [vmem:[#allocation2 + $0x140] sm:$0xff]
      %v496 = vld [vmem:[#allocation2 + $0x150] sm:$0xff]
      %v497 = vld [vmem:[#allocation2 + $0x158] sm:$0xff]
      %v498 = vld [vmem:[#allocation2 + $0x168] sm:$0xff]
      %v499 = vld [vmem:[#allocation2 + $0x170] sm:$0xff]
      %500 = vst.msk [vmem:[#allocation3] sm:$0xff] %vm237, %v468
      %501 = vst.msk [vmem:[#allocation3 + $0x8] sm:$0xff] %vm237, %v469
      %502 = vst.msk [vmem:[#allocation3 + $0x10] sm:$0xff] %vm237, %v470
      %503 = vst.msk [vmem:[#allocation3 + $0x18] sm:$0xff] %vm237, %v471
      %504 = vst.msk [vmem:[#allocation3 + $0x20] sm:$0xff] %vm237, %v472
      %505 = vst.msk [vmem:[#allocation3 + $0x28] sm:$0xff] %vm237, %v473
      %506 = vst.msk [vmem:[#allocation3 + $0x30] sm:$0xff] %vm237, %v474
      %507 = vst.msk [vmem:[#allocation3 + $0x38] sm:$0xff] %vm237, %v475
      %508 = vst.msk [vmem:[#allocation3 + $0x40] sm:$0xff] %vm237, %v476
      %509 = vst.msk [vmem:[#allocation3 + $0x48] sm:$0xff] %vm237, %v477
      %510 = vst.msk [vmem:[#allocation3 + $0x50] sm:$0xff] %vm237, %v478
      %511 = vst.msk [vmem:[#allocation3 + $0x58] sm:$0xff] %vm237, %v479
      %512 = vst.msk [vmem:[#allocation3 + $0x60] sm:$0xff] %vm237, %v480
      %513 = vst.msk [vmem:[#allocation3 + $0x68] sm:$0xff] %vm237, %v481
      %514 = vst.msk [vmem:[#allocation3 + $0x70] sm:$0xff] %vm237, %v482
      %515 = vst.msk [vmem:[#allocation3 + $0x78] sm:$0xff] %vm237, %v483
      %516 = vst.msk [vmem:[#allocation3 + $0x80] sm:$0xff] %vm237, %v484
      %517 = vst.msk [vmem:[#allocation3 + $0x88] sm:$0xff] %vm237, %v485
      %518 = vst.msk [vmem:[#allocation3 + $0x90] sm:$0xff] %vm237, %v486
      %519 = vst.msk [vmem:[#allocation3 + $0x98] sm:$0xff] %vm237, %v487
      %520 = vst.msk [vmem:[#allocation3 + $0xa0] sm:$0xff] %vm237, %v488
      %521 = vst.msk [vmem:[#allocation3 + $0xa8] sm:$0xff] %vm237, %v489
      %522 = vst.msk [vmem:[#allocation3 + $0xb0] sm:$0xff] %vm237, %v490
      %523 = vst.msk [vmem:[#allocation3 + $0xb8] sm:$0xff] %vm237, %v491
      %524 = vst.msk [vmem:[#allocation3 + $0xc0] sm:$0xff] %vm237, %v492
      %525 = vst.msk [vmem:[#allocation3 + $0xc8] sm:$0xff] %vm237, %v493
      %526 = vst.msk [vmem:[#allocation3 + $0xd0] sm:$0xff] %vm237, %v494
      %527 = vst.msk [vmem:[#allocation3 + $0xd8] sm:$0xff] %vm237, %v495
      %528 = vst.msk [vmem:[#allocation3 + $0xe0] sm:$0xff] %vm237, %v496
      %529 = vst.msk [vmem:[#allocation3 + $0xe8] sm:$0xff] %vm237, %v497
      %530 = vst.msk [vmem:[#allocation3 + $0xf0] sm:$0xff] %vm237, %v498
      %531 = vst.msk [vmem:[#allocation3 + $0xf8] sm:$0xff] %vm237, %v499
      %v532 = vld [vmem:[#allocation2 + $0x1] sm:$0xff]
      %v533 = vld [vmem:[#allocation2 + $0x9] sm:$0xff]
      %v534 = vld [vmem:[#allocation2 + $0x19] sm:$0xff]
      %v535 = vld [vmem:[#allocation2 + $0x21] sm:$0xff]
      %v536 = vld [vmem:[#allocation2 + $0x31] sm:$0xff]
      %v537 = vld [vmem:[#allocation2 + $0x39] sm:$0xff]
      %v538 = vld [vmem:[#allocation2 + $0x49] sm:$0xff]
      %v539 = vld [vmem:[#allocation2 + $0x51] sm:$0xff]
      %v540 = vld [vmem:[#allocation2 + $0x61] sm:$0xff]
      %v541 = vld [vmem:[#allocation2 + $0x69] sm:$0xff]
      %v542 = vld [vmem:[#allocation2 + $0x79] sm:$0xff]
      %v543 = vld [vmem:[#allocation2 + $0x81] sm:$0xff]
      %v544 = vld [vmem:[#allocation2 + $0x91] sm:$0xff]
      %v545 = vld [vmem:[#allocation2 + $0x99] sm:$0xff]
      %v546 = vld [vmem:[#allocation2 + $0xa9] sm:$0xff]
      %v547 = vld [vmem:[#allocation2 + $0xb1] sm:$0xff]
      %v548 = vld [vmem:[#allocation2 + $0xc1] sm:$0xff]
      %v549 = vld [vmem:[#allocation2 + $0xc9] sm:$0xff]
      %v550 = vld [vmem:[#allocation2 + $0xd9] sm:$0xff]
      %v551 = vld [vmem:[#allocation2 + $0xe1] sm:$0xff]
      %v552 = vld [vmem:[#allocation2 + $0xf1] sm:$0xff]
      %v553 = vld [vmem:[#allocation2 + $0xf9] sm:$0xff]
      %v554 = vld [vmem:[#allocation2 + $0x109] sm:$0xff]
      %v555 = vld [vmem:[#allocation2 + $0x111] sm:$0xff]
      %v556 = vld [vmem:[#allocation2 + $0x121] sm:$0xff]
      %v557 = vld [vmem:[#allocation2 + $0x129] sm:$0xff]
      %v558 = vld [vmem:[#allocation2 + $0x139] sm:$0xff]
      %v559 = vld [vmem:[#allocation2 + $0x141] sm:$0xff]
      %v560 = vld [vmem:[#allocation2 + $0x151] sm:$0xff]
      %v561 = vld [vmem:[#allocation2 + $0x159] sm:$0xff]
      %v562 = vld [vmem:[#allocation2 + $0x169] sm:$0xff]
      %v563 = vld [vmem:[#allocation2 + $0x171] sm:$0xff]
      %596 = vrot.lane.b32.xlu0 %v532, 8
      %v597 = vpop.permute.xlu0 %596
      %598 = vrot.lane.b32.xlu0 %v533, 8
      %v599 = vpop.permute.xlu0 %598
      %600 = vrot.lane.b32.xlu0 %v534, 8
      %v601 = vpop.permute.xlu0 %600
      %602 = vrot.lane.b32.xlu0 %v535, 8
      %v603 = vpop.permute.xlu0 %602
      %604 = vrot.lane.b32.xlu0 %v536, 8
      %v605 = vpop.permute.xlu0 %604
      %606 = vrot.lane.b32.xlu0 %v537, 8
      %v607 = vpop.permute.xlu0 %606
      %608 = vrot.lane.b32.xlu0 %v538, 8
      %v609 = vpop.permute.xlu0 %608
      %610 = vrot.lane.b32.xlu0 %v539, 8
      %v611 = vpop.permute.xlu0 %610
      %612 = vrot.lane.b32.xlu0 %v540, 8
      %v613 = vpop.permute.xlu0 %612
      %614 = vrot.lane.b32.xlu0 %v541, 8
      %v615 = vpop.permute.xlu0 %614
      %616 = vrot.lane.b32.xlu0 %v542, 8
      %v617 = vpop.permute.xlu0 %616
      %618 = vrot.lane.b32.xlu0 %v543, 8
      %v619 = vpop.permute.xlu0 %618
      %620 = vrot.lane.b32.xlu0 %v544, 8
      %v621 = vpop.permute.xlu0 %620
      %622 = vrot.lane.b32.xlu0 %v545, 8
      %v623 = vpop.permute.xlu0 %622
      %624 = vrot.lane.b32.xlu0 %v546, 8
      %v625 = vpop.permute.xlu0 %624
      %626 = vrot.lane.b32.xlu0 %v547, 8
      %v627 = vpop.permute.xlu0 %626
      %628 = vrot.lane.b32.xlu0 %v548, 8
      %v629 = vpop.permute.xlu0 %628
      %630 = vrot.lane.b32.xlu0 %v549, 8
      %v631 = vpop.permute.xlu0 %630
      %632 = vrot.lane.b32.xlu0 %v550, 8
      %v633 = vpop.permute.xlu0 %632
      %634 = vrot.lane.b32.xlu0 %v551, 8
      %v635 = vpop.permute.xlu0 %634
      %636 = vrot.lane.b32.xlu0 %v552, 8
      %v637 = vpop.permute.xlu0 %636
      %638 = vrot.lane.b32.xlu0 %v553, 8
      %v639 = vpop.permute.xlu0 %638
      %640 = vrot.lane.b32.xlu0 %v554, 8
      %v641 = vpop.permute.xlu0 %640
      %642 = vrot.lane.b32.xlu0 %v555, 8
      %v643 = vpop.permute.xlu0 %642
      %644 = vrot.lane.b32.xlu0 %v556, 8
      %v645 = vpop.permute.xlu0 %644
      %646 = vrot.lane.b32.xlu0 %v557, 8
      %v647 = vpop.permute.xlu0 %646
      %648 = vrot.lane.b32.xlu0 %v558, 8
      %v649 = vpop.permute.xlu0 %648
      %650 = vrot.lane.b32.xlu0 %v559, 8
      %v651 = vpop.permute.xlu0 %650
      %652 = vrot.lane.b32.xlu0 %v560, 8
      %v653 = vpop.permute.xlu0 %652
      %654 = vrot.lane.b32.xlu0 %v561, 8
      %v655 = vpop.permute.xlu0 %654
      %656 = vrot.lane.b32.xlu0 %v562, 8
      %v657 = vpop.permute.xlu0 %656
      %658 = vrot.lane.b32.xlu0 %v563, 8
      %v659 = vpop.permute.xlu0 %658
      %vm692 = vcmask 130112
      %693 = vst.msk [vmem:[#allocation3] sm:$0xff] %vm692, %v597
      %694 = vst.msk [vmem:[#allocation3 + $0x8] sm:$0xff] %vm692, %v599
      %695 = vst.msk [vmem:[#allocation3 + $0x10] sm:$0xff] %vm692, %v601
      %696 = vst.msk [vmem:[#allocation3 + $0x18] sm:$0xff] %vm692, %v603
      %697 = vst.msk [vmem:[#allocation3 + $0x20] sm:$0xff] %vm692, %v605
      %698 = vst.msk [vmem:[#allocation3 + $0x28] sm:$0xff] %vm692, %v607
      %699 = vst.msk [vmem:[#allocation3 + $0x30] sm:$0xff] %vm692, %v609
      %700 = vst.msk [vmem:[#allocation3 + $0x38] sm:$0xff] %vm692, %v611
      %701 = vst.msk [vmem:[#allocation3 + $0x40] sm:$0xff] %vm692, %v613
      %702 = vst.msk [vmem:[#allocation3 + $0x48] sm:$0xff] %vm692, %v615
      %703 = vst.msk [vmem:[#allocation3 + $0x50] sm:$0xff] %vm692, %v617
      %704 = vst.msk [vmem:[#allocation3 + $0x58] sm:$0xff] %vm692, %v619
      %705 = vst.msk [vmem:[#allocation3 + $0x60] sm:$0xff] %vm692, %v621
      %706 = vst.msk [vmem:[#allocation3 + $0x68] sm:$0xff] %vm692, %v623
      %707 = vst.msk [vmem:[#allocation3 + $0x70] sm:$0xff] %vm692, %v625
      %708 = vst.msk [vmem:[#allocation3 + $0x78] sm:$0xff] %vm692, %v627
      %709 = vst.msk [vmem:[#allocation3 + $0x80] sm:$0xff] %vm692, %v629
      %710 = vst.msk [vmem:[#allocation3 + $0x88] sm:$0xff] %vm692, %v631
      %711 = vst.msk [vmem:[#allocation3 + $0x90] sm:$0xff] %vm692, %v633
      %712 = vst.msk [vmem:[#allocation3 + $0x98] sm:$0xff] %vm692, %v635
      %713 = vst.msk [vmem:[#allocation3 + $0xa0] sm:$0xff] %vm692, %v637
      %714 = vst.msk [vmem:[#allocation3 + $0xa8] sm:$0xff] %vm692, %v639
      %715 = vst.msk [vmem:[#allocation3 + $0xb0] sm:$0xff] %vm692, %v641
      %716 = vst.msk [vmem:[#allocation3 + $0xb8] sm:$0xff] %vm692, %v643
      %717 = vst.msk [vmem:[#allocation3 + $0xc0] sm:$0xff] %vm692, %v645
      %718 = vst.msk [vmem:[#allocation3 + $0xc8] sm:$0xff] %vm692, %v647
      %719 = vst.msk [vmem:[#allocation3 + $0xd0] sm:$0xff] %vm692, %v649
      %720 = vst.msk [vmem:[#allocation3 + $0xd8] sm:$0xff] %vm692, %v651
      %721 = vst.msk [vmem:[#allocation3 + $0xe0] sm:$0xff] %vm692, %v653
      %722 = vst.msk [vmem:[#allocation3 + $0xe8] sm:$0xff] %vm692, %v655
      %723 = vst.msk [vmem:[#allocation3 + $0xf0] sm:$0xff] %vm692, %v657
      %724 = vst.msk [vmem:[#allocation3 + $0xf8] sm:$0xff] %vm692, %v659
      %v725 = vld [vmem:[#allocation2 + $0x2] sm:$0xff]
      %v726 = vld [vmem:[#allocation2 + $0xa] sm:$0xff]
      %v727 = vld [vmem:[#allocation2 + $0x1a] sm:$0xff]
      %v728 = vld [vmem:[#allocation2 + $0x22] sm:$0xff]
      %v729 = vld [vmem:[#allocation2 + $0x32] sm:$0xff]
      %v730 = vld [vmem:[#allocation2 + $0x3a] sm:$0xff]
      %v731 = vld [vmem:[#allocation2 + $0x4a] sm:$0xff]
      %v732 = vld [vmem:[#allocation2 + $0x52] sm:$0xff]
      %v733 = vld [vmem:[#allocation2 + $0x62] sm:$0xff]
      %v734 = vld [vmem:[#allocation2 + $0x6a] sm:$0xff]
      %v735 = vld [vmem:[#allocation2 + $0x7a] sm:$0xff]
      %v736 = vld [vmem:[#allocation2 + $0x82] sm:$0xff]
      %v737 = vld [vmem:[#allocation2 + $0x92] sm:$0xff]
      %v738 = vld [vmem:[#allocation2 + $0x9a] sm:$0xff]
      %v739 = vld [vmem:[#allocation2 + $0xaa] sm:$0xff]
      %v740 = vld [vmem:[#allocation2 + $0xb2] sm:$0xff]
      %v741 = vld [vmem:[#allocation2 + $0xc2] sm:$0xff]
      %v742 = vld [vmem:[#allocation2 + $0xca] sm:$0xff]
      %v743 = vld [vmem:[#allocation2 + $0xda] sm:$0xff]
      %v744 = vld [vmem:[#allocation2 + $0xe2] sm:$0xff]
      %v745 = vld [vmem:[#allocation2 + $0xf2] sm:$0xff]
      %v746 = vld [vmem:[#allocation2 + $0xfa] sm:$0xff]
      %v747 = vld [vmem:[#allocation2 + $0x10a] sm:$0xff]
      %v748 = vld [vmem:[#allocation2 + $0x112] sm:$0xff]
      %v749 = vld [vmem:[#allocation2 + $0x122] sm:$0xff]
      %v750 = vld [vmem:[#allocation2 + $0x12a] sm:$0xff]
      %v751 = vld [vmem:[#allocation2 + $0x13a] sm:$0xff]
      %v752 = vld [vmem:[#allocation2 + $0x142] sm:$0xff]
      %v753 = vld [vmem:[#allocation2 + $0x152] sm:$0xff]
      %v754 = vld [vmem:[#allocation2 + $0x15a] sm:$0xff]
      %v755 = vld [vmem:[#allocation2 + $0x16a] sm:$0xff]
      %v756 = vld [vmem:[#allocation2 + $0x172] sm:$0xff]
      %789 = vrot.lane.b32.xlu0 %v725, 16
      %v790 = vpop.permute.xlu0 %789
      %791 = vrot.lane.b32.xlu0 %v726, 16
      %v792 = vpop.permute.xlu0 %791
      %793 = vrot.lane.b32.xlu0 %v727, 16
      %v794 = vpop.permute.xlu0 %793
      %795 = vrot.lane.b32.xlu0 %v728, 16
      %v796 = vpop.permute.xlu0 %795
      %797 = vrot.lane.b32.xlu0 %v729, 16
      %v798 = vpop.permute.xlu0 %797
      %799 = vrot.lane.b32.xlu0 %v730, 16
      %v800 = vpop.permute.xlu0 %799
      %801 = vrot.lane.b32.xlu0 %v731, 16
      %v802 = vpop.permute.xlu0 %801
      %803 = vrot.lane.b32.xlu0 %v732, 16
      %v804 = vpop.permute.xlu0 %803
      %805 = vrot.lane.b32.xlu0 %v733, 16
      %v806 = vpop.permute.xlu0 %805
      %807 = vrot.lane.b32.xlu0 %v734, 16
      %v808 = vpop.permute.xlu0 %807
      %809 = vrot.lane.b32.xlu0 %v735, 16
      %v810 = vpop.permute.xlu0 %809
      %811 = vrot.lane.b32.xlu0 %v736, 16
      %v812 = vpop.permute.xlu0 %811
      %813 = vrot.lane.b32.xlu0 %v737, 16
      %v814 = vpop.permute.xlu0 %813
      %815 = vrot.lane.b32.xlu0 %v738, 16
      %v816 = vpop.permute.xlu0 %815
      %817 = vrot.lane.b32.xlu0 %v739, 16
      %v818 = vpop.permute.xlu0 %817
      %819 = vrot.lane.b32.xlu0 %v740, 16
      %v820 = vpop.permute.xlu0 %819
      %821 = vrot.lane.b32.xlu0 %v741, 16
      %v822 = vpop.permute.xlu0 %821
      %823 = vrot.lane.b32.xlu0 %v742, 16
      %v824 = vpop.permute.xlu0 %823
      %825 = vrot.lane.b32.xlu0 %v743, 16
      %v826 = vpop.permute.xlu0 %825
      %827 = vrot.lane.b32.xlu0 %v744, 16
      %v828 = vpop.permute.xlu0 %827
      %829 = vrot.lane.b32.xlu0 %v745, 16
      %v830 = vpop.permute.xlu0 %829
      %831 = vrot.lane.b32.xlu0 %v746, 16
      %v832 = vpop.permute.xlu0 %831
      %833 = vrot.lane.b32.xlu0 %v747, 16
      %v834 = vpop.permute.xlu0 %833
      %835 = vrot.lane.b32.xlu0 %v748, 16
      %v836 = vpop.permute.xlu0 %835
      %837 = vrot.lane.b32.xlu0 %v749, 16
      %v838 = vpop.permute.xlu0 %837
      %839 = vrot.lane.b32.xlu0 %v750, 16
      %v840 = vpop.permute.xlu0 %839
      %841 = vrot.lane.b32.xlu0 %v751, 16
      %v842 = vpop.permute.xlu0 %841
      %843 = vrot.lane.b32.xlu0 %v752, 16
      %v844 = vpop.permute.xlu0 %843
      %845 = vrot.lane.b32.xlu0 %v753, 16
      %v846 = vpop.permute.xlu0 %845
      %847 = vrot.lane.b32.xlu0 %v754, 16
      %v848 = vpop.permute.xlu0 %847
      %849 = vrot.lane.b32.xlu0 %v755, 16
      %v850 = vpop.permute.xlu0 %849
      %851 = vrot.lane.b32.xlu0 %v756, 16
      %v852 = vpop.permute.xlu0 %851
      %vm885 = vcmask 195712
      %886 = vst.msk [vmem:[#allocation3] sm:$0xff] %vm885, %v790
      %887 = vst.msk [vmem:[#allocation3 + $0x8] sm:$0xff] %vm885, %v792
      %888 = vst.msk [vmem:[#allocation3 + $0x10] sm:$0xff] %vm885, %v794
      %889 = vst.msk [vmem:[#allocation3 + $0x18] sm:$0xff] %vm885, %v796
      %890 = vst.msk [vmem:[#allocation3 + $0x20] sm:$0xff] %vm885, %v798
      %891 = vst.msk [vmem:[#allocation3 + $0x28] sm:$0xff] %vm885, %v800
      %892 = vst.msk [vmem:[#allocation3 + $0x30] sm:$0xff] %vm885, %v802
      %893 = vst.msk [vmem:[#allocation3 + $0x38] sm:$0xff] %vm885, %v804
      %894 = vst.msk [vmem:[#allocation3 + $0x40] sm:$0xff] %vm885, %v806
      %895 = vst.msk [vmem:[#allocation3 + $0x48] sm:$0xff] %vm885, %v808
      %896 = vst.msk [vmem:[#allocation3 + $0x50] sm:$0xff] %vm885, %v810
      %897 = vst.msk [vmem:[#allocation3 + $0x58] sm:$0xff] %vm885, %v812
      %898 = vst.msk [vmem:[#allocation3 + $0x60] sm:$0xff] %vm885, %v814
      %899 = vst.msk [vmem:[#allocation3 + $0x68] sm:$0xff] %vm885, %v816
      %900 = vst.msk [vmem:[#allocation3 + $0x70] sm:$0xff] %vm885, %v818
      %901 = vst.msk [vmem:[#allocation3 + $0x78] sm:$0xff] %vm885, %v820
      %902 = vst.msk [vmem:[#allocation3 + $0x80] sm:$0xff] %vm885, %v822
      %903 = vst.msk [vmem:[#allocation3 + $0x88] sm:$0xff] %vm885, %v824
      %904 = vst.msk [vmem:[#allocation3 + $0x90] sm:$0xff] %vm885, %v826
      %905 = vst.msk [vmem:[#allocation3 + $0x98] sm:$0xff] %vm885, %v828
      %906 = vst.msk [vmem:[#allocation3 + $0xa0] sm:$0xff] %vm885, %v830
      %907 = vst.msk [vmem:[#allocation3 + $0xa8] sm:$0xff] %vm885, %v832
      %908 = vst.msk [vmem:[#allocation3 + $0xb0] sm:$0xff] %vm885, %v834
      %909 = vst.msk [vmem:[#allocation3 + $0xb8] sm:$0xff] %vm885, %v836
      %910 = vst.msk [vmem:[#allocation3 + $0xc0] sm:$0xff] %vm885, %v838
      %911 = vst.msk [vmem:[#allocation3 + $0xc8] sm:$0xff] %vm885, %v840
      %912 = vst.msk [vmem:[#allocation3 + $0xd0] sm:$0xff] %vm885, %v842
      %913 = vst.msk [vmem:[#allocation3 + $0xd8] sm:$0xff] %vm885, %v844
      %914 = vst.msk [vmem:[#allocation3 + $0xe0] sm:$0xff] %vm885, %v846
      %915 = vst.msk [vmem:[#allocation3 + $0xe8] sm:$0xff] %vm885, %v848
      %916 = vst.msk [vmem:[#allocation3 + $0xf0] sm:$0xff] %vm885, %v850
      %917 = vst.msk [vmem:[#allocation3 + $0xf8] sm:$0xff] %vm885, %v852
      %v918 = vld [vmem:[%s435] sm:$0xff]
      %v919 = vld [vmem:[%s435 + $0x8] sm:$0xff]
      %v920 = vld [vmem:[%s435 + $0x18] sm:$0xff]
      %v921 = vld [vmem:[%s435 + $0x20] sm:$0xff]
      %v922 = vld [vmem:[%s435 + $0x30] sm:$0xff]
      %v923 = vld [vmem:[%s435 + $0x38] sm:$0xff]
      %v924 = vld [vmem:[%s435 + $0x48] sm:$0xff]
      %v925 = vld [vmem:[%s435 + $0x50] sm:$0xff]
      %v926 = vld [vmem:[%s435 + $0x60] sm:$0xff]
      %v927 = vld [vmem:[%s435 + $0x68] sm:$0xff]
      %v928 = vld [vmem:[%s435 + $0x78] sm:$0xff]
      %v929 = vld [vmem:[%s435 + $0x80] sm:$0xff]
      %v930 = vld [vmem:[%s435 + $0x90] sm:$0xff]
      %v931 = vld [vmem:[%s435 + $0x98] sm:$0xff]
      %v932 = vld [vmem:[%s435 + $0xa8] sm:$0xff]
      %v933 = vld [vmem:[%s435 + $0xb0] sm:$0xff]
      %v934 = vld [vmem:[%s435 + $0xc0] sm:$0xff]
      %v935 = vld [vmem:[%s435 + $0xc8] sm:$0xff]
      %v936 = vld [vmem:[%s435 + $0xd8] sm:$0xff]
      %v937 = vld [vmem:[%s435 + $0xe0] sm:$0xff]
      %v938 = vld [vmem:[%s435 + $0xf0] sm:$0xff]
      %v939 = vld [vmem:[%s435 + $0xf8] sm:$0xff]
      %v940 = vld [vmem:[%s435 + $0x108] sm:$0xff]
      %v941 = vld [vmem:[%s435 + $0x110] sm:$0xff]
      %v942 = vld [vmem:[%s435 + $0x120] sm:$0xff]
      %v943 = vld [vmem:[%s435 + $0x128] sm:$0xff]
      %v944 = vld [vmem:[%s435 + $0x138] sm:$0xff]
      %v945 = vld [vmem:[%s435 + $0x140] sm:$0xff]
      %v946 = vld [vmem:[%s435 + $0x150] sm:$0xff]
      %v947 = vld [vmem:[%s435 + $0x158] sm:$0xff]
      %v948 = vld [vmem:[%s435 + $0x168] sm:$0xff]
      %v949 = vld [vmem:[%s435 + $0x170] sm:$0xff]
      %982 = vrot.lane.b32.xlu0 %v918, 24
      %v983 = vpop.permute.xlu0 %982
      %984 = vrot.lane.b32.xlu0 %v919, 24
      %v985 = vpop.permute.xlu0 %984
      %986 = vrot.lane.b32.xlu0 %v920, 24
      %v987 = vpop.permute.xlu0 %986
      %988 = vrot.lane.b32.xlu0 %v921, 24
      %v989 = vpop.permute.xlu0 %988
      %990 = vrot.lane.b32.xlu0 %v922, 24
      %v991 = vpop.permute.xlu0 %990
      %992 = vrot.lane.b32.xlu0 %v923, 24
      %v993 = vpop.permute.xlu0 %992
      %994 = vrot.lane.b32.xlu0 %v924, 24
      %v995 = vpop.permute.xlu0 %994
      %996 = vrot.lane.b32.xlu0 %v925, 24
      %v997 = vpop.permute.xlu0 %996
      %998 = vrot.lane.b32.xlu0 %v926, 24
      %v999 = vpop.permute.xlu0 %998
      %1000 = vrot.lane.b32.xlu0 %v927, 24
      %v1001 = vpop.permute.xlu0 %1000
      %1002 = vrot.lane.b32.xlu0 %v928, 24
      %v1003 = vpop.permute.xlu0 %1002
      %1004 = vrot.lane.b32.xlu0 %v929, 24
      %v1005 = vpop.permute.xlu0 %1004
      %1006 = vrot.lane.b32.xlu0 %v930, 24
      %v1007 = vpop.permute.xlu0 %1006
      %1008 = vrot.lane.b32.xlu0 %v931, 24
      %v1009 = vpop.permute.xlu0 %1008
      %1010 = vrot.lane.b32.xlu0 %v932, 24
      %v1011 = vpop.permute.xlu0 %1010
      %1012 = vrot.lane.b32.xlu0 %v933, 24
      %v1013 = vpop.permute.xlu0 %1012
      %1014 = vrot.lane.b32.xlu0 %v934, 24
      %v1015 = vpop.permute.xlu0 %1014
      %1016 = vrot.lane.b32.xlu0 %v935, 24
      %v1017 = vpop.permute.xlu0 %1016
      %1018 = vrot.lane.b32.xlu0 %v936, 24
      %v1019 = vpop.permute.xlu0 %1018
      %1020 = vrot.lane.b32.xlu0 %v937, 24
      %v1021 = vpop.permute.xlu0 %1020
      %1022 = vrot.lane.b32.xlu0 %v938, 24
      %v1023 = vpop.permute.xlu0 %1022
      %1024 = vrot.lane.b32.xlu0 %v939, 24
      %v1025 = vpop.permute.xlu0 %1024
      %1026 = vrot.lane.b32.xlu0 %v940, 24
      %v1027 = vpop.permute.xlu0 %1026
      %1028 = vrot.lane.b32.xlu0 %v941, 24
      %v1029 = vpop.permute.xlu0 %1028
      %1030 = vrot.lane.b32.xlu0 %v942, 24
      %v1031 = vpop.permute.xlu0 %1030
      %1032 = vrot.lane.b32.xlu0 %v943, 24
      %v1033 = vpop.permute.xlu0 %1032
      %1034 = vrot.lane.b32.xlu0 %v944, 24
      %v1035 = vpop.permute.xlu0 %1034
      %1036 = vrot.lane.b32.xlu0 %v945, 24
      %v1037 = vpop.permute.xlu0 %1036
      %1038 = vrot.lane.b32.xlu0 %v946, 24
      %v1039 = vpop.permute.xlu0 %1038
      %1040 = vrot.lane.b32.xlu0 %v947, 24
      %v1041 = vpop.permute.xlu0 %1040
      %1042 = vrot.lane.b32.xlu0 %v948, 24
      %v1043 = vpop.permute.xlu0 %1042
      %1044 = vrot.lane.b32.xlu0 %v949, 24
      %v1045 = vpop.permute.xlu0 %1044
      %vm1078 = vcmask 261312
      %1079 = vst.msk [vmem:[#allocation3] sm:$0xff] %vm1078, %v983
      %1080 = vst.msk [vmem:[#allocation3 + $0x8] sm:$0xff] %vm1078, %v985
      %1081 = vst.msk [vmem:[#allocation3 + $0x10] sm:$0xff] %vm1078, %v987
      %1082 = vst.msk [vmem:[#allocation3 + $0x18] sm:$0xff] %vm1078, %v989
      %1083 = vst.msk [vmem:[#allocation3 + $0x20] sm:$0xff] %vm1078, %v991
      %1084 = vst.msk [vmem:[#allocation3 + $0x28] sm:$0xff] %vm1078, %v993
      %1085 = vst.msk [vmem:[#allocation3 + $0x30] sm:$0xff] %vm1078, %v995
      %1086 = vst.msk [vmem:[#allocation3 + $0x38] sm:$0xff] %vm1078, %v997
      %1087 = vst.msk [vmem:[#allocation3 + $0x40] sm:$0xff] %vm1078, %v999
      %1088 = vst.msk [vmem:[#allocation3 + $0x48] sm:$0xff] %vm1078, %v1001
      %1089 = vst.msk [vmem:[#allocation3 + $0x50] sm:$0xff] %vm1078, %v1003
      %1090 = vst.msk [vmem:[#allocation3 + $0x58] sm:$0xff] %vm1078, %v1005
      %1091 = vst.msk [vmem:[#allocation3 + $0x60] sm:$0xff] %vm1078, %v1007
      %1092 = vst.msk [vmem:[#allocation3 + $0x68] sm:$0xff] %vm1078, %v1009
      %1093 = vst.msk [vmem:[#allocation3 + $0x70] sm:$0xff] %vm1078, %v1011
      %1094 = vst.msk [vmem:[#allocation3 + $0x78] sm:$0xff] %vm1078, %v1013
      %1095 = vst.msk [vmem:[#allocation3 + $0x80] sm:$0xff] %vm1078, %v1015
      %1096 = vst.msk [vmem:[#allocation3 + $0x88] sm:$0xff] %vm1078, %v1017
      %1097 = vst.msk [vmem:[#allocation3 + $0x90] sm:$0xff] %vm1078, %v1019
      %1098 = vst.msk [vmem:[#allocation3 + $0x98] sm:$0xff] %vm1078, %v1021
      %1099 = vst.msk [vmem:[#allocation3 + $0xa0] sm:$0xff] %vm1078, %v1023
      %1100 = vst.msk [vmem:[#allocation3 + $0xa8] sm:$0xff] %vm1078, %v1025
      %1101 = vst.msk [vmem:[#allocation3 + $0xb0] sm:$0xff] %vm1078, %v1027
      %1102 = vst.msk [vmem:[#allocation3 + $0xb8] sm:$0xff] %vm1078, %v1029
      %1103 = vst.msk [vmem:[#allocation3 + $0xc0] sm:$0xff] %vm1078, %v1031
      %1104 = vst.msk [vmem:[#allocation3 + $0xc8] sm:$0xff] %vm1078, %v1033
      %1105 = vst.msk [vmem:[#allocation3 + $0xd0] sm:$0xff] %vm1078, %v1035
      %1106 = vst.msk [vmem:[#allocation3 + $0xd8] sm:$0xff] %vm1078, %v1037
      %1107 = vst.msk [vmem:[#allocation3 + $0xe0] sm:$0xff] %vm1078, %v1039
      %1108 = vst.msk [vmem:[#allocation3 + $0xe8] sm:$0xff] %vm1078, %v1041
      %1109 = vst.msk [vmem:[#allocation3 + $0xf0] sm:$0xff] %vm1078, %v1043
      %1110 = vst.msk [vmem:[#allocation3 + $0xf8] sm:$0xff] %vm1078, %v1045
      %v1111 = vld [vmem:[%s435 + $0x1] sm:$0xff]
      %v1112 = vld [vmem:[%s435 + $0x9] sm:$0xff]
      %v1113 = vld [vmem:[%s435 + $0x19] sm:$0xff]
      %v1114 = vld [vmem:[%s435 + $0x21] sm:$0xff]
      %v1115 = vld [vmem:[%s435 + $0x31] sm:$0xff]
      %v1116 = vld [vmem:[%s435 + $0x39] sm:$0xff]
      %v1117 = vld [vmem:[%s435 + $0x49] sm:$0xff]
      %v1118 = vld [vmem:[%s435 + $0x51] sm:$0xff]
      %v1119 = vld [vmem:[%s435 + $0x61] sm:$0xff]
      %v1120 = vld [vmem:[%s435 + $0x69] sm:$0xff]
      %v1121 = vld [vmem:[%s435 + $0x79] sm:$0xff]
      %v1122 = vld [vmem:[%s435 + $0x81] sm:$0xff]
      %v1123 = vld [vmem:[%s435 + $0x91] sm:$0xff]
      %v1124 = vld [vmem:[%s435 + $0x99] sm:$0xff]
      %v1125 = vld [vmem:[%s435 + $0xa9] sm:$0xff]
      %v1126 = vld [vmem:[%s435 + $0xb1] sm:$0xff]
      %v1127 = vld [vmem:[%s435 + $0xc1] sm:$0xff]
      %v1128 = vld [vmem:[%s435 + $0xc9] sm:$0xff]
      %v1129 = vld [vmem:[%s435 + $0xd9] sm:$0xff]
      %v1130 = vld [vmem:[%s435 + $0xe1] sm:$0xff]
      %v1131 = vld [vmem:[%s435 + $0xf1] sm:$0xff]
      %v1132 = vld [vmem:[%s435 + $0xf9] sm:$0xff]
      %v1133 = vld [vmem:[%s435 + $0x109] sm:$0xff]
      %v1134 = vld [vmem:[%s435 + $0x111] sm:$0xff]
      %v1135 = vld [vmem:[%s435 + $0x121] sm:$0xff]
      %v1136 = vld [vmem:[%s435 + $0x129] sm:$0xff]
      %v1137 = vld [vmem:[%s435 + $0x139] sm:$0xff]
      %v1138 = vld [vmem:[%s435 + $0x141] sm:$0xff]
      %v1139 = vld [vmem:[%s435 + $0x151] sm:$0xff]
      %v1140 = vld [vmem:[%s435 + $0x159] sm:$0xff]
      %v1141 = vld [vmem:[%s435 + $0x169] sm:$0xff]
      %v1142 = vld [vmem:[%s435 + $0x171] sm:$0xff]
      %1175 = vrot.lane.b32.xlu0 %v1111, 32
      %v1176 = vpop.permute.xlu0 %1175
      %1177 = vrot.lane.b32.xlu0 %v1112, 32
      %v1178 = vpop.permute.xlu0 %1177
      %1179 = vrot.lane.b32.xlu0 %v1113, 32
      %v1180 = vpop.permute.xlu0 %1179
      %1181 = vrot.lane.b32.xlu0 %v1114, 32
      %v1182 = vpop.permute.xlu0 %1181
      %1183 = vrot.lane.b32.xlu0 %v1115, 32
      %v1184 = vpop.permute.xlu0 %1183
      %1185 = vrot.lane.b32.xlu0 %v1116, 32
      %v1186 = vpop.permute.xlu0 %1185
      %1187 = vrot.lane.b32.xlu0 %v1117, 32
      %v1188 = vpop.permute.xlu0 %1187
      %1189 = vrot.lane.b32.xlu0 %v1118, 32
      %v1190 = vpop.permute.xlu0 %1189
      %1191 = vrot.lane.b32.xlu0 %v1119, 32
      %v1192 = vpop.permute.xlu0 %1191
      %1193 = vrot.lane.b32.xlu0 %v1120, 32
      %v1194 = vpop.permute.xlu0 %1193
      %1195 = vrot.lane.b32.xlu0 %v1121, 32
      %v1196 = vpop.permute.xlu0 %1195
      %1197 = vrot.lane.b32.xlu0 %v1122, 32
      %v1198 = vpop.permute.xlu0 %1197
      %1199 = vrot.lane.b32.xlu0 %v1123, 32
      %v1200 = vpop.permute.xlu0 %1199
      %1201 = vrot.lane.b32.xlu0 %v1124, 32
      %v1202 = vpop.permute.xlu0 %1201
      %1203 = vrot.lane.b32.xlu0 %v1125, 32
      %v1204 = vpop.permute.xlu0 %1203
      %1205 = vrot.lane.b32.xlu0 %v1126, 32
      %v1206 = vpop.permute.xlu0 %1205
      %1207 = vrot.lane.b32.xlu0 %v1127, 32
      %v1208 = vpop.permute.xlu0 %1207
      %1209 = vrot.lane.b32.xlu0 %v1128, 32
      %v1210 = vpop.permute.xlu0 %1209
      %1211 = vrot.lane.b32.xlu0 %v1129, 32
      %v1212 = vpop.permute.xlu0 %1211
      %1213 = vrot.lane.b32.xlu0 %v1130, 32
      %v1214 = vpop.permute.xlu0 %1213
      %1215 = vrot.lane.b32.xlu0 %v1131, 32
      %v1216 = vpop.permute.xlu0 %1215
      %1217 = vrot.lane.b32.xlu0 %v1132, 32
      %v1218 = vpop.permute.xlu0 %1217
      %1219 = vrot.lane.b32.xlu0 %v1133, 32
      %v1220 = vpop.permute.xlu0 %1219
      %1221 = vrot.lane.b32.xlu0 %v1134, 32
      %v1222 = vpop.permute.xlu0 %1221
      %1223 = vrot.lane.b32.xlu0 %v1135, 32
      %v1224 = vpop.permute.xlu0 %1223
      %1225 = vrot.lane.b32.xlu0 %v1136, 32
      %v1226 = vpop.permute.xlu0 %1225
      %1227 = vrot.lane.b32.xlu0 %v1137, 32
      %v1228 = vpop.permute.xlu0 %1227
      %1229 = vrot.lane.b32.xlu0 %v1138, 32
      %v1230 = vpop.permute.xlu0 %1229
      %1231 = vrot.lane.b32.xlu0 %v1139, 32
      %v1232 = vpop.permute.xlu0 %1231
      %1233 = vrot.lane.b32.xlu0 %v1140, 32
      %v1234 = vpop.permute.xlu0 %1233
      %1235 = vrot.lane.b32.xlu0 %v1141, 32
      %v1236 = vpop.permute.xlu0 %1235
      %1237 = vrot.lane.b32.xlu0 %v1142, 32
      %v1238 = vpop.permute.xlu0 %1237
      %vm1271 = vcmask 326912
      %1272 = vst.msk [vmem:[#allocation3] sm:$0xff] %vm1271, %v1176
      %1273 = vst.msk [vmem:[#allocation3 + $0x8] sm:$0xff] %vm1271, %v1178
      %1274 = vst.msk [vmem:[#allocation3 + $0x10] sm:$0xff] %vm1271, %v1180
      %1275 = vst.msk [vmem:[#allocation3 + $0x18] sm:$0xff] %vm1271, %v1182
      %1276 = vst.msk [vmem:[#allocation3 + $0x20] sm:$0xff] %vm1271, %v1184
      %1277 = vst.msk [vmem:[#allocation3 + $0x28] sm:$0xff] %vm1271, %v1186
      %1278 = vst.msk [vmem:[#allocation3 + $0x30] sm:$0xff] %vm1271, %v1188
      %1279 = vst.msk [vmem:[#allocation3 + $0x38] sm:$0xff] %vm1271, %v1190
      %1280 = vst.msk [vmem:[#allocation3 + $0x40] sm:$0xff] %vm1271, %v1192
      %1281 = vst.msk [vmem:[#allocation3 + $0x48] sm:$0xff] %vm1271, %v1194
      %1282 = vst.msk [vmem:[#allocation3 + $0x50] sm:$0xff] %vm1271, %v1196
      %1283 = vst.msk [vmem:[#allocation3 + $0x58] sm:$0xff] %vm1271, %v1198
      %1284 = vst.msk [vmem:[#allocation3 + $0x60] sm:$0xff] %vm1271, %v1200
      %1285 = vst.msk [vmem:[#allocation3 + $0x68] sm:$0xff] %vm1271, %v1202
      %1286 = vst.msk [vmem:[#allocation3 + $0x70] sm:$0xff] %vm1271, %v1204
      %1287 = vst.msk [vmem:[#allocation3 + $0x78] sm:$0xff] %vm1271, %v1206
      %1288 = vst.msk [vmem:[#allocation3 + $0x80] sm:$0xff] %vm1271, %v1208
      %1289 = vst.msk [vmem:[#allocation3 + $0x88] sm:$0xff] %vm1271, %v1210
      %1290 = vst.msk [vmem:[#allocation3 + $0x90] sm:$0xff] %vm1271, %v1212
      %1291 = vst.msk [vmem:[#allocation3 + $0x98] sm:$0xff] %vm1271, %v1214
      %1292 = vst.msk [vmem:[#allocation3 + $0xa0] sm:$0xff] %vm1271, %v1216
      %1293 = vst.msk [vmem:[#allocation3 + $0xa8] sm:$0xff] %vm1271, %v1218
      %1294 = vst.msk [vmem:[#allocation3 + $0xb0] sm:$0xff] %vm1271, %v1220
      %1295 = vst.msk [vmem:[#allocation3 + $0xb8] sm:$0xff] %vm1271, %v1222
      %1296 = vst.msk [vmem:[#allocation3 + $0xc0] sm:$0xff] %vm1271, %v1224
      %1297 = vst.msk [vmem:[#allocation3 + $0xc8] sm:$0xff] %vm1271, %v1226
      %1298 = vst.msk [vmem:[#allocation3 + $0xd0] sm:$0xff] %vm1271, %v1228
      %1299 = vst.msk [vmem:[#allocation3 + $0xd8] sm:$0xff] %vm1271, %v1230
      %1300 = vst.msk [vmem:[#allocation3 + $0xe0] sm:$0xff] %vm1271, %v1232
      %1301 = vst.msk [vmem:[#allocation3 + $0xe8] sm:$0xff] %vm1271, %v1234
      %1302 = vst.msk [vmem:[#allocation3 + $0xf0] sm:$0xff] %vm1271, %v1236
      %1303 = vst.msk [vmem:[#allocation3 + $0xf8] sm:$0xff] %vm1271, %v1238
      %v1304 = vld [vmem:[%s435 + $0x2] sm:$0xff]
      %v1305 = vld [vmem:[%s435 + $0xa] sm:$0xff]
      %v1306 = vld [vmem:[%s435 + $0x1a] sm:$0xff]
      %v1307 = vld [vmem:[%s435 + $0x22] sm:$0xff]
      %v1308 = vld [vmem:[%s435 + $0x32] sm:$0xff]
      %v1309 = vld [vmem:[%s435 + $0x3a] sm:$0xff]
      %v1310 = vld [vmem:[%s435 + $0x4a] sm:$0xff]
      %v1311 = vld [vmem:[%s435 + $0x52] sm:$0xff]
      %v1312 = vld [vmem:[%s435 + $0x62] sm:$0xff]
      %v1313 = vld [vmem:[%s435 + $0x6a] sm:$0xff]
      %v1314 = vld [vmem:[%s435 + $0x7a] sm:$0xff]
      %v1315 = vld [vmem:[%s435 + $0x82] sm:$0xff]
      %v1316 = vld [vmem:[%s435 + $0x92] sm:$0xff]
      %v1317 = vld [vmem:[%s435 + $0x9a] sm:$0xff]
      %v1318 = vld [vmem:[%s435 + $0xaa] sm:$0xff]
      %v1319 = vld [vmem:[%s435 + $0xb2] sm:$0xff]
      %v1320 = vld [vmem:[%s435 + $0xc2] sm:$0xff]
      %v1321 = vld [vmem:[%s435 + $0xca] sm:$0xff]
      %v1322 = vld [vmem:[%s435 + $0xda] sm:$0xff]
      %v1323 = vld [vmem:[%s435 + $0xe2] sm:$0xff]
      %v1324 = vld [vmem:[%s435 + $0xf2] sm:$0xff]
      %v1325 = vld [vmem:[%s435 + $0xfa] sm:$0xff]
      %v1326 = vld [vmem:[%s435 + $0x10a] sm:$0xff]
      %v1327 = vld [vmem:[%s435 + $0x112] sm:$0xff]
      %v1328 = vld [vmem:[%s435 + $0x122] sm:$0xff]
      %v1329 = vld [vmem:[%s435 + $0x12a] sm:$0xff]
      %v1330 = vld [vmem:[%s435 + $0x13a] sm:$0xff]
      %v1331 = vld [vmem:[%s435 + $0x142] sm:$0xff]
      %v1332 = vld [vmem:[%s435 + $0x152] sm:$0xff]
      %v1333 = vld [vmem:[%s435 + $0x15a] sm:$0xff]
      %v1334 = vld [vmem:[%s435 + $0x16a] sm:$0xff]
      %v1335 = vld [vmem:[%s435 + $0x172] sm:$0xff]
      %1368 = vrot.lane.b32.xlu0 %v1304, 40
      %v1369 = vpop.permute.xlu0 %1368
      %1370 = vrot.lane.b32.xlu0 %v1305, 40
      %v1371 = vpop.permute.xlu0 %1370
      %1372 = vrot.lane.b32.xlu0 %v1306, 40
      %v1373 = vpop.permute.xlu0 %1372
      %1374 = vrot.lane.b32.xlu0 %v1307, 40
      %v1375 = vpop.permute.xlu0 %1374
      %1376 = vrot.lane.b32.xlu0 %v1308, 40
      %v1377 = vpop.permute.xlu0 %1376
      %1378 = vrot.lane.b32.xlu0 %v1309, 40
      %v1379 = vpop.permute.xlu0 %1378
      %1380 = vrot.lane.b32.xlu0 %v1310, 40
      %v1381 = vpop.permute.xlu0 %1380
      %1382 = vrot.lane.b32.xlu0 %v1311, 40
      %v1383 = vpop.permute.xlu0 %1382
      %1384 = vrot.lane.b32.xlu0 %v1312, 40
      %v1385 = vpop.permute.xlu0 %1384
      %1386 = vrot.lane.b32.xlu0 %v1313, 40
      %v1387 = vpop.permute.xlu0 %1386
      %1388 = vrot.lane.b32.xlu0 %v1314, 40
      %v1389 = vpop.permute.xlu0 %1388
      %1390 = vrot.lane.b32.xlu0 %v1315, 40
      %v1391 = vpop.permute.xlu0 %1390
      %1392 = vrot.lane.b32.xlu0 %v1316, 40
      %v1393 = vpop.permute.xlu0 %1392
      %1394 = vrot.lane.b32.xlu0 %v1317, 40
      %v1395 = vpop.permute.xlu0 %1394
      %1396 = vrot.lane.b32.xlu0 %v1318, 40
      %v1397 = vpop.permute.xlu0 %1396
      %1398 = vrot.lane.b32.xlu0 %v1319, 40
      %v1399 = vpop.permute.xlu0 %1398
      %1400 = vrot.lane.b32.xlu0 %v1320, 40
      %v1401 = vpop.permute.xlu0 %1400
      %1402 = vrot.lane.b32.xlu0 %v1321, 40
      %v1403 = vpop.permute.xlu0 %1402
      %1404 = vrot.lane.b32.xlu0 %v1322, 40
      %v1405 = vpop.permute.xlu0 %1404
      %1406 = vrot.lane.b32.xlu0 %v1323, 40
      %v1407 = vpop.permute.xlu0 %1406
      %1408 = vrot.lane.b32.xlu0 %v1324, 40
      %v1409 = vpop.permute.xlu0 %1408
      %1410 = vrot.lane.b32.xlu0 %v1325, 40
      %v1411 = vpop.permute.xlu0 %1410
      %1412 = vrot.lane.b32.xlu0 %v1326, 40
      %v1413 = vpop.permute.xlu0 %1412
      %1414 = vrot.lane.b32.xlu0 %v1327, 40
      %v1415 = vpop.permute.xlu0 %1414
      %1416 = vrot.lane.b32.xlu0 %v1328, 40
      %v1417 = vpop.permute.xlu0 %1416
      %1418 = vrot.lane.b32.xlu0 %v1329, 40
      %v1419 = vpop.permute.xlu0 %1418
      %1420 = vrot.lane.b32.xlu0 %v1330, 40
      %v1421 = vpop.permute.xlu0 %1420
      %1422 = vrot.lane.b32.xlu0 %v1331, 40
      %v1423 = vpop.permute.xlu0 %1422
      %1424 = vrot.lane.b32.xlu0 %v1332, 40
      %v1425 = vpop.permute.xlu0 %1424
      %1426 = vrot.lane.b32.xlu0 %v1333, 40
      %v1427 = vpop.permute.xlu0 %1426
      %1428 = vrot.lane.b32.xlu0 %v1334, 40
      %v1429 = vpop.permute.xlu0 %1428
      %1430 = vrot.lane.b32.xlu0 %v1335, 40
      %v1431 = vpop.permute.xlu0 %1430
      %vm1464 = vcmask 392512
      %1465 = vst.msk [vmem:[#allocation3] sm:$0xff] %vm1464, %v1369
      %1466 = vst.msk [vmem:[#allocation3 + $0x8] sm:$0xff] %vm1464, %v1371
      %1467 = vst.msk [vmem:[#allocation3 + $0x10] sm:$0xff] %vm1464, %v1373
      %1468 = vst.msk [vmem:[#allocation3 + $0x18] sm:$0xff] %vm1464, %v1375
      %1469 = vst.msk [vmem:[#allocation3 + $0x20] sm:$0xff] %vm1464, %v1377
      %1470 = vst.msk [vmem:[#allocation3 + $0x28] sm:$0xff] %vm1464, %v1379
      %1471 = vst.msk [vmem:[#allocation3 + $0x30] sm:$0xff] %vm1464, %v1381
      %1472 = vst.msk [vmem:[#allocation3 + $0x38] sm:$0xff] %vm1464, %v1383
      %1473 = vst.msk [vmem:[#allocation3 + $0x40] sm:$0xff] %vm1464, %v1385
      %1474 = vst.msk [vmem:[#allocation3 + $0x48] sm:$0xff] %vm1464, %v1387
      %1475 = vst.msk [vmem:[#allocation3 + $0x50] sm:$0xff] %vm1464, %v1389
      %1476 = vst.msk [vmem:[#allocation3 + $0x58] sm:$0xff] %vm1464, %v1391
      %1477 = vst.msk [vmem:[#allocation3 + $0x60] sm:$0xff] %vm1464, %v1393
      %1478 = vst.msk [vmem:[#allocation3 + $0x68] sm:$0xff] %vm1464, %v1395
      %1479 = vst.msk [vmem:[#allocation3 + $0x70] sm:$0xff] %vm1464, %v1397
      %1480 = vst.msk [vmem:[#allocation3 + $0x78] sm:$0xff] %vm1464, %v1399
      %1481 = vst.msk [vmem:[#allocation3 + $0x80] sm:$0xff] %vm1464, %v1401
      %1482 = vst.msk [vmem:[#allocation3 + $0x88] sm:$0xff] %vm1464, %v1403
      %1483 = vst.msk [vmem:[#allocation3 + $0x90] sm:$0xff] %vm1464, %v1405
      %1484 = vst.msk [vmem:[#allocation3 + $0x98] sm:$0xff] %vm1464, %v1407
      %1485 = vst.msk [vmem:[#allocation3 + $0xa0] sm:$0xff] %vm1464, %v1409
      %1486 = vst.msk [vmem:[#allocation3 + $0xa8] sm:$0xff] %vm1464, %v1411
      %1487 = vst.msk [vmem:[#allocation3 + $0xb0] sm:$0xff] %vm1464, %v1413
      %1488 = vst.msk [vmem:[#allocation3 + $0xb8] sm:$0xff] %vm1464, %v1415
      %1489 = vst.msk [vmem:[#allocation3 + $0xc0] sm:$0xff] %vm1464, %v1417
      %1490 = vst.msk [vmem:[#allocation3 + $0xc8] sm:$0xff] %vm1464, %v1419
      %1491 = vst.msk [vmem:[#allocation3 + $0xd0] sm:$0xff] %vm1464, %v1421
      %1492 = vst.msk [vmem:[#allocation3 + $0xd8] sm:$0xff] %vm1464, %v1423
      %1493 = vst.msk [vmem:[#allocation3 + $0xe0] sm:$0xff] %vm1464, %v1425
      %1494 = vst.msk [vmem:[#allocation3 + $0xe8] sm:$0xff] %vm1464, %v1427
      %1495 = vst.msk [vmem:[#allocation3 + $0xf0] sm:$0xff] %vm1464, %v1429
      %1496 = vst.msk [vmem:[#allocation3 + $0xf8] sm:$0xff] %vm1464, %v1431
      %s1497 = scalar_lea.vmem [#allocation2], 48
      %v1498 = vld [vmem:[%s1497] sm:$0xff]
      %v1499 = vld [vmem:[%s1497 + $0x8] sm:$0xff]
      %v1500 = vld [vmem:[%s1497 + $0x18] sm:$0xff]
      %v1501 = vld [vmem:[%s1497 + $0x20] sm:$0xff]
      %v1502 = vld [vmem:[%s1497 + $0x30] sm:$0xff]
      %v1503 = vld [vmem:[%s1497 + $0x38] sm:$0xff]
      %v1504 = vld [vmem:[%s1497 + $0x48] sm:$0xff]
      %v1505 = vld [vmem:[%s1497 + $0x50] sm:$0xff]
      %v1506 = vld [vmem:[%s1497 + $0x60] sm:$0xff]
      %v1507 = vld [vmem:[%s1497 + $0x68] sm:$0xff]
      %v1508 = vld [vmem:[%s1497 + $0x78] sm:$0xff]
      %v1509 = vld [vmem:[%s1497 + $0x80] sm:$0xff]
      %v1510 = vld [vmem:[%s1497 + $0x90] sm:$0xff]
      %v1511 = vld [vmem:[%s1497 + $0x98] sm:$0xff]
      %v1512 = vld [vmem:[%s1497 + $0xa8] sm:$0xff]
      %v1513 = vld [vmem:[%s1497 + $0xb0] sm:$0xff]
      %v1514 = vld [vmem:[%s1497 + $0xc0] sm:$0xff]
      %v1515 = vld [vmem:[%s1497 + $0xc8] sm:$0xff]
      %v1516 = vld [vmem:[%s1497 + $0xd8] sm:$0xff]
      %v1517 = vld [vmem:[%s1497 + $0xe0] sm:$0xff]
      %v1518 = vld [vmem:[%s1497 + $0xf0] sm:$0xff]
      %v1519 = vld [vmem:[%s1497 + $0xf8] sm:$0xff]
      %v1520 = vld [vmem:[%s1497 + $0x108] sm:$0xff]
      %v1521 = vld [vmem:[%s1497 + $0x110] sm:$0xff]
      %v1522 = vld [vmem:[%s1497 + $0x120] sm:$0xff]
      %v1523 = vld [vmem:[%s1497 + $0x128] sm:$0xff]
      %v1524 = vld [vmem:[%s1497 + $0x138] sm:$0xff]
      %v1525 = vld [vmem:[%s1497 + $0x140] sm:$0xff]
      %v1526 = vld [vmem:[%s1497 + $0x150] sm:$0xff]
      %v1527 = vld [vmem:[%s1497 + $0x158] sm:$0xff]
      %v1528 = vld [vmem:[%s1497 + $0x168] sm:$0xff]
      %v1529 = vld [vmem:[%s1497 + $0x170] sm:$0xff]
      %1562 = vrot.lane.b32.xlu0 %v1498, 48
      %v1563 = vpop.permute.xlu0 %1562
      %1564 = vrot.lane.b32.xlu0 %v1499, 48
      %v1565 = vpop.permute.xlu0 %1564
      %1566 = vrot.lane.b32.xlu0 %v1500, 48
      %v1567 = vpop.permute.xlu0 %1566
      %1568 = vrot.lane.b32.xlu0 %v1501, 48
      %v1569 = vpop.permute.xlu0 %1568
      %1570 = vrot.lane.b32.xlu0 %v1502, 48
      %v1571 = vpop.permute.xlu0 %1570
      %1572 = vrot.lane.b32.xlu0 %v1503, 48
      %v1573 = vpop.permute.xlu0 %1572
      %1574 = vrot.lane.b32.xlu0 %v1504, 48
      %v1575 = vpop.permute.xlu0 %1574
      %1576 = vrot.lane.b32.xlu0 %v1505, 48
      %v1577 = vpop.permute.xlu0 %1576
      %1578 = vrot.lane.b32.xlu0 %v1506, 48
      %v1579 = vpop.permute.xlu0 %1578
      %1580 = vrot.lane.b32.xlu0 %v1507, 48
      %v1581 = vpop.permute.xlu0 %1580
      %1582 = vrot.lane.b32.xlu0 %v1508, 48
      %v1583 = vpop.permute.xlu0 %1582
      %1584 = vrot.lane.b32.xlu0 %v1509, 48
      %v1585 = vpop.permute.xlu0 %1584
      %1586 = vrot.lane.b32.xlu0 %v1510, 48
      %v1587 = vpop.permute.xlu0 %1586
      %1588 = vrot.lane.b32.xlu0 %v1511, 48
      %v1589 = vpop.permute.xlu0 %1588
      %1590 = vrot.lane.b32.xlu0 %v1512, 48
      %v1591 = vpop.permute.xlu0 %1590
      %1592 = vrot.lane.b32.xlu0 %v1513, 48
      %v1593 = vpop.permute.xlu0 %1592
      %1594 = vrot.lane.b32.xlu0 %v1514, 48
      %v1595 = vpop.permute.xlu0 %1594
      %1596 = vrot.lane.b32.xlu0 %v1515, 48
      %v1597 = vpop.permute.xlu0 %1596
      %1598 = vrot.lane.b32.xlu0 %v1516, 48
      %v1599 = vpop.permute.xlu0 %1598
      %1600 = vrot.lane.b32.xlu0 %v1517, 48
      %v1601 = vpop.permute.xlu0 %1600
      %1602 = vrot.lane.b32.xlu0 %v1518, 48
      %v1603 = vpop.permute.xlu0 %1602
      %1604 = vrot.lane.b32.xlu0 %v1519, 48
      %v1605 = vpop.permute.xlu0 %1604
      %1606 = vrot.lane.b32.xlu0 %v1520, 48
      %v1607 = vpop.permute.xlu0 %1606
      %1608 = vrot.lane.b32.xlu0 %v1521, 48
      %v1609 = vpop.permute.xlu0 %1608
      %1610 = vrot.lane.b32.xlu0 %v1522, 48
      %v1611 = vpop.permute.xlu0 %1610
      %1612 = vrot.lane.b32.xlu0 %v1523, 48
      %v1613 = vpop.permute.xlu0 %1612
      %1614 = vrot.lane.b32.xlu0 %v1524, 48
      %v1615 = vpop.permute.xlu0 %1614
      %1616 = vrot.lane.b32.xlu0 %v1525, 48
      %v1617 = vpop.permute.xlu0 %1616
      %1618 = vrot.lane.b32.xlu0 %v1526, 48
      %v1619 = vpop.permute.xlu0 %1618
      %1620 = vrot.lane.b32.xlu0 %v1527, 48
      %v1621 = vpop.permute.xlu0 %1620
      %1622 = vrot.lane.b32.xlu0 %v1528, 48
      %v1623 = vpop.permute.xlu0 %1622
      %1624 = vrot.lane.b32.xlu0 %v1529, 48
      %v1625 = vpop.permute.xlu0 %1624
      %vm1658 = vcmask 458112
      %1659 = vst.msk [vmem:[#allocation3] sm:$0xff] %vm1658, %v1563
      %1660 = vst.msk [vmem:[#allocation3 + $0x8] sm:$0xff] %vm1658, %v1565
      %1661 = vst.msk [vmem:[#allocation3 + $0x10] sm:$0xff] %vm1658, %v1567
      %1662 = vst.msk [vmem:[#allocation3 + $0x18] sm:$0xff] %vm1658, %v1569
      %1663 = vst.msk [vmem:[#allocation3 + $0x20] sm:$0xff] %vm1658, %v1571
      %1664 = vst.msk [vmem:[#allocation3 + $0x28] sm:$0xff] %vm1658, %v1573
      %1665 = vst.msk [vmem:[#allocation3 + $0x30] sm:$0xff] %vm1658, %v1575
      %1666 = vst.msk [vmem:[#allocation3 + $0x38] sm:$0xff] %vm1658, %v1577
      %1667 = vst.msk [vmem:[#allocation3 + $0x40] sm:$0xff] %vm1658, %v1579
      %1668 = vst.msk [vmem:[#allocation3 + $0x48] sm:$0xff] %vm1658, %v1581
      %1669 = vst.msk [vmem:[#allocation3 + $0x50] sm:$0xff] %vm1658, %v1583
      %1670 = vst.msk [vmem:[#allocation3 + $0x58] sm:$0xff] %vm1658, %v1585
      %1671 = vst.msk [vmem:[#allocation3 + $0x60] sm:$0xff] %vm1658, %v1587
      %1672 = vst.msk [vmem:[#allocation3 + $0x68] sm:$0xff] %vm1658, %v1589
      %1673 = vst.msk [vmem:[#allocation3 + $0x70] sm:$0xff] %vm1658, %v1591
      %1674 = vst.msk [vmem:[#allocation3 + $0x78] sm:$0xff] %vm1658, %v1593
      %1675 = vst.msk [vmem:[#allocation3 + $0x80] sm:$0xff] %vm1658, %v1595
      %1676 = vst.msk [vmem:[#allocation3 + $0x88] sm:$0xff] %vm1658, %v1597
      %1677 = vst.msk [vmem:[#allocation3 + $0x90] sm:$0xff] %vm1658, %v1599
      %1678 = vst.msk [vmem:[#allocation3 + $0x98] sm:$0xff] %vm1658, %v1601
      %1679 = vst.msk [vmem:[#allocation3 + $0xa0] sm:$0xff] %vm1658, %v1603
      %1680 = vst.msk [vmem:[#allocation3 + $0xa8] sm:$0xff] %vm1658, %v1605
      %1681 = vst.msk [vmem:[#allocation3 + $0xb0] sm:$0xff] %vm1658, %v1607
      %1682 = vst.msk [vmem:[#allocation3 + $0xb8] sm:$0xff] %vm1658, %v1609
      %1683 = vst.msk [vmem:[#allocation3 + $0xc0] sm:$0xff] %vm1658, %v1611
      %1684 = vst.msk [vmem:[#allocation3 + $0xc8] sm:$0xff] %vm1658, %v1613
      %1685 = vst.msk [vmem:[#allocation3 + $0xd0] sm:$0xff] %vm1658, %v1615
      %1686 = vst.msk [vmem:[#allocation3 + $0xd8] sm:$0xff] %vm1658, %v1617
      %1687 = vst.msk [vmem:[#allocation3 + $0xe0] sm:$0xff] %vm1658, %v1619
      %1688 = vst.msk [vmem:[#allocation3 + $0xe8] sm:$0xff] %vm1658, %v1621
      %1689 = vst.msk [vmem:[#allocation3 + $0xf0] sm:$0xff] %vm1658, %v1623
      %1690 = vst.msk [vmem:[#allocation3 + $0xf8] sm:$0xff] %vm1658, %v1625
      %v1691 = vld [vmem:[%s1497 + $0x1] sm:$0xff]
      %v1692 = vld [vmem:[%s1497 + $0x9] sm:$0xff]
      %v1693 = vld [vmem:[%s1497 + $0x19] sm:$0xff]
      %v1694 = vld [vmem:[%s1497 + $0x21] sm:$0xff]
      %v1695 = vld [vmem:[%s1497 + $0x31] sm:$0xff]
      %v1696 = vld [vmem:[%s1497 + $0x39] sm:$0xff]
      %v1697 = vld [vmem:[%s1497 + $0x49] sm:$0xff]
      %v1698 = vld [vmem:[%s1497 + $0x51] sm:$0xff]
      %v1699 = vld [vmem:[%s1497 + $0x61] sm:$0xff]
      %v1700 = vld [vmem:[%s1497 + $0x69] sm:$0xff]
      %v1701 = vld [vmem:[%s1497 + $0x79] sm:$0xff]
      %v1702 = vld [vmem:[%s1497 + $0x81] sm:$0xff]
      %v1703 = vld [vmem:[%s1497 + $0x91] sm:$0xff]
      %v1704 = vld [vmem:[%s1497 + $0x99] sm:$0xff]
      %v1705 = vld [vmem:[%s1497 + $0xa9] sm:$0xff]
      %v1706 = vld [vmem:[%s1497 + $0xb1] sm:$0xff]
      %v1707 = vld [vmem:[%s1497 + $0xc1] sm:$0xff]
      %v1708 = vld [vmem:[%s1497 + $0xc9] sm:$0xff]
      %v1709 = vld [vmem:[%s1497 + $0xd9] sm:$0xff]
      %v1710 = vld [vmem:[%s1497 + $0xe1] sm:$0xff]
      %v1711 = vld [vmem:[%s1497 + $0xf1] sm:$0xff]
      %v1712 = vld [vmem:[%s1497 + $0xf9] sm:$0xff]
      %v1713 = vld [vmem:[%s1497 + $0x109] sm:$0xff]
      %v1714 = vld [vmem:[%s1497 + $0x111] sm:$0xff]
      %v1715 = vld [vmem:[%s1497 + $0x121] sm:$0xff]
      %v1716 = vld [vmem:[%s1497 + $0x129] sm:$0xff]
      %v1717 = vld [vmem:[%s1497 + $0x139] sm:$0xff]
      %v1718 = vld [vmem:[%s1497 + $0x141] sm:$0xff]
      %v1719 = vld [vmem:[%s1497 + $0x151] sm:$0xff]
      %v1720 = vld [vmem:[%s1497 + $0x159] sm:$0xff]
      %v1721 = vld [vmem:[%s1497 + $0x169] sm:$0xff]
      %v1722 = vld [vmem:[%s1497 + $0x171] sm:$0xff]
      %1755 = vrot.lane.b32.xlu0 %v1691, 56
      %v1756 = vpop.permute.xlu0 %1755
      %1757 = vrot.lane.b32.xlu0 %v1692, 56
      %v1758 = vpop.permute.xlu0 %1757
      %1759 = vrot.lane.b32.xlu0 %v1693, 56
      %v1760 = vpop.permute.xlu0 %1759
      %1761 = vrot.lane.b32.xlu0 %v1694, 56
      %v1762 = vpop.permute.xlu0 %1761
      %1763 = vrot.lane.b32.xlu0 %v1695, 56
      %v1764 = vpop.permute.xlu0 %1763
      %1765 = vrot.lane.b32.xlu0 %v1696, 56
      %v1766 = vpop.permute.xlu0 %1765
      %1767 = vrot.lane.b32.xlu0 %v1697, 56
      %v1768 = vpop.permute.xlu0 %1767
      %1769 = vrot.lane.b32.xlu0 %v1698, 56
      %v1770 = vpop.permute.xlu0 %1769
      %1771 = vrot.lane.b32.xlu0 %v1699, 56
      %v1772 = vpop.permute.xlu0 %1771
      %1773 = vrot.lane.b32.xlu0 %v1700, 56
      %v1774 = vpop.permute.xlu0 %1773
      %1775 = vrot.lane.b32.xlu0 %v1701, 56
      %v1776 = vpop.permute.xlu0 %1775
      %1777 = vrot.lane.b32.xlu0 %v1702, 56
      %v1778 = vpop.permute.xlu0 %1777
      %1779 = vrot.lane.b32.xlu0 %v1703, 56
      %v1780 = vpop.permute.xlu0 %1779
      %1781 = vrot.lane.b32.xlu0 %v1704, 56
      %v1782 = vpop.permute.xlu0 %1781
      %1783 = vrot.lane.b32.xlu0 %v1705, 56
      %v1784 = vpop.permute.xlu0 %1783
      %1785 = vrot.lane.b32.xlu0 %v1706, 56
      %v1786 = vpop.permute.xlu0 %1785
      %1787 = vrot.lane.b32.xlu0 %v1707, 56
      %v1788 = vpop.permute.xlu0 %1787
      %1789 = vrot.lane.b32.xlu0 %v1708, 56
      %v1790 = vpop.permute.xlu0 %1789
      %1791 = vrot.lane.b32.xlu0 %v1709, 56
      %v1792 = vpop.permute.xlu0 %1791
      %1793 = vrot.lane.b32.xlu0 %v1710, 56
      %v1794 = vpop.permute.xlu0 %1793
      %1795 = vrot.lane.b32.xlu0 %v1711, 56
      %v1796 = vpop.permute.xlu0 %1795
      %1797 = vrot.lane.b32.xlu0 %v1712, 56
      %v1798 = vpop.permute.xlu0 %1797
      %1799 = vrot.lane.b32.xlu0 %v1713, 56
      %v1800 = vpop.permute.xlu0 %1799
      %1801 = vrot.lane.b32.xlu0 %v1714, 56
      %v1802 = vpop.permute.xlu0 %1801
      %1803 = vrot.lane.b32.xlu0 %v1715, 56
      %v1804 = vpop.permute.xlu0 %1803
      %1805 = vrot.lane.b32.xlu0 %v1716, 56
      %v1806 = vpop.permute.xlu0 %1805
      %1807 = vrot.lane.b32.xlu0 %v1717, 56
      %v1808 = vpop.permute.xlu0 %1807
      %1809 = vrot.lane.b32.xlu0 %v1718, 56
      %v1810 = vpop.permute.xlu0 %1809
      %1811 = vrot.lane.b32.xlu0 %v1719, 56
      %v1812 = vpop.permute.xlu0 %1811
      %1813 = vrot.lane.b32.xlu0 %v1720, 56
      %v1814 = vpop.permute.xlu0 %1813
      %1815 = vrot.lane.b32.xlu0 %v1721, 56
      %v1816 = vpop.permute.xlu0 %1815
      %1817 = vrot.lane.b32.xlu0 %v1722, 56
      %v1818 = vpop.permute.xlu0 %1817
      %vm1851 = vcmask 523712
      %1852 = vst.msk [vmem:[#allocation3] sm:$0xff] %vm1851, %v1756
      %1853 = vst.msk [vmem:[#allocation3 + $0x8] sm:$0xff] %vm1851, %v1758
      %1854 = vst.msk [vmem:[#allocation3 + $0x10] sm:$0xff] %vm1851, %v1760
      %1855 = vst.msk [vmem:[#allocation3 + $0x18] sm:$0xff] %vm1851, %v1762
      %1856 = vst.msk [vmem:[#allocation3 + $0x20] sm:$0xff] %vm1851, %v1764
      %1857 = vst.msk [vmem:[#allocation3 + $0x28] sm:$0xff] %vm1851, %v1766
      %1858 = vst.msk [vmem:[#allocation3 + $0x30] sm:$0xff] %vm1851, %v1768
      %1859 = vst.msk [vmem:[#allocation3 + $0x38] sm:$0xff] %vm1851, %v1770
      %1860 = vst.msk [vmem:[#allocation3 + $0x40] sm:$0xff] %vm1851, %v1772
      %1861 = vst.msk [vmem:[#allocation3 + $0x48] sm:$0xff] %vm1851, %v1774
      %1862 = vst.msk [vmem:[#allocation3 + $0x50] sm:$0xff] %vm1851, %v1776
      %1863 = vst.msk [vmem:[#allocation3 + $0x58] sm:$0xff] %vm1851, %v1778
      %1864 = vst.msk [vmem:[#allocation3 + $0x60] sm:$0xff] %vm1851, %v1780
      %1865 = vst.msk [vmem:[#allocation3 + $0x68] sm:$0xff] %vm1851, %v1782
      %1866 = vst.msk [vmem:[#allocation3 + $0x70] sm:$0xff] %vm1851, %v1784
      %1867 = vst.msk [vmem:[#allocation3 + $0x78] sm:$0xff] %vm1851, %v1786
      %1868 = vst.msk [vmem:[#allocation3 + $0x80] sm:$0xff] %vm1851, %v1788
      %1869 = vst.msk [vmem:[#allocation3 + $0x88] sm:$0xff] %vm1851, %v1790
      %1870 = vst.msk [vmem:[#allocation3 + $0x90] sm:$0xff] %vm1851, %v1792
      %1871 = vst.msk [vmem:[#allocation3 + $0x98] sm:$0xff] %vm1851, %v1794
      %1872 = vst.msk [vmem:[#allocation3 + $0xa0] sm:$0xff] %vm1851, %v1796
      %1873 = vst.msk [vmem:[#allocation3 + $0xa8] sm:$0xff] %vm1851, %v1798
      %1874 = vst.msk [vmem:[#allocation3 + $0xb0] sm:$0xff] %vm1851, %v1800
      %1875 = vst.msk [vmem:[#allocation3 + $0xb8] sm:$0xff] %vm1851, %v1802
      %1876 = vst.msk [vmem:[#allocation3 + $0xc0] sm:$0xff] %vm1851, %v1804
      %1877 = vst.msk [vmem:[#allocation3 + $0xc8] sm:$0xff] %vm1851, %v1806
      %1878 = vst.msk [vmem:[#allocation3 + $0xd0] sm:$0xff] %vm1851, %v1808
      %1879 = vst.msk [vmem:[#allocation3 + $0xd8] sm:$0xff] %vm1851, %v1810
      %1880 = vst.msk [vmem:[#allocation3 + $0xe0] sm:$0xff] %vm1851, %v1812
      %1881 = vst.msk [vmem:[#allocation3 + $0xe8] sm:$0xff] %vm1851, %v1814
      %1882 = vst.msk [vmem:[#allocation3 + $0xf0] sm:$0xff] %vm1851, %v1816
      %1883 = vst.msk [vmem:[#allocation3 + $0xf8] sm:$0xff] %vm1851, %v1818
      %v1884 = vld [vmem:[%s1497 + $0x2] sm:$0xff]
      %v1885 = vld [vmem:[%s1497 + $0xa] sm:$0xff]
      %v1886 = vld [vmem:[%s1497 + $0x1a] sm:$0xff]
      %v1887 = vld [vmem:[%s1497 + $0x22] sm:$0xff]
      %v1888 = vld [vmem:[%s1497 + $0x32] sm:$0xff]
      %v1889 = vld [vmem:[%s1497 + $0x3a] sm:$0xff]
      %v1890 = vld [vmem:[%s1497 + $0x4a] sm:$0xff]
      %v1891 = vld [vmem:[%s1497 + $0x52] sm:$0xff]
      %v1892 = vld [vmem:[%s1497 + $0x62] sm:$0xff]
      %v1893 = vld [vmem:[%s1497 + $0x6a] sm:$0xff]
      %v1894 = vld [vmem:[%s1497 + $0x7a] sm:$0xff]
      %v1895 = vld [vmem:[%s1497 + $0x82] sm:$0xff]
      %v1896 = vld [vmem:[%s1497 + $0x92] sm:$0xff]
      %v1897 = vld [vmem:[%s1497 + $0x9a] sm:$0xff]
      %v1898 = vld [vmem:[%s1497 + $0xaa] sm:$0xff]
      %v1899 = vld [vmem:[%s1497 + $0xb2] sm:$0xff]
      %v1900 = vld [vmem:[%s1497 + $0xc2] sm:$0xff]
      %v1901 = vld [vmem:[%s1497 + $0xca] sm:$0xff]
      %v1902 = vld [vmem:[%s1497 + $0xda] sm:$0xff]
      %v1903 = vld [vmem:[%s1497 + $0xe2] sm:$0xff]
      %v1904 = vld [vmem:[%s1497 + $0xf2] sm:$0xff]
      %v1905 = vld [vmem:[%s1497 + $0xfa] sm:$0xff]
      %v1906 = vld [vmem:[%s1497 + $0x10a] sm:$0xff]
      %v1907 = vld [vmem:[%s1497 + $0x112] sm:$0xff]
      %v1908 = vld [vmem:[%s1497 + $0x122] sm:$0xff]
      %v1909 = vld [vmem:[%s1497 + $0x12a] sm:$0xff]
      %v1910 = vld [vmem:[%s1497 + $0x13a] sm:$0xff]
      %v1911 = vld [vmem:[%s1497 + $0x142] sm:$0xff]
      %v1912 = vld [vmem:[%s1497 + $0x152] sm:$0xff]
      %v1913 = vld [vmem:[%s1497 + $0x15a] sm:$0xff]
      %v1914 = vld [vmem:[%s1497 + $0x16a] sm:$0xff]
      %v1915 = vld [vmem:[%s1497 + $0x172] sm:$0xff]
      %1948 = vrot.lane.b32.xlu0 %v1884, 64
      %v1949 = vpop.permute.xlu0 %1948
      %1950 = vrot.lane.b32.xlu0 %v1885, 64
      %v1951 = vpop.permute.xlu0 %1950
      %1952 = vrot.lane.b32.xlu0 %v1886, 64
      %v1953 = vpop.permute.xlu0 %1952
      %1954 = vrot.lane.b32.xlu0 %v1887, 64
      %v1955 = vpop.permute.xlu0 %1954
      %1956 = vrot.lane.b32.xlu0 %v1888, 64
      %v1957 = vpop.permute.xlu0 %1956
      %1958 = vrot.lane.b32.xlu0 %v1889, 64
      %v1959 = vpop.permute.xlu0 %1958
      %1960 = vrot.lane.b32.xlu0 %v1890, 64
      %v1961 = vpop.permute.xlu0 %1960
      %1962 = vrot.lane.b32.xlu0 %v1891, 64
      %v1963 = vpop.permute.xlu0 %1962
      %1964 = vrot.lane.b32.xlu0 %v1892, 64
      %v1965 = vpop.permute.xlu0 %1964
      %1966 = vrot.lane.b32.xlu0 %v1893, 64
      %v1967 = vpop.permute.xlu0 %1966
      %1968 = vrot.lane.b32.xlu0 %v1894, 64
      %v1969 = vpop.permute.xlu0 %1968
      %1970 = vrot.lane.b32.xlu0 %v1895, 64
      %v1971 = vpop.permute.xlu0 %1970
      %1972 = vrot.lane.b32.xlu0 %v1896, 64
      %v1973 = vpop.permute.xlu0 %1972
      %1974 = vrot.lane.b32.xlu0 %v1897, 64
      %v1975 = vpop.permute.xlu0 %1974
      %1976 = vrot.lane.b32.xlu0 %v1898, 64
      %v1977 = vpop.permute.xlu0 %1976
      %1978 = vrot.lane.b32.xlu0 %v1899, 64
      %v1979 = vpop.permute.xlu0 %1978
      %1980 = vrot.lane.b32.xlu0 %v1900, 64
      %v1981 = vpop.permute.xlu0 %1980
      %1982 = vrot.lane.b32.xlu0 %v1901, 64
      %v1983 = vpop.permute.xlu0 %1982
      %1984 = vrot.lane.b32.xlu0 %v1902, 64
      %v1985 = vpop.permute.xlu0 %1984
      %1986 = vrot.lane.b32.xlu0 %v1903, 64
      %v1987 = vpop.permute.xlu0 %1986
      %1988 = vrot.lane.b32.xlu0 %v1904, 64
      %v1989 = vpop.permute.xlu0 %1988
      %1990 = vrot.lane.b32.xlu0 %v1905, 64
      %v1991 = vpop.permute.xlu0 %1990
      %1992 = vrot.lane.b32.xlu0 %v1906, 64
      %v1993 = vpop.permute.xlu0 %1992
      %1994 = vrot.lane.b32.xlu0 %v1907, 64
      %v1995 = vpop.permute.xlu0 %1994
      %1996 = vrot.lane.b32.xlu0 %v1908, 64
      %v1997 = vpop.permute.xlu0 %1996
      %1998 = vrot.lane.b32.xlu0 %v1909, 64
      %v1999 = vpop.permute.xlu0 %1998
      %2000 = vrot.lane.b32.xlu0 %v1910, 64
      %v2001 = vpop.permute.xlu0 %2000
      %2002 = vrot.lane.b32.xlu0 %v1911, 64
      %v2003 = vpop.permute.xlu0 %2002
      %2004 = vrot.lane.b32.xlu0 %v1912, 64
      %v2005 = vpop.permute.xlu0 %2004
      %2006 = vrot.lane.b32.xlu0 %v1913, 64
      %v2007 = vpop.permute.xlu0 %2006
      %2008 = vrot.lane.b32.xlu0 %v1914, 64
      %v2009 = vpop.permute.xlu0 %2008
      %2010 = vrot.lane.b32.xlu0 %v1915, 64
      %v2011 = vpop.permute.xlu0 %2010
      %vm2044 = vcmask 589312
      %2045 = vst.msk [vmem:[#allocation3] sm:$0xff] %vm2044, %v1949
      %2046 = vst.msk [vmem:[#allocation3 + $0x8] sm:$0xff] %vm2044, %v1951
      %2047 = vst.msk [vmem:[#allocation3 + $0x10] sm:$0xff] %vm2044, %v1953
      %2048 = vst.msk [vmem:[#allocation3 + $0x18] sm:$0xff] %vm2044, %v1955
      %2049 = vst.msk [vmem:[#allocation3 + $0x20] sm:$0xff] %vm2044, %v1957
      %2050 = vst.msk [vmem:[#allocation3 + $0x28] sm:$0xff] %vm2044, %v1959
      %2051 = vst.msk [vmem:[#allocation3 + $0x30] sm:$0xff] %vm2044, %v1961
      %2052 = vst.msk [vmem:[#allocation3 + $0x38] sm:$0xff] %vm2044, %v1963
      %2053 = vst.msk [vmem:[#allocation3 + $0x40] sm:$0xff] %vm2044, %v1965
      %2054 = vst.msk [vmem:[#allocation3 + $0x48] sm:$0xff] %vm2044, %v1967
      %2055 = vst.msk [vmem:[#allocation3 + $0x50] sm:$0xff] %vm2044, %v1969
      %2056 = vst.msk [vmem:[#allocation3 + $0x58] sm:$0xff] %vm2044, %v1971
      %2057 = vst.msk [vmem:[#allocation3 + $0x60] sm:$0xff] %vm2044, %v1973
      %2058 = vst.msk [vmem:[#allocation3 + $0x68] sm:$0xff] %vm2044, %v1975
      %2059 = vst.msk [vmem:[#allocation3 + $0x70] sm:$0xff] %vm2044, %v1977
      %2060 = vst.msk [vmem:[#allocation3 + $0x78] sm:$0xff] %vm2044, %v1979
      %2061 = vst.msk [vmem:[#allocation3 + $0x80] sm:$0xff] %vm2044, %v1981
      %2062 = vst.msk [vmem:[#allocation3 + $0x88] sm:$0xff] %vm2044, %v1983
      %2063 = vst.msk [vmem:[#allocation3 + $0x90] sm:$0xff] %vm2044, %v1985
      %2064 = vst.msk [vmem:[#allocation3 + $0x98] sm:$0xff] %vm2044, %v1987
      %2065 = vst.msk [vmem:[#allocation3 + $0xa0] sm:$0xff] %vm2044, %v1989
      %2066 = vst.msk [vmem:[#allocation3 + $0xa8] sm:$0xff] %vm2044, %v1991
      %2067 = vst.msk [vmem:[#allocation3 + $0xb0] sm:$0xff] %vm2044, %v1993
      %2068 = vst.msk [vmem:[#allocation3 + $0xb8] sm:$0xff] %vm2044, %v1995
      %2069 = vst.msk [vmem:[#allocation3 + $0xc0] sm:$0xff] %vm2044, %v1997
      %2070 = vst.msk [vmem:[#allocation3 + $0xc8] sm:$0xff] %vm2044, %v1999
      %2071 = vst.msk [vmem:[#allocation3 + $0xd0] sm:$0xff] %vm2044, %v2001
      %2072 = vst.msk [vmem:[#allocation3 + $0xd8] sm:$0xff] %vm2044, %v2003
      %2073 = vst.msk [vmem:[#allocation3 + $0xe0] sm:$0xff] %vm2044, %v2005
      %2074 = vst.msk [vmem:[#allocation3 + $0xe8] sm:$0xff] %vm2044, %v2007
      %2075 = vst.msk [vmem:[#allocation3 + $0xf0] sm:$0xff] %vm2044, %v2009
      %2076 = vst.msk [vmem:[#allocation3 + $0xf8] sm:$0xff] %vm2044, %v2011
      %v2077 = vld [vmem:[#allocation3] sm:$0xff]
      %v2078 = vld [vmem:[#allocation3 + $0x8] sm:$0xff]
      %v2079 = vld [vmem:[#allocation3 + $0x10] sm:$0xff]
      %v2080 = vld [vmem:[#allocation3 + $0x18] sm:$0xff]
      %v2081 = vld [vmem:[#allocation3 + $0x20] sm:$0xff]
      %v2082 = vld [vmem:[#allocation3 + $0x28] sm:$0xff]
      %v2083 = vld [vmem:[#allocation3 + $0x30] sm:$0xff]
      %v2084 = vld [vmem:[#allocation3 + $0x38] sm:$0xff]
      %v2085 = vld [vmem:[#allocation3 + $0x40] sm:$0xff]
      %v2086 = vld [vmem:[#allocation3 + $0x48] sm:$0xff]
      %v2087 = vld [vmem:[#allocation3 + $0x50] sm:$0xff]
      %v2088 = vld [vmem:[#allocation3 + $0x58] sm:$0xff]
      %v2089 = vld [vmem:[#allocation3 + $0x60] sm:$0xff]
      %v2090 = vld [vmem:[#allocation3 + $0x68] sm:$0xff]
      %v2091 = vld [vmem:[#allocation3 + $0x70] sm:$0xff]
      %v2092 = vld [vmem:[#allocation3 + $0x78] sm:$0xff]
      %v2093 = vld [vmem:[#allocation3 + $0x80] sm:$0xff]
      %v2094 = vld [vmem:[#allocation3 + $0x88] sm:$0xff]
      %v2095 = vld [vmem:[#allocation3 + $0x90] sm:$0xff]
      %v2096 = vld [vmem:[#allocation3 + $0x98] sm:$0xff]
      %v2097 = vld [vmem:[#allocation3 + $0xa0] sm:$0xff]
      %v2098 = vld [vmem:[#allocation3 + $0xa8] sm:$0xff]
      %v2099 = vld [vmem:[#allocation3 + $0xb0] sm:$0xff]
      %v2100 = vld [vmem:[#allocation3 + $0xb8] sm:$0xff]
      %v2101 = vld [vmem:[#allocation3 + $0xc0] sm:$0xff]
      %v2102 = vld [vmem:[#allocation3 + $0xc8] sm:$0xff]
      %v2103 = vld [vmem:[#allocation3 + $0xd0] sm:$0xff]
      %v2104 = vld [vmem:[#allocation3 + $0xd8] sm:$0xff]
      %v2105 = vld [vmem:[#allocation3 + $0xe0] sm:$0xff]
      %v2106 = vld [vmem:[#allocation3 + $0xe8] sm:$0xff]
      %v2107 = vld [vmem:[#allocation3 + $0xf0] sm:$0xff]
      %v2108 = vld [vmem:[#allocation3 + $0xf8] sm:$0xff]
      %v2109 = vpack.c.bf16 %v2078, %v2077
      %v2110 = vpack.c.bf16 %v2080, %v2079
      %v2111 = vpack.c.bf16 %v2082, %v2081
      %v2112 = vpack.c.bf16 %v2084, %v2083
      %v2113 = vpack.c.bf16 %v2086, %v2085
      %v2114 = vpack.c.bf16 %v2088, %v2087
      %v2115 = vpack.c.bf16 %v2090, %v2089
      %v2116 = vpack.c.bf16 %v2092, %v2091
      %v2117 = vpack.c.bf16 %v2094, %v2093
      %v2118 = vpack.c.bf16 %v2096, %v2095
      %v2119 = vpack.c.bf16 %v2098, %v2097
      %v2120 = vpack.c.bf16 %v2100, %v2099
      %v2121 = vpack.c.bf16 %v2102, %v2101
      %v2122 = vpack.c.bf16 %v2104, %v2103
      %v2123 = vpack.c.bf16 %v2106, %v2105
      %v2124 = vpack.c.bf16 %v2108, %v2107
      %v2125 = vld [vmem:[%s1] sm:$0xf]
      %v2126 = vld [vmem:[%s1 + $0x4] sm:$0xf]
      %v2127 = vld [vmem:[%s1 + $0x8] sm:$0xf]
      %v2128 = vld [vmem:[%s1 + $0xc] sm:$0xf]
      %v2129 = vld [vmem:[%s1 + $0x10] sm:$0xf]
      %v2130 = vld [vmem:[%s1 + $0x14] sm:$0xf]
      %v2131 = vld [vmem:[%s1 + $0x18] sm:$0xf]
      %v2132 = vld [vmem:[%s1 + $0x1c] sm:$0xf]
      %v2133 = vld [vmem:[%s1 + $0x20] sm:$0xf]
      %v2143 = vunpack.c.l.b16 %v2125
      %v2144 = vunpack.c.l.b16 %v2126
      %v2145 = vunpack.c.l.b16 %v2127
      %v2146 = vunpack.c.l.b16 %v2128
      %v2147 = vunpack.c.l.b16 %v2129
      %v2148 = vunpack.c.l.b16 %v2130
      %v2149 = vunpack.c.l.b16 %v2131
      %v2150 = vunpack.c.l.b16 %v2132
      %v2151 = vunpack.c.l.b16 %v2133
      %v2152 = vpack.c.b16 %v2144, %v2143
      %v2153 = vpack.c.b16 %v2146, %v2145
      %v2154 = vpack.c.b16 %v2148, %v2147
      %v2155 = vpack.c.b16 %v2150, %v2149
      %v2156 = vpack.c.b16 %v2151, %v2151
      %vm2161 = vcmask 588800
      %v2163 = vsel %vm2161, %v2109, 0
      %v2166 = vsel %vm2161, %v2110, 0
      %v2169 = vsel %vm2161, %v2111, 0
      %v2172 = vsel %vm2161, %v2112, 0
      %v2175 = vsel %vm2161, %v2113, 0
      %v2178 = vsel %vm2161, %v2114, 0
      %v2181 = vsel %vm2161, %v2115, 0
      %v2184 = vsel %vm2161, %v2116, 0
      %v2187 = vsel %vm2161, %v2117, 0
      %v2190 = vsel %vm2161, %v2118, 0
      %v2193 = vsel %vm2161, %v2119, 0
      %v2196 = vsel %vm2161, %v2120, 0
      %v2199 = vsel %vm2161, %v2121, 0
      %v2202 = vsel %vm2161, %v2122, 0
      %v2205 = vsel %vm2161, %v2123, 0
      %v2208 = vsel %vm2161, %v2124, 0
      %vm2210 = vcmask 1043456
      %v2212 = vsel %vm2210, %v2156, 0
      %2214 = vmatprep.subr.bf16.mxu0 0
      %2215 = vmatpush1.bf16.msra.mxu0 0
      %2216 = vmatprep.subr.bf16.mxu0 0
      %2217 = vmatpush1.bf16.msra.mxu0 0
      %2218 = vmatprep.subr.bf16.mxu0 0
      %2219 = vmatpush1.bf16.msra.mxu0 0
      %2220 = vmatprep.subr.bf16.mxu0 0
      %2221 = vmatpush1.bf16.msra.mxu0 %v2212
      %2222 = vmatprep.subr.bf16.mxu0 0
      %2223 = vmatpush1.bf16.msra.mxu0 %v2155
      %2224 = vmatprep.subr.bf16.mxu0 0
      %2225 = vmatpush1.bf16.msra.mxu0 %v2154
      %2226 = vmatprep.subr.bf16.mxu0 0
      %2227 = vmatpush1.bf16.msra.mxu0 %v2153
      %2228 = vmatprep.subr.bf16.mxu0 0
      %2229 = vmatpush1.bf16.msra.mxu0 %v2152
      %2230 = vmatprep.subr.bf16.mxu0 0
      %2231 = vmatpush2.bf16.msra.mxu0 0
      %2232 = vmatprep.subr.bf16.mxu0 0
      %2233 = vmatpush2.bf16.msra.mxu0 0
      %2234 = vmatprep.subr.bf16.mxu0 0
      %2235 = vmatpush2.bf16.msra.mxu0 0
      %2236 = vmatprep.subr.bf16.mxu0 0
      %2237 = vmatpush2.bf16.msra.mxu0 0
      %2238 = vmatprep.subr.bf16.mxu0 0
      %2239 = vmatpush2.bf16.msra.mxu0 0
      %2240 = vmatprep.subr.bf16.mxu0 0
      %2241 = vmatpush2.bf16.msra.mxu0 0
      %2242 = vmatprep.subr.bf16.mxu0 0
      %2243 = vmatpush2.bf16.msra.mxu0 0
      %2244 = vmatprep.subr.bf16.mxu0 0
      %2245 = vmatpush2.bf16.msra.mxu0 0
      %2246 = vmatprep.mubr.bf16.mxu0 0
      %2247 = vmatmul.mubr.bf16.gmra.mxu0 %v2163
      %v2248 = vpop.f32.mrf.mxu0
      %v2249 = vadd.f32 0.0, %v2248
      %v2250 = vpop.f32.mrf.mxu0
      %v2251 = vpop.f32.mrf.mxu0
      %v2252 = vadd.f32 0.0, %v2251
      %v2253 = vpop.f32.mrf.mxu0
      %2254 = vmatprep.mubr.bf16.mxu0 0
      %2255 = vmatmul.mubr.bf16.gmra.mxu0 %v2166
      %v2256 = vpop.f32.mrf.mxu0
      %v2257 = vadd.f32 0.0, %v2256
      %v2258 = vpop.f32.mrf.mxu0
      %v2259 = vpop.f32.mrf.mxu0
      %v2260 = vadd.f32 0.0, %v2259
      %v2261 = vpop.f32.mrf.mxu0
      %2262 = vmatprep.mubr.bf16.mxu0 0
      %2263 = vmatmul.mubr.bf16.gmra.mxu0 %v2169
      %v2264 = vpop.f32.mrf.mxu0
      %v2265 = vadd.f32 0.0, %v2264
      %v2266 = vpop.f32.mrf.mxu0
      %v2267 = vpop.f32.mrf.mxu0
      %v2268 = vadd.f32 0.0, %v2267
      %v2269 = vpop.f32.mrf.mxu0
      %2270 = vmatprep.mubr.bf16.mxu0 0
      %2271 = vmatmul.mubr.bf16.gmra.mxu0 %v2172
      %v2272 = vpop.f32.mrf.mxu0
      %v2273 = vadd.f32 0.0, %v2272
      %v2274 = vpop.f32.mrf.mxu0
      %v2275 = vpop.f32.mrf.mxu0
      %v2276 = vadd.f32 0.0, %v2275
      %v2277 = vpop.f32.mrf.mxu0
      %2278 = vmatprep.mubr.bf16.mxu0 0
      %2279 = vmatmul.mubr.bf16.gmra.mxu0 %v2175
      %v2280 = vpop.f32.mrf.mxu0
      %v2281 = vadd.f32 0.0, %v2280
      %v2282 = vpop.f32.mrf.mxu0
      %v2283 = vpop.f32.mrf.mxu0
      %v2284 = vadd.f32 0.0, %v2283
      %v2285 = vpop.f32.mrf.mxu0
      %2286 = vmatprep.mubr.bf16.mxu0 0
      %2287 = vmatmul.mubr.bf16.gmra.mxu0 %v2178
      %v2288 = vpop.f32.mrf.mxu0
      %v2289 = vadd.f32 0.0, %v2288
      %v2290 = vpop.f32.mrf.mxu0
      %v2291 = vpop.f32.mrf.mxu0
      %v2292 = vadd.f32 0.0, %v2291
      %v2293 = vpop.f32.mrf.mxu0
      %2294 = vmatprep.mubr.bf16.mxu0 0
      %2295 = vmatmul.mubr.bf16.gmra.mxu0 %v2181
      %v2296 = vpop.f32.mrf.mxu0
      %v2297 = vadd.f32 0.0, %v2296
      %v2298 = vpop.f32.mrf.mxu0
      %v2299 = vpop.f32.mrf.mxu0
      %v2300 = vadd.f32 0.0, %v2299
      %v2301 = vpop.f32.mrf.mxu0
      %2302 = vmatprep.mubr.bf16.mxu0 0
      %2303 = vmatmul.mubr.bf16.gmra.mxu0 %v2184
      %v2304 = vpop.f32.mrf.mxu0
      %v2305 = vadd.f32 0.0, %v2304
      %v2306 = vpop.f32.mrf.mxu0
      %v2307 = vpop.f32.mrf.mxu0
      %v2308 = vadd.f32 0.0, %v2307
      %v2309 = vpop.f32.mrf.mxu0
      %2310 = vmatprep.mubr.bf16.mxu0 0
      %2311 = vmatmul.mubr.bf16.gmra.mxu0 %v2187
      %v2312 = vpop.f32.mrf.mxu0
      %v2313 = vadd.f32 0.0, %v2312
      %v2314 = vpop.f32.mrf.mxu0
      %v2315 = vpop.f32.mrf.mxu0
      %v2316 = vadd.f32 0.0, %v2315
      %v2317 = vpop.f32.mrf.mxu0
      %2318 = vmatprep.mubr.bf16.mxu0 0
      %2319 = vmatmul.mubr.bf16.gmra.mxu0 %v2190
      %v2320 = vpop.f32.mrf.mxu0
      %v2321 = vadd.f32 0.0, %v2320
      %v2322 = vpop.f32.mrf.mxu0
      %v2323 = vpop.f32.mrf.mxu0
      %v2324 = vadd.f32 0.0, %v2323
      %v2325 = vpop.f32.mrf.mxu0
      %2326 = vmatprep.mubr.bf16.mxu0 0
      %2327 = vmatmul.mubr.bf16.gmra.mxu0 %v2193
      %v2328 = vpop.f32.mrf.mxu0
      %v2329 = vadd.f32 0.0, %v2328
      %v2330 = vpop.f32.mrf.mxu0
      %v2331 = vpop.f32.mrf.mxu0
      %v2332 = vadd.f32 0.0, %v2331
      %v2333 = vpop.f32.mrf.mxu0
      %2334 = vmatprep.mubr.bf16.mxu0 0
      %2335 = vmatmul.mubr.bf16.gmra.mxu0 %v2196
      %v2336 = vpop.f32.mrf.mxu0
      %v2337 = vadd.f32 0.0, %v2336
      %v2338 = vpop.f32.mrf.mxu0
      %v2339 = vpop.f32.mrf.mxu0
      %v2340 = vadd.f32 0.0, %v2339
      %v2341 = vpop.f32.mrf.mxu0
      %2342 = vmatprep.mubr.bf16.mxu0 0
      %2343 = vmatmul.mubr.bf16.gmra.mxu0 %v2199
      %v2344 = vpop.f32.mrf.mxu0
      %v2345 = vadd.f32 0.0, %v2344
      %v2346 = vpop.f32.mrf.mxu0
      %v2347 = vpop.f32.mrf.mxu0
      %v2348 = vadd.f32 0.0, %v2347
      %v2349 = vpop.f32.mrf.mxu0
      %2350 = vmatprep.mubr.bf16.mxu0 0
      %2351 = vmatmul.mubr.bf16.gmra.mxu0 %v2202
      %v2352 = vpop.f32.mrf.mxu0
      %v2353 = vadd.f32 0.0, %v2352
      %v2354 = vpop.f32.mrf.mxu0
      %v2355 = vpop.f32.mrf.mxu0
      %v2356 = vadd.f32 0.0, %v2355
      %v2357 = vpop.f32.mrf.mxu0
      %2358 = vmatprep.mubr.bf16.mxu0 0
      %2359 = vmatmul.mubr.bf16.gmra.mxu0 %v2205
      %v2360 = vpop.f32.mrf.mxu0
      %v2361 = vadd.f32 0.0, %v2360
      %v2362 = vpop.f32.mrf.mxu0
      %v2363 = vpop.f32.mrf.mxu0
      %v2364 = vadd.f32 0.0, %v2363
      %v2365 = vpop.f32.mrf.mxu0
      %2366 = vmatprep.mubr.bf16.mxu0 0
      %2367 = vmatmul.mubr.bf16.gmra.mxu0 %v2208
      %v2368 = vpop.f32.mrf.mxu0
      %v2369 = vadd.f32 0.0, %v2368
      %v2370 = vpop.f32.mrf.mxu0
      %v2371 = vpop.f32.mrf.mxu0
      %v2372 = vadd.f32 0.0, %v2371
      %v2373 = vpop.f32.mrf.mxu0
      %2374 = vdwg.mxu0
      %2375 = vst.msk [vmem:[%s231] sm:$0xff] %vm237, %v2249
      %2376 = vst.msk [vmem:[%s231 + $0x8] sm:$0xff] %vm237, %v2252
      %2377 = vst.msk [vmem:[%s231 + $0x10] sm:$0xff] %vm237, %v2257
      %2378 = vst.msk [vmem:[%s231 + $0x18] sm:$0xff] %vm237, %v2260
      %2379 = vst.msk [vmem:[%s231 + $0x20] sm:$0xff] %vm237, %v2265
      %2380 = vst.msk [vmem:[%s231 + $0x28] sm:$0xff] %vm237, %v2268
      %2381 = vst.msk [vmem:[%s231 + $0x30] sm:$0xff] %vm237, %v2273
      %2382 = vst.msk [vmem:[%s231 + $0x38] sm:$0xff] %vm237, %v2276
      %2383 = vst.msk [vmem:[%s231 + $0x40] sm:$0xff] %vm237, %v2281
      %2384 = vst.msk [vmem:[%s231 + $0x48] sm:$0xff] %vm237, %v2284
      %2385 = vst.msk [vmem:[%s231 + $0x50] sm:$0xff] %vm237, %v2289
      %2386 = vst.msk [vmem:[%s231 + $0x58] sm:$0xff] %vm237, %v2292
      %2387 = vst.msk [vmem:[%s231 + $0x60] sm:$0xff] %vm237, %v2297
      %2388 = vst.msk [vmem:[%s231 + $0x68] sm:$0xff] %vm237, %v2300
      %2389 = vst.msk [vmem:[%s231 + $0x70] sm:$0xff] %vm237, %v2305
      %2390 = vst.msk [vmem:[%s231 + $0x78] sm:$0xff] %vm237, %v2308
      %2391 = vst.msk [vmem:[%s231 + $0x80] sm:$0xff] %vm237, %v2313
      %2392 = vst.msk [vmem:[%s231 + $0x88] sm:$0xff] %vm237, %v2316
      %2393 = vst.msk [vmem:[%s231 + $0x90] sm:$0xff] %vm237, %v2321
      %2394 = vst.msk [vmem:[%s231 + $0x98] sm:$0xff] %vm237, %v2324
      %2395 = vst.msk [vmem:[%s231 + $0xa0] sm:$0xff] %vm237, %v2329
      %2396 = vst.msk [vmem:[%s231 + $0xa8] sm:$0xff] %vm237, %v2332
      %2397 = vst.msk [vmem:[%s231 + $0xb0] sm:$0xff] %vm237, %v2337
      %2398 = vst.msk [vmem:[%s231 + $0xb8] sm:$0xff] %vm237, %v2340
      %2399 = vst.msk [vmem:[%s231 + $0xc0] sm:$0xff] %vm237, %v2345
      %2400 = vst.msk [vmem:[%s231 + $0xc8] sm:$0xff] %vm237, %v2348
      %2401 = vst.msk [vmem:[%s231 + $0xd0] sm:$0xff] %vm237, %v2353
      %2402 = vst.msk [vmem:[%s231 + $0xd8] sm:$0xff] %vm237, %v2356
      %2403 = vst.msk [vmem:[%s231 + $0xe0] sm:$0xff] %vm237, %v2361
      %2404 = vst.msk [vmem:[%s231 + $0xe8] sm:$0xff] %vm237, %v2364
      %2405 = vst.msk [vmem:[%s231 + $0xf0] sm:$0xff] %vm237, %v2369
      %2406 = vst.msk [vmem:[%s231 + $0xf8] sm:$0xff] %vm237, %v2372
      %v2407 = vsel %vm237, %v2249, 0.0
      %v2408 = vsel %vm237, %v2252, 0.0
      %v2409 = vadd.f32 %v2407, %v2408
      %v2410 = vsel %vm237, %v2257, 0.0
      %v2411 = vadd.f32 %v2409, %v2410
      %v2412 = vsel %vm237, %v2260, 0.0
      %v2413 = vadd.f32 %v2411, %v2412
      %v2414 = vsel %vm237, %v2265, 0.0
      %v2415 = vadd.f32 %v2413, %v2414
      %v2416 = vsel %vm237, %v2268, 0.0
      %v2417 = vadd.f32 %v2415, %v2416
      %v2418 = vsel %vm237, %v2273, 0.0
      %v2419 = vadd.f32 %v2417, %v2418
      %v2420 = vsel %vm237, %v2276, 0.0
      %v2421 = vadd.f32 %v2419, %v2420
      %v2422 = vsel %vm237, %v2281, 0.0
      %v2423 = vadd.f32 %v2421, %v2422
      %v2424 = vsel %vm237, %v2284, 0.0
      %v2425 = vadd.f32 %v2423, %v2424
      %v2426 = vsel %vm237, %v2289, 0.0
      %v2427 = vadd.f32 %v2425, %v2426
      %v2428 = vsel %vm237, %v2292, 0.0
      %v2429 = vadd.f32 %v2427, %v2428
      %v2430 = vsel %vm237, %v2297, 0.0
      %v2431 = vadd.f32 %v2429, %v2430
      %v2432 = vsel %vm237, %v2300, 0.0
      %v2433 = vadd.f32 %v2431, %v2432
      %v2434 = vsel %vm237, %v2305, 0.0
      %v2435 = vadd.f32 %v2433, %v2434
      %v2436 = vsel %vm237, %v2308, 0.0
      %v2437 = vadd.f32 %v2435, %v2436
      %v2438 = vsel %vm237, %v2313, 0.0
      %v2439 = vadd.f32 %v2437, %v2438
      %v2440 = vsel %vm237, %v2316, 0.0
      %v2441 = vadd.f32 %v2439, %v2440
      %v2442 = vsel %vm237, %v2321, 0.0
      %v2443 = vadd.f32 %v2441, %v2442
      %v2444 = vsel %vm237, %v2324, 0.0
      %v2445 = vadd.f32 %v2443, %v2444
      %v2446 = vsel %vm237, %v2329, 0.0
      %v2447 = vadd.f32 %v2445, %v2446
      %v2448 = vsel %vm237, %v2332, 0.0
      %v2449 = vadd.f32 %v2447, %v2448
      %v2450 = vsel %vm237, %v2337, 0.0
      %v2451 = vadd.f32 %v2449, %v2450
      %v2452 = vsel %vm237, %v2340, 0.0
      %v2453 = vadd.f32 %v2451, %v2452
      %v2454 = vsel %vm237, %v2345, 0.0
      %v2455 = vadd.f32 %v2453, %v2454
      %v2456 = vsel %vm237, %v2348, 0.0
      %v2457 = vadd.f32 %v2455, %v2456
      %v2458 = vsel %vm237, %v2353, 0.0
      %v2459 = vadd.f32 %v2457, %v2458
      %v2460 = vsel %vm237, %v2356, 0.0
      %v2461 = vadd.f32 %v2459, %v2460
      %v2462 = vsel %vm237, %v2361, 0.0
      %v2463 = vadd.f32 %v2461, %v2462
      %v2464 = vsel %vm237, %v2364, 0.0
      %v2465 = vadd.f32 %v2463, %v2464
      %v2466 = vsel %vm237, %v2369, 0.0
      %v2467 = vadd.f32 %v2465, %v2466
      %v2468 = vsel %vm237, %v2372, 0.0
      %v2469 = vadd.f32 %v2467, %v2468
      %v2470 = vrot.slane %v2469, 4
      %v2471 = vadd.f32 %v2469, %v2470
      %v2472 = vrot.slane %v2471, 2
      %v2473 = vadd.f32 %v2471, %v2472
      %v2474 = vrot.slane %v2473, 1
      %v2475 = vadd.f32 %v2473, %v2474
      %vm2476 = vcmask 57344
      %2477 = vst.msk [vmem:[%s235] sm:$0x1] %vm2476, %v2475
      %v2478 = vmul.f32 %v2249, %v2249
      %v2479 = vmul.f32 %v2252, %v2252
      %v2480 = vmul.f32 %v2257, %v2257
      %v2481 = vmul.f32 %v2260, %v2260
      %v2482 = vmul.f32 %v2265, %v2265
      %v2483 = vmul.f32 %v2268, %v2268
      %v2484 = vmul.f32 %v2273, %v2273
      %v2485 = vmul.f32 %v2276, %v2276
      %v2486 = vmul.f32 %v2281, %v2281
      %v2487 = vmul.f32 %v2284, %v2284
      %v2488 = vmul.f32 %v2289, %v2289
      %v2489 = vmul.f32 %v2292, %v2292
      %v2490 = vmul.f32 %v2297, %v2297
      %v2491 = vmul.f32 %v2300, %v2300
      %v2492 = vmul.f32 %v2305, %v2305
      %v2493 = vmul.f32 %v2308, %v2308
      %v2494 = vmul.f32 %v2313, %v2313
      %v2495 = vmul.f32 %v2316, %v2316
      %v2496 = vmul.f32 %v2321, %v2321
      %v2497 = vmul.f32 %v2324, %v2324
      %v2498 = vmul.f32 %v2329, %v2329
      %v2499 = vmul.f32 %v2332, %v2332
      %v2500 = vmul.f32 %v2337, %v2337
      %v2501 = vmul.f32 %v2340, %v2340
      %v2502 = vmul.f32 %v2345, %v2345
      %v2503 = vmul.f32 %v2348, %v2348
      %v2504 = vmul.f32 %v2353, %v2353
      %v2505 = vmul.f32 %v2356, %v2356
      %v2506 = vmul.f32 %v2361, %v2361
      %v2507 = vmul.f32 %v2364, %v2364
      %v2508 = vmul.f32 %v2369, %v2369
      %v2509 = vmul.f32 %v2372, %v2372
      %v2510 = vsel %vm237, %v2478, 0.0
      %v2511 = vsel %vm237, %v2479, 0.0
      %v2512 = vadd.f32 %v2510, %v2511
      %v2513 = vsel %vm237, %v2480, 0.0
      %v2514 = vadd.f32 %v2512, %v2513
      %v2515 = vsel %vm237, %v2481, 0.0
      %v2516 = vadd.f32 %v2514, %v2515
      %v2517 = vsel %vm237, %v2482, 0.0
      %v2518 = vadd.f32 %v2516, %v2517
      %v2519 = vsel %vm237, %v2483, 0.0
      %v2520 = vadd.f32 %v2518, %v2519
      %v2521 = vsel %vm237, %v2484, 0.0
      %v2522 = vadd.f32 %v2520, %v2521
      %v2523 = vsel %vm237, %v2485, 0.0
      %v2524 = vadd.f32 %v2522, %v2523
      %v2525 = vsel %vm237, %v2486, 0.0
      %v2526 = vadd.f32 %v2524, %v2525
      %v2527 = vsel %vm237, %v2487, 0.0
      %v2528 = vadd.f32 %v2526, %v2527
      %v2529 = vsel %vm237, %v2488, 0.0
      %v2530 = vadd.f32 %v2528, %v2529
      %v2531 = vsel %vm237, %v2489, 0.0
      %v2532 = vadd.f32 %v2530, %v2531
      %v2533 = vsel %vm237, %v2490, 0.0
      %v2534 = vadd.f32 %v2532, %v2533
      %v2535 = vsel %vm237, %v2491, 0.0
      %v2536 = vadd.f32 %v2534, %v2535
      %v2537 = vsel %vm237, %v2492, 0.0
      %v2538 = vadd.f32 %v2536, %v2537
      %v2539 = vsel %vm237, %v2493, 0.0
      %v2540 = vadd.f32 %v2538, %v2539
      %v2541 = vsel %vm237, %v2494, 0.0
      %v2542 = vadd.f32 %v2540, %v2541
      %v2543 = vsel %vm237, %v2495, 0.0
      %v2544 = vadd.f32 %v2542, %v2543
      %v2545 = vsel %vm237, %v2496, 0.0
      %v2546 = vadd.f32 %v2544, %v2545
      %v2547 = vsel %vm237, %v2497, 0.0
      %v2548 = vadd.f32 %v2546, %v2547
      %v2549 = vsel %vm237, %v2498, 0.0
      %v2550 = vadd.f32 %v2548, %v2549
      %v2551 = vsel %vm237, %v2499, 0.0
      %v2552 = vadd.f32 %v2550, %v2551
      %v2553 = vsel %vm237, %v2500, 0.0
      %v2554 = vadd.f32 %v2552, %v2553
      %v2555 = vsel %vm237, %v2501, 0.0
      %v2556 = vadd.f32 %v2554, %v2555
      %v2557 = vsel %vm237, %v2502, 0.0
      %v2558 = vadd.f32 %v2556, %v2557
      %v2559 = vsel %vm237, %v2503, 0.0
      %v2560 = vadd.f32 %v2558, %v2559
      %v2561 = vsel %vm237, %v2504, 0.0
      %v2562 = vadd.f32 %v2560, %v2561
      %v2563 = vsel %vm237, %v2505, 0.0
      %v2564 = vadd.f32 %v2562, %v2563
      %v2565 = vsel %vm237, %v2506, 0.0
      %v2566 = vadd.f32 %v2564, %v2565
      %v2567 = vsel %vm237, %v2507, 0.0
      %v2568 = vadd.f32 %v2566, %v2567
      %v2569 = vsel %vm237, %v2508, 0.0
      %v2570 = vadd.f32 %v2568, %v2569
      %v2571 = vsel %vm237, %v2509, 0.0
      %v2572 = vadd.f32 %v2570, %v2571
      %v2573 = vrot.slane %v2572, 4
      %v2574 = vadd.f32 %v2572, %v2573
      %v2575 = vrot.slane %v2574, 2
      %v2576 = vadd.f32 %v2574, %v2575
      %v2577 = vrot.slane %v2576, 1
      %v2578 = vadd.f32 %v2576, %v2577
      %2579 = vst.msk [vmem:[%s235 + $0x1] sm:$0x1] %vm2476, %v2578
      %p2580 = scmp.lt.s32.totalorder %s17, 1
      %s2581 = scalar_select %p2580, %s17, 1
      %s2582 = smul.addr %s2581, 32
      %s2583 = smul.addr %s2582, 8
      %s2584 = scalar_lea.vmem %s4, %s2583
      %p2585 = scmp.lt.s32.totalorder %s17, 1
      %s2586 = scalar_select %p2585, %s17, 1
      %s2587 = smul.addr %s2586, 2
      %s2588 = scalar_lea.vmem %s5, %s2587
      // Predicated region
      $region37: #{residual_block.4} parent=35 // pred_check
        %p2589 = pneg %p124
      $region38: #{residual_block.4} parent=35 // pred_check_branch
        %2591 = sbr.rel (%p2589) target = $region40
      $region39: #{residual_block.4} parent=35 // pred_region
        _
      $region40: #{residual_block.4} parent=35 // pred_fallthru
        _
      // Predicated region
      $region41: #{residual_block.4} parent=35 // pred_check
        %p2592 = pneg %p150
      $region42: #{residual_block.4} parent=35 // pred_check_branch
        %2594 = sbr.rel (%p2592) target = $region44
      $region43: #{residual_block.4} parent=35 // pred_region
        _
      $region44: #{residual_block.4} parent=35 // pred_fallthru
        _
    $region36: #{residual_block.4} parent=5 // pred_fallthru
      _
    %p2595 = scmp.le.s32.totalorder 2, %s12
    // Predicated region
    $region45: #{residual_block.4} parent=5 // pred_check
      %p2596 = pneg %p2595
    $region46: #{residual_block.4} parent=5 // pred_check_branch
      %2598 = sbr.rel (%p2596) target = $region48
    $region47: #{residual_block.4} parent=5 // pred_region
      %s2599 = ssub.s32 %s12, 2
      // Predicated region
      $region49: #{residual_block.4} parent=47 // pred_check
        %p2600 = pneg %p130
      $region50: #{residual_block.4} parent=47 // pred_check_branch
        %2602 = sbr.rel (%p2600) target = $region52
      $region51: #{residual_block.4} parent=47 // pred_region
        %p2603 = scmp.lt.s32.totalorder %s18, 1
        %s2604 = scalar_select %p2603, %s18, 1
        %s2605 = smul.addr %s2604, 32
        %s2606 = smul.addr %s2605, 8
        %s2607 = scalar_lea.vmem %s4, %s2606
      $region52: #{residual_block.4} parent=47 // pred_fallthru
        _
      // Predicated region
      $region53: #{residual_block.4} parent=47 // pred_check
        %p2608 = pneg %p156
      $region54: #{residual_block.4} parent=47 // pred_check_branch
        %2610 = sbr.rel (%p2608) target = $region56
      $region55: #{residual_block.4} parent=47 // pred_region
        %p2611 = scmp.lt.s32.totalorder %s18, 1
        %s2612 = scalar_select %p2611, %s18, 1
        %s2613 = smul.addr %s2612, 2
        %s2614 = scalar_lea.vmem %s5, %s2613
      $region56: #{residual_block.4} parent=47 // pred_fallthru
        _
    $region48: #{residual_block.4} parent=5 // pred_fallthru
      _
  $region6: #{residual_block.4} parent=0 // loop_footer
    %s16 = sadd.s32 1, %s12
  $region7: #{residual_block.4} parent=0 // loop_footer_branch
    %11 = sbr.rel target = $region3
  $region8: #{residual_block.4} parent=0 // loop_exit
    _

// kernel: residual_block.3
$region0: #{residual_block.3}
  #allocation0 [shape = 'u32[]', space=smem, size = 0x4, offset = 0x4, fixed_abs, tag = 'smem constant byte address 0x4 - core index']
  #allocation1 [shape = 'u32[144,128]{1,0:T(1,128)}', space=vmem, size = 0x12000, scoped, tag = 'internal scratch']
  #allocation2 [shape = 'f32[18,18,4]{2,1,0:T(8,128)}', space=vmem, size = 0x36000, scoped, tag = 'scratch operand']
  #allocation3 [shape = 'f32[256,36]{1,0:T(8,128)}', space=vmem, size = 0x20000, scoped, tag = 'scratch operand']
  %s0 = inlined_call_operand.vmem [shape: f32[2,16,16,4], index: 0, kind: input, shape index: {}]
  %s1 = inlined_call_operand.vmem [shape: bf16[36,8], index: 1, kind: input, shape index: {}]
  %s2 = inlined_call_operand.vmem [shape: bf16[4,8], index: 2, kind: input, shape index: {}]
  %s3 = inlined_call_operand.vmem [shape: f32[2,256,8], index: 3, kind: output, shape index: {0}]
  %s4 = inlined_call_operand.vmem [shape: f32[2,256,8], index: 4, kind: output, shape index: {1}]
  %s5 = inlined_call_operand.vmem [shape: f32[2,2,8], index: 5, kind: output, shape index: {2}]
  %s6 = inlined_call_operand.vmem [shape: f32[2,2,8], index: 6, kind: output, shape index: {3}]
  %7 = xla_tuple %s3, %s4, %s5, %s6
  %s8 = sld [smem:[#allocation0]]
  $region69: #{residual_block.3} parent=0
    _
  %s10 = ssub.s32 1, %s8
  %s11 = scalar_select 0, %s10, %s8
  loop: start=0, step=1, limit=4
  $region2: #{residual_block.3} parent=0 // loop_pre_header
    _
  $region3: #{residual_block.3} parent=0 // loop_header
    %s13 = sphi 0, %s17
    %p14 = scmp.ge.s32.totalorder %s13, 4
    %s23 = sphi 0, %s25
    %s26 = sphi 0, %s23
    %s27 = sphi 0, %s26
    %s43 = sphi 0, %s27
    %s47 = sphi 0, %s47
    %s49 = sphi 0, %s47
    %s50 = sphi 0, %s49
    %s64 = sphi 0, %s50
    %s68 = sphi 0, %s68
    %s70 = sphi 0, %s68
    %s71 = sphi 0, %s70
    %s85 = sphi 0, %s71
    %s91 = sphi 0, %s93
    %s94 = sphi 0, %s91
    %s95 = sphi 0, %s94
    %s111 = sphi 0, %s95
    %s117 = sphi 0, %s119
    %s120 = sphi 0, %s117
    %s121 = sphi 0, %s120
    %s137 = sphi 0, %s121
    %s143 = sphi 0, %s145
    %s146 = sphi 0, %s143
    %s147 = sphi 0, %s146
    %s163 = sphi 0, %s147
    %s169 = sphi 0, %s171
    %s172 = sphi 0, %s169
    %s173 = sphi 0, %s172
    %s189 = sphi 0, %s173
  $region4: #{residual_block.3} parent=0 // loop_header_branch
    %16 = sbr.rel (%p14) target = $region8
  $region5: #{residual_block.3} parent=0 // loop_body
    %s18 = ssub.s32 %s13, 1
    %s19 = ssub.s32 %s13, 2
    %s20 = sadd.s32 %s13, 1
    %s21 = ssub.s32 %s13, %s20
    %p22 = scmp.eq.s32.totalorder %s21, 0
    %s24 = sadd.s32 %s23, 1
    %s25 = scalar_select %p22, %s23, %s24
    %p28 = pneg %p22
    %p29 = scmp.eq.s32.totalorder %s13, 1
    %p30 = por %p28, %p29
    %p31 = scmp.ne.s32.totalorder %s23, %s26
    %p32 = scmp.eq.s32.totalorder %s13, 0
    %p33 = por %p31, %p32
    %p34 = scmp.ne.s32.totalorder %s23, %s26
    %p35 = scmp.eq.s32.totalorder %s18, 1
    %p36 = por %p34, %p35
    %p37 = scmp.ne.s32.totalorder %s26, %s27
    %p38 = scmp.eq.s32.totalorder %s18, 0
    %p39 = por %p37, %p38
    %p40 = scmp.ne.s32.totalorder %s26, %s27
    %p41 = scmp.eq.s32.totalorder %s19, 1
    %p42 = por %p40, %p41
    %p44 = scmp.ne.s32.totalorder %s27, %s43
    %p45 = scmp.eq.s32.totalorder %s19, 0
    %p46 = por %p44, %p45
    %s48 = sadd.s32 %s47, 1
    %p51 = scmp.eq.s32.totalorder %s13, 1
    %p52 = scmp.ne.s32.totalorder %s47, %s49
    %p53 = scmp.eq.s32.totalorder %s13, 0
    %p54 = por %p52, %p53
    %p55 = scmp.ne.s32.totalorder %s47, %s49
    %p56 = scmp.eq.s32.totalorder %s18, 1
    %p57 = por %p55, %p56
    %p58 = scmp.ne.s32.totalorder %s49, %s50
    %p59 = scmp.eq.s32.totalorder %s18, 0
    %p60 = por %p58, %p59
    %p61 = scmp.ne.s32.totalorder %s49, %s50
    %p62 = scmp.eq.s32.totalorder %s19, 1
    %p63 = por %p61, %p62
    %p65 = scmp.ne.s32.totalorder %s50, %s64
    %p66 = scmp.eq.s32.totalorder %s19, 0
    %p67 = por %p65, %p66
    %s69 = sadd.s32 %s68, 1
    %p72 = scmp.eq.s32.totalorder %s13, 1
    %p73 = scmp.ne.s32.totalorder %s68, %s70
    %p74 = scmp.eq.s32.totalorder %s13, 0
    %p75 = por %p73, %p74
    %p76 = scmp.ne.s32.totalorder %s68, %s70
    %p77 = scmp.eq.s32.totalorder %s18, 1
    %p78 = por %p76, %p77
    %p79 = scmp.ne.s32.totalorder %s70, %s71
    %p80 = scmp.eq.s32.totalorder %s18, 0
    %p81 = por %p79, %p80
    %p82 = scmp.ne.s32.totalorder %s70, %s71
    %p83 = scmp.eq.s32.totalorder %s19, 1
    %p84 = por %p82, %p83
    %p86 = scmp.ne.s32.totalorder %s71, %s85
    %p87 = scmp.eq.s32.totalorder %s19, 0
    %p88 = por %p86, %p87
    %s89 = ssub.s32 %s13, %s20
    %p90 = scmp.eq.s32.totalorder %s89, 0
    %s92 = sadd.s32 %s91, 1
    %s93 = scalar_select %p90, %s91, %s92
    %p96 = pneg %p90
    %p97 = scmp.eq.s32.totalorder %s13, 1
    %p98 = por %p96, %p97
    %p99 = scmp.ne.s32.totalorder %s91, %s94
    %p100 = scmp.eq.s32.totalorder %s13, 0
    %p101 = por %p99, %p100
    %p102 = scmp.ne.s32.totalorder %s91, %s94
    %p103 = scmp.eq.s32.totalorder %s18, 1
    %p104 = por %p102, %p103
    %p105 = scmp.ne.s32.totalorder %s94, %s95
    %p106 = scmp.eq.s32.totalorder %s18, 0
    %p107 = por %p105, %p106
    %p108 = scmp.ne.s32.totalorder %s94, %s95
    %p109 = scmp.eq.s32.totalorder %s19, 1
    %p110 = por %p108, %p109
    %p112 = scmp.ne.s32.totalorder %s95, %s111
    %p113 = scmp.eq.s32.totalorder %s19, 0
    %p114 = por %p112, %p113
    %s115 = ssub.s32 %s13, %s20
    %p116 = scmp.eq.s32.totalorder %s115, 0
    %s118 = sadd.s32 %s117, 1
    %s119 = scalar_select %p116, %s117, %s118
    %p122 = pneg %p116
    %p123 = scmp.eq.s32.totalorder %s13, 1
    %p124 = por %p122, %p123
    %p125 = scmp.ne.s32.totalorder %s117, %s120
    %p126 = scmp.eq.s32.totalorder %s13, 0
    %p127 = por %p125, %p126
    %p128 = scmp.ne.s32.totalorder %s117, %s120
    %p129 = scmp.eq.s32.totalorder %s18, 1
    %p130 = por %p128, %p129
    %p131 = scmp.ne.s32.totalorder %s120, %s121
    %p132 = scmp.eq.s32.totalorder %s18, 0
    %p133 = por %p131, %p132
    %p134 = scmp.ne.s32.totalorder %s120, %s121
    %p135 = scmp.eq.s32.totalorder %s19, 1
    %p136 = por %p134, %p135
    %p138 = scmp.ne.s32.totalorder %s121, %s137
    %p139 = scmp.eq.s32.totalorder %s19, 0
    %p140 = por %p138, %p139
    %s141 = ssub.s32 %s13, %s20
    %p142 = scmp.eq.s32.totalorder %s141, 0
    %s144 = sadd.s32 %s143, 1
    %s145 = scalar_select %p142, %s143, %s144
    %p148 = pneg %p142
    %p149 = scmp.eq.s32.totalorder %s13, 1
    %p150 = por %p148, %p149
    %p151 = scmp.ne.s32.totalorder %s143, %s146
    %p152 = scmp.eq.s32.totalorder %s13, 0
    %p153 = por %p151, %p152
    %p154 = scmp.ne.s32.totalorder %s143, %s146
    %p155 = scmp.eq.s32.totalorder %s18, 1
    %p156 = por %p154, %p155
    %p157 = scmp.ne.s32.totalorder %s146, %s147
    %p158 = scmp.eq.s32.totalorder %s18, 0
    %p159 = por %p157, %p158
    %p160 = scmp.ne.s32.totalorder %s146, %s147
    %p161 = scmp.eq.s32.totalorder %s19, 1
    %p162 = por %p160, %p161
    %p164 = scmp.ne.s32.totalorder %s147, %s163
    %p165 = scmp.eq.s32.totalorder %s19, 0
    %p166 = por %p164, %p165
    %s167 = ssub.s32 %s13, %s20
    %p168 = scmp.eq.s32.totalorder %s167, 0
    %s170 = sadd.s32 %s169, 1
    %s171 = scalar_select %p168, %s169, %s170
    %p174 = pneg %p168
    %p175 = scmp.eq.s32.totalorder %s13, 1
    %p176 = por %p174, %p175
    %p177 = scmp.ne.s32.totalorder %s169, %s172
    %p178 = scmp.eq.s32.totalorder %s13, 0
    %p179 = por %p177, %p178
    %p180 = scmp.ne.s32.totalorder %s169, %s172
    %p181 = scmp.eq.s32.totalorder %s18, 1
    %p182 = por %p180, %p181
    %p183 = scmp.ne.s32.totalorder %s172, %s173
    %p184 = scmp.eq.s32.totalorder %s18, 0
    %p185 = por %p183, %p184
    %p186 = scmp.ne.s32.totalorder %s172, %s173
    %p187 = scmp.eq.s32.totalorder %s19, 1
    %p188 = por %p186, %p187
    %p190 = scmp.ne.s32.totalorder %s173, %s189
    %p191 = scmp.eq.s32.totalorder %s19, 0
    %p192 = por %p190, %p191
    %p193 = scmp.le.s32.totalorder 1, %s13
    %p194 = scmp.lt.s32.totalorder %s13, 3
    %p195 = pnand %p193, %p194
    %p196 = pneg %p195
    // Predicated region
    $region9: #{residual_block.3} parent=5 // pred_check
      _
    $region10: #{residual_block.3} parent=5 // pred_check_branch
      %198 = sbr.rel (%p195) target = $region12
    $region11: #{residual_block.3} parent=5 // pred_region
      %s199 = ssub.s32 %s13, 1
      // Predicated region
      $region13: #{residual_block.3} parent=11 // pred_check
        %p200 = pneg %p60
      $region14: #{residual_block.3} parent=11 // pred_check_branch
        %202 = sbr.rel (%p200) target = $region16
      $region15: #{residual_block.3} parent=11 // pred_region
        _
      $region16: #{residual_block.3} parent=11 // pred_fallthru
        _
      // Predicated region
      $region17: #{residual_block.3} parent=11 // pred_check
        %p203 = pneg %p81
      $region18: #{residual_block.3} parent=11 // pred_check_branch
        %205 = sbr.rel (%p203) target = $region20
      $region19: #{residual_block.3} parent=11 // pred_region
        _
      $region20: #{residual_block.3} parent=11 // pred_fallthru
        _
    $region12: #{residual_block.3} parent=5 // pred_fallthru
      _
    %p206 = scmp.lt.s32.totalorder %s13, 2
    // Predicated region
    $region21: #{residual_block.3} parent=5 // pred_check
      %p207 = pneg %p206
    $region22: #{residual_block.3} parent=5 // pred_check_branch
      %209 = sbr.rel (%p207) target = $region24
    $region23: #{residual_block.3} parent=5 // pred_region
      // Predicated region
      $region25: #{residual_block.3} parent=23 // pred_check
        %p210 = pneg %p33
      $region26: #{residual_block.3} parent=23 // pred_check_branch
        %212 = sbr.rel (%p210) target = $region28
      $region27: #{residual_block.3} parent=23 // pred_region
        %p213 = scmp.lt.s32.totalorder %s13, 1
        %s214 = scalar_select %p213, %s13, 1
        %s215 = smul.addr %s214, 32
        %s216 = smul.addr %s215, 8
        %s217 = scalar_lea.vmem %s0, %s216
      $region28: #{residual_block.3} parent=23 // pred_fallthru
        _
    $region24: #{residual_block.3} parent=5 // pred_fallthru
      _
    %p218 = scmp.le.s32.totalorder 1, %s13
    %p219 = scmp.lt.s32.totalorder %s13, 3
    %p220 = pnand %p218, %p219
    %p221 = pneg %p220
    // Predicated region
    $region29: #{residual_block.3} parent=5 // pred_check
      _
    $region30: #{residual_block.3} parent=5 // pred_check_branch
      %223 = sbr.rel (%p220) target = $region32
    $region31: #{residual_block.3} parent=5 // pred_region
      %s224 = ssub.s32 %s13, 1
      %p225 = scmp.lt.s32.totalorder %s18, 1
      %s226 = scalar_select %p225, %s18, 1
      %s227 = smul.addr %s226, 32
      %s228 = smul.addr %s227, 8
      %s229 = scalar_lea.vmem %s0, %s228
      %p230 = pneg %p39
      %p231 = pneg %p36
      %p232 = pneg %p60
      %p233 = pneg %p57
      %p234 = pneg %p81
      %p235 = pneg %p78
      %p236 = pneg %p107
      %p237 = pneg %p104
      %p238 = scmp.lt.s32.totalorder %s18, 1
      %s239 = scalar_select %p238, %s18, 1
      %s240 = smul.addr %s239, 32
      %s241 = smul.addr %s240, 8
      %s242 = scalar_lea.vmem %s3, %s241
      %p243 = pneg %p133
      %p244 = pneg %p130
      %p245 = scmp.lt.s32.totalorder %s18, 1
      %s246 = scalar_select %p245, %s18, 1
      %s247 = smul.addr %s246, 32
      %s248 = smul.addr %s247, 8
      %s249 = scalar_lea.vmem %s4, %s248
      %p250 = pneg %p159
      %p251 = pneg %p156
      %p252 = scmp.lt.s32.totalorder %s18, 1
      %s253 = scalar_select %p252, %s18, 1
      %s254 = smul.addr %s253, 2
      %s255 = scalar_lea.vmem %s5, %s254
      %p256 = pneg %p185
      %p257 = pneg %p182
      %p258 = scmp.lt.s32.totalorder %s18, 1
      %s259 = scalar_select %p258, %s18, 1
      %s260 = smul.addr %s259, 2
      %s261 = scalar_lea.vmem %s6, %s260
      %p262 = scmp.lt.s32.totalorder %s18, 1
      %s263 = scalar_select %p262, %s18, 1
      %s264 = smul.addr %s263, 32
      %s265 = smul.addr %s264, 8
      %s266 = scalar_lea.vmem %s0, %s265
      %p267 = scmp.lt.s32.totalorder %s18, 1
      %s268 = scalar_select %p267, %s18, 1
      %s269 = smul.addr %s268, 32
      %s270 = smul.addr %s269, 8
      %s271 = scalar_lea.vmem %s3, %s270
      %p272 = scmp.lt.s32.totalorder %s18, 1
      %s273 = scalar_select %p272, %s18, 1
      %s274 = smul.addr %s273, 32
      %s275 = smul.addr %s274, 8
      %s276 = scalar_lea.vmem %s4, %s275
      %p277 = scmp.lt.s32.totalorder %s18, 1
      %s278 = scalar_select %p277, %s18, 1
      %s279 = smul.addr %s278, 2
      %s280 = scalar_lea.vmem %s5, %s279
      %p281 = scmp.lt.s32.totalorder %s18, 1
      %s282 = scalar_select %p281, %s18, 1
      %s283 = smul.addr %s282, 2
      %s284 = scalar_lea.vmem %s6, %s283
      %vm286 = vcmask 31744
      %287 = vst.msk [vmem:[#allocation2] sm:$0xff] %vm286, 0.0
      %288 = vst.msk [vmem:[#allocation2 + $0x8] sm:$0xff] %vm286, 0.0
      %vm289 = vcmask 25600
      %290 = vst.msk [vmem:[#allocation2 + $0x10] sm:$0x3] %vm289, 0.0
      %291 = vst.msk [vmem:[#allocation2 + $0x18] sm:$0xff] %vm286, 0.0
      %292 = vst.msk [vmem:[#allocation2 + $0x20] sm:$0xff] %vm286, 0.0
      %293 = vst.msk [vmem:[#allocation2 + $0x28] sm:$0x3] %vm289, 0.0
      %294 = vst.msk [vmem:[#allocation2 + $0x30] sm:$0xff] %vm286, 0.0
      %295 = vst.msk [vmem:[#allocation2 + $0x38] sm:$0xff] %vm286, 0.0
      %296 = vst.msk [vmem:[#allocation2 + $0x40] sm:$0x3] %vm289, 0.0
      %297 = vst.msk [vmem:[#allocation2 + $0x48] sm:$0xff] %vm286, 0.0
      %298 = vst.msk [vmem:[#allocation2 + $0x50] sm:$0xff] %vm286, 0.0
      %299 = vst.msk [vmem:[#allocation2 + $0x58] sm:$0x3] %vm289, 0.0
      %300 = vst.msk [vmem:[#allocation2 + $0x60] sm:$0xff] %vm286, 0.0
      %301 = vst.msk [vmem:[#allocation2 + $0x68] sm:$0xff] %vm286, 0.0
      %302 = vst.msk [vmem:[#allocation2 + $0x70] sm:$0x3] %vm289, 0.0
      %303 = vst.msk [vmem:[#allocation2 + $0x78] sm:$0xff] %vm286, 0.0
      %304 = vst.msk [vmem:[#allocation2 + $0x80] sm:$0xff] %vm286, 0.0
      %305 = vst.msk [vmem:[#allocation2 + $0x88] sm:$0x3] %vm289, 0.0
      %306 = vst.msk [vmem:[#allocation2 + $0x90] sm:$0xff] %vm286, 0.0
      %307 = vst.msk [vmem:[#allocation2 + $0x98] sm:$0xff] %vm286, 0.0
      %308 = vst.msk [vmem:[#allocation2 + $0xa0] sm:$0x3] %vm289, 0.0
      %309 = vst.msk [vmem:[#allocation2 + $0xa8] sm:$0xff] %vm286, 0.0
      %310 = vst.msk [vmem:[#allocation2 + $0xb0] sm:$0xff] %vm286, 0.0
      %311 = vst.msk [vmem:[#allocation2 + $0xb8] sm:$0x3] %vm289, 0.0
      %312 = vst.msk [vmem:[#allocation2 + $0xc0] sm:$0xff] %vm286, 0.0
      %313 = vst.msk [vmem:[#allocation2 + $0xc8] sm:$0xff] %vm286, 0.0
      %314 = vst.msk [vmem:[#allocation2 + $0xd0] sm:$0x3] %vm289, 0.0
      %315 = vst.msk [vmem:[#allocation2 + $0xd8] sm:$0xff] %vm286, 0.0
      %316 = vst.msk [vmem:[#allocation2 + $0xe0] sm:$0xff] %vm286, 0.0
      %317 = vst.msk [vmem:[#allocation2 + $0xe8] sm:$0x3] %vm289, 0.0
      %318 = vst.msk [vmem:[#allocation2 + $0xf0] sm:$0xff] %vm286, 0.0
      %319 = vst.msk [vmem:[#allocation2 + $0xf8] sm:$0xff] %vm286, 0.0
      %320 = vst.msk [vmem:[#allocation2 + $0x100] sm:$0x3] %vm289, 0.0
      %321 = vst.msk [vmem:[#allocation2 + $0x108] sm:$0xff] %vm286, 0.0
      %322 = vst.msk [vmem:[#allocation2 + $0x110] sm:$0xff] %vm286, 0.0
      %323 = vst.msk [vmem:[#allocation2 + $0x118] sm:$0x3] %vm289, 0.0
      %324 = vst.msk [vmem:[#allocation2 + $0x120] sm:$0xff] %vm286, 0.0
      %325 = vst.msk [vmem:[#allocation2 + $0x128] sm:$0xff] %vm286, 0.0
      %326 = vst.msk [vmem:[#allocation2 + $0x130] sm:$0x3] %vm289, 0.0
      %327 = vst.msk [vmem:[#allocation2 + $0x138] sm:$0xff] %vm286, 0.0
      %328 = vst.msk [vmem:[#allocation2 + $0x140] sm:$0xff] %vm286, 0.0
      %329 = vst.msk [vmem:[#allocation2 + $0x148] sm:$0x3] %vm289, 0.0
      %330 = vst.msk [vmem:[#allocation2 + $0x150] sm:$0xff] %vm286, 0.0
      %331 = vst.msk [vmem:[#allocation2 + $0x158] sm:$0xff] %vm286, 0.0
      %332 = vst.msk [vmem:[#allocation2 + $0x160] sm:$0x3] %vm289, 0.0
      %333 = vst.msk [vmem:[#allocation2 + $0x168] sm:$0xff] %vm286, 0.0
      %334 = vst.msk [vmem:[#allocation2 + $0x170] sm:$0xff] %vm286, 0.0
      %335 = vst.msk [vmem:[#allocation2 + $0x178] sm:$0x3] %vm289, 0.0
      %336 = vst.msk [vmem:[#allocation2 + $0x180] sm:$0xff] %vm286, 0.0
      %337 = vst.msk [vmem:[#allocation2 + $0x188] sm:$0xff] %vm286, 0.0
      %338 = vst.msk [vmem:[#allocation2 + $0x190] sm:$0x3] %vm289, 0.0
      %339 = vst.msk [vmem:[#allocation2 + $0x198] sm:$0xff] %vm286, 0.0
      %340 = vst.msk [vmem:[#allocation2 + $0x1a0] sm:$0xff] %vm286, 0.0
      %341 = vst.msk [vmem:[#allocation2 + $0x1a8] sm:$0x3] %vm289, 0.0
      %v342 = vld [vmem:[%s266] sm:$0xff]
      %v343 = vld [vmem:[%s266 + $0x8] sm:$0xff]
      %v344 = vld [vmem:[%s266 + $0x10] sm:$0xff]
      %v345 = vld [vmem:[%s266 + $0x18] sm:$0xff]
      %v346 = vld [vmem:[%s266 + $0x20] sm:$0xff]
      %v347 = vld [vmem:[%s266 + $0x28] sm:$0xff]
      %v348 = vld [vmem:[%s266 + $0x30] sm:$0xff]
      %v349 = vld [vmem:[%s266 + $0x38] sm:$0xff]
      %v350 = vld [vmem:[%s266 + $0x40] sm:$0xff]
      %v351 = vld [vmem:[%s266 + $0x48] sm:$0xff]
      %v352 = vld [vmem:[%s266 + $0x50] sm:$0xff]
      %v353 = vld [vmem:[%s266 + $0x58] sm:$0xff]
      %v354 = vld [vmem:[%s266 + $0x60] sm:$0xff]
      %v355 = vld [vmem:[%s266 + $0x68] sm:$0xff]
      %v356 = vld [vmem:[%s266 + $0x70] sm:$0xff]
      %v357 = vld [vmem:[%s266 + $0x78] sm:$0xff]
      %v358 = vld [vmem:[%s266 + $0x80] sm:$0xff]
      %v359 = vld [vmem:[%s266 + $0x88] sm:$0xff]
      %v360 = vld [vmem:[%s266 + $0x90] sm:$0xff]
      %v361 = vld [vmem:[%s266 + $0x98] sm:$0xff]
      %v362 = vld [vmem:[%s266 + $0xa0] sm:$0xff]
      %v363 = vld [vmem:[%s266 + $0xa8] sm:$0xff]
      %v364 = vld [vmem:[%s266 + $0xb0] sm:$0xff]
      %v365 = vld [vmem:[%s266 + $0xb8] sm:$0xff]
      %v366 = vld [vmem:[%s266 + $0xc0] sm:$0xff]
      %v367 = vld [vmem:[%s266 + $0xc8] sm:$0xff]
      %v368 = vld [vmem:[%s266 + $0xd0] sm:$0xff]
      %v369 = vld [vmem:[%s266 + $0xd8] sm:$0xff]
      %v370 = vld [vmem:[%s266 + $0xe0] sm:$0xff]
      %v371 = vld [vmem:[%s266 + $0xe8] sm:$0xff]
      %v372 = vld [vmem:[%s266 + $0xf0] sm:$0xff]
      %v373 = vld [vmem:[%s266 + $0xf8] sm:$0xff]
      %s374 = scalar_lea.vmem [#allocation2], 24
      %375 = vst.msk [vmem:[%s374 + $0x1] sm:$0xff] %vm286, %v342
      %376 = vst.msk [vmem:[%s374 + $0x9] sm:$0xff] %vm286, %v343
      %377 = vst.msk [vmem:[%s374 + $0x19] sm:$0xff] %vm286, %v344
      %378 = vst.msk [vmem:[%s374 + $0x21] sm:$0xff] %vm286, %v345
      %379 = vst.msk [vmem:[%s374 + $0x31] sm:$0xff] %vm286, %v346
      %380 = vst.msk [vmem:[%s374 + $0x39] sm:$0xff] %vm286, %v347
      %381 = vst.msk [vmem:[%s374 + $0x49] sm:$0xff] %vm286, %v348
      %382 = vst.msk [vmem:[%s374 + $0x51] sm:$0xff] %vm286, %v349
      %383 = vst.msk [vmem:[%s374 + $0x61] sm:$0xff] %vm286, %v350
      %384 = vst.msk [vmem:[%s374 + $0x69] sm:$0xff] %vm286, %v351
      %385 = vst.msk [vmem:[%s374 + $0x79] sm:$0xff] %vm286, %v352
      %386 = vst.msk [vmem:[%s374 + $0x81] sm:$0xff] %vm286, %v353
      %387 = vst.msk [vmem:[%s374 + $0x91] sm:$0xff] %vm286, %v354
      %388 = vst.msk [vmem:[%s374 + $0x99] sm:$0xff] %vm286, %v355
      %389 = vst.msk [vmem:[%s374 + $0xa9] sm:$0xff] %vm286, %v356
      %390 = vst.msk [vmem:[%s374 + $0xb1] sm:$0xff] %vm286, %v357
      %391 = vst.msk [vmem:[%s374 + $0xc1] sm:$0xff] %vm286, %v358
      %392 = vst.msk [vmem:[%s374 + $0xc9] sm:$0xff] %vm286, %v359
      %393 = vst.msk [vmem:[%s374 + $0xd9] sm:$0xff] %vm286, %v360
      %394 = vst.msk [vmem:[%s374 + $0xe1] sm:$0xff] %vm286, %v361
      %395 = vst.msk [vmem:[%s374 + $0xf1] sm:$0xff] %vm286, %v362
      %396 = vst.msk [vmem:[%s374 + $0xf9] sm:$0xff] %vm286, %v363
      %397 = vst.msk [vmem:[%s374 + $0x109] sm:$0xff] %vm286, %v364
      %398 = vst.msk [vmem:[%s374 + $0x111] sm:$0xff] %vm286, %v365
      %399 = vst.msk [vmem:[%s374 + $0x121] sm:$0xff] %vm286, %v366
      %400 = vst.msk [vmem:[%s374 + $0x129] sm:$0xff] %vm286, %v367
      %401 = vst.msk [vmem:[%s374 + $0x139] sm:$0xff] %vm286, %v368
      %402 = vst.msk [vmem:[%s374 + $0x141] sm:$0xff] %vm286, %v369
      %403 = vst.msk [vmem:[%s374 + $0x151] sm:$0xff] %vm286, %v370
      %404 = vst.msk [vmem:[%s374 + $0x159] sm:$0xff] %vm286, %v371
      %405 = vst.msk [vmem:[%s374 + $0x169] sm:$0xff] %vm286, %v372
      %406 = vst.msk [vmem:[%s374 + $0x171] sm:$0xff] %vm286, %v373
      %v407 = vld [vmem:[#allocation2] sm:$0xff]
      %v408 = vld [vmem:[#allocation2 + $0x8] sm:$0xff]
      %v409 = vld [vmem:[#allocation2 + $0x18] sm:$0xff]
      %v410 = vld [vmem:[#allocation2 + $0x20] sm:$0xff]
      %v411 = vld [vmem:[#allocation2 + $0x30] sm:$0xff]
      %v412 = vld [vmem:[#allocation2 + $0x38] sm:$0xff]
      %v413 = vld [vmem:[#allocation2 + $0x48] sm:$0xff]
      %v414 = vld [vmem:[#allocation2 + $0x50] sm:$0xff]
      %v415 = vld [vmem:[#allocation2 + $0x60] sm:$0xff]
      %v416 = vld [vmem:[#allocation2 + $0x68] sm:$0xff]
      %v417 = vld [vmem:[#allocation2 + $0x78] sm:$0xff]
      %v418 = vld [vmem:[#allocation2 + $0x80] sm:$0xff]
      %v419 = vld [vmem:[#allocation2 + $0x90] sm:$0xff]
      %v420 = vld [vmem:[#allocation2 + $0x98] sm:$0xff]
      %v421 = vld [vmem:[#allocation2 + $0xa8] sm:$0xff]
      %v422 = vld [vmem:[#allocation2 + $0xb0] sm:$0xff]
      %v423 = vld [vmem:[#allocation2 + $0xc0] sm:$0xff]
      %v424 = vld [vmem:[#allocation2 + $0xc8] sm:$0xff]
      %v425 = vld [vmem:[#allocation2 + $0xd8] sm:$0xff]
      %v426 = vld [vmem:[#allocation2 + $0xe0] sm:$0xff]
      %v427 = vld [vmem:[#allocation2 + $0xf0] sm:$0xff]
      %v428 = vld [vmem:[#allocation2 + $0xf8] sm:$0xff]
      %v429 = vld [vmem:[#allocation2 + $0x108] sm:$0xff]
      %v430 = vld [vmem:[#allocation2 + $0x110] sm:$0xff]
      %v431 = vld [vmem:[#allocation2 + $0x120] sm:$0xff]
      %v432 = vld [vmem:[#allocation2 + $0x128] sm:$0xff]
      %v433 = vld [vmem:[#allocation2 + $0x138] sm:$0xff]
      %v434 = vld [vmem:[#allocation2 + $0x140] sm:$0xff]
      %v435 = vld [vmem:[#allocation2 + $0x150] sm:$0xff]
      %v436 = vld [vmem:[#allocation2 + $0x158] sm:$0xff]
      %v437 = vld [vmem:[#allocation2 + $0x168] sm:$0xff]
      %v438 = vld [vmem:[#allocation2 + $0x170] sm:$0xff]
      %439 = vst.msk [vmem:[#allocation3] sm:$0xff] %vm286, %v407
      %440 = vst.msk [vmem:[#allocation3 + $0x8] sm:$0xff] %vm286, %v408
      %441 = vst.msk [vmem:[#allocation3 + $0x10] sm:$0xff] %vm286, %v409
      %442 = vst.msk [vmem:[#allocation3 + $0x18] sm:$0xff] %vm286, %v410
      %443 = vst.msk [vmem:[#allocation3 + $0x20] sm:$0xff] %vm286, %v411
      %444 = vst.msk [vmem:[#allocation3 + $0x28] sm:$0xff] %vm286, %v412
      %445 = vst.msk [vmem:[#allocation3 + $0x30] sm:$0xff] %vm286, %v413
      %446 = vst.msk [vmem:[#allocation3 + $0x38] sm:$0xff] %vm286, %v414
      %447 = vst.msk [vmem:[#allocation3 + $0x40] sm:$0xff] %vm286, %v415
      %448 = vst.msk [vmem:[#allocation3 + $0x48] sm:$0xff] %vm286, %v416
      %449 = vst.msk [vmem:[#allocation3 + $0x50] sm:$0xff] %vm286, %v417
      %450 = vst.msk [vmem:[#allocation3 + $0x58] sm:$0xff] %vm286, %v418
      %451 = vst.msk [vmem:[#allocation3 + $0x60] sm:$0xff] %vm286, %v419
      %452 = vst.msk [vmem:[#allocation3 + $0x68] sm:$0xff] %vm286, %v420
      %453 = vst.msk [vmem:[#allocation3 + $0x70] sm:$0xff] %vm286, %v421
      %454 = vst.msk [vmem:[#allocation3 + $0x78] sm:$0xff] %vm286, %v422
      %455 = vst.msk [vmem:[#allocation3 + $0x80] sm:$0xff] %vm286, %v423
      %456 = vst.msk [vmem:[#allocation3 + $0x88] sm:$0xff] %vm286, %v424
      %457 = vst.msk [vmem:[#allocation3 + $0x90] sm:$0xff] %vm286, %v425
      %458 = vst.msk [vmem:[#allocation3 + $0x98] sm:$0xff] %vm286, %v426
      %459 = vst.msk [vmem:[#allocation3 + $0xa0] sm:$0xff] %vm286, %v427
      %460 = vst.msk [vmem:[#allocation3 + $0xa8] sm:$0xff] %vm286, %v428
      %461 = vst.msk [vmem:[#allocation3 + $0xb0] sm:$0xff] %vm286, %v429
      %462 = vst.msk [vmem:[#allocation3 + $0xb8] sm:$0xff] %vm286, %v430
      %463 = vst.msk [vmem:[#allocation3 + $0xc0] sm:$0xff] %vm286, %v431
      %464 = vst.msk [vmem:[#allocation3 + $0xc8] sm:$0xff] %vm286, %v432
      %465 = vst.msk [vmem:[#allocation3 + $0xd0] sm:$0xff] %vm286, %v433
      %466 = vst.msk [vmem:[#allocation3 + $0xd8] sm:$0xff] %vm286, %v434
      %467 = vst.msk [vmem:[#allocation3 + $0xe0] sm:$0xff] %vm286, %v435
      %468 = vst.msk [vmem:[#allocation3 + $0xe8] sm:$0xff] %vm286, %v436
      %469 = vst.msk [vmem:[#allocation3 + $0xf0] sm:$0xff] %vm286, %v437
      %470 = vst.msk [vmem:[#allocation3 + $0xf8] sm:$0xff] %vm286, %v438
      %v471 = vld [vmem:[#allocation2 + $0x1] sm:$0xff]
      %v472 = vld [vmem:[#allocation2 + $0x9] sm:$0xff]
      %v473 = vld [vmem:[#allocation2 + $0x19] sm:$0xff]
      %v474 = vld [vmem:[#allocation2 + $0x21] sm:$0xff]
      %v475 = vld [vmem:[#allocation2 + $0x31] sm:$0xff]
      %v476 = vld [vmem:[#allocation2 + $0x39] sm:$0xff]
      %v477 = vld [vmem:[#allocation2 + $0x49] sm:$0xff]
      %v478 = vld [vmem:[#allocation2 + $0x51] sm:$0xff]
      %v479 = vld [vmem:[#allocation2 + $0x61] sm:$0xff]
      %v480 = vld [vmem:[#allocation2 + $0x69] sm:$0xff]
      %v481 = vld [vmem:[#allocation2 + $0x79] sm:$0xff]
      %v482 = vld [vmem:[#allocation2 + $0x81] sm:$0xff]
      %v483 = vld [vmem:[#allocation2 + $0x91] sm:$0xff]
      %v484 = vld [vmem:[#allocation2 + $0x99] sm:$0xff]
      %v485 = vld [vmem:[#allocation2 + $0xa9] sm:$0xff]
      %v486 = vld [vmem:[#allocation2 + $0xb1] sm:$0xff]
      %v487 = vld [vmem:[#allocation2 + $0xc1] sm:$0xff]
      %v488 = vld [vmem:[#allocation2 + $0xc9] sm:$0xff]
      %v489 = vld [vmem:[#allocation2 + $0xd9] sm:$0xff]
      %v490 = vld [vmem:[#allocation2 + $0xe1] sm:$0xff]
      %v491 = vld [vmem:[#allocation2 + $0xf1] sm:$0xff]
      %v492 = vld [vmem:[#allocation2 + $0xf9] sm:$0xff]
      %v493 = vld [vmem:[#allocation2 + $0x109] sm:$0xff]
      %v494 = vld [vmem:[#allocation2 + $0x111] sm:$0xff]
      %v495 = vld [vmem:[#allocation2 + $0x121] sm:$0xff]
      %v496 = vld [vmem:[#allocation2 + $0x129] sm:$0xff]
      %v497 = vld [vmem:[#allocation2 + $0x139] sm:$0xff]
      %v498 = vld [vmem:[#allocation2 + $0x141] sm:$0xff]
      %v499 = vld [vmem:[#allocation2 + $0x151] sm:$0xff]
      %v500 = vld [vmem:[#allocation2 + $0x159] sm:$0xff]
      %v501 = vld [vmem:[#allocation2 + $0x169] sm:$0xff]
      %v502 = vld [vmem:[#allocation2 + $0x171] sm:$0xff]
      %535 = vrot.lane.b32.xlu0 %v471, 4
      %v536 = vpop.permute.xlu0 %535
      %537 = vrot.lane.b32.xlu0 %v472, 4
      %v538 = vpop.permute.xlu0 %537
      %539 = vrot.lane.b32.xlu0 %v473, 4
      %v540 = vpop.permute.xlu0 %539
      %541 = vrot.lane.b32.xlu0 %v474, 4
      %v542 = vpop.permute.xlu0 %541
      %543 = vrot.lane.b32.xlu0 %v475, 4
      %v544 = vpop.permute.xlu0 %543
      %545 = vrot.lane.b32.xlu0 %v476, 4
      %v546 = vpop.permute.xlu0 %545
      %547 = vrot.lane.b32.xlu0 %v477, 4
      %v548 = vpop.permute.xlu0 %547
      %549 = vrot.lane.b32.xlu0 %v478, 4
      %v550 = vpop.permute.xlu0 %549
      %551 = vrot.lane.b32.xlu0 %v479, 4
      %v552 = vpop.permute.xlu0 %551
      %553 = vrot.lane.b32.xlu0 %v480, 4
      %v554 = vpop.permute.xlu0 %553
      %555 = vrot.lane.b32.xlu0 %v481, 4
      %v556 = vpop.permute.xlu0 %555
      %557 = vrot.lane.b32.xlu0 %v482, 4
      %v558 = vpop.permute.xlu0 %557
      %559 = vrot.lane.b32.xlu0 %v483, 4
      %v560 = vpop.permute.xlu0 %559
      %561 = vrot.lane.b32.xlu0 %v484, 4
      %v562 = vpop.permute.xlu0 %561
      %563 = vrot.lane.b32.xlu0 %v485, 4
      %v564 = vpop.permute.xlu0 %563
      %565 = vrot.lane.b32.xlu0 %v486, 4
      %v566 = vpop.permute.xlu0 %565
      %567 = vrot.lane.b32.xlu0 %v487, 4
      %v568 = vpop.permute.xlu0 %567
      %569 = vrot.lane.b32.xlu0 %v488, 4
      %v570 = vpop.permute.xlu0 %569
      %571 = vrot.lane.b32.xlu0 %v489, 4
      %v572 = vpop.permute.xlu0 %571
      %573 = vrot.lane.b32.xlu0 %v490, 4
      %v574 = vpop.permute.xlu0 %573
      %575 = vrot.lane.b32.xlu0 %v491, 4
      %v576 = vpop.permute.xlu0 %575
      %577 = vrot.lane.b32.xlu0 %v492, 4
      %v578 = vpop.permute.xlu0 %577
      %579 = vrot.lane.b32.xlu0 %v493, 4
      %v580 = vpop.permute.xlu0 %579
      %581 = vrot.lane.b32.xlu0 %v494, 4
      %v582 = vpop.permute.xlu0 %581
      %583 = vrot.lane.b32.xlu0 %v495, 4
      %v584 = vpop.permute.xlu0 %583
      %585 = vrot.lane.b32.xlu0 %v496, 4
      %v586 = vpop.permute.xlu0 %585
      %587 = vrot.lane.b32.xlu0 %v497, 4
      %v588 = vpop.permute.xlu0 %587
      %589 = vrot.lane.b32.xlu0 %v498, 4
      %v590 = vpop.permute.xlu0 %589
      %591 = vrot.lane.b32.xlu0 %v499, 4
      %v592 = vpop.permute.xlu0 %591
      %593 = vrot.lane.b32.xlu0 %v500, 4
      %v594 = vpop.permute.xlu0 %593
      %595 = vrot.lane.b32.xlu0 %v501, 4
      %v596 = vpop.permute.xlu0 %595
      %597 = vrot.lane.b32.xlu0 %v502, 4
      %v598 = vpop.permute.xlu0 %597
      %vm631 = vcmask 64544
      %632 = vst.msk [vmem:[#allocation3] sm:$0xff] %vm631, %v536
      %633 = vst.msk [vmem:[#allocation3 + $0x8] sm:$0xff] %vm631, %v538
      %634 = vst.msk [vmem:[#allocation3 + $0x10] sm:$0xff] %vm631, %v540
      %635 = vst.msk [vmem:[#allocation3 + $0x18] sm:$0xff] %vm631, %v542
      %636 = vst.msk [vmem:[#allocation3 + $0x20] sm:$0xff] %vm631, %v544
      %637 = vst.msk [vmem:[#allocation3 + $0x28] sm:$0xff] %vm631, %v546
      %638 = vst.msk [vmem:[#allocation3 + $0x30] sm:$0xff] %vm631, %v548
      %639 = vst.msk [vmem:[#allocation3 + $0x38] sm:$0xff] %vm631, %v550
      %640 = vst.msk [vmem:[#allocation3 + $0x40] sm:$0xff] %vm631, %v552
      %641 = vst.msk [vmem:[#allocation3 + $0x48] sm:$0xff] %vm631, %v554
      %642 = vst.msk [vmem:[#allocation3 + $0x50] sm:$0xff] %vm631, %v556
      %643 = vst.msk [vmem:[#allocation3 + $0x58] sm:$0xff] %vm631, %v558
      %644 = vst.msk [vmem:[#allocation3 + $0x60] sm:$0xff] %vm631, %v560
      %645 = vst.msk [vmem:[#allocation3 + $0x68] sm:$0xff] %vm631, %v562
      %646 = vst.msk [vmem:[#allocation3 + $0x70] sm:$0xff] %vm631, %v564
      %647 = vst.msk [vmem:[#allocation3 + $0x78] sm:$0xff] %vm631, %v566
      %648 = vst.msk [vmem:[#allocation3 + $0x80] sm:$0xff] %vm631, %v568
      %649 = vst.msk [vmem:[#allocation3 + $0x88] sm:$0xff] %vm631, %v570
      %650 = vst.msk [vmem:[#allocation3 + $0x90] sm:$0xff] %vm631, %v572
      %651 = vst.msk [vmem:[#allocation3 + $0x98] sm:$0xff] %vm631, %v574
      %652 = vst.msk [vmem:[#allocation3 + $0xa0] sm:$0xff] %vm631, %v576
      %653 = vst.msk [vmem:[#allocation3 + $0xa8] sm:$0xff] %vm631, %v578
      %654 = vst.msk [vmem:[#allocation3 + $0xb0] sm:$0xff] %vm631, %v580
      %655 = vst.msk [vmem:[#allocation3 + $0xb8] sm:$0xff] %vm631, %v582
      %656 = vst.msk [vmem:[#allocation3 + $0xc0] sm:$0xff] %vm631, %v584
      %657 = vst.msk [vmem:[#allocation3 + $0xc8] sm:$0xff] %vm631, %v586
      %658 = vst.msk [vmem:[#allocation3 + $0xd0] sm:$0xff] %vm631, %v588
      %659 = vst.msk [vmem:[#allocation3 + $0xd8] sm:$0xff] %vm631, %v590
      %660 = vst.msk [vmem:[#allocation3 + $0xe0] sm:$0xff] %vm631, %v592
      %661 = vst.msk [vmem:[#allocation3 + $0xe8] sm:$0xff] %vm631, %v594
      %662 = vst.msk [vmem:[#allocation3 + $0xf0] sm:$0xff] %vm631, %v596
      %663 = vst.msk [vmem:[#allocation3 + $0xf8] sm:$0xff] %vm631, %v598
      %v664 = vld [vmem:[#allocation2 + $0x2] sm:$0xff]
      %v665 = vld [vmem:[#allocation2 + $0xa] sm:$0xff]
      %v666 = vld [vmem:[#allocation2 + $0x1a] sm:$0xff]
      %v667 = vld [vmem:[#allocation2 + $0x22] sm:$0xff]
      %v668 = vld [vmem:[#allocation2 + $0x32] sm:$0xff]
      %v669 = vld [vmem:[#allocation2 + $0x3a] sm:$0xff]
      %v670 = vld [vmem:[#allocation2 + $0x4a] sm:$0xff]
      %v671 = vld [vmem:[#allocation2 + $0x52] sm:$0xff]
      %v672 = vld [vmem:[#allocation2 + $0x62] sm:$0xff]
      %v673 = vld [vmem:[#allocation2 + $0x6a] sm:$0xff]
      %v674 = vld [vmem:[#allocation2 + $0x7a] sm:$0xff]
      %v675 = vld [vmem:[#allocation2 + $0x82] sm:$0xff]
      %v676 = vld [vmem:[#allocation2 + $0x92] sm:$0xff]
      %v677 = vld [vmem:[#allocation2 + $0x9a] sm:$0xff]
      %v678 = vld [vmem:[#allocation2 + $0xaa] sm:$0xff]
      %v679 = vld [vmem:[#allocation2 + $0xb2] sm:$0xff]
      %v680 = vld [vmem:[#allocation2 + $0xc2] sm:$0xff]
      %v681 = vld [vmem:[#allocation2 + $0xca] sm:$0xff]
      %v682 = vld [vmem:[#allocation2 + $0xda] sm:$0xff]
      %v683 = vld [vmem:[#allocation2 + $0xe2] sm:$0xff]
      %v684 = vld [vmem:[#allocation2 + $0xf2] sm:$0xff]
      %v685 = vld [vmem:[#allocation2 + $0xfa] sm:$0xff]
      %v686 = vld [vmem:[#allocation2 + $0x10a] sm:$0xff]
      %v687 = vld [vmem:[#allocation2 + $0x112] sm:$0xff]
      %v688 = vld [vmem:[#allocation2 + $0x122] sm:$0xff]
      %v689 = vld [vmem:[#allocation2 + $0x12a] sm:$0xff]
      %v690 = vld [vmem:[#allocation2 + $0x13a] sm:$0xff]
      %v691 = vld [vmem:[#allocation2 + $0x142] sm:$0xff]
      %v692 = vld [vmem:[#allocation2 + $0x152] sm:$0xff]
      %v693 = vld [vmem:[#allocation2 + $0x15a] sm:$0xff]
      %v694 = vld [vmem:[#allocation2 + $0x16a] sm:$0xff]
      %v695 = vld [vmem:[#allocation2 + $0x172] sm:$0xff]
      %728 = vrot.lane.b32.xlu0 %v664, 8
      %v729 = vpop.permute.xlu0 %728
      %730 = vrot.lane.b32.xlu0 %v665, 8
      %v731 = vpop.permute.xlu0 %730
      %732 = vrot.lane.b32.xlu0 %v666, 8
      %v733 = vpop.permute.xlu0 %732
      %734 = vrot.lane.b32.xlu0 %v667, 8
      %v735 = vpop.permute.xlu0 %734
      %736 = vrot.lane.b32.xlu0 %v668, 8
      %v737 = vpop.permute.xlu0 %736
      %738 = vrot.lane.b32.xlu0 %v669, 8
      %v739 = vpop.permute.xlu0 %738
      %740 = vrot.lane.b32.xlu0 %v670, 8
      %v741 = vpop.permute.xlu0 %740
      %742 = vrot.lane.b32.xlu0 %v671, 8
      %v743 = vpop.permute.xlu0 %742
      %744 = vrot.lane.b32.xlu0 %v672, 8
      %v745 = vpop.permute.xlu0 %744
      %746 = vrot.lane.b32.xlu0 %v673, 8
      %v747 = vpop.permute.xlu0 %746
      %748 = vrot.lane.b32.xlu0 %v674, 8
      %v749 = vpop.permute.xlu0 %748
      %750 = vrot.lane.b32.xlu0 %v675, 8
      %v751 = vpop.permute.xlu0 %750
      %752 = vrot.lane.b32.xlu0 %v676, 8
      %v753 = vpop.permute.xlu0 %752
      %754 = vrot.lane.b32.xlu0 %v677, 8
      %v755 = vpop.permute.xlu0 %754
      %756 = vrot.lane.b32.xlu0 %v678, 8
      %v757 = vpop.permute.xlu0 %756
      %758 = vrot.lane.b32.xlu0 %v679, 8
      %v759 = vpop.permute.xlu0 %758
      %760 = vrot.lane.b32.xlu0 %v680, 8
      %v761 = vpop.permute.xlu0 %760
      %762 = vrot.lane.b32.xlu0 %v681, 8
      %v763 = vpop.permute.xlu0 %762
      %764 = vrot.lane.b32.xlu0 %v682, 8
      %v765 = vpop.permute.xlu0 %764
      %766 = vrot.lane.b32.xlu0 %v683, 8
      %v767 = vpop.permute.xlu0 %766
      %768 = vrot.lane.b32.xlu0 %v684, 8
      %v769 = vpop.permute.xlu0 %768
      %770 = vrot.lane.b32.xlu0 %v685, 8
      %v771 = vpop.permute.xlu0 %770
      %772 = vrot.lane.b32.xlu0 %v686, 8
      %v773 = vpop.permute.xlu0 %772
      %774 = vrot.lane.b32.xlu0 %v687, 8
      %v775 = vpop.permute.xlu0 %774
      %776 = vrot.lane.b32.xlu0 %v688, 8
      %v777 = vpop.permute.xlu0 %776
      %778 = vrot.lane.b32.xlu0 %v689, 8
      %v779 = vpop.permute.xlu0 %778
      %780 = vrot.lane.b32.xlu0 %v690, 8
      %v781 = vpop.permute.xlu0 %780
      %782 = vrot.lane.b32.xlu0 %v691, 8
      %v783 = vpop.permute.xlu0 %782
      %784 = vrot.lane.b32.xlu0 %v692, 8
      %v785 = vpop.permute.xlu0 %784
      %786 = vrot.lane.b32.xlu0 %v693, 8
      %v787 = vpop.permute.xlu0 %786
      %788 = vrot.lane.b32.xlu0 %v694, 8
      %v789 = vpop.permute.xlu0 %788
      %790 = vrot.lane.b32.xlu0 %v695, 8
      %v791 = vpop.permute.xlu0 %790
      %vm824 = vcmask 97344
      %825 = vst.msk [vmem:[#allocation3] sm:$0xff] %vm824, %v729
      %826 = vst.msk [vmem:[#allocation3 + $0x8] sm:$0xff] %vm824, %v731
      %827 = vst.msk [vmem:[#allocation3 + $0x10] sm:$0xff] %vm824, %v733
      %828 = vst.msk [vmem:[#allocation3 + $0x18] sm:$0xff] %vm824, %v735
      %829 = vst.msk [vmem:[#allocation3 + $0x20] sm:$0xff] %vm824, %v737
      %830 = vst.msk [vmem:[#allocation3 + $0x28] sm:$0xff] %vm824, %v739
      %831 = vst.msk [vmem:[#allocation3 + $0x30] sm:$0xff] %vm824, %v741
      %832 = vst.msk [vmem:[#allocation3 + $0x38] sm:$0xff] %vm824, %v743
      %833 = vst.msk [vmem:[#allocation3 + $0x40] sm:$0xff] %vm824, %v745
      %834 = vst.msk [vmem:[#allocation3 + $0x48] sm:$0xff] %vm824, %v747
      %835 = vst.msk [vmem:[#allocation3 + $0x50] sm:$0xff] %vm824, %v749
      %836 = vst.msk [vmem:[#allocation3 + $0x58] sm:$0xff] %vm824, %v751
      %837 = vst.msk [vmem:[#allocation3 + $0x60] sm:$0xff] %vm824, %v753
      %838 = vst.msk [vmem:[#allocation3 + $0x68] sm:$0xff] %vm824, %v755
      %839 = vst.msk [vmem:[#allocation3 + $0x70] sm:$0xff] %vm824, %v757
      %840 = vst.msk [vmem:[#allocation3 + $0x78] sm:$0xff] %vm824, %v759
      %841 = vst.msk [vmem:[#allocation3 + $0x80] sm:$0xff] %vm824, %v761
      %842 = vst.msk [vmem:[#allocation3 + $0x88] sm:$0xff] %vm824, %v763
      %843 = vst.msk [vmem:[#allocation3 + $0x90] sm:$0xff] %vm824, %v765
      %844 = vst.msk [vmem:[#allocation3 + $0x98] sm:$0xff] %vm824, %v767
      %845 = vst.msk [vmem:[#allocation3 + $0xa0] sm:$0xff] %vm824, %v769
      %846 = vst.msk [vmem:[#allocation3 + $0xa8] sm:$0xff] %vm824, %v771
      %847 = vst.msk [vmem:[#allocation3 + $0xb0] sm:$0xff] %vm824, %v773
      %848 = vst.msk [vmem:[#allocation3 + $0xb8] sm:$0xff] %vm824, %v775
      %849 = vst.msk [vmem:[#allocation3 + $0xc0] sm:$0xff] %vm824, %v777
      %850 = vst.msk [vmem:[#allocation3 + $0xc8] sm:$0xff] %vm824, %v779
      %851 = vst.msk [vmem:[#allocation3 + $0xd0] sm:$0xff] %vm824, %v781
      %852 = vst.msk [vmem:[#allocation3 + $0xd8] sm:$0xff] %vm824, %v783
      %853 = vst.msk [vmem:[#allocation3 + $0xe0] sm:$0xff] %vm824, %v785
      %854 = vst.msk [vmem:[#allocation3 + $0xe8] sm:$0xff] %vm824, %v787
      %855 = vst.msk [vmem:[#allocation3 + $0xf0] sm:$0xff] %vm824, %v789
      %856 = vst.msk [vmem:[#allocation3 + $0xf8] sm:$0xff] %vm824, %v791
      %v857 = vld [vmem:[%s374] sm:$0xff]
      %v858 = vld [vmem:[%s374 + $0x8] sm:$0xff]
      %v859 = vld [vmem:[%s374 + $0x18] sm:$0xff]
      %v860 = vld [vmem:[%s374 + $0x20] sm:$0xff]
      %v861 = vld [vmem:[%s374 + $0x30] sm:$0xff]
      %v862 = vld [vmem:[%s374 + $0x38] sm:$0xff]
      %v863 = vld [vmem:[%s374 + $0x48] sm:$0xff]
      %v864 = vld [vmem:[%s374 + $0x50] sm:$0xff]
      %v865 = vld [vmem:[%s374 + $0x60] sm:$0xff]
      %v866 = vld [vmem:[%s374 + $0x68] sm:$0xff]
      %v867 = vld [vmem:[%s374 + $0x78] sm:$0xff]
      %v868 = vld [vmem:[%s374 + $0x80] sm:$0xff]
      %v869 = vld [vmem:[%s374 + $0x90] sm:$0xff]
      %v870 = vld [vmem:[%s374 + $0x98] sm:$0xff]
      %v871 = vld [vmem:[%s374 + $0xa8] sm:$0xff]
      %v872 = vld [vmem:[%s374 + $0xb0] sm:$0xff]
      %v873 = vld [vmem:[%s374 + $0xc0] sm:$0xff]
      %v874 = vld [vmem:[%s374 + $0xc8] sm:$0xff]
      %v875 = vld [vmem:[%s374 + $0xd8] sm:$0xff]
      %v876 = vld [vmem:[%s374 + $0xe0] sm:$0xff]
      %v877 = vld [vmem:[%s374 + $0xf0] sm:$0xff]
      %v878 = vld [vmem:[%s374 + $0xf8] sm:$0xff]
      %v879 = vld [vmem:[%s374 + $0x108] sm:$0xff]
      %v880 = vld [vmem:[%s374 + $0x110] sm:$0xff]
      %v881 = vld [vmem:[%s374 + $0x120] sm:$0xff]
      %v882 = vld [vmem:[%s374 + $0x128] sm:$0xff]
      %v883 = vld [vmem:[%s374 + $0x138] sm:$0xff]
      %v884 = vld [vmem:[%s374 + $0x140] sm:$0xff]
      %v885 = vld [vmem:[%s374 + $0x150] sm:$0xff]
      %v886 = vld [vmem:[%s374 + $0x158] sm:$0xff]
      %v887 = vld [vmem:[%s374 + $0x168] sm:$0xff]
      %v888 = vld [vmem:[%s374 + $0x170] sm:$0xff]
      %921 = vrot.lane.b32.xlu0 %v857, 12
      %v922 = vpop.permute.xlu0 %921
      %923 = vrot.lane.b32.xlu0 %v858, 12
      %v924 = vpop.permute.xlu0 %923
      %925 = vrot.lane.b32.xlu0 %v859, 12
      %v926 = vpop.permute.xlu0 %925
      %927 = vrot.lane.b32.xlu0 %v860, 12
      %v928 = vpop.permute.xlu0 %927
      %929 = vrot.lane.b32.xlu0 %v861, 12
      %v930 = vpop.permute.xlu0 %929
      %931 = vrot.lane.b32.xlu0 %v862, 12
      %v932 = vpop.permute.xlu0 %931
      %933 = vrot.lane.b32.xlu0 %v863, 12
      %v934 = vpop.permute.xlu0 %933
      %935 = vrot.lane.b32.xlu0 %v864, 12
      %v936 = vpop.permute.xlu0 %935
      %937 = vrot.lane.b32.xlu0 %v865, 12
      %v938 = vpop.permute.xlu0 %937
      %939 = vrot.lane.b32.xlu0 %v866, 12
      %v940 = vpop.permute.xlu0 %939
      %941 = vrot.lane.b32.xlu0 %v867, 12
      %v942 = vpop.permute.xlu0 %941
      %943 = vrot.lane.b32.xlu0 %v868, 12
      %v944 = vpop.permute.xlu0 %943
      %945 = vrot.lane.b32.xlu0 %v869, 12
      %v946 = vpop.permute.xlu0 %945
      %947 = vrot.lane.b32.xlu0 %v870, 12
      %v948 = vpop.permute.xlu0 %947
      %949 = vrot.lane.b32.xlu0 %v871, 12
      %v950 = vpop.permute.xlu0 %949
      %951 = vrot.lane.b32.xlu0 %v872, 12
      %v952 = vpop.permute.xlu0 %951
      %953 = vrot.lane.b32.xlu0 %v873, 12
      %v954 = vpop.permute.xlu0 %953
      %955 = vrot.lane.b32.xlu0 %v874, 12
      %v956 = vpop.permute.xlu0 %955
      %957 = vrot.lane.b32.xlu0 %v875, 12
      %v958 = vpop.permute.xlu0 %957
      %959 = vrot.lane.b32.xlu0 %v876, 12
      %v960 = vpop.permute.xlu0 %959
      %961 = vrot.lane.b32.xlu0 %v877, 12
      %v962 = vpop.permute.xlu0 %961
      %963 = vrot.lane.b32.xlu0 %v878, 12
      %v964 = vpop.permute.xlu0 %963
      %965 = vrot.lane.b32.xlu0 %v879, 12
      %v966 = vpop.permute.xlu0 %965
      %967 = vrot.lane.b32.xlu0 %v880, 12
      %v968 = vpop.permute.xlu0 %967
      %969 = vrot.lane.b32.xlu0 %v881, 12
      %v970 = vpop.permute.xlu0 %969
      %971 = vrot.lane.b32.xlu0 %v882, 12
      %v972 = vpop.permute.xlu0 %971
      %973 = vrot.lane.b32.xlu0 %v883, 12
      %v974 = vpop.permute.xlu0 %973
      %975 = vrot.lane.b32.xlu0 %v884, 12
      %v976 = vpop.permute.xlu0 %975
      %977 = vrot.lane.b32.xlu0 %v885, 12
      %v978 = vpop.permute.xlu0 %977
      %979 = vrot.lane.b32.xlu0 %v886, 12
      %v980 = vpop.permute.xlu0 %979
      %981 = vrot.lane.b32.xlu0 %v887, 12
      %v982 = vpop.permute.xlu0 %981
      %983 = vrot.lane.b32.xlu0 %v888, 12
      %v984 = vpop.permute.xlu0 %983
      %vm1017 = vcmask 130144
      %1018 = vst.msk [vmem:[#allocation3] sm:$0xff] %vm1017, %v922
      %1019 = vst.msk [vmem:[#allocation3 + $0x8] sm:$0xff] %vm1017, %v924
      %1020 = vst.msk [vmem:[#allocation3 + $0x10] sm:$0xff] %vm1017, %v926
      %1021 = vst.msk [vmem:[#allocation3 + $0x18] sm:$0xff] %vm1017, %v928
      %1022 = vst.msk [vmem:[#allocation3 + $0x20] sm:$0xff] %vm1017, %v930
      %1023 = vst.msk [vmem:[#allocation3 + $0x28] sm:$0xff] %vm1017, %v932
      %1024 = vst.msk [vmem:[#allocation3 + $0x30] sm:$0xff] %vm1017, %v934
      %1025 = vst.msk [vmem:[#allocation3 + $0x38] sm:$0xff] %vm1017, %v936
      %1026 = vst.msk [vmem:[#allocation3 + $0x40] sm:$0xff] %vm1017, %v938
      %1027 = vst.msk [vmem:[#allocation3 + $0x48] sm:$0xff] %vm1017, %v940
      %1028 = vst.msk [vmem:[#allocation3 + $0x50] sm:$0xff] %vm1017, %v942
      %1029 = vst.msk [vmem:[#allocation3 + $0x58] sm:$0xff] %vm1017, %v944
      %1030 = vst.msk [vmem:[#allocation3 + $0x60] sm:$0xff] %vm1017, %v946
      %1031 = vst.msk [vmem:[#allocation3 + $0x68] sm:$0xff] %vm1017, %v948
      %1032 = vst.msk [vmem:[#allocation3 + $0x70] sm:$0xff] %vm1017, %v950
      %1033 = vst.msk [vmem:[#allocation3 + $0x78] sm:$0xff] %vm1017, %v952
      %1034 = vst.msk [vmem:[#allocation3 + $0x80] sm:$0xff] %vm1017, %v954
      %1035 = vst.msk [vmem:[#allocation3 + $0x88] sm:$0xff] %vm1017, %v956
      %1036 = vst.msk [vmem:[#allocation3 + $0x90] sm:$0xff] %vm1017, %v958
      %1037 = vst.msk [vmem:[#allocation3 + $0x98] sm:$0xff] %vm1017, %v960
      %1038 = vst.msk [vmem:[#allocation3 + $0xa0] sm:$0xff] %vm1017, %v962
      %1039 = vst.msk [vmem:[#allocation3 + $0xa8] sm:$0xff] %vm1017, %v964
      %1040 = vst.msk [vmem:[#allocation3 + $0xb0] sm:$0xff] %vm1017, %v966
      %1041 = vst.msk [vmem:[#allocation3 + $0xb8] sm:$0xff] %vm1017, %v968
      %1042 = vst.msk [vmem:[#allocation3 + $0xc0] sm:$0xff] %vm1017, %v970
      %1043 = vst.msk [vmem:[#allocation3 + $0xc8] sm:$0xff] %vm1017, %v972
      %1044 = vst.msk [vmem:[#allocation3 + $0xd0] sm:$0xff] %vm1017, %v974
      %1045 = vst.msk [vmem:[#allocation3 + $0xd8] sm:$0xff] %vm1017, %v976
      %1046 = vst.msk [vmem:[#allocation3 + $0xe0] sm:$0xff] %vm1017, %v978
      %1047 = vst.msk [vmem:[#allocation3 + $0xe8] sm:$0xff] %vm1017, %v980
      %1048 = vst.msk [vmem:[#allocation3 + $0xf0] sm:$0xff] %vm1017, %v982
      %1049 = vst.msk [vmem:[#allocation3 + $0xf8] sm:$0xff] %vm1017, %v984
      %v1050 = vld [vmem:[%s374 + $0x1] sm:$0xff]
      %v1051 = vld [vmem:[%s374 + $0x9] sm:$0xff]
      %v1052 = vld [vmem:[%s374 + $0x19] sm:$0xff]
      %v1053 = vld [vmem:[%s374 + $0x21] sm:$0xff]
      %v1054 = vld [vmem:[%s374 + $0x31] sm:$0xff]
      %v1055 = vld [vmem:[%s374 + $0x39] sm:$0xff]
      %v1056 = vld [vmem:[%s374 + $0x49] sm:$0xff]
      %v1057 = vld [vmem:[%s374 + $0x51] sm:$0xff]
      %v1058 = vld [vmem:[%s374 + $0x61] sm:$0xff]
      %v1059 = vld [vmem:[%s374 + $0x69] sm:$0xff]
      %v1060 = vld [vmem:[%s374 + $0x79] sm:$0xff]
      %v1061 = vld [vmem:[%s374 + $0x81] sm:$0xff]
      %v1062 = vld [vmem:[%s374 + $0x91] sm:$0xff]
      %v1063 = vld [vmem:[%s374 + $0x99] sm:$0xff]
      %v1064 = vld [vmem:[%s374 + $0xa9] sm:$0xff]
      %v1065 = vld [vmem:[%s374 + $0xb1] sm:$0xff]
      %v1066 = vld [vmem:[%s374 + $0xc1] sm:$0xff]
      %v1067 = vld [vmem:[%s374 + $0xc9] sm:$0xff]
      %v1068 = vld [vmem:[%s374 + $0xd9] sm:$0xff]
      %v1069 = vld [vmem:[%s374 + $0xe1] sm:$0xff]
      %v1070 = vld [vmem:[%s374 + $0xf1] sm:$0xff]
      %v1071 = vld [vmem:[%s374 + $0xf9] sm:$0xff]
      %v1072 = vld [vmem:[%s374 + $0x109] sm:$0xff]
      %v1073 = vld [vmem:[%s374 + $0x111] sm:$0xff]
      %v1074 = vld [vmem:[%s374 + $0x121] sm:$0xff]
      %v1075 = vld [vmem:[%s374 + $0x129] sm:$0xff]
      %v1076 = vld [vmem:[%s374 + $0x139] sm:$0xff]
      %v1077 = vld [vmem:[%s374 + $0x141] sm:$0xff]
      %v1078 = vld [vmem:[%s374 + $0x151] sm:$0xff]
      %v1079 = vld [vmem:[%s374 + $0x159] sm:$0xff]
      %v1080 = vld [vmem:[%s374 + $0x169] sm:$0xff]
      %v1081 = vld [vmem:[%s374 + $0x171] sm:$0xff]
      %1114 = vrot.lane.b32.xlu0 %v1050, 16
      %v1115 = vpop.permute.xlu0 %1114
      %1116 = vrot.lane.b32.xlu0 %v1051, 16
      %v1117 = vpop.permute.xlu0 %1116
      %1118 = vrot.lane.b32.xlu0 %v1052, 16
      %v1119 = vpop.permute.xlu0 %1118
      %1120 = vrot.lane.b32.xlu0 %v1053, 16
      %v1121 = vpop.permute.xlu0 %1120
      %1122 = vrot.lane.b32.xlu0 %v1054, 16
      %v1123 = vpop.permute.xlu0 %1122
      %1124 = vrot.lane.b32.xlu0 %v1055, 16
      %v1125 = vpop.permute.xlu0 %1124
      %1126 = vrot.lane.b32.xlu0 %v1056, 16
      %v1127 = vpop.permute.xlu0 %1126
      %1128 = vrot.lane.b32.xlu0 %v1057, 16
      %v1129 = vpop.permute.xlu0 %1128
      %1130 = vrot.lane.b32.xlu0 %v1058, 16
      %v1131 = vpop.permute.xlu0 %1130
      %1132 = vrot.lane.b32.xlu0 %v1059, 16
      %v1133 = vpop.permute.xlu0 %1132
      %1134 = vrot.lane.b32.xlu0 %v1060, 16
      %v1135 = vpop.permute.xlu0 %1134
      %1136 = vrot.lane.b32.xlu0 %v1061, 16
      %v1137 = vpop.permute.xlu0 %1136
      %1138 = vrot.lane.b32.xlu0 %v1062, 16
      %v1139 = vpop.permute.xlu0 %1138
      %1140 = vrot.lane.b32.xlu0 %v1063, 16
      %v1141 = vpop.permute.xlu0 %1140
      %1142 = vrot.lane.b32.xlu0 %v1064, 16
      %v1143 = vpop.permute.xlu0 %1142
      %1144 = vrot.lane.b32.xlu0 %v1065, 16
      %v1145 = vpop.permute.xlu0 %1144
      %1146 = vrot.lane.b32.xlu0 %v1066, 16
      %v1147 = vpop.permute.xlu0 %1146
      %1148 = vrot.lane.b32.xlu0 %v1067, 16
      %v1149 = vpop.permute.xlu0 %1148
      %1150 = vrot.lane.b32.xlu0 %v1068, 16
      %v1151 = vpop.permute.xlu0 %1150
      %1152 = vrot.lane.b32.xlu0 %v1069, 16
      %v1153 = vpop.permute.xlu0 %1152
      %1154 = vrot.lane.b32.xlu0 %v1070, 16
      %v1155 = vpop.permute.xlu0 %1154
      %1156 = vrot.lane.b32.xlu0 %v1071, 16
      %v1157 = vpop.permute.xlu0 %1156
      %1158 = vrot.lane.b32.xlu0 %v1072, 16
      %v1159 = vpop.permute.xlu0 %1158
      %1160 = vrot.lane.b32.xlu0 %v1073, 16
      %v1161 = vpop.permute.xlu0 %1160
      %1162 = vrot.lane.b32.xlu0 %v1074, 16
      %v1163 = vpop.permute.xlu0 %1162
      %1164 = vrot.lane.b32.xlu0 %v1075, 16
      %v1165 = vpop.permute.xlu0 %1164
      %1166 = vrot.lane.b32.xlu0 %v1076, 16
      %v1167 = vpop.permute.xlu0 %1166
      %1168 = vrot.lane.b32.xlu0 %v1077, 16
      %v1169 = vpop.permute.xlu0 %1168
      %1170 = vrot.lane.b32.xlu0 %v1078, 16
      %v1171 = vpop.permute.xlu0 %1170
      %1172 = vrot.lane.b32.xlu0 %v1079, 16
      %v1173 = vpop.permute.xlu0 %1172
      %1174 = vrot.lane.b32.xlu0 %v1080, 16
      %v1175 = vpop.permute.xlu0 %1174
      %1176 = vrot.lane.b32.xlu0 %v1081, 16
      %v1177 = vpop.permute.xlu0 %1176
      %vm1210 = vcmask 162944
      %1211 = vst.msk [vmem:[#allocation3] sm:$0xff] %vm1210, %v1115
      %1212 = vst.msk [vmem:[#allocation3 + $0x8] sm:$0xff] %vm1210, %v1117
      %1213 = vst.msk [vmem:[#allocation3 + $0x10] sm:$0xff] %vm1210, %v1119
      %1214 = vst.msk [vmem:[#allocation3 + $0x18] sm:$0xff] %vm1210, %v1121
      %1215 = vst.msk [vmem:[#allocation3 + $0x20] sm:$0xff] %vm1210, %v1123
      %1216 = vst.msk [vmem:[#allocation3 + $0x28] sm:$0xff] %vm1210, %v1125
      %1217 = vst.msk [vmem:[#allocation3 + $0x30] sm:$0xff] %vm1210, %v1127
      %1218 = vst.msk [vmem:[#allocation3 + $0x38] sm:$0xff] %vm1210, %v1129
      %1219 = vst.msk [vmem:[#allocation3 + $0x40] sm:$0xff] %vm1210, %v1131
      %1220 = vst.msk [vmem:[#allocation3 + $0x48] sm:$0xff] %vm1210, %v1133
      %1221 = vst.msk [vmem:[#allocation3 + $0x50] sm:$0xff] %vm1210, %v1135
      %1222 = vst.msk [vmem:[#allocation3 + $0x58] sm:$0xff] %vm1210, %v1137
      %1223 = vst.msk [vmem:[#allocation3 + $0x60] sm:$0xff] %vm1210, %v1139
      %1224 = vst.msk [vmem:[#allocation3 + $0x68] sm:$0xff] %vm1210, %v1141
      %1225 = vst.msk [vmem:[#allocation3 + $0x70] sm:$0xff] %vm1210, %v1143
      %1226 = vst.msk [vmem:[#allocation3 + $0x78] sm:$0xff] %vm1210, %v1145
      %1227 = vst.msk [vmem:[#allocation3 + $0x80] sm:$0xff] %vm1210, %v1147
      %1228 = vst.msk [vmem:[#allocation3 + $0x88] sm:$0xff] %vm1210, %v1149
      %1229 = vst.msk [vmem:[#allocation3 + $0x90] sm:$0xff] %vm1210, %v1151
      %1230 = vst.msk [vmem:[#allocation3 + $0x98] sm:$0xff] %vm1210, %v1153
      %1231 = vst.msk [vmem:[#allocation3 + $0xa0] sm:$0xff] %vm1210, %v1155
      %1232 = vst.msk [vmem:[#allocation3 + $0xa8] sm:$0xff] %vm1210, %v1157
      %1233 = vst.msk [vmem:[#allocation3 + $0xb0] sm:$0xff] %vm1210, %v1159
      %1234 = vst.msk [vmem:[#allocation3 + $0xb8] sm:$0xff] %vm1210, %v1161
      %1235 = vst.msk [vmem:[#allocation3 + $0xc0] sm:$0xff] %vm1210, %v1163
      %1236 = vst.msk [vmem:[#allocation3 + $0xc8] sm:$0xff] %vm1210, %v1165
      %1237 = vst.msk [vmem:[#allocation3 + $0xd0] sm:$0xff] %vm1210, %v1167
      %1238 = vst.msk [vmem:[#allocation3 + $0xd8] sm:$0xff] %vm1210, %v1169
      %1239 = vst.msk [vmem:[#allocation3 + $0xe0] sm:$0xff] %vm1210, %v1171
      %1240 = vst.msk [vmem:[#allocation3 + $0xe8] sm:$0xff] %vm1210, %v1173
      %1241 = vst.msk [vmem:[#allocation3 + $0xf0] sm:$0xff] %vm1210, %v1175
      %1242 = vst.msk [vmem:[#allocation3 + $0xf8] sm:$0xff] %vm1210, %v1177
      %v1243 = vld [vmem:[%s374 + $0x2] sm:$0xff]
      %v1244 = vld [vmem:[%s374 + $0xa] sm:$0xff]
      %v1245 = vld [vmem:[%s374 + $0x1a] sm:$0xff]
      %v1246 = vld [vmem:[%s374 + $0x22] sm:$0xff]
      %v1247 = vld [vmem:[%s374 + $0x32] sm:$0xff]
      %v1248 = vld [vmem:[%s374 + $0x3a] sm:$0xff]
      %v1249 = vld [vmem:[%s374 + $0x4a] sm:$0xff]
      %v1250 = vld [vmem:[%s374 + $0x52] sm:$0xff]
      %v1251 = vld [vmem:[%s374 + $0x62] sm:$0xff]
      %v1252 = vld [vmem:[%s374 + $0x6a] sm:$0xff]
      %v1253 = vld [vmem:[%s374 + $0x7a] sm:$0xff]
      %v1254 = vld [vmem:[%s374 + $0x82] sm:$0xff]
      %v1255 = vld [vmem:[%s374 + $0x92] sm:$0xff]
      %v1256 = vld [vmem:[%s374 + $0x9a] sm:$0xff]
      %v1257 = vld [vmem:[%s374 + $0xaa] sm:$0xff]
      %v1258 = vld [vmem:[%s374 + $0xb2] sm:$0xff]
      %v1259 = vld [vmem:[%s374 + $0xc2] sm:$0xff]
      %v1260 = vld [vmem:[%s374 + $0xca] sm:$0xff]
      %v1261 = vld [vmem:[%s374 + $0xda] sm:$0xff]
      %v1262 = vld [vmem:[%s374 + $0xe2] sm:$0xff]
      %v1263 = vld [vmem:[%s374 + $0xf2] sm:$0xff]
      %v1264 = vld [vmem:[%s374 + $0xfa] sm:$0xff]
      %v1265 = vld [vmem:[%s374 + $0x10a] sm:$0xff]
      %v1266 = vld [vmem:[%s374 + $0x112] sm:$0xff]
      %v1267 = vld [vmem:[%s374 + $0x122] sm:$0xff]
      %v1268 = vld [vmem:[%s374 + $0x12a] sm:$0xff]
      %v1269 = vld [vmem:[%s374 + $0x13a] sm:$0xff]
      %v1270 = vld [vmem:[%s374 + $0x142] sm:$0xff]
      %v1271 = vld [vmem:[%s374 + $0x152] sm:$0xff]
      %v1272 = vld [vmem:[%s374 + $0x15a] sm:$0xff]
      %v1273 = vld [vmem:[%s374 + $0x16a] sm:$0xff]
      %v1274 = vld [vmem:[%s374 + $0x172] sm:$0xff]
      %1307 = vrot.lane.b32.xlu0 %v1243, 20
      %v1308 = vpop.permute.xlu0 %1307
      %1309 = vrot.lane.b32.xlu0 %v1244, 20
      %v1310 = vpop.permute.xlu0 %1309
      %1311 = vrot.lane.b32.xlu0 %v1245, 20
      %v1312 = vpop.permute.xlu0 %1311
      %1313 = vrot.lane.b32.xlu0 %v1246, 20
      %v1314 = vpop.permute.xlu0 %1313
      %1315 = vrot.lane.b32.xlu0 %v1247, 20
      %v1316 = vpop.permute.xlu0 %1315
      %1317 = vrot.lane.b32.xlu0 %v1248, 20
      %v1318 = vpop.permute.xlu0 %1317
      %1319 = vrot.lane.b32.xlu0 %v1249, 20
      %v1320 = vpop.permute.xlu0 %1319
      %1321 = vrot.lane.b32.xlu0 %v1250, 20
      %v1322 = vpop.permute.xlu0 %1321
      %1323 = vrot.lane.b32.xlu0 %v1251, 20
      %v1324 = vpop.permute.xlu0 %1323
      %1325 = vrot.lane.b32.xlu0 %v1252, 20
      %v1326 = vpop.permute.xlu0 %1325
      %1327 = vrot.lane.b32.xlu0 %v1253, 20
      %v1328 = vpop.permute.xlu0 %1327
      %1329 = vrot.lane.b32.xlu0 %v1254, 20
      %v1330 = vpop.permute.xlu0 %1329
      %1331 = vrot.lane.b32.xlu0 %v1255, 20
      %v1332 = vpop.permute.xlu0 %1331
      %1333 = vrot.lane.b32.xlu0 %v1256, 20
      %v1334 = vpop.permute.xlu0 %1333
      %1335 = vrot.lane.b32.xlu0 %v1257, 20
      %v1336 = vpop.permute.xlu0 %1335
      %1337 = vrot.lane.b32.xlu0 %v1258, 20
      %v1338 = vpop.permute.xlu0 %1337
      %1339 = vrot.lane.b32.xlu0 %v1259, 20
      %v1340 = vpop.permute.xlu0 %1339
      %1341 = vrot.lane.b32.xlu0 %v1260, 20
      %v1342 = vpop.permute.xlu0 %1341
      %1343 = vrot.lane.b32.xlu0 %v1261, 20
      %v1344 = vpop.permute.xlu0 %1343
      %1345 = vrot.lane.b32.xlu0 %v1262, 20
      %v1346 = vpop.permute.xlu0 %1345
      %1347 = vrot.lane.b32.xlu0 %v1263, 20
      %v1348 = vpop.permute.xlu0 %1347
      %1349 = vrot.lane.b32.xlu0 %v1264, 20
      %v1350 = vpop.permute.xlu0 %1349
      %1351 = vrot.lane.b32.xlu0 %v1265, 20
      %v1352 = vpop.permute.xlu0 %1351
      %1353 = vrot.lane.b32.xlu0 %v1266, 20
      %v1354 = vpop.permute.xlu0 %1353
      %1355 = vrot.lane.b32.xlu0 %v1267, 20
      %v1356 = vpop.permute.xlu0 %1355
      %1357 = vrot.lane.b32.xlu0 %v1268, 20
      %v1358 = vpop.permute.xlu0 %1357
      %1359 = vrot.lane.b32.xlu0 %v1269, 20
      %v1360 = vpop.permute.xlu0 %1359
      %1361 = vrot.lane.b32.xlu0 %v1270, 20
      %v1362 = vpop.permute.xlu0 %1361
      %1363 = vrot.lane.b32.xlu0 %v1271, 20
      %v1364 = vpop.permute.xlu0 %1363
      %1365 = vrot.lane.b32.xlu0 %v1272, 20
      %v1366 = vpop.permute.xlu0 %1365
      %1367 = vrot.lane.b32.xlu0 %v1273, 20
      %v1368 = vpop.permute.xlu0 %1367
      %1369 = vrot.lane.b32.xlu0 %v1274, 20
      %v1370 = vpop.permute.xlu0 %1369
      %vm1403 = vcmask 195744
      %1404 = vst.msk [vmem:[#allocation3] sm:$0xff] %vm1403, %v1308
      %1405 = vst.msk [vmem:[#allocation3 + $0x8] sm:$0xff] %vm1403, %v1310
      %1406 = vst.msk [vmem:[#allocation3 + $0x10] sm:$0xff] %vm1403, %v1312
      %1407 = vst.msk [vmem:[#allocation3 + $0x18] sm:$0xff] %vm1403, %v1314
      %1408 = vst.msk [vmem:[#allocation3 + $0x20] sm:$0xff] %vm1403, %v1316
      %1409 = vst.msk [vmem:[#allocation3 + $0x28] sm:$0xff] %vm1403, %v1318
      %1410 = vst.msk [vmem:[#allocation3 + $0x30] sm:$0xff] %vm1403, %v1320
      %1411 = vst.msk [vmem:[#allocation3 + $0x38] sm:$0xff] %vm1403, %v1322
      %1412 = vst.msk [vmem:[#allocation3 + $0x40] sm:$0xff] %vm1403, %v1324
      %1413 = vst.msk [vmem:[#allocation3 + $0x48] sm:$0xff] %vm1403, %v1326
      %1414 = vst.msk [vmem:[#allocation3 + $0x50] sm:$0xff] %vm1403, %v1328
      %1415 = vst.msk [vmem:[#allocation3 + $0x58] sm:$0xff] %vm1403, %v1330
      %1416 = vst.msk [vmem:[#allocation3 + $0x60] sm:$0xff] %vm1403, %v1332
      %1417 = vst.msk [vmem:[#allocation3 + $0x68] sm:$0xff] %vm1403, %v1334
      %1418 = vst.msk [vmem:[#allocation3 + $0x70] sm:$0xff] %vm1403, %v1336
      %1419 = vst.msk [vmem:[#allocation3 + $0x78] sm:$0xff] %vm1403, %v1338
      %1420 = vst.msk [vmem:[#allocation3 + $0x80] sm:$0xff] %vm1403, %v1340
      %1421 = vst.msk [vmem:[#allocation3 + $0x88] sm:$0xff] %vm1403, %v1342
      %1422 = vst.msk [vmem:[#allocation3 + $0x90] sm:$0xff] %vm1403, %v1344
      %1423 = vst.msk [vmem:[#allocation3 + $0x98] sm:$0xff] %vm1403, %v1346
      %1424 = vst.msk [vmem:[#allocation3 + $0xa0] sm:$0xff] %vm1403, %v1348
      %1425 = vst.msk [vmem:[#allocation3 + $0xa8] sm:$0xff] %vm1403, %v1350
      %1426 = vst.msk [vmem:[#allocation3 + $0xb0] sm:$0xff] %vm1403, %v1352
      %1427 = vst.msk [vmem:[#allocation3 + $0xb8] sm:$0xff] %vm1403, %v1354
      %1428 = vst.msk [vmem:[#allocation3 + $0xc0] sm:$0xff] %vm1403, %v1356
      %1429 = vst.msk [vmem:[#allocation3 + $0xc8] sm:$0xff] %vm1403, %v1358
      %1430 = vst.msk [vmem:[#allocation3 + $0xd0] sm:$0xff] %vm1403, %v1360
      %1431 = vst.msk [vmem:[#allocation3 + $0xd8] sm:$0xff] %vm1403, %v1362
      %1432 = vst.msk [vmem:[#allocation3 + $0xe0] sm:$0xff] %vm1403, %v1364
      %1433 = vst.msk [vmem:[#allocation3 + $0xe8] sm:$0xff] %vm1403, %v1366
      %1434 = vst.msk [vmem:[#allocation3 + $0xf0] sm:$0xff] %vm1403, %v1368
      %1435 = vst.msk [vmem:[#allocation3 + $0xf8] sm:$0xff] %vm1403, %v1370
      %s1436 = scalar_lea.vmem [#allocation2], 48
      %v1437 = vld [vmem:[%s1436] sm:$0xff]
      %v1438 = vld [vmem:[%s1436 + $0x8] sm:$0xff]
      %v1439 = vld [vmem:[%s1436 + $0x18] sm:$0xff]
      %v1440 = vld [vmem:[%s1436 + $0x20] sm:$0xff]
      %v1441 = vld [vmem:[%s1436 + $0x30] sm:$0xff]
      %v1442 = vld [vmem:[%s1436 + $0x38] sm:$0xff]
      %v1443 = vld [vmem:[%s1436 + $0x48] sm:$0xff]
      %v1444 = vld [vmem:[%s1436 + $0x50] sm:$0xff]
      %v1445 = vld [vmem:[%s1436 + $0x60] sm:$0xff]
      %v1446 = vld [vmem:[%s1436 + $0x68] sm:$0xff]
      %v1447 = vld [vmem:[%s1436 + $0x78] sm:$0xff]
      %v1448 = vld [vmem:[%s1436 + $0x80] sm:$0xff]
      %v1449 = vld [vmem:[%s1436 + $0x90] sm:$0xff]
      %v1450 = vld [vmem:[%s1436 + $0x98] sm:$0xff]
      %v1451 = vld [vmem:[%s1436 + $0xa8] sm:$0xff]
      %v1452 = vld [vmem:[%s1436 + $0xb0] sm:$0xff]
      %v1453 = vld [vmem:[%s1436 + $0xc0] sm:$0xff]
      %v1454 = vld [vmem:[%s1436 + $0xc8] sm:$0xff]
      %v1455 = vld [vmem:[%s1436 + $0xd8] sm:$0xff]
      %v1456 = vld [vmem:[%s1436 + $0xe0] sm:$0xff]
      %v1457 = vld [vmem:[%s1436 + $0xf0] sm:$0xff]
      %v1458 = vld [vmem:[%s1436 + $0xf8] sm:$0xff]
      %v1459 = vld [vmem:[%s1436 + $0x108] sm:$0xff]
      %v1460 = vld [vmem:[%s1436 + $0x110] sm:$0xff]
      %v1461 = vld [vmem:[%s1436 + $0x120] sm:$0xff]
      %v1462 = vld [vmem:[%s1436 + $0x128] sm:$0xff]
      %v1463 = vld [vmem:[%s1436 + $0x138] sm:$0xff]
      %v1464 = vld [vmem:[%s1436 + $0x140] sm:$0xff]
      %v1465 = vld [vmem:[%s1436 + $0x150] sm:$0xff]
      %v1466 = vld [vmem:[%s1436 + $0x158] sm:$0xff]
      %v1467 = vld [vmem:[%s1436 + $0x168] sm:$0xff]
      %v1468 = vld [vmem:[%s1436 + $0x170] sm:$0xff]
      %1501 = vrot.lane.b32.xlu0 %v1437, 24
      %v1502 = vpop.permute.xlu0 %1501
      %1503 = vrot.lane.b32.xlu0 %v1438, 24
      %v1504 = vpop.permute.xlu0 %1503
      %1505 = vrot.lane.b32.xlu0 %v1439, 24
      %v1506 = vpop.permute.xlu0 %1505
      %1507 = vrot.lane.b32.xlu0 %v1440, 24
      %v1508 = vpop.permute.xlu0 %1507
      %1509 = vrot.lane.b32.xlu0 %v1441, 24
      %v1510 = vpop.permute.xlu0 %1509
      %1511 = vrot.lane.b32.xlu0 %v1442, 24
      %v1512 = vpop.permute.xlu0 %1511
      %1513 = vrot.lane.b32.xlu0 %v1443, 24
      %v1514 = vpop.permute.xlu0 %1513
      %1515 = vrot.lane.b32.xlu0 %v1444, 24
      %v1516 = vpop.permute.xlu0 %1515
      %1517 = vrot.lane.b32.xlu0 %v1445, 24
      %v1518 = vpop.permute.xlu0 %1517
      %1519 = vrot.lane.b32.xlu0 %v1446, 24
      %v1520 = vpop.permute.xlu0 %1519
      %1521 = vrot.lane.b32.xlu0 %v1447, 24
      %v1522 = vpop.permute.xlu0 %1521
      %1523 = vrot.lane.b32.xlu0 %v1448, 24
      %v1524 = vpop.permute.xlu0 %1523
      %1525 = vrot.lane.b32.xlu0 %v1449, 24
      %v1526 = vpop.permute.xlu0 %1525
      %1527 = vrot.lane.b32.xlu0 %v1450, 24
      %v1528 = vpop.permute.xlu0 %1527
      %1529 = vrot.lane.b32.xlu0 %v1451, 24
      %v1530 = vpop.permute.xlu0 %1529
      %1531 = vrot.lane.b32.xlu0 %v1452, 24
      %v1532 = vpop.permute.xlu0 %1531
      %1533 = vrot.lane.b32.xlu0 %v1453, 24
      %v1534 = vpop.permute.xlu0 %1533
      %1535 = vrot.lane.b32.xlu0 %v1454, 24
      %v1536 = vpop.permute.xlu0 %1535
      %1537 = vrot.lane.b32.xlu0 %v1455, 24
      %v1538 = vpop.permute.xlu0 %1537
      %1539 = vrot.lane.b32.xlu0 %v1456, 24
      %v1540 = vpop.permute.xlu0 %1539
      %1541 = vrot.lane.b32.xlu0 %v1457, 24
      %v1542 = vpop.permute.xlu0 %1541
      %1543 = vrot.lane.b32.xlu0 %v1458, 24
      %v1544 = vpop.permute.xlu0 %1543
      %1545 = vrot.lane.b32.xlu0 %v1459, 24
      %v1546 = vpop.permute.xlu0 %1545
      %1547 = vrot.lane.b32.xlu0 %v1460, 24
      %v1548 = vpop.permute.xlu0 %1547
      %1549 = vrot.lane.b32.xlu0 %v1461, 24
      %v1550 = vpop.permute.xlu0 %1549
      %1551 = vrot.lane.b32.xlu0 %v1462, 24
      %v1552 = vpop.permute.xlu0 %1551
      %1553 = vrot.lane.b32.xlu0 %v1463, 24
      %v1554 = vpop.permute.xlu0 %1553
      %1555 = vrot.lane.b32.xlu0 %v1464, 24
      %v1556 = vpop.permute.xlu0 %1555
      %1557 = vrot.lane.b32.xlu0 %v1465, 24
      %v1558 = vpop.permute.xlu0 %1557
      %1559 = vrot.lane.b32.xlu0 %v1466, 24
      %v1560 = vpop.permute.xlu0 %1559
      %1561 = vrot.lane.b32.xlu0 %v1467, 24
      %v1562 = vpop.permute.xlu0 %1561
      %1563 = vrot.lane.b32.xlu0 %v1468, 24
      %v1564 = vpop.permute.xlu0 %1563
      %vm1597 = vcmask 228544
      %1598 = vst.msk [vmem:[#allocation3] sm:$0xff] %vm1597, %v1502
      %1599 = vst.msk [vmem:[#allocation3 + $0x8] sm:$0xff] %vm1597, %v1504
      %1600 = vst.msk [vmem:[#allocation3 + $0x10] sm:$0xff] %vm1597, %v1506
      %1601 = vst.msk [vmem:[#allocation3 + $0x18] sm:$0xff] %vm1597, %v1508
      %1602 = vst.msk [vmem:[#allocation3 + $0x20] sm:$0xff] %vm1597, %v1510
      %1603 = vst.msk [vmem:[#allocation3 + $0x28] sm:$0xff] %vm1597, %v1512
      %1604 = vst.msk [vmem:[#allocation3 + $0x30] sm:$0xff] %vm1597, %v1514
      %1605 = vst.msk [vmem:[#allocation3 + $0x38] sm:$0xff] %vm1597, %v1516
      %1606 = vst.msk [vmem:[#allocation3 + $0x40] sm:$0xff] %vm1597, %v1518
      %1607 = vst.msk [vmem:[#allocation3 + $0x48] sm:$0xff] %vm1597, %v1520
      %1608 = vst.msk [vmem:[#allocation3 + $0x50] sm:$0xff] %vm1597, %v1522
      %1609 = vst.msk [vmem:[#allocation3 + $0x58] sm:$0xff] %vm1597, %v1524
      %1610 = vst.msk [vmem:[#allocation3 + $0x60] sm:$0xff] %vm1597, %v1526
      %1611 = vst.msk [vmem:[#allocation3 + $0x68] sm:$0xff] %vm1597, %v1528
      %1612 = vst.msk [vmem:[#allocation3 + $0x70] sm:$0xff] %vm1597, %v1530
      %1613 = vst.msk [vmem:[#allocation3 + $0x78] sm:$0xff] %vm1597, %v1532
      %1614 = vst.msk [vmem:[#allocation3 + $0x80] sm:$0xff] %vm1597, %v1534
      %1615 = vst.msk [vmem:[#allocation3 + $0x88] sm:$0xff] %vm1597, %v1536
      %1616 = vst.msk [vmem:[#allocation3 + $0x90] sm:$0xff] %vm1597, %v1538
      %1617 = vst.msk [vmem:[#allocation3 + $0x98] sm:$0xff] %vm1597, %v1540
      %1618 = vst.msk [vmem:[#allocation3 + $0xa0] sm:$0xff] %vm1597, %v1542
      %1619 = vst.msk [vmem:[#allocation3 + $0xa8] sm:$0xff] %vm1597, %v1544
      %1620 = vst.msk [vmem:[#allocation3 + $0xb0] sm:$0xff] %vm1597, %v1546
      %1621 = vst.msk [vmem:[#allocation3 + $0xb8] sm:$0xff] %vm1597, %v1548
      %1622 = vst.msk [vmem:[#allocation3 + $0xc0] sm:$0xff] %vm1597, %v1550
      %1623 = vst.msk [vmem:[#allocation3 + $0xc8] sm:$0xff] %vm1597, %v1552
      %1624 = vst.msk [vmem:[#allocation3 + $0xd0] sm:$0xff] %vm1597, %v1554
      %1625 = vst.msk [vmem:[#allocation3 + $0xd8] sm:$0xff] %vm1597, %v1556
      %1626 = vst.msk [vmem:[#allocation3 + $0xe0] sm:$0xff] %vm1597, %v1558
      %1627 = vst.msk [vmem:[#allocation3 + $0xe8] sm:$0xff] %vm1597, %v1560
      %1628 = vst.msk [vmem:[#allocation3 + $0xf0] sm:$0xff] %vm1597, %v1562
      %1629 = vst.msk [vmem:[#allocation3 + $0xf8] sm:$0xff] %vm1597, %v1564
      %v1630 = vld [vmem:[%s1436 + $0x1] sm:$0xff]
      %v1631 = vld [vmem:[%s1436 + $0x9] sm:$0xff]
      %v1632 = vld [vmem:[%s1436 + $0x19] sm:$0xff]
      %v1633 = vld [vmem:[%s1436 + $0x21] sm:$0xff]
      %v1634 = vld [vmem:[%s1436 + $0x31] sm:$0xff]
      %v1635 = vld [vmem:[%s1436 + $0x39] sm:$0xff]
      %v1636 = vld [vmem:[%s1436 + $0x49] sm:$0xff]
      %v1637 = vld [vmem:[%s1436 + $0x51] sm:$0xff]
      %v1638 = vld [vmem:[%s1436 + $0x61] sm:$0xff]
      %v1639 = vld [vmem:[%s1436 + $0x69] sm:$0xff]
      %v1640 = vld [vmem:[%s1436 + $0x79] sm:$0xff]
      %v1641 = vld [vmem:[%s1436 + $0x81] sm:$0xff]
      %v1642 = vld [vmem:[%s1436 + $0x91] sm:$0xff]
      %v1643 = vld [vmem:[%s1436 + $0x99] sm:$0xff]
      %v1644 = vld [vmem:[%s1436 + $0xa9] sm:$0xff]
      %v1645 = vld [vmem:[%s1436 + $0xb1] sm:$0xff]
      %v1646 = vld [vmem:[%s1436 + $0xc1] sm:$0xff]
      %v1647 = vld [vmem:[%s1436 + $0xc9] sm:$0xff]
      %v1648 = vld [vmem:[%s1436 + $0xd9] sm:$0xff]
      %v1649 = vld [vmem:[%s1436 + $0xe1] sm:$0xff]
      %v1650 = vld [vmem:[%s1436 + $0xf1] sm:$0xff]
      %v1651 = vld [vmem:[%s1436 + $0xf9] sm:$0xff]
      %v1652 = vld [vmem:[%s1436 + $0x109] sm:$0xff]
      %v1653 = vld [vmem:[%s1436 + $0x111] sm:$0xff]
      %v1654 = vld [vmem:[%s1436 + $0x121] sm:$0xff]
      %v1655 = vld [vmem:[%s1436 + $0x129] sm:$0xff]
      %v1656 = vld [vmem:[%s1436 + $0x139] sm:$0xff]
      %v1657 = vld [vmem:[%s1436 + $0x141] sm:$0xff]
      %v1658 = vld [vmem:[%s1436 + $0x151] sm:$0xff]
      %v1659 = vld [vmem:[%s1436 + $0x159] sm:$0xff]
      %v1660 = vld [vmem:[%s1436 + $0x169] sm:$0xff]
      %v1661 = vld [vmem:[%s1436 + $0x171] sm:$0xff]
      %1694 = vrot.lane.b32.xlu0 %v1630, 28
      %v1695 = vpop.permute.xlu0 %1694
      %1696 = vrot.lane.b32.xlu0 %v1631, 28
      %v1697 = vpop.permute.xlu0 %1696
      %1698 = vrot.lane.b32.xlu0 %v1632, 28
      %v1699 = vpop.permute.xlu0 %1698
      %1700 = vrot.lane.b32.xlu0 %v1633, 28
      %v1701 = vpop.permute.xlu0 %1700
      %1702 = vrot.lane.b32.xlu0 %v1634, 28
      %v1703 = vpop.permute.xlu0 %1702
      %1704 = vrot.lane.b32.xlu0 %v1635, 28
      %v1705 = vpop.permute.xlu0 %1704
      %1706 = vrot.lane.b32.xlu0 %v1636, 28
      %v1707 = vpop.permute.xlu0 %1706
      %1708 = vrot.lane.b32.xlu0 %v1637, 28
      %v1709 = vpop.permute.xlu0 %1708
      %1710 = vrot.lane.b32.xlu0 %v1638, 28
      %v1711 = vpop.permute.xlu0 %1710
      %1712 = vrot.lane.b32.xlu0 %v1639, 28
      %v1713 = vpop.permute.xlu0 %1712
      %1714 = vrot.lane.b32.xlu0 %v1640, 28
      %v1715 = vpop.permute.xlu0 %1714
      %1716 = vrot.lane.b32.xlu0 %v1641, 28
      %v1717 = vpop.permute.xlu0 %1716
      %1718 = vrot.lane.b32.xlu0 %v1642, 28
      %v1719 = vpop.permute.xlu0 %1718
      %1720 = vrot.lane.b32.xlu0 %v1643, 28
      %v1721 = vpop.permute.xlu0 %1720
      %1722 = vrot.lane.b32.xlu0 %v1644, 28
      %v1723 = vpop.permute.xlu0 %1722
      %1724 = vrot.lane.b32.xlu0 %v1645, 28
      %v1725 = vpop.permute.xlu0 %1724
      %1726 = vrot.lane.b32.xlu0 %v1646, 28
      %v1727 = vpop.permute.xlu0 %1726
      %1728 = vrot.lane.b32.xlu0 %v1647, 28
      %v1729 = vpop.permute.xlu0 %1728
      %1730 = vrot.lane.b32.xlu0 %v1648, 28
      %v1731 = vpop.permute.xlu0 %1730
      %1732 = vrot.lane.b32.xlu0 %v1649, 28
      %v1733 = vpop.permute.xlu0 %1732
      %1734 = vrot.lane.b32.xlu0 %v1650, 28
      %v1735 = vpop.permute.xlu0 %1734
      %1736 = vrot.lane.b32.xlu0 %v1651, 28
      %v1737 = vpop.permute.xlu0 %1736
      %1738 = vrot.lane.b32.xlu0 %v1652, 28
      %v1739 = vpop.permute.xlu0 %1738
      %1740 = vrot.lane.b32.xlu0 %v1653, 28
      %v1741 = vpop.permute.xlu0 %1740
      %1742 = vrot.lane.b32.xlu0 %v1654, 28
      %v1743 = vpop.permute.xlu0 %1742
      %1744 = vrot.lane.b32.xlu0 %v1655, 28
      %v1745 = vpop.permute.xlu0 %1744
      %1746 = vrot.lane.b32.xlu0 %v1656, 28
      %v1747 = vpop.permute.xlu0 %1746
      %1748 = vrot.lane.b32.xlu0 %v1657, 28
      %v1749 = vpop.permute.xlu0 %1748
      %1750 = vrot.lane.b32.xlu0 %v1658, 28
      %v1751 = vpop.permute.xlu0 %1750
      %1752 = vrot.lane.b32.xlu0 %v1659, 28
      %v1753 = vpop.permute.xlu0 %1752
      %1754 = vrot.lane.b32.xlu0 %v1660, 28
      %v1755 = vpop.permute.xlu0 %1754
      %1756 = vrot.lane.b32.xlu0 %v1661, 28
      %v1757 = vpop.permute.xlu0 %1756
      %vm1790 = vcmask 261344
      %1791 = vst.msk [vmem:[#allocation3] sm:$0xff] %vm1790, %v1695
      %1792 = vst.msk [vmem:[#allocation3 + $0x8] sm:$0xff] %vm1790, %v1697
      %1793 = vst.msk [vmem:[#allocation3 + $0x10] sm:$0xff] %vm1790, %v1699
      %1794 = vst.msk [vmem:[#allocation3 + $0x18] sm:$0xff] %vm1790, %v1701
      %1795 = vst.msk [vmem:[#allocation3 + $0x20] sm:$0xff] %vm1790, %v1703
      %1796 = vst.msk [vmem:[#allocation3 + $0x28] sm:$0xff] %vm1790, %v1705
      %1797 = vst.msk [vmem:[#allocation3 + $0x30] sm:$0xff] %vm1790, %v1707
      %1798 = vst.msk [vmem:[#allocation3 + $0x38] sm:$0xff] %vm1790, %v1709
      %1799 = vst.msk [vmem:[#allocation3 + $0x40] sm:$0xff] %vm1790, %v1711
      %1800 = vst.msk [vmem:[#allocation3 + $0x48] sm:$0xff] %vm1790, %v1713
      %1801 = vst.msk [vmem:[#allocation3 + $0x50] sm:$0xff] %vm1790, %v1715
      %1802 = vst.msk [vmem:[#allocation3 + $0x58] sm:$0xff] %vm1790, %v1717
      %1803 = vst.msk [vmem:[#allocation3 + $0x60] sm:$0xff] %vm1790, %v1719
      %1804 = vst.msk [vmem:[#allocation3 + $0x68] sm:$0xff] %vm1790, %v1721
      %1805 = vst.msk [vmem:[#allocation3 + $0x70] sm:$0xff] %vm1790, %v1723
      %1806 = vst.msk [vmem:[#allocation3 + $0x78] sm:$0xff] %vm1790, %v1725
      %1807 = vst.msk [vmem:[#allocation3 + $0x80] sm:$0xff] %vm1790, %v1727
      %1808 = vst.msk [vmem:[#allocation3 + $0x88] sm:$0xff] %vm1790, %v1729
      %1809 = vst.msk [vmem:[#allocation3 + $0x90] sm:$0xff] %vm1790, %v1731
      %1810 = vst.msk [vmem:[#allocation3 + $0x98] sm:$0xff] %vm1790, %v1733
      %1811 = vst.msk [vmem:[#allocation3 + $0xa0] sm:$0xff] %vm1790, %v1735
      %1812 = vst.msk [vmem:[#allocation3 + $0xa8] sm:$0xff] %vm1790, %v1737
      %1813 = vst.msk [vmem:[#allocation3 + $0xb0] sm:$0xff] %vm1790, %v1739
      %1814 = vst.msk [vmem:[#allocation3 + $0xb8] sm:$0xff] %vm1790, %v1741
      %1815 = vst.msk [vmem:[#allocation3 + $0xc0] sm:$0xff] %vm1790, %v1743
      %1816 = vst.msk [vmem:[#allocation3 + $0xc8] sm:$0xff] %vm1790, %v1745
      %1817 = vst.msk [vmem:[#allocation3 + $0xd0] sm:$0xff] %vm1790, %v1747
      %1818 = vst.msk [vmem:[#allocation3 + $0xd8] sm:$0xff] %vm1790, %v1749
      %1819 = vst.msk [vmem:[#allocation3 + $0xe0] sm:$0xff] %vm1790, %v1751
      %1820 = vst.msk [vmem:[#allocation3 + $0xe8] sm:$0xff] %vm1790, %v1753
      %1821 = vst.msk [vmem:[#allocation3 + $0xf0] sm:$0xff] %vm1790, %v1755
      %1822 = vst.msk [vmem:[#allocation3 + $0xf8] sm:$0xff] %vm1790, %v1757
      %v1823 = vld [vmem:[%s1436 + $0x2] sm:$0xff]
      %v1824 = vld [vmem:[%s1436 + $0xa] sm:$0xff]
      %v1825 = vld [vmem:[%s1436 + $0x1a] sm:$0xff]
      %v1826 = vld [vmem:[%s1436 + $0x22] sm:$0xff]
      %v1827 = vld [vmem:[%s1436 + $0x32] sm:$0xff]
      %v1828 = vld [vmem:[%s1436 + $0x3a] sm:$0xff]
      %v1829 = vld [vmem:[%s1436 + $0x4a] sm:$0xff]
      %v1830 = vld [vmem:[%s1436 + $0x52] sm:$0xff]
      %v1831 = vld [vmem:[%s1436 + $0x62] sm:$0xff]
      %v1832 = vld [vmem:[%s1436 + $0x6a] sm:$0xff]
      %v1833 = vld [vmem:[%s1436 + $0x7a] sm:$0xff]
      %v1834 = vld [vmem:[%s1436 + $0x82] sm:$0xff]
      %v1835 = vld [vmem:[%s1436 + $0x92] sm:$0xff]
      %v1836 = vld [vmem:[%s1436 + $0x9a] sm:$0xff]
      %v1837 = vld [vmem:[%s1436 + $0xaa] sm:$0xff]
      %v1838 = vld [vmem:[%s1436 + $0xb2] sm:$0xff]
      %v1839 = vld [vmem:[%s1436 + $0xc2] sm:$0xff]
      %v1840 = vld [vmem:[%s1436 + $0xca] sm:$0xff]
      %v1841 = vld [vmem:[%s1436 + $0xda] sm:$0xff]
      %v1842 = vld [vmem:[%s1436 + $0xe2] sm:$0xff]
      %v1843 = vld [vmem:[%s1436 + $0xf2] sm:$0xff]
      %v1844 = vld [vmem:[%s1436 + $0xfa] sm:$0xff]
      %v1845 = vld [vmem:[%s1436 + $0x10a] sm:$0xff]
      %v1846 = vld [vmem:[%s1436 + $0x112] sm:$0xff]
      %v1847 = vld [vmem:[%s1436 + $0x122] sm:$0xff]
      %v1848 = vld [vmem:[%s1436 + $0x12a] sm:$0xff]
      %v1849 = vld [vmem:[%s1436 + $0x13a] sm:$0xff]
      %v1850 = vld [vmem:[%s1436 + $0x142] sm:$0xff]
      %v1851 = vld [vmem:[%s1436 + $0x152] sm:$0xff]
      %v1852 = vld [vmem:[%s1436 + $0x15a] sm:$0xff]
      %v1853 = vld [vmem:[%s1436 + $0x16a] sm:$0xff]
      %v1854 = vld [vmem:[%s1436 + $0x172] sm:$0xff]
      %1887 = vrot.lane.b32.xlu0 %v1823, 32
      %v1888 = vpop.permute.xlu0 %1887
      %1889 = vrot.lane.b32.xlu0 %v1824, 32
      %v1890 = vpop.permute.xlu0 %1889
      %1891 = vrot.lane.b32.xlu0 %v1825, 32
      %v1892 = vpop.permute.xlu0 %1891
      %1893 = vrot.lane.b32.xlu0 %v1826, 32
      %v1894 = vpop.permute.xlu0 %1893
      %1895 = vrot.lane.b32.xlu0 %v1827, 32
      %v1896 = vpop.permute.xlu0 %1895
      %1897 = vrot.lane.b32.xlu0 %v1828, 32
      %v1898 = vpop.permute.xlu0 %1897
      %1899 = vrot.lane.b32.xlu0 %v1829, 32
      %v1900 = vpop.permute.xlu0 %1899
      %1901 = vrot.lane.b32.xlu0 %v1830, 32
      %v1902 = vpop.permute.xlu0 %1901
      %1903 = vrot.lane.b32.xlu0 %v1831, 32
      %v1904 = vpop.permute.xlu0 %1903
      %1905 = vrot.lane.b32.xlu0 %v1832, 32
      %v1906 = vpop.permute.xlu0 %1905
      %1907 = vrot.lane.b32.xlu0 %v1833, 32
      %v1908 = vpop.permute.xlu0 %1907
      %1909 = vrot.lane.b32.xlu0 %v1834, 32
      %v1910 = vpop.permute.xlu0 %1909
      %1911 = vrot.lane.b32.xlu0 %v1835, 32
      %v1912 = vpop.permute.xlu0 %1911
      %1913 = vrot.lane.b32.xlu0 %v1836, 32
      %v1914 = vpop.permute.xlu0 %1913
      %1915 = vrot.lane.b32.xlu0 %v1837, 32
      %v1916 = vpop.permute.xlu0 %1915
      %1917 = vrot.lane.b32.xlu0 %v1838, 32
      %v1918 = vpop.permute.xlu0 %1917
      %1919 = vrot.lane.b32.xlu0 %v1839, 32
      %v1920 = vpop.permute.xlu0 %1919
      %1921 = vrot.lane.b32.xlu0 %v1840, 32
      %v1922 = vpop.permute.xlu0 %1921
      %1923 = vrot.lane.b32.xlu0 %v1841, 32
      %v1924 = vpop.permute.xlu0 %1923
      %1925 = vrot.lane.b32.xlu0 %v1842, 32
      %v1926 = vpop.permute.xlu0 %1925
      %1927 = vrot.lane.b32.xlu0 %v1843, 32
      %v1928 = vpop.permute.xlu0 %1927
      %1929 = vrot.lane.b32.xlu0 %v1844, 32
      %v1930 = vpop.permute.xlu0 %1929
      %1931 = vrot.lane.b32.xlu0 %v1845, 32
      %v1932 = vpop.permute.xlu0 %1931
      %1933 = vrot.lane.b32.xlu0 %v1846, 32
      %v1934 = vpop.permute.xlu0 %1933
      %1935 = vrot.lane.b32.xlu0 %v1847, 32
      %v1936 = vpop.permute.xlu0 %1935
      %1937 = vrot.lane.b32.xlu0 %v1848, 32
      %v1938 = vpop.permute.xlu0 %1937
      %1939 = vrot.lane.b32.xlu0 %v1849, 32
      %v1940 = vpop.permute.xlu0 %1939
      %1941 = vrot.lane.b32.xlu0 %v1850, 32
      %v1942 = vpop.permute.xlu0 %1941
      %1943 = vrot.lane.b32.xlu0 %v1851, 32
      %v1944 = vpop.permute.xlu0 %1943
      %1945 = vrot.lane.b32.xlu0 %v1852, 32
      %v1946 = vpop.permute.xlu0 %1945
      %1947 = vrot.lane.b32.xlu0 %v1853, 32
      %v1948 = vpop.permute.xlu0 %1947
      %1949 = vrot.lane.b32.xlu0 %v1854, 32
      %v1950 = vpop.permute.xlu0 %1949
      %vm1983 = vcmask 294144
      %1984 = vst.msk [vmem:[#allocation3] sm:$0xff] %vm1983, %v1888
      %1985 = vst.msk [vmem:[#allocation3 + $0x8] sm:$0xff] %vm1983, %v1890
      %1986 = vst.msk [vmem:[#allocation3 + $0x10] sm:$0xff] %vm1983, %v1892
      %1987 = vst.msk [vmem:[#allocation3 + $0x18] sm:$0xff] %vm1983, %v1894
      %1988 = vst.msk [vmem:[#allocation3 + $0x20] sm:$0xff] %vm1983, %v1896
      %1989 = vst.msk [vmem:[#allocation3 + $0x28] sm:$0xff] %vm1983, %v1898
      %1990 = vst.msk [vmem:[#allocation3 + $0x30] sm:$0xff] %vm1983, %v1900
      %1991 = vst.msk [vmem:[#allocation3 + $0x38] sm:$0xff] %vm1983, %v1902
      %1992 = vst.msk [vmem:[#allocation3 + $0x40] sm:$0xff] %vm1983, %v1904
      %1993 = vst.msk [vmem:[#allocation3 + $0x48] sm:$0xff] %vm1983, %v1906
      %1994 = vst.msk [vmem:[#allocation3 + $0x50] sm:$0xff] %vm1983, %v1908
      %1995 = vst.msk [vmem:[#allocation3 + $0x58] sm:$0xff] %vm1983, %v1910
      %1996 = vst.msk [vmem:[#allocation3 + $0x60] sm:$0xff] %vm1983, %v1912
      %1997 = vst.msk [vmem:[#allocation3 + $0x68] sm:$0xff] %vm1983, %v1914
      %1998 = vst.msk [vmem:[#allocation3 + $0x70] sm:$0xff] %vm1983, %v1916
      %1999 = vst.msk [vmem:[#allocation3 + $0x78] sm:$0xff] %vm1983, %v1918
      %2000 = vst.msk [vmem:[#allocation3 + $0x80] sm:$0xff] %vm1983, %v1920
      %2001 = vst.msk [vmem:[#allocation3 + $0x88] sm:$0xff] %vm1983, %v1922
      %2002 = vst.msk [vmem:[#allocation3 + $0x90] sm:$0xff] %vm1983, %v1924
      %2003 = vst.msk [vmem:[#allocation3 + $0x98] sm:$0xff] %vm1983, %v1926
      %2004 = vst.msk [vmem:[#allocation3 + $0xa0] sm:$0xff] %vm1983, %v1928
      %2005 = vst.msk [vmem:[#allocation3 + $0xa8] sm:$0xff] %vm1983, %v1930
      %2006 = vst.msk [vmem:[#allocation3 + $0xb0] sm:$0xff] %vm1983, %v1932
      %2007 = vst.msk [vmem:[#allocation3 + $0xb8] sm:$0xff] %vm1983, %v1934
      %2008 = vst.msk [vmem:[#allocation3 + $0xc0] sm:$0xff] %vm1983, %v1936
      %2009 = vst.msk [vmem:[#allocation3 + $0xc8] sm:$0xff] %vm1983, %v1938
      %2010 = vst.msk [vmem:[#allocation3 + $0xd0] sm:$0xff] %vm1983, %v1940
      %2011 = vst.msk [vmem:[#allocation3 + $0xd8] sm:$0xff] %vm1983, %v1942
      %2012 = vst.msk [vmem:[#allocation3 + $0xe0] sm:$0xff] %vm1983, %v1944
      %2013 = vst.msk [vmem:[#allocation3 + $0xe8] sm:$0xff] %vm1983, %v1946
      %2014 = vst.msk [vmem:[#allocation3 + $0xf0] sm:$0xff] %vm1983, %v1948
      %2015 = vst.msk [vmem:[#allocation3 + $0xf8] sm:$0xff] %vm1983, %v1950
      %v2016 = vld [vmem:[#allocation3] sm:$0xff]
      %v2017 = vld [vmem:[#allocation3 + $0x8] sm:$0xff]
      %v2018 = vld [vmem:[#allocation3 + $0x10] sm:$0xff]
      %v2019 = vld [vmem:[#allocation3 + $0x18] sm:$0xff]
      %v2020 = vld [vmem:[#allocation3 + $0x20] sm:$0xff]
      %v2021 = vld [vmem:[#allocation3 + $0x28] sm:$0xff]
      %v2022 = vld [vmem:[#allocation3 + $0x30] sm:$0xff]
      %v2023 = vld [vmem:[#allocation3 + $0x38] sm:$0xff]
      %v2024 = vld [vmem:[#allocation3 + $0x40] sm:$0xff]
      %v2025 = vld [vmem:[#allocation3 + $0x48] sm:$0xff]
      %v2026 = vld [vmem:[#allocation3 + $0x50] sm:$0xff]
      %v2027 = vld [vmem:[#allocation3 + $0x58] sm:$0xff]
      %v2028 = vld [vmem:[#allocation3 + $0x60] sm:$0xff]
      %v2029 = vld [vmem:[#allocation3 + $0x68] sm:$0xff]
      %v2030 = vld [vmem:[#allocation3 + $0x70] sm:$0xff]
      %v2031 = vld [vmem:[#allocation3 + $0x78] sm:$0xff]
      %v2032 = vld [vmem:[#allocation3 + $0x80] sm:$0xff]
      %v2033 = vld [vmem:[#allocation3 + $0x88] sm:$0xff]
      %v2034 = vld [vmem:[#allocation3 + $0x90] sm:$0xff]
      %v2035 = vld [vmem:[#allocation3 + $0x98] sm:$0xff]
      %v2036 = vld [vmem:[#allocation3 + $0xa0] sm:$0xff]
      %v2037 = vld [vmem:[#allocation3 + $0xa8] sm:$0xff]
      %v2038 = vld [vmem:[#allocation3 + $0xb0] sm:$0xff]
      %v2039 = vld [vmem:[#allocation3 + $0xb8] sm:$0xff]
      %v2040 = vld [vmem:[#allocation3 + $0xc0] sm:$0xff]
      %v2041 = vld [vmem:[#allocation3 + $0xc8] sm:$0xff]
      %v2042 = vld [vmem:[#allocation3 + $0xd0] sm:$0xff]
      %v2043 = vld [vmem:[#allocation3 + $0xd8] sm:$0xff]
      %v2044 = vld [vmem:[#allocation3 + $0xe0] sm:$0xff]
      %v2045 = vld [vmem:[#allocation3 + $0xe8] sm:$0xff]
      %v2046 = vld [vmem:[#allocation3 + $0xf0] sm:$0xff]
      %v2047 = vld [vmem:[#allocation3 + $0xf8] sm:$0xff]
      %v2048 = vpack.c.bf16 %v2017, %v2016
      %v2049 = vpack.c.bf16 %v2019, %v2018
      %v2050 = vpack.c.bf16 %v2021, %v2020
      %v2051 = vpack.c.bf16 %v2023, %v2022
      %v2052 = vpack.c.bf16 %v2025, %v2024
      %v2053 = vpack.c.bf16 %v2027, %v2026
      %v2054 = vpack.c.bf16 %v2029, %v2028
      %v2055 = vpack.c.bf16 %v2031, %v2030
      %v2056 = vpack.c.bf16 %v2033, %v2032
      %v2057 = vpack.c.bf16 %v2035, %v2034
      %v2058 = vpack.c.bf16 %v2037, %v2036
      %v2059 = vpack.c.bf16 %v2039, %v2038
      %v2060 = vpack.c.bf16 %v2041, %v2040
      %v2061 = vpack.c.bf16 %v2043, %v2042
      %v2062 = vpack.c.bf16 %v2045, %v2044
      %v2063 = vpack.c.bf16 %v2047, %v2046
      %v2064 = vld [vmem:[%s1] sm:$0xf]
      %v2065 = vld [vmem:[%s1 + $0x4] sm:$0xf]
      %v2066 = vld [vmem:[%s1 + $0x8] sm:$0xf]
      %v2067 = vld [vmem:[%s1 + $0xc] sm:$0xf]
      %v2068 = vld [vmem:[%s1 + $0x10] sm:$0x3]
      %v2074 = vunpack.c.l.b16 %v2064
      %v2075 = vunpack.c.l.b16 %v2065
      %v2076 = vunpack.c.l.b16 %v2066
      %v2077 = vunpack.c.l.b16 %v2067
      %v2078 = vunpack.c.l.b16 %v2068
      %v2079 = vpack.c.b16 %v2075, %v2074
      %v2080 = vpack.c.b16 %v2077, %v2076
      %v2081 = vpack.c.b16 %v2078, %v2078
      %vm2084 = vcmask 293888
      %v2086 = vsel %vm2084, %v2048, 0
      %v2089 = vsel %vm2084, %v2049, 0
      %v2092 = vsel %vm2084, %v2050, 0
      %v2095 = vsel %vm2084, %v2051, 0
      %v2098 = vsel %vm2084, %v2052, 0
      %v2101 = vsel %vm2084, %v2053, 0
      %v2104 = vsel %vm2084, %v2054, 0
      %v2107 = vsel %vm2084, %v2055, 0
      %v2110 = vsel %vm2084, %v2056, 0
      %v2113 = vsel %vm2084, %v2057, 0
      %v2116 = vsel %vm2084, %v2058, 0
      %v2119 = vsel %vm2084, %v2059, 0
      %v2122 = vsel %vm2084, %v2060, 0
      %v2125 = vsel %vm2084, %v2061, 0
      %v2128 = vsel %vm2084, %v2062, 0
      %v2131 = vsel %vm2084, %v2063, 0
      %vm2133 = vcmask 1041408
      %v2135 = vsel %vm2133, %v2081, 0
      %2137 = vmatprep.subr.bf16.mxu0 0
      %2138 = vmatpush1.bf16.msra.mxu0 0
      %2139 = vmatprep.subr.bf16.mxu0 0
      %2140 = vmatpush1.bf16.msra.mxu0 0
      %2141 = vmatprep.subr.bf16.mxu0 0
      %2142 = vmatpush1.bf16.msra.mxu0 0
      %2143 = vmatprep.subr.bf16.mxu0 0
      %2144 = vmatpush1.bf16.msra.mxu0 0
      %2145 = vmatprep.subr.bf16.mxu0 0
      %2146 = vmatpush1.bf16.msra.mxu0 0
      %2147 = vmatprep.subr.bf16.mxu0 0
      %2148 = vmatpush1.bf16.msra.mxu0 %v2135
      %2149 = vmatprep.subr.bf16.mxu0 0
      %2150 = vmatpush1.bf16.msra.mxu0 %v2080
      %2151 = vmatprep.subr.bf16.mxu0 0
      %2152 = vmatpush1.bf16.msra.mxu0 %v2079
      %2153 = vmatprep.subr.bf16.mxu0 0
      %2154 = vmatpush2.bf16.msra.mxu0 0
      %2155 = vmatprep.subr.bf16.mxu0 0
      %2156 = vmatpush2.bf16.msra.mxu0 0
      %2157 = vmatprep.subr.bf16.mxu0 0
      %2158 = vmatpush2.bf16.msra.mxu0 0
      %2159 = vmatprep.subr.bf16.mxu0 0
      %2160 = vmatpush2.bf16.msra.mxu0 0
      %2161 = vmatprep.subr.bf16.mxu0 0
      %2162 = vmatpush2.bf16.msra.mxu0 0
      %2163 = vmatprep.subr.bf16.mxu0 0
      %2164 = vmatpush2.bf16.msra.mxu0 0
      %2165 = vmatprep.subr.bf16.mxu0 0
      %2166 = vmatpush2.bf16.msra.mxu0 0
      %2167 = vmatprep.subr.bf16.mxu0 0
      %2168 = vmatpush2.bf16.msra.mxu0 0
      %2169 = vmatprep.mubr.bf16.mxu0 0
      %2170 = vmatmul.mubr.bf16.gmra.mxu0 %v2086
      %v2171 = vpop.f32.mrf.mxu0
      %v2172 = vadd.f32 0.0, %v2171
      %v2173 = vpop.f32.mrf.mxu0
      %v2174 = vpop.f32.mrf.mxu0
      %v2175 = vadd.f32 0.0, %v2174
      %v2176 = vpop.f32.mrf.mxu0
      %2177 = vmatprep.mubr.bf16.mxu0 0
      %2178 = vmatmul.mubr.bf16.gmra.mxu0 %v2089
      %v2179 = vpop.f32.mrf.mxu0
      %v2180 = vadd.f32 0.0, %v2179
      %v2181 = vpop.f32.mrf.mxu0
      %v2182 = vpop.f32.mrf.mxu0
      %v2183 = vadd.f32 0.0, %v2182
      %v2184 = vpop.f32.mrf.mxu0
      %2185 = vmatprep.mubr.bf16.mxu0 0
      %2186 = vmatmul.mubr.bf16.gmra.mxu0 %v2092
      %v2187 = vpop.f32.mrf.mxu0
      %v2188 = vadd.f32 0.0, %v2187
      %v2189 = vpop.f32.mrf.mxu0
      %v2190 = vpop.f32.mrf.mxu0
      %v2191 = vadd.f32 0.0, %v2190
      %v2192 = vpop.f32.mrf.mxu0
      %2193 = vmatprep.mubr.bf16.mxu0 0
      %2194 = vmatmul.mubr.bf16.gmra.mxu0 %v2095
      %v2195 = vpop.f32.mrf.mxu0
      %v2196 = vadd.f32 0.0, %v2195
      %v2197 = vpop.f32.mrf.mxu0
      %v2198 = vpop.f32.mrf.mxu0
      %v2199 = vadd.f32 0.0, %v2198
      %v2200 = vpop.f32.mrf.mxu0
      %2201 = vmatprep.mubr.bf16.mxu0 0
      %2202 = vmatmul.mubr.bf16.gmra.mxu0 %v2098
      %v2203 = vpop.f32.mrf.mxu0
      %v2204 = vadd.f32 0.0, %v2203
      %v2205 = vpop.f32.mrf.mxu0
      %v2206 = vpop.f32.mrf.mxu0
      %v2207 = vadd.f32 0.0, %v2206
      %v2208 = vpop.f32.mrf.mxu0
      %2209 = vmatprep.mubr.bf16.mxu0 0
      %2210 = vmatmul.mubr.bf16.gmra.mxu0 %v2101
      %v2211 = vpop.f32.mrf.mxu0
      %v2212 = vadd.f32 0.0, %v2211
      %v2213 = vpop.f32.mrf.mxu0
      %v2214 = vpop.f32.mrf.mxu0
      %v2215 = vadd.f32 0.0, %v2214
      %v2216 = vpop.f32.mrf.mxu0
      %2217 = vmatprep.mubr.bf16.mxu0 0
      %2218 = vmatmul.mubr.bf16.gmra.mxu0 %v2104
      %v2219 = vpop.f32.mrf.mxu0
      %v2220 = vadd.f32 0.0, %v2219
      %v2221 = vpop.f32.mrf.mxu0
      %v2222 = vpop.f32.mrf.mxu0
      %v2223 = vadd.f32 0.0, %v2222
      %v2224 = vpop.f32.mrf.mxu0
      %2225 = vmatprep.mubr.bf16.mxu0 0
      %2226 = vmatmul.mubr.bf16.gmra.mxu0 %v2107
      %v2227 = vpop.f32.mrf.mxu0
      %v2228 = vadd.f32 0.0, %v2227
      %v2229 = vpop.f32.mrf.mxu0
      %v2230 = vpop.f32.mrf.mxu0
      %v2231 = vadd.f32 0.0, %v2230
      %v2232 = vpop.f32.mrf.mxu0
      %2233 = vmatprep.mubr.bf16.mxu0 0
      %2234 = vmatmul.mubr.bf16.gmra.mxu0 %v2110
      %v2235 = vpop.f32.mrf.mxu0
      %v2236 = vadd.f32 0.0, %v2235
      %v2237 = vpop.f32.mrf.mxu0
      %v2238 = vpop.f32.mrf.mxu0
      %v2239 = vadd.f32 0.0, %v2238
      %v2240 = vpop.f32.mrf.mxu0
      %2241 = vmatprep.mubr.bf16.mxu0 0
      %2242 = vmatmul.mubr.bf16.gmra.mxu0 %v2113
      %v2243 = vpop.f32.mrf.mxu0
      %v2244 = vadd.f32 0.0, %v2243
      %v2245 = vpop.f32.mrf.mxu0
      %v2246 = vpop.f32.mrf.mxu0
      %v2247 = vadd.f32 0.0, %v2246
      %v2248 = vpop.f32.mrf.mxu0
      %2249 = vmatprep.mubr.bf16.mxu0 0
      %2250 = vmatmul.mubr.bf16.gmra.mxu0 %v2116
      %v2251 = vpop.f32.mrf.mxu0
      %v2252 = vadd.f32 0.0, %v2251
      %v2253 = vpop.f32.mrf.mxu0
      %v2254 = vpop.f32.mrf.mxu0
      %v2255 = vadd.f32 0.0, %v2254
      %v2256 = vpop.f32.mrf.mxu0
      %2257 = vmatprep.mubr.bf16.mxu0 0
      %2258 = vmatmul.mubr.bf16.gmra.mxu0 %v2119
      %v2259 = vpop.f32.mrf.mxu0
      %v2260 = vadd.f32 0.0, %v2259
      %v2261 = vpop.f32.mrf.mxu0
      %v2262 = vpop.f32.mrf.mxu0
      %v2263 = vadd.f32 0.0, %v2262
      %v2264 = vpop.f32.mrf.mxu0
      %2265 = vmatprep.mubr.bf16.mxu0 0
      %2266 = vmatmul.mubr.bf16.gmra.mxu0 %v2122
      %v2267 = vpop.f32.mrf.mxu0
      %v2268 = vadd.f32 0.0, %v2267
      %v2269 = vpop.f32.mrf.mxu0
      %v2270 = vpop.f32.mrf.mxu0
      %v2271 = vadd.f32 0.0, %v2270
      %v2272 = vpop.f32.mrf.mxu0
      %2273 = vmatprep.mubr.bf16.mxu0 0
      %2274 = vmatmul.mubr.bf16.gmra.mxu0 %v2125
      %v2275 = vpop.f32.mrf.mxu0
      %v2276 = vadd.f32 0.0, %v2275
      %v2277 = vpop.f32.mrf.mxu0
      %v2278 = vpop.f32.mrf.mxu0
      %v2279 = vadd.f32 0.0, %v2278
      %v2280 = vpop.f32.mrf.mxu0
      %2281 = vmatprep.mubr.bf16.mxu0 0
      %2282 = vmatmul.mubr.bf16.gmra.mxu0 %v2128
      %v2283 = vpop.f32.mrf.mxu0
      %v2284 = vadd.f32 0.0, %v2283
      %v2285 = vpop.f32.mrf.mxu0
      %v2286 = vpop.f32.mrf.mxu0
      %v2287 = vadd.f32 0.0, %v2286
      %v2288 = vpop.f32.mrf.mxu0
      %2289 = vmatprep.mubr.bf16.mxu0 0
      %2290 = vmatmul.mubr.bf16.gmra.mxu0 %v2131
      %v2291 = vpop.f32.mrf.mxu0
      %v2292 = vadd.f32 0.0, %v2291
      %v2293 = vpop.f32.mrf.mxu0
      %v2294 = vpop.f32.mrf.mxu0
      %v2295 = vadd.f32 0.0, %v2294
      %v2296 = vpop.f32.mrf.mxu0
      %2297 = vdwg.mxu0
      %vm2298 = vcmask 64512
      %2299 = vst.msk [vmem:[%s271] sm:$0xff] %vm2298, %v2172
      %2300 = vst.msk [vmem:[%s271 + $0x8] sm:$0xff] %vm2298, %v2175
      %2301 = vst.msk [vmem:[%s271 + $0x10] sm:$0xff] %vm2298, %v2180
      %2302 = vst.msk [vmem:[%s271 + $0x18] sm:$0xff] %vm2298, %v2183
      %2303 = vst.msk [vmem:[%s271 + $0x20] sm:$0xff] %vm2298, %v2188
      %2304 = vst.msk [vmem:[%s271 + $0x28] sm:$0xff] %vm2298, %v2191
      %2305 = vst.msk [vmem:[%s271 + $0x30] sm:$0xff] %vm2298, %v2196
      %2306 = vst.msk [vmem:[%s271 + $0x38] sm:$0xff] %vm2298, %v2199
      %2307 = vst.msk [vmem:[%s271 + $0x40] sm:$0xff] %vm2298, %v2204
      %2308 = vst.msk [vmem:[%s271 + $0x48] sm:$0xff] %vm2298, %v2207
      %2309 = vst.msk [vmem:[%s271 + $0x50] sm:$0xff] %vm2298, %v2212
      %2310 = vst.msk [vmem:[%s271 + $0x58] sm:$0xff] %vm2298, %v2215
      %2311 = vst.msk [vmem:[%s271 + $0x60] sm:$0xff] %vm2298, %v2220
      %2312 = vst.msk [vmem:[%s271 + $0x68] sm:$0xff] %vm2298, %v2223
      %2313 = vst.msk [vmem:[%s271 + $0x70] sm:$0xff] %vm2298, %v2228
      %2314 = vst.msk [vmem:[%s271 + $0x78] sm:$0xff] %vm2298, %v2231
      %2315 = vst.msk [vmem:[%s271 + $0x80] sm:$0xff] %vm2298, %v2236
      %2316 = vst.msk [vmem:[%s271 + $0x88] sm:$0xff] %vm2298, %v2239
      %2317 = vst.msk [vmem:[%s271 + $0x90] sm:$0xff] %vm2298, %v2244
      %2318 = vst.msk [vmem:[%s271 + $0x98] sm:$0xff] %vm2298, %v2247
      %2319 = vst.msk [vmem:[%s271 + $0xa0] sm:$0xff] %vm2298, %v2252
      %2320 = vst.msk [vmem:[%s271 + $0xa8] sm:$0xff] %vm2298, %v2255
      %2321 = vst.msk [vmem:[%s271 + $0xb0] sm:$0xff] %vm2298, %v2260
      %2322 = vst.msk [vmem:[%s271 + $0xb8] sm:$0xff] %vm2298, %v2263
      %2323 = vst.msk [vmem:[%s271 + $0xc0] sm:$0xff] %vm2298, %v2268
      %2324 = vst.msk [vmem:[%s271 + $0xc8] sm:$0xff] %vm2298, %v2271
      %2325 = vst.msk [vmem:[%s271 + $0xd0] sm:$0xff] %vm2298, %v2276
      %2326 = vst.msk [vmem:[%s271 + $0xd8] sm:$0xff] %vm2298, %v2279
      %2327 = vst.msk [vmem:[%s271 + $0xe0] sm:$0xff] %vm2298, %v2284
      %2328 = vst.msk [vmem:[%s271 + $0xe8] sm:$0xff] %vm2298, %v2287
      %2329 = vst.msk [vmem:[%s271 + $0xf0] sm:$0xff] %vm2298, %v2292
      %2330 = vst.msk [vmem:[%s271 + $0xf8] sm:$0xff] %vm2298, %v2295
      %v2331 = vsel %vm2298, %v2172, 0.0
      %v2332 = vsel %vm2298, %v2175, 0.0
      %v2333 = vadd.f32 %v2331, %v2332
      %v2334 = vsel %vm2298, %v2180, 0.0
      %v2335 = vadd.f32 %v2333, %v2334
      %v2336 = vsel %vm2298, %v2183, 0.0
      %v2337 = vadd.f32 %v2335, %v2336
      %v2338 = vsel %vm2298, %v2188, 0.0
      %v2339 = vadd.f32 %v2337, %v2338
      %v2340 = vsel %vm2298, %v2191, 0.0
      %v2341 = vadd.f32 %v2339, %v2340
      %v2342 = vsel %vm2298, %v2196, 0.0
      %v2343 = vadd.f32 %v2341, %v2342
      %v2344 = vsel %vm2298, %v2199, 0.0
      %v2345 = vadd.f32 %v2343, %v2344
      %v2346 = vsel %vm2298, %v2204, 0.0
      %v2347 = vadd.f32 %v2345, %v2346
      %v2348 = vsel %vm2298, %v2207, 0.0
      %v2349 = vadd.f32 %v2347, %v2348
      %v2350 = vsel %vm2298, %v2212, 0.0
      %v2351 = vadd.f32 %v2349, %v2350
      %v2352 = vsel %vm2298, %v2215, 0.0
      %v2353 = vadd.f32 %v2351, %v2352
      %v2354 = vsel %vm2298, %v2220, 0.0
      %v2355 = vadd.f32 %v2353, %v2354
      %v2356 = vsel %vm2298, %v2223, 0.0
      %v2357 = vadd.f32 %v2355, %v2356
      %v2358 = vsel %vm2298, %v2228, 0.0
      %v2359 = vadd.f32 %v2357, %v2358
      %v2360 = vsel %vm2298, %v2231, 0.0
      %v2361 = vadd.f32 %v2359, %v2360
      %v2362 = vsel %vm2298, %v2236, 0.0
      %v2363 = vadd.f32 %v2361, %v2362
      %v2364 = vsel %vm2298, %v2239, 0.0
      %v2365 = vadd.f32 %v2363, %v2364
      %v2366 = vsel %vm2298, %v2244, 0.0
      %v2367 = vadd.f32 %v2365, %v2366
      %v2368 = vsel %vm2298, %v2247, 0.0
      %v2369 = vadd.f32 %v2367, %v2368
      %v2370 = vsel %vm2298, %v2252, 0.0
      %v2371 = vadd.f32 %v2369, %v2370
      %v2372 = vsel %vm2298, %v2255, 0.0
      %v2373 = vadd.f32 %v2371, %v2372
      %v2374 = vsel %vm2298, %v2260, 0.0
      %v2375 = vadd.f32 %v2373, %v2374
      %v2376 = vsel %vm2298, %v2263, 0.0
      %v2377 = vadd.f32 %v2375, %v2376
      %v2378 = vsel %vm2298, %v2268, 0.0
      %v2379 = vadd.f32 %v2377, %v2378
      %v2380 = vsel %vm2298, %v2271, 0.0
      %v2381 = vadd.f32 %v2379, %v2380
      %v2382 = vsel %vm2298, %v2276, 0.0
      %v2383 = vadd.f32 %v2381, %v2382
      %v2384 = vsel %vm2298, %v2279, 0.0
      %v2385 = vadd.f32 %v2383, %v2384
      %v2386 = vsel %vm2298, %v2284, 0.0
      %v2387 = vadd.f32 %v2385, %v2386
      %v2388 = vsel %vm2298, %v2287, 0.0
      %v2389 = vadd.f32 %v2387, %v2388
      %v2390 = vsel %vm2298, %v2292, 0.0
      %v2391 = vadd.f32 %v2389, %v2390
      %v2392 = vsel %vm2298, %v2295, 0.0
      %v2393 = vadd.f32 %v2391, %v2392
      %v2394 = vrot.slane %v2393, 4
      %v2395 = vadd.f32 %v2393, %v2394
      %v2396 = vrot.slane %v2395, 2
      %v2397 = vadd.f32 %v2395, %v2396
      %v2398 = vrot.slane %v2397, 1
      %v2399 = vadd.f32 %v2397, %v2398
      %vm2400 = vcmask 57344
      %2401 = vst.msk [vmem:[%s280] sm:$0x1] %vm2400, %v2399
      %v2402 = vmul.f32 %v2172, %v2172
      %v2403 = vmul.f32 %v2175, %v2175
      %v2404 = vmul.f32 %v2180, %v2180
      %v2405 = vmul.f32 %v2183, %v2183
      %v2406 = vmul.f32 %v2188, %v2188
      %v2407 = vmul.f32 %v2191, %v2191
      %v2408 = vmul.f32 %v2196, %v2196
      %v2409 = vmul.f32 %v2199, %v2199
      %v2410 = vmul.f32 %v2204, %v2204
      %v2411 = vmul.f32 %v2207, %v2207
      %v2412 = vmul.f32 %v2212, %v2212
      %v2413 = vmul.f32 %v2215, %v2215
      %v2414 = vmul.f32 %v2220, %v2220
      %v2415 = vmul.f32 %v2223, %v2223
      %v2416 = vmul.f32 %v2228, %v2228
      %v2417 = vmul.f32 %v2231, %v2231
      %v2418 = vmul.f32 %v2236, %v2236
      %v2419 = vmul.f32 %v2239, %v2239
      %v2420 = vmul.f32 %v2244, %v2244
      %v2421 = vmul.f32 %v2247, %v2247
      %v2422 = vmul.f32 %v2252, %v2252
      %v2423 = vmul.f32 %v2255, %v2255
      %v2424 = vmul.f32 %v2260, %v2260
      %v2425 = vmul.f32 %v2263, %v2263
      %v2426 = vmul.f32 %v2268, %v2268
      %v2427 = vmul.f32 %v2271, %v2271
      %v2428 = vmul.f32 %v2276, %v2276
      %v2429 = vmul.f32 %v2279, %v2279
      %v2430 = vmul.f32 %v2284, %v2284
      %v2431 = vmul.f32 %v2287, %v2287
      %v2432 = vmul.f32 %v2292, %v2292
      %v2433 = vmul.f32 %v2295, %v2295
      %v2434 = vsel %vm2298, %v2402, 0.0
      %v2435 = vsel %vm2298, %v2403, 0.0
      %v2436 = vadd.f32 %v2434, %v2435
      %v2437 = vsel %vm2298, %v2404, 0.0
      %v2438 = vadd.f32 %v2436, %v2437
      %v2439 = vsel %vm2298, %v2405, 0.0
      %v2440 = vadd.f32 %v2438, %v2439
      %v2441 = vsel %vm2298, %v2406, 0.0
      %v2442 = vadd.f32 %v2440, %v2441
      %v2443 = vsel %vm2298, %v2407, 0.0
      %v2444 = vadd.f32 %v2442, %v2443
      %v2445 = vsel %vm2298, %v2408, 0.0
      %v2446 = vadd.f32 %v2444, %v2445
      %v2447 = vsel %vm2298, %v2409, 0.0
      %v2448 = vadd.f32 %v2446, %v2447
      %v2449 = vsel %vm2298, %v2410, 0.0
      %v2450 = vadd.f32 %v2448, %v2449
      %v2451 = vsel %vm2298, %v2411, 0.0
      %v2452 = vadd.f32 %v2450, %v2451
      %v2453 = vsel %vm2298, %v2412, 0.0
      %v2454 = vadd.f32 %v2452, %v2453
      %v2455 = vsel %vm2298, %v2413, 0.0
      %v2456 = vadd.f32 %v2454, %v2455
      %v2457 = vsel %vm2298, %v2414, 0.0
      %v2458 = vadd.f32 %v2456, %v2457
      %v2459 = vsel %vm2298, %v2415, 0.0
      %v2460 = vadd.f32 %v2458, %v2459
      %v2461 = vsel %vm2298, %v2416, 0.0
      %v2462 = vadd.f32 %v2460, %v2461
      %v2463 = vsel %vm2298, %v2417, 0.0
      %v2464 = vadd.f32 %v2462, %v2463
      %v2465 = vsel %vm2298, %v2418, 0.0
      %v2466 = vadd.f32 %v2464, %v2465
      %v2467 = vsel %vm2298, %v2419, 0.0
      %v2468 = vadd.f32 %v2466, %v2467
      %v2469 = vsel %vm2298, %v2420, 0.0
      %v2470 = vadd.f32 %v2468, %v2469
      %v2471 = vsel %vm2298, %v2421, 0.0
      %v2472 = vadd.f32 %v2470, %v2471
      %v2473 = vsel %vm2298, %v2422, 0.0
      %v2474 = vadd.f32 %v2472, %v2473
      %v2475 = vsel %vm2298, %v2423, 0.0
      %v2476 = vadd.f32 %v2474, %v2475
      %v2477 = vsel %vm2298, %v2424, 0.0
      %v2478 = vadd.f32 %v2476, %v2477
      %v2479 = vsel %vm2298, %v2425, 0.0
      %v2480 = vadd.f32 %v2478, %v2479
      %v2481 = vsel %vm2298, %v2426, 0.0
      %v2482 = vadd.f32 %v2480, %v2481
      %v2483 = vsel %vm2298, %v2427, 0.0
      %v2484 = vadd.f32 %v2482, %v2483
      %v2485 = vsel %vm2298, %v2428, 0.0
      %v2486 = vadd.f32 %v2484, %v2485
      %v2487 = vsel %vm2298, %v2429, 0.0
      %v2488 = vadd.f32 %v2486, %v2487
      %v2489 = vsel %vm2298, %v2430, 0.0
      %v2490 = vadd.f32 %v2488, %v2489
      %v2491 = vsel %vm2298, %v2431, 0.0
      %v2492 = vadd.f32 %v2490, %v2491
      %v2493 = vsel %vm2298, %v2432, 0.0
      %v2494 = vadd.f32 %v2492, %v2493
      %v2495 = vsel %vm2298, %v2433, 0.0
      %v2496 = vadd.f32 %v2494, %v2495
      %v2497 = vrot.slane %v2496, 4
      %v2498 = vadd.f32 %v2496, %v2497
      %v2499 = vrot.slane %v2498, 2
      %v2500 = vadd.f32 %v2498, %v2499
      %v2501 = vrot.slane %v2500, 1
      %v2502 = vadd.f32 %v2500, %v2501
      %2503 = vst.msk [vmem:[%s280 + $0x1] sm:$0x1] %vm2400, %v2502
      %v2504 = vld [vmem:[#allocation3] sm:$0xff]
      %v2505 = vld [vmem:[#allocation3 + $0x8] sm:$0xff]
      %v2506 = vld [vmem:[#allocation3 + $0x10] sm:$0xff]
      %v2507 = vld [vmem:[#allocation3 + $0x18] sm:$0xff]
      %v2508 = vld [vmem:[#allocation3 + $0x20] sm:$0xff]
      %v2509 = vld [vmem:[#allocation3 + $0x28] sm:$0xff]
      %v2510 = vld [vmem:[#allocation3 + $0x30] sm:$0xff]
      %v2511 = vld [vmem:[#allocation3 + $0x38] sm:$0xff]
      %v2512 = vld [vmem:[#allocation3 + $0x40] sm:$0xff]
      %v2513 = vld [vmem:[#allocation3 + $0x48] sm:$0xff]
      %v2514 = vld [vmem:[#allocation3 + $0x50] sm:$0xff]
      %v2515 = vld [vmem:[#allocation3 + $0x58] sm:$0xff]
      %v2516 = vld [vmem:[#allocation3 + $0x60] sm:$0xff]
      %v2517 = vld [vmem:[#allocation3 + $0x68] sm:$0xff]
      %v2518 = vld [vmem:[#allocation3 + $0x70] sm:$0xff]
      %v2519 = vld [vmem:[#allocation3 + $0x78] sm:$0xff]
      %v2520 = vld [vmem:[#allocation3 + $0x80] sm:$0xff]
      %v2521 = vld [vmem:[#allocation3 + $0x88] sm:$0xff]
      %v2522 = vld [vmem:[#allocation3 + $0x90] sm:$0xff]
      %v2523 = vld [vmem:[#allocation3 + $0x98] sm:$0xff]
      %v2524 = vld [vmem:[#allocation3 + $0xa0] sm:$0xff]
      %v2525 = vld [vmem:[#allocation3 + $0xa8] sm:$0xff]
      %v2526 = vld [vmem:[#allocation3 + $0xb0] sm:$0xff]
      %v2527 = vld [vmem:[#allocation3 + $0xb8] sm:$0xff]
      %v2528 = vld [vmem:[#allocation3 + $0xc0] sm:$0xff]
      %v2529 = vld [vmem:[#allocation3 + $0xc8] sm:$0xff]
      %v2530 = vld [vmem:[#allocation3 + $0xd0] sm:$0xff]
      %v2531 = vld [vmem:[#allocation3 + $0xd8] sm:$0xff]
      %v2532 = vld [vmem:[#allocation3 + $0xe0] sm:$0xff]
      %v2533 = vld [vmem:[#allocation3 + $0xe8] sm:$0xff]
      %v2534 = vld [vmem:[#allocation3 + $0xf0] sm:$0xff]
      %v2535 = vld [vmem:[#allocation3 + $0xf8] sm:$0xff]
      %v2536 = vpack.c.bf16 %v2505, %v2504
      %v2537 = vpack.c.bf16 %v2507, %v2506
      %v2538 = vpack.c.bf16 %v2509, %v2508
      %v2539 = vpack.c.bf16 %v2511, %v2510
      %v2540 = vpack.c.bf16 %v2513, %v2512
      %v2541 = vpack.c.bf16 %v2515, %v2514
      %v2542 = vpack.c.bf16 %v2517, %v2516
      %v2543 = vpack.c.bf16 %v2519, %v2518
      %v2544 = vpack.c.bf16 %v2521, %v2520
      %v2545 = vpack.c.bf16 %v2523, %v2522
      %v2546 = vpack.c.bf16 %v2525, %v2524
      %v2547 = vpack.c.bf16 %v2527, %v2526
      %v2548 = vpack.c.bf16 %v2529, %v2528
      %v2549 = vpack.c.bf16 %v2531, %v2530
      %v2550 = vpack.c.bf16 %v2533, %v2532
      %v2551 = vpack.c.bf16 %v2535, %v2534
      %v2552 = vld [vmem:[%s2] sm:$0x3]
      %2569 = vrot.lane.b32.xlu0 %v2536, 112
      %v2570 = vpop.permute.xlu0 %2569
      %2571 = vrot.lane.b32.xlu0 %v2537, 112
      %v2572 = vpop.permute.xlu0 %2571
      %2573 = vrot.lane.b32.xlu0 %v2538, 112
      %v2574 = vpop.permute.xlu0 %2573
      %2575 = vrot.lane.b32.xlu0 %v2539, 112
      %v2576 = vpop.permute.xlu0 %2575
      %2577 = vrot.lane.b32.xlu0 %v2540, 112
      %v2578 = vpop.permute.xlu0 %2577
      %2579 = vrot.lane.b32.xlu0 %v2541, 112
      %v2580 = vpop.permute.xlu0 %2579
      %2581 = vrot.lane.b32.xlu0 %v2542, 112
      %v2582 = vpop.permute.xlu0 %2581
      %2583 = vrot.lane.b32.xlu0 %v2543, 112
      %v2584 = vpop.permute.xlu0 %2583
      %2585 = vrot.lane.b32.xlu0 %v2544, 112
      %v2586 = vpop.permute.xlu0 %2585
      %2587 = vrot.lane.b32.xlu0 %v2545, 112
      %v2588 = vpop.permute.xlu0 %2587
      %2589 = vrot.lane.b32.xlu0 %v2546, 112
      %v2590 = vpop.permute.xlu0 %2589
      %2591 = vrot.lane.b32.xlu0 %v2547, 112
      %v2592 = vpop.permute.xlu0 %2591
      %2593 = vrot.lane.b32.xlu0 %v2548, 112
      %v2594 = vpop.permute.xlu0 %2593
      %2595 = vrot.lane.b32.xlu0 %v2549, 112
      %v2596 = vpop.permute.xlu0 %2595
      %2597 = vrot.lane.b32.xlu0 %v2550, 112
      %v2598 = vpop.permute.xlu0 %2597
      %2599 = vrot.lane.b32.xlu0 %v2551, 112
      %v2600 = vpop.permute.xlu0 %2599
      %v2602 = vsel %vm286, %v2570, 0
      %v2605 = vsel %vm286, %v2572, 0
      %v2608 = vsel %vm286, %v2574, 0
      %v2611 = vsel %vm286, %v2576, 0
      %v2614 = vsel %vm286, %v2578, 0
      %v2617 = vsel %vm286, %v2580, 0
      %v2620 = vsel %vm286, %v2582, 0
      %v2623 = vsel %vm286, %v2584, 0
      %v2626 = vsel %vm286, %v2586, 0
      %v2629 = vsel %vm286, %v2588, 0
      %v2632 = vsel %vm286, %v2590, 0
      %v2635 = vsel %vm286, %v2592, 0
      %v2638 = vsel %vm286, %v2594, 0
      %v2641 = vsel %vm286, %v2596, 0
      %v2644 = vsel %vm286, %v2598, 0
      %v2647 = vsel %vm286, %v2600, 0
      %v2650 = vsel %vm2133, %v2552, 0
      %2652 = vmatprep.subr.bf16.mxu0 0
      %2653 = vmatpush1.bf16.msra.mxu0 0
      %2654 = vmatprep.subr.bf16.mxu0 0
      %2655 = vmatpush1.bf16.msra.mxu0 0
      %2656 = vmatprep.subr.bf16.mxu0 0
      %2657 = vmatpush1.bf16.msra.mxu0 0
      %2658 = vmatprep.subr.bf16.mxu0 0
      %2659 = vmatpush1.bf16.msra.mxu0 0
      %2660 = vmatprep.subr.bf16.mxu0 0
      %2661 = vmatpush1.bf16.msra.mxu0 0
      %2662 = vmatprep.subr.bf16.mxu0 0
      %2663 = vmatpush1.bf16.msra.mxu0 0
      %2664 = vmatprep.subr.bf16.mxu0 0
      %2665 = vmatpush1.bf16.msra.mxu0 0
      %2666 = vmatprep.subr.bf16.mxu0 0
      %2667 = vmatpush1.bf16.msra.mxu0 %v2650
      %2668 = vmatprep.subr.bf16.mxu0 0
      %2669 = vmatpush2.bf16.msra.mxu0 0
      %2670 = vmatprep.subr.bf16.mxu0 0
      %2671 = vmatpush2.bf16.msra.mxu0 0
      %2672 = vmatprep.subr.bf16.mxu0 0
      %2673 = vmatpush2.bf16.msra.mxu0 0
      %2674 = vmatprep.subr.bf16.mxu0 0
      %2675 = vmatpush2.bf16.msra.mxu0 0
      %2676 = vmatprep.subr.bf16.mxu0 0
      %2677 = vmatpush2.bf16.msra.mxu0 0
      %2678 = vmatprep.subr.bf16.mxu0 0
      %2679 = vmatpush2.bf16.msra.mxu0 0
      %2680 = vmatprep.subr.bf16.mxu0 0
      %2681 = vmatpush2.bf16.msra.mxu0 0
      %2682 = vmatprep.subr.bf16.mxu0 0
      %2683 = vmatpush2.bf16.msra.mxu0 0
      %2684 = vmatprep.mubr.bf16.mxu0 0
      %2685 = vmatmul.mubr.bf16.gmra.mxu0 %v2602
      %v2686 = vpop.f32.mrf.mxu0
      %v2687 = vadd.f32 0.0, %v2686
      %v2688 = vpop.f32.mrf.mxu0
      %v2689 = vpop.f32.mrf.mxu0
      %v2690 = vadd.f32 0.0, %v2689
      %v2691 = vpop.f32.mrf.mxu0
      %2692 = vmatprep.mubr.bf16.mxu0 0
      %2693 = vmatmul.mubr.bf16.gmra.mxu0 %v2605
      %v2694 = vpop.f32.mrf.mxu0
      %v2695 = vadd.f32 0.0, %v2694
      %v2696 = vpop.f32.mrf.mxu0
      %v2697 = vpop.f32.mrf.mxu0
      %v2698 = vadd.f32 0.0, %v2697
      %v2699 = vpop.f32.mrf.mxu0
      %2700 = vmatprep.mubr.bf16.mxu0 0
      %2701 = vmatmul.mubr.bf16.gmra.mxu0 %v2608
      %v2702 = vpop.f32.mrf.mxu0
      %v2703 = vadd.f32 0.0, %v2702
      %v2704 = vpop.f32.mrf.mxu0
      %v2705 = vpop.f32.mrf.mxu0
      %v2706 = vadd.f32 0.0, %v2705
      %v2707 = vpop.f32.mrf.mxu0
      %2708 = vmatprep.mubr.bf16.mxu0 0
      %2709 = vmatmul.mubr.bf16.gmra.mxu0 %v2611
      %v2710 = vpop.f32.mrf.mxu0
      %v2711 = vadd.f32 0.0, %v2710
      %v2712 = vpop.f32.mrf.mxu0
      %v2713 = vpop.f32.mrf.mxu0
      %v2714 = vadd.f32 0.0, %v2713
      %v2715 = vpop.f32.mrf.mxu0
      %2716 = vmatprep.mubr.bf16.mxu0 0
      %2717 = vmatmul.mubr.bf16.gmra.mxu0 %v2614
      %v2718 = vpop.f32.mrf.mxu0
      %v2719 = vadd.f32 0.0, %v2718
      %v2720 = vpop.f32.mrf.mxu0
      %v2721 = vpop.f32.mrf.mxu0
      %v2722 = vadd.f32 0.0, %v2721
      %v2723 = vpop.f32.mrf.mxu0
      %2724 = vmatprep.mubr.bf16.mxu0 0
      %2725 = vmatmul.mubr.bf16.gmra.mxu0 %v2617
      %v2726 = vpop.f32.mrf.mxu0
      %v2727 = vadd.f32 0.0, %v2726
      %v2728 = vpop.f32.mrf.mxu0
      %v2729 = vpop.f32.mrf.mxu0
      %v2730 = vadd.f32 0.0, %v2729
      %v2731 = vpop.f32.mrf.mxu0
      %2732 = vmatprep.mubr.bf16.mxu0 0
      %2733 = vmatmul.mubr.bf16.gmra.mxu0 %v2620
      %v2734 = vpop.f32.mrf.mxu0
      %v2735 = vadd.f32 0.0, %v2734
      %v2736 = vpop.f32.mrf.mxu0
      %v2737 = vpop.f32.mrf.mxu0
      %v2738 = vadd.f32 0.0, %v2737
      %v2739 = vpop.f32.mrf.mxu0
      %2740 = vmatprep.mubr.bf16.mxu0 0
      %2741 = vmatmul.mubr.bf16.gmra.mxu0 %v2623
      %v2742 = vpop.f32.mrf.mxu0
      %v2743 = vadd.f32 0.0, %v2742
      %v2744 = vpop.f32.mrf.mxu0
      %v2745 = vpop.f32.mrf.mxu0
      %v2746 = vadd.f32 0.0, %v2745
      %v2747 = vpop.f32.mrf.mxu0
      %2748 = vmatprep.mubr.bf16.mxu0 0
      %2749 = vmatmul.mubr.bf16.gmra.mxu0 %v2626
      %v2750 = vpop.f32.mrf.mxu0
      %v2751 = vadd.f32 0.0, %v2750
      %v2752 = vpop.f32.mrf.mxu0
      %v2753 = vpop.f32.mrf.mxu0
      %v2754 = vadd.f32 0.0, %v2753
      %v2755 = vpop.f32.mrf.mxu0
      %2756 = vmatprep.mubr.bf16.mxu0 0
      %2757 = vmatmul.mubr.bf16.gmra.mxu0 %v2629
      %v2758 = vpop.f32.mrf.mxu0
      %v2759 = vadd.f32 0.0, %v2758
      %v2760 = vpop.f32.mrf.mxu0
      %v2761 = vpop.f32.mrf.mxu0
      %v2762 = vadd.f32 0.0, %v2761
      %v2763 = vpop.f32.mrf.mxu0
      %2764 = vmatprep.mubr.bf16.mxu0 0
      %2765 = vmatmul.mubr.bf16.gmra.mxu0 %v2632
      %v2766 = vpop.f32.mrf.mxu0
      %v2767 = vadd.f32 0.0, %v2766
      %v2768 = vpop.f32.mrf.mxu0
      %v2769 = vpop.f32.mrf.mxu0
      %v2770 = vadd.f32 0.0, %v2769
      %v2771 = vpop.f32.mrf.mxu0
      %2772 = vmatprep.mubr.bf16.mxu0 0
      %2773 = vmatmul.mubr.bf16.gmra.mxu0 %v2635
      %v2774 = vpop.f32.mrf.mxu0
      %v2775 = vadd.f32 0.0, %v2774
      %v2776 = vpop.f32.mrf.mxu0
      %v2777 = vpop.f32.mrf.mxu0
      %v2778 = vadd.f32 0.0, %v2777
      %v2779 = vpop.f32.mrf.mxu0
      %2780 = vmatprep.mubr.bf16.mxu0 0
      %2781 = vmatmul.mubr.bf16.gmra.mxu0 %v2638
      %v2782 = vpop.f32.mrf.mxu0
      %v2783 = vadd.f32 0.0, %v2782
      %v2784 = vpop.f32.mrf.mxu0
      %v2785 = vpop.f32.mrf.mxu0
      %v2786 = vadd.f32 0.0, %v2785
      %v2787 = vpop.f32.mrf.mxu0
      %2788 = vmatprep.mubr.bf16.mxu0 0
      %2789 = vmatmul.mubr.bf16.gmra.mxu0 %v2641
      %v2790 = vpop.f32.mrf.mxu0
      %v2791 = vadd.f32 0.0, %v2790
      %v2792 = vpop.f32.mrf.mxu0
      %v2793 = vpop.f32.mrf.mxu0
      %v2794 = vadd.f32 0.0, %v2793
      %v2795 = vpop.f32.mrf.mxu0
      %2796 = vmatprep.mubr.bf16.mxu0 0
      %2797 = vmatmul.mubr.bf16.gmra.mxu0 %v2644
      %v2798 = vpop.f32.mrf.mxu0
      %v2799 = vadd.f32 0.0, %v2798
      %v2800 = vpop.f32.mrf.mxu0
      %v2801 = vpop.f32.mrf.mxu0
      %v2802 = vadd.f32 0.0, %v2801
      %v2803 = vpop.f32.mrf.mxu0
      %2804 = vmatprep.mubr.bf16.mxu0 0
      %2805 = vmatmul.mubr.bf16.gmra.mxu0 %v2647
      %v2806 = vpop.f32.mrf.mxu0
      %v2807 = vadd.f32 0.0, %v2806
      %v2808 = vpop.f32.mrf.mxu0
      %v2809 = vpop.f32.mrf.mxu0
      %v2810 = vadd.f32 0.0, %v2809
      %v2811 = vpop.f32.mrf.mxu0
      %2812 = vdwg.mxu0
      %2813 = vst.msk [vmem:[%s276] sm:$0xff] %vm2298, %v2687
      %2814 = vst.msk [vmem:[%s276 + $0x8] sm:$0xff] %vm2298, %v2690
      %2815 = vst.msk [vmem:[%s276 + $0x10] sm:$0xff] %vm2298, %v2695
      %2816 = vst.msk [vmem:[%s276 + $0x18] sm:$0xff] %vm2298, %v2698
      %2817 = vst.msk [vmem:[%s276 + $0x20] sm:$0xff] %vm2298, %v2703
      %2818 = vst.msk [vmem:[%s276 + $0x28] sm:$0xff] %vm2298, %v2706
      %2819 = vst.msk [vmem:[%s276 + $0x30] sm:$0xff] %vm2298, %v2711
      %2820 = vst.msk [vmem:[%s276 + $0x38] sm:$0xff] %vm2298, %v2714
      %2821 = vst.msk [vmem:[%s276 + $0x40] sm:$0xff] %vm2298, %v2719
      %2822 = vst.msk [vmem:[%s276 + $0x48] sm:$0xff] %vm2298, %v2722
      %2823 = vst.msk [vmem:[%s276 + $0x50] sm:$0xff] %vm2298, %v2727
      %2824 = vst.msk [vmem:[%s276 + $0x58] sm:$0xff] %vm2298, %v2730
      %2825 = vst.msk [vmem:[%s276 + $0x60] sm:$0xff] %vm2298, %v2735
      %2826 = vst.msk [vmem:[%s276 + $0x68] sm:$0xff] %vm2298, %v2738
      %2827 = vst.msk [vmem:[%s276 + $0x70] sm:$0xff] %vm2298, %v2743
      %2828 = vst.msk [vmem:[%s276 + $0x78] sm:$0xff] %vm2298, %v2746
      %2829 = vst.msk [vmem:[%s276 + $0x80] sm:$0xff] %vm2298, %v2751
      %2830 = vst.msk [vmem:[%s276 + $0x88] sm:$0xff] %vm2298, %v2754
      %2831 = vst.msk [vmem:[%s276 + $0x90] sm:$0xff] %vm2298, %v2759
      %2832 = vst.msk [vmem:[%s276 + $0x98] sm:$0xff] %vm2298, %v2762
      %2833 = vst.msk [vmem:[%s276 + $0xa0] sm:$0xff] %vm2298, %v2767
      %2834 = vst.msk [vmem:[%s276 + $0xa8] sm:$0xff] %vm2298, %v2770
      %2835 = vst.msk [vmem:[%s276 + $0xb0] sm:$0xff] %vm2298, %v2775
      %2836 = vst.msk [vmem:[%s276 + $0xb8] sm:$0xff] %vm2298, %v2778
      %2837 = vst.msk [vmem:[%s276 + $0xc0] sm:$0xff] %vm2298, %v2783
      %2838 = vst.msk [vmem:[%s276 + $0xc8] sm:$0xff] %vm2298, %v2786
      %2839 = vst.msk [vmem:[%s276 + $0xd0] sm:$0xff] %vm2298, %v2791
      %2840 = vst.msk [vmem:[%s276 + $0xd8] sm:$0xff] %vm2298, %v2794
      %2841 = vst.msk [vmem:[%s276 + $0xe0] sm:$0xff] %vm2298, %v2799
      %2842 = vst.msk [vmem:[%s276 + $0xe8] sm:$0xff] %vm2298, %v2802
      %2843 = vst.msk [vmem:[%s276 + $0xf0] sm:$0xff] %vm2298, %v2807
      %2844 = vst.msk [vmem:[%s276 + $0xf8] sm:$0xff] %vm2298, %v2810
      %v2845 = vsel %vm2298, %v2687, 0.0
      %v2846 = vsel %vm2298, %v2690, 0.0
      %v2847 = vadd.f32 %v2845, %v2846
      %v2848 = vsel %vm2298, %v2695, 0.0
      %v2849 = vadd.f32 %v2847, %v2848
      %v2850 = vsel %vm2298, %v2698, 0.0
      %v2851 = vadd.f32 %v2849, %v2850
      %v2852 = vsel %vm2298, %v2703, 0.0
      %v2853 = vadd.f32 %v2851, %v2852
      %v2854 = vsel %vm2298, %v2706, 0.0
      %v2855 = vadd.f32 %v2853, %v2854
      %v2856 = vsel %vm2298, %v2711, 0.0
      %v2857 = vadd.f32 %v2855, %v2856
      %v2858 = vsel %vm2298, %v2714, 0.0
      %v2859 = vadd.f32 %v2857, %v2858
      %v2860 = vsel %vm2298, %v2719, 0.0
      %v2861 = vadd.f32 %v2859, %v2860
      %v2862 = vsel %vm2298, %v2722, 0.0
      %v2863 = vadd.f32 %v2861, %v2862
      %v2864 = vsel %vm2298, %v2727, 0.0
      %v2865 = vadd.f32 %v2863, %v2864
      %v2866 = vsel %vm2298, %v2730, 0.0
      %v2867 = vadd.f32 %v2865, %v2866
      %v2868 = vsel %vm2298, %v2735, 0.0
      %v2869 = vadd.f32 %v2867, %v2868
      %v2870 = vsel %vm2298, %v2738, 0.0
      %v2871 = vadd.f32 %v2869, %v2870
      %v2872 = vsel %vm2298, %v2743, 0.0
      %v2873 = vadd.f32 %v2871, %v2872
      %v2874 = vsel %vm2298, %v2746, 0.0
      %v2875 = vadd.f32 %v2873, %v2874
      %v2876 = vsel %vm2298, %v2751, 0.0
      %v2877 = vadd.f32 %v2875, %v2876
      %v2878 = vsel %vm2298, %v2754, 0.0
      %v2879 = vadd.f32 %v2877, %v2878
      %v2880 = vsel %vm2298, %v2759, 0.0
      %v2881 = vadd.f32 %v2879, %v2880
      %v2882 = vsel %vm2298, %v2762, 0.0
      %v2883 = vadd.f32 %v2881, %v2882
      %v2884 = vsel %vm2298, %v2767, 0.0
      %v2885 = vadd.f32 %v2883, %v2884
      %v2886 = vsel %vm2298, %v2770, 0.0
      %v2887 = vadd.f32 %v2885, %v2886
      %v2888 = vsel %vm2298, %v2775, 0.0
      %v2889 = vadd.f32 %v2887, %v2888
      %v2890 = vsel %vm2298, %v2778, 0.0
      %v2891 = vadd.f32 %v2889, %v2890
      %v2892 = vsel %vm2298, %v2783, 0.0
      %v2893 = vadd.f32 %v2891, %v2892
      %v2894 = vsel %vm2298, %v2786, 0.0
      %v2895 = vadd.f32 %v2893, %v2894
      %v2896 = vsel %vm2298, %v2791, 0.0
      %v2897 = vadd.f32 %v2895, %v2896
      %v2898 = vsel %vm2298, %v2794, 0.0
      %v2899 = vadd.f32 %v2897, %v2898
      %v2900 = vsel %vm2298, %v2799, 0.0
      %v2901 = vadd.f32 %v2899, %v2900
      %v2902 = vsel %vm2298, %v2802, 0.0
      %v2903 = vadd.f32 %v2901, %v2902
      %v2904 = vsel %vm2298, %v2807, 0.0
      %v2905 = vadd.f32 %v2903, %v2904
      %v2906 = vsel %vm2298, %v2810, 0.0
      %v2907 = vadd.f32 %v2905, %v2906
      %v2908 = vrot.slane %v2907, 4
      %v2909 = vadd.f32 %v2907, %v2908
      %v2910 = vrot.slane %v2909, 2
      %v2911 = vadd.f32 %v2909, %v2910
      %v2912 = vrot.slane %v2911, 1
      %v2913 = vadd.f32 %v2911, %v2912
      %2914 = vst.msk [vmem:[%s284] sm:$0x1] %vm2400, %v2913
      %v2915 = vmul.f32 %v2687, %v2687
      %v2916 = vmul.f32 %v2690, %v2690
      %v2917 = vmul.f32 %v2695, %v2695
      %v2918 = vmul.f32 %v2698, %v2698
      %v2919 = vmul.f32 %v2703, %v2703
      %v2920 = vmul.f32 %v2706, %v2706
      %v2921 = vmul.f32 %v2711, %v2711
      %v2922 = vmul.f32 %v2714, %v2714
      %v2923 = vmul.f32 %v2719, %v2719
      %v2924 = vmul.f32 %v2722, %v2722
      %v2925 = vmul.f32 %v2727, %v2727
      %v2926 = vmul.f32 %v2730, %v2730
      %v2927 = vmul.f32 %v2735, %v2735
      %v2928 = vmul.f32 %v2738, %v2738
      %v2929 = vmul.f32 %v2743, %v2743
      %v2930 = vmul.f32 %v2746, %v2746
      %v2931 = vmul.f32 %v2751, %v2751
      %v2932 = vmul.f32 %v2754, %v2754
      %v2933 = vmul.f32 %v2759, %v2759
      %v2934 = vmul.f32 %v2762, %v2762
      %v2935 = vmul.f32 %v2767, %v2767
      %v2936 = vmul.f32 %v2770, %v2770
      %v2937 = vmul.f32 %v2775, %v2775
      %v2938 = vmul.f32 %v2778, %v2778
      %v2939 = vmul.f32 %v2783, %v2783
      %v2940 = vmul.f32 %v2786, %v2786
      %v2941 = vmul.f32 %v2791, %v2791
      %v2942 = vmul.f32 %v2794, %v2794
      %v2943 = vmul.f32 %v2799, %v2799
      %v2944 = vmul.f32 %v2802, %v2802
      %v2945 = vmul.f32 %v2807, %v2807
      %v2946 = vmul.f32 %v2810, %v2810
      %v2947 = vsel %vm2298, %v2915, 0.0
      %v2948 = vsel %vm2298, %v2916, 0.0
      %v2949 = vadd.f32 %v2947, %v2948
      %v2950 = vsel %vm2298, %v2917, 0.0
      %v2951 = vadd.f32 %v2949, %v2950
      %v2952 = vsel %vm2298, %v2918, 0.0
      %v2953 = vadd.f32 %v2951, %v2952
      %v2954 = vsel %vm2298, %v2919, 0.0
      %v2955 = vadd.f32 %v2953, %v2954
      %v2956 = vsel %vm2298, %v2920, 0.0
      %v2957 = vadd.f32 %v2955, %v2956
      %v2958 = vsel %vm2298, %v2921, 0.0
      %v2959 = vadd.f32 %v2957, %v2958
      %v2960 = vsel %vm2298, %v2922, 0.0
      %v2961 = vadd.f32 %v2959, %v2960
      %v2962 = vsel %vm2298, %v2923, 0.0
      %v2963 = vadd.f32 %v2961, %v2962
      %v2964 = vsel %vm2298, %v2924, 0.0
      %v2965 = vadd.f32 %v2963, %v2964
      %v2966 = vsel %vm2298, %v2925, 0.0
      %v2967 = vadd.f32 %v2965, %v2966
      %v2968 = vsel %vm2298, %v2926, 0.0
      %v2969 = vadd.f32 %v2967, %v2968
      %v2970 = vsel %vm2298, %v2927, 0.0
      %v2971 = vadd.f32 %v2969, %v2970
      %v2972 = vsel %vm2298, %v2928, 0.0
      %v2973 = vadd.f32 %v2971, %v2972
      %v2974 = vsel %vm2298, %v2929, 0.0
      %v2975 = vadd.f32 %v2973, %v2974
      %v2976 = vsel %vm2298, %v2930, 0.0
      %v2977 = vadd.f32 %v2975, %v2976
      %v2978 = vsel %vm2298, %v2931, 0.0
      %v2979 = vadd.f32 %v2977, %v2978
      %v2980 = vsel %vm2298, %v2932, 0.0
      %v2981 = vadd.f32 %v2979, %v2980
      %v2982 = vsel %vm2298, %v2933, 0.0
      %v2983 = vadd.f32 %v2981, %v2982
      %v2984 = vsel %vm2298, %v2934, 0.0
      %v2985 = vadd.f32 %v2983, %v2984
      %v2986 = vsel %vm2298, %v2935, 0.0
      %v2987 = vadd.f32 %v2985, %v2986
      %v2988 = vsel %vm2298, %v2936, 0.0
      %v2989 = vadd.f32 %v2987, %v2988
      %v2990 = vsel %vm2298, %v2937, 0.0
      %v2991 = vadd.f32 %v2989, %v2990
      %v2992 = vsel %vm2298, %v2938, 0.0
      %v2993 = vadd.f32 %v2991, %v2992
      %v2994 = vsel %vm2298, %v2939, 0.0
      %v2995 = vadd.f32 %v2993, %v2994
      %v2996 = vsel %vm2298, %v2940, 0.0
      %v2997 = vadd.f32 %v2995, %v2996
      %v2998 = vsel %vm2298, %v2941, 0.0
      %v2999 = vadd.f32 %v2997, %v2998
      %v3000 = vsel %vm2298, %v2942, 0.0
      %v3001 = vadd.f32 %v2999, %v3000
      %v3002 = vsel %vm2298, %v2943, 0.0
      %v3003 = vadd.f32 %v3001, %v3002
      %v3004 = vsel %vm2298, %v2944, 0.0
      %v3005 = vadd.f32 %v3003, %v3004
      %v3006 = vsel %vm2298, %v2945, 0.0
      %v3007 = vadd.f32 %v3005, %v3006
      %v3008 = vsel %vm2298, %v2946, 0.0
      %v3009 = vadd.f32 %v3007, %v3008
      %v3010 = vrot.slane %v3009, 4
      %v3011 = vadd.f32 %v3009, %v3010
      %v3012 = vrot.slane %v3011, 2
      %v3013 = vadd.f32 %v3011, %v3012
      %v3014 = vrot.slane %v3013, 1
      %v3015 = vadd.f32 %v3013, %v3014
      %3016 = vst.msk [vmem:[%s284 + $0x1] sm:$0x1] %vm2400, %v3015
      %p3017 = scmp.lt.s32.totalorder %s18, 1
      %s3018 = scalar_select %p3017, %s18, 1
      %s3019 = smul.addr %s3018, 32
      %s3020 = smul.addr %s3019, 8
      %s3021 = scalar_lea.vmem %s3, %s3020
      %p3022 = scmp.lt.s32.totalorder %s18, 1
      %s3023 = scalar_select %p3022, %s18, 1
      %s3024 = smul.addr %s3023, 32
      %s3025 = smul.addr %s3024, 8
      %s3026 = scalar_lea.vmem %s4, %s3025
      %p3027 = scmp.lt.s32.totalorder %s18, 1
      %s3028 = scalar_select %p3027, %s18, 1
      %s3029 = smul.addr %s3028, 2
      %s3030 = scalar_lea.vmem %s5, %s3029
      %p3031 = scmp.lt.s32.totalorder %s18, 1
      %s3032 = scalar_select %p3031, %s18, 1
      %s3033 = smul.addr %s3032, 2
      %s3034 = scalar_lea.vmem %s6, %s3033
      // Predicated region
      $region33: #{residual_block.3} parent=31 // pred_check
        %p3035 = pneg %p104
      $region34: #{residual_block.3} parent=31 // pred_check_branch
        %3037 = sbr.rel (%p3035) target = $region36
      $region35: #{residual_block.3} parent=31 // pred_region
        _
      $region36: #{residual_block.3} parent=31 // pred_fallthru
        _
      // Predicated region
      $region37: #{residual_block.3} parent=31 // pred_check
        %p3038 = pneg %p130
      $region38: #{residual_block.3} parent=31 // pred_check_branch
        %3040 = sbr.rel (%p3038) target = $region40
      $region39: #{residual_block.3} parent=31 // pred_region
        _
      $region40: #{residual_block.3} parent=31 // pred_fallthru
        _
      // Predicated region
      $region41: #{residual_block.3} parent=31 // pred_check
        %p3041 = pneg %p156
      $region42: #{residual_block.3} parent=31 // pred_check_branch
        %3043 = sbr.rel (%p3041) target = $region44
      $region43: #{residual_block.3} parent=31 // pred_region
        _
      $region44: #{residual_block.3} parent=31 // pred_fallthru
        _
      // Predicated region
      $region45: #{residual_block.3} parent=31 // pred_check
        %p3044 = pneg %p182
      $region46: #{residual_block.3} parent=31 // pred_check_branch
        %3046 = sbr.rel (%p3044) target = $region48
      $region47: #{residual_block.3} parent=31 // pred_region
        _
      $region48: #{residual_block.3} parent=31 // pred_fallthru
        _
    $region32: #{residual_block.3} parent=5 // pred_fallthru
      _
    %p3047 = scmp.le.s32.totalorder 2, %s13
    // Predicated region
    $region49: #{residual_block.3} parent=5 // pred_check
      %p3048 = pneg %p3047
    $region50: #{residual_block.3} parent=5 // pred_check_branch
      %3050 = sbr.rel (%p3048) target = $region52
    $region51: #{residual_block.3} parent=5 // pred_region
      %s3051 = ssub.s32 %s13, 2
      // Predicated region
      $region53: #{residual_block.3} parent=51 // pred_check
        %p3052 = pneg %p110
      $region54: #{residual_block.3} parent=51 // pred_check_branch
        %3054 = sbr.rel (%p3052) target = $region56
      $region55: #{residual_block.3} parent=51 // pred_region
        %p3055 = scmp.lt.s32.totalorder %s19, 1
        %s3056 = scalar_select %p3055, %s19, 1
        %s3057 = smul.addr %s3056, 32
        %s3058 = smul.addr %s3057, 8
        %s3059 = scalar_lea.vmem %s3, %s3058
      $region56: #{residual_block.3} parent=51 // pred_fallthru
        _
      // Predicated region
      $region57: #{residual_block.3} parent=51 // pred_check
        %p3060 = pneg %p136
      $region58: #{residual_block.3} parent=51 // pred_check_branch
        %3062 = sbr.rel (%p3060) target = $region60
      $region59: #{residual_block.3} parent=51 // pred_region
        %p3063 = scmp.lt.s32.totalorder %s19, 1
        %s3064 = scalar_select %p3063, %s19, 1
        %s3065 = smul.addr %s3064, 32
        %s3066 = smul.addr %s3065, 8
        %s3067 = scalar_lea.vmem %s4, %s3066
      $region60: #{residual_block.3} parent=51 // pred_fallthru
        _
      // Predicated region
      $region61: #{residual_block.3} parent=51 // pred_check
        %p3068 = pneg %p162
      $region62: #{residual_block.3} parent=51 // pred_check_branch
        %3070 = sbr.rel (%p3068) target = $region64
      $region63: #{residual_block.3} parent=51 // pred_region
        %p3071 = scmp.lt.s32.totalorder %s19, 1
        %s3072 = scalar_select %p3071, %s19, 1
        %s3073 = smul.addr %s3072, 2
        %s3074 = scalar_lea.vmem %s5, %s3073
      $region64: #{residual_block.3} parent=51 // pred_fallthru
        _
      // Predicated region
      $region65: #{residual_block.3} parent=51 // pred_check
        %p3075 = pneg %p188
      $region66: #{residual_block.3} parent=51 // pred_check_branch
        %3077 = sbr.rel (%p3075) target = $region68
      $region67: #{residual_block.3} parent=51 // pred_region
        %p3078 = scmp.lt.s32.totalorder %s19, 1
        %s3079 = scalar_select %p3078, %s19, 1
        %s3080 = smul.addr %s3079, 2
        %s3081 = scalar_lea.vmem %s6, %s3080
      $region68: #{residual_block.3} parent=51 // pred_fallthru
        _
    $region52: #{residual_block.3} parent=5 // pred_fallthru
      _
  $region6: #{residual_block.3} parent=0 // loop_footer
    %s17 = sadd.s32 1, %s13
  $region7: #{residual_block.3} parent=0 // loop_footer_branch
    %12 = sbr.rel target = $region3
  $region8: #{residual_block.3} parent=0 // loop_exit
    _

</llo_original>
